<compile_context>
chip_gen: v7x
topology: tpu7x:2x2x1
jax: 0.10.0
libtpu: 0.0.40
codegen_flags: <defaults>
</compile_context>

<pallas_src>
import jax
import jax.numpy as jnp
from jax.experimental import pallas as pl
from jax.experimental.pallas import tpu as pltpu

LAYER_DIMS = [48 * 48 * 1, 1536, 512, 128, 32, 7]  # matches SimpleDNN._linear


def _mlp_softmax_kernel(x_ref,
                        w1q_ref, s1_ref, b1_ref,
                        w2q_ref, s2_ref, b2_ref,
                        w3_ref, b3_ref,
                        w4_ref, b4_ref,
                        w5_ref, b5_ref,
                        out_ref):
    """Fused: 4x (Linear + ReLU) -> Linear -> Softmax(dim=1) for one batch tile."""
    x = x_ref[...]

    # Layer 1 (int8 weights): q -> bf16 is exact; per-output-channel scale is
    # applied to the f32 MXU result (it factors out of the contraction).
    h = jnp.dot(x, w1q_ref[...].astype(jnp.bfloat16),
                preferred_element_type=jnp.float32)
    h = jnp.maximum(h * s1_ref[...] + b1_ref[...], 0.0)

    # Layer 2 (int8 weights).
    h = jnp.dot(h.astype(jnp.bfloat16), w2q_ref[...].astype(jnp.bfloat16),
                preferred_element_type=jnp.float32)
    h = jnp.maximum(h * s2_ref[...] + b2_ref[...], 0.0)

    # Layers 3-4 (bf16 weights, tiny).
    h = jnp.maximum(
        jnp.dot(h.astype(jnp.bfloat16), w3_ref[...],
                preferred_element_type=jnp.float32) + b3_ref[...], 0.0)
    h = jnp.maximum(
        jnp.dot(h.astype(jnp.bfloat16), w4_ref[...],
                preferred_element_type=jnp.float32) + b4_ref[...], 0.0)

    # Output layer + numerically-stable softmax over dim=1 (class axis).
    logits = jnp.dot(h.astype(jnp.bfloat16), w5_ref[...],
                     preferred_element_type=jnp.float32) + b5_ref[...]
    m = jnp.max(logits, axis=1, keepdims=True)
    e = jnp.exp(logits - m)
    # Exact divide: denominator is only (tb, 1) and the VPU has total slack.
    out_ref[...] = e / jnp.sum(e, axis=1, keepdims=True)


def _vmem_limit_bytes():
    """Generation-aware scoped-VMEM cap (v7x has only 64 MiB per TensorCore)."""
    cap = 64 * 1024 * 1024
    try:
        info = pltpu.get_tpu_info()
        cap = int(getattr(info, "vmem_capacity_bytes", cap))
    except Exception:
        pass
    return int(min(cap // 2, 32 * 1024 * 1024))


def _quantize_per_channel_int8(w):
    """Symmetric per-output-channel int8 quantization of a (in, out) weight."""
    absmax = jnp.max(jnp.abs(w), axis=0, keepdims=True)          # (1, out)
    scale = jnp.maximum(absmax, 1e-8) / 127.0
    q = jnp.clip(jnp.round(w / scale), -127.0, 127.0).astype(jnp.int8)
    return q, scale.astype(jnp.float32)


def init_params(key):
    """Deterministic init mimicking torch.nn.Linear: U(-1/sqrt(fan_in), +1/sqrt(fan_in)).

    W1/W2 are stored int8 + per-output-channel f32 scale (they dominate HBM
    traffic); W3..W5 are bf16; biases are f32.  Returns a flat tuple:
      (w1q, s1, b1, w2q, s2, b2, w3, b3, w4, b4, w5, b5)
    """
    ws, bs = [], []
    for fan_in, fan_out in zip(LAYER_DIMS[:-1], LAYER_DIMS[1:]):
        key, wk, bk = jax.random.split(key, 3)
        bound = 1.0 / (fan_in ** 0.5)
        ws.append(jax.random.uniform(wk, (fan_in, fan_out), jnp.float32, -bound, bound))
        bs.append(jax.random.uniform(bk, (1, fan_out), jnp.float32, -bound, bound))

    w1q, s1 = _quantize_per_channel_int8(ws[0])
    w2q, s2 = _quantize_per_channel_int8(ws[1])
    return (w1q, s1, bs[0],
            w2q, s2, bs[1],
            ws[2].astype(jnp.bfloat16), bs[2],
            ws[3].astype(jnp.bfloat16), bs[3],
            ws[4].astype(jnp.bfloat16), bs[4])


@jax.jit
def simple_dnn_forward(x, params):
    batch = x.shape[0]
    # glue: same as x.view(batch_size, -1) on an NCHW tensor
    x_flat = x.reshape(batch, -1).astype(jnp.bfloat16)
    assert x_flat.shape[1] == LAYER_DIMS[0]

    # Batch tile: full batch when small; 128-row tiles once the batch is large
    # enough that the "parallel" axis can shard across v7x's two TensorCores
    # (and map cleanly to v5e's 128x128 MXU).
    tb = batch
    if batch >= 256 and batch % 128 == 0:
        tb = 128
    grid = (batch // tb,)

    (w1q, s1, b1, w2q, s2, b2, w3, b3, w4, b4, w5, b5) = params

    def _const(shape):
        # Whole-array block with a constant block index: fetched once per call
        # and resident in VMEM across all batch tiles (no re-streaming of W1).
        return pl.BlockSpec(shape, lambda b: (0,) * len(shape))

    in_specs = [
        pl.BlockSpec((tb, LAYER_DIMS[0]), lambda b: (b, 0)),   # x: tiled on batch
        _const(w1q.shape), _const(s1.shape), _const(b1.shape),
        _const(w2q.shape), _const(s2.shape), _const(b2.shape),
        _const(w3.shape), _const(b3.shape),
        _const(w4.shape), _const(b4.shape),
        _const(w5.shape), _const(b5.shape),
    ]
    out_specs = pl.BlockSpec((tb, LAYER_DIMS[-1]), lambda b: (b, 0))

    return pl.pallas_call(
        _mlp_softmax_kernel,
        grid=grid,
        in_specs=in_specs,
        out_specs=out_specs,
        out_shape=jax.ShapeDtypeStruct((batch, LAYER_DIMS[-1]), jnp.float32),
        compiler_params=pltpu.CompilerParams(
            dimension_semantics=("parallel",),
            vmem_limit_bytes=_vmem_limit_bytes(),
        ),
    )(x_flat, w1q, s1, b1, w2q, s2, b2, w3, b3, w4, b4, w5, b5)


def _reference_forward(x, params):
    """Pure-JAX reference using the exact same quantized weights / math order."""
    (w1q, s1, b1, w2q, s2, b2, w3, b3, w4, b4, w5, b5) = params
    h = x.reshape(x.shape[0], -1).astype(jnp.bfloat16)
    h = jnp.dot(h, w1q.astype(jnp.bfloat16),
                preferred_element_type=jnp.float32) * s1 + b1
    h = jnp.maximum(h, 0.0).astype(jnp.bfloat16)
    h = jnp.dot(h, w2q.astype(jnp.bfloat16),
                preferred_element_type=jnp.float32) * s2 + b2
    h = jnp.maximum(h, 0.0).astype(jnp.bfloat16)
    h = jnp.maximum(jnp.dot(h, w3, preferred_element_type=jnp.float32) + b3,
                    0.0).astype(jnp.bfloat16)
    h = jnp.maximum(jnp.dot(h, w4, preferred_element_type=jnp.float32) + b4,
                    0.0).astype(jnp.bfloat16)
    logits = jnp.dot(h, w5, preferred_element_type=jnp.float32) + b5
    return jax.nn.softmax(logits, axis=1)


if __name__ == "__main__":
    key = jax.random.PRNGKey(0)
    pkey, xkey = jax.random.split(key)
    params = init_params(pkey)

    # Input consistent with the module: 48x48 single-channel images, batch=2.
    x = jax.random.normal(xkey, (2, 1, 48, 48), dtype=jnp.float32)

    out = simple_dnn_forward(x, params)
    out = jax.block_until_ready(out)

    ref = _reference_forward(x, params)

    assert out.shape == (2, 7), out.shape
    assert bool(jnp.all(jnp.isfinite(out)))
    # Exact divide in the kernel -> softmax rows sum to 1 to f32 precision.
    assert bool(jnp.allclose(jnp.sum(out, axis=1), 1.0, atol=1e-5))
    assert bool(jnp.allclose(out, ref, atol=1e-3)), float(jnp.max(jnp.abs(out - ref)))

    print("KERNEL_OK")
</pallas_src>

<mosaic_0001>
module attributes {stable_mosaic.version = 11 : i64} {
  func.func @_mlp_softmax_kernel(%arg0: i32, %arg1: memref<2x2304xbf16, #tpu.memory_space<vmem>>, %arg2: memref<2304x1536xi8, #tpu.memory_space<vmem>>, %arg3: memref<1x1536xf32, #tpu.memory_space<vmem>>, %arg4: memref<1x1536xf32, #tpu.memory_space<vmem>>, %arg5: memref<1536x512xi8, #tpu.memory_space<vmem>>, %arg6: memref<1x512xf32, #tpu.memory_space<vmem>>, %arg7: memref<1x512xf32, #tpu.memory_space<vmem>>, %arg8: memref<512x128xbf16, #tpu.memory_space<vmem>>, %arg9: memref<1x128xf32, #tpu.memory_space<vmem>>, %arg10: memref<128x32xbf16, #tpu.memory_space<vmem>>, %arg11: memref<1x32xf32, #tpu.memory_space<vmem>>, %arg12: memref<32x7xbf16, #tpu.memory_space<vmem>>, %arg13: memref<1x7xf32, #tpu.memory_space<vmem>>, %arg14: memref<2x7xf32, #tpu.memory_space<vmem>>) attributes {dimension_semantics = [#tpu.dimension_semantics<parallel>], iteration_bounds = array<i64: 1>, scalar_prefetch = 0 : i64, scratch_operands = 0 : i64, tpu.core_type = #tpu.core_type<tc>, window_params = [{transform_indices = @transform_0, window_bounds = array<i64: 2, 2304>}, {pipeline_mode = #tpu.pipeline_mode<synchronous>, transform_indices = @transform_1, window_bounds = array<i64: 2304, 1536>}, {pipeline_mode = #tpu.pipeline_mode<synchronous>, transform_indices = @transform_2, window_bounds = array<i64: 1, 1536>}, {pipeline_mode = #tpu.pipeline_mode<synchronous>, transform_indices = @transform_3, window_bounds = array<i64: 1, 1536>}, {pipeline_mode = #tpu.pipeline_mode<synchronous>, transform_indices = @transform_4, window_bounds = array<i64: 1536, 512>}, {pipeline_mode = #tpu.pipeline_mode<synchronous>, transform_indices = @transform_5, window_bounds = array<i64: 1, 512>}, {pipeline_mode = #tpu.pipeline_mode<synchronous>, transform_indices = @transform_6, window_bounds = array<i64: 1, 512>}, {pipeline_mode = #tpu.pipeline_mode<synchronous>, transform_indices = @transform_7, window_bounds = array<i64: 512, 128>}, {pipeline_mode = #tpu.pipeline_mode<synchronous>, transform_indices = @transform_8, window_bounds = array<i64: 1, 128>}, {pipeline_mode = #tpu.pipeline_mode<synchronous>, transform_indices = @transform_9, window_bounds = array<i64: 128, 32>}, {pipeline_mode = #tpu.pipeline_mode<synchronous>, transform_indices = @transform_10, window_bounds = array<i64: 1, 32>}, {pipeline_mode = #tpu.pipeline_mode<synchronous>, transform_indices = @transform_11, window_bounds = array<i64: 32, 7>}, {pipeline_mode = #tpu.pipeline_mode<synchronous>, transform_indices = @transform_12, window_bounds = array<i64: 1, 7>}, {transform_indices = @transform_13, window_bounds = array<i64: 2, 7>}]} {
    %c0 = arith.constant 0 : index
    %c0_0 = arith.constant 0 : index
    %0 = vector.load %arg1[%c0, %c0_0] : memref<2x2304xbf16, #tpu.memory_space<vmem>>, vector<2x2304xbf16>
    %c0_1 = arith.constant 0 : index
    %c0_2 = arith.constant 0 : index
    %1 = vector.load %arg2[%c0_1, %c0_2] : memref<2304x1536xi8, #tpu.memory_space<vmem>>, vector<2304x1536xi8>
    %2 = arith.sitofp %1 : vector<2304x1536xi8> to vector<2304x1536xbf16>
    %cst = arith.constant dense<0.000000e+00> : vector<2x1536xf32>
    %3 = tpu.matmul %0, %2, %cst {dimension_numbers = #tpu.dot_dimension_numbers<[1], [0], [0], [1], [0, 0, 1, 1], [], []>} : vector<2x2304xbf16>, vector<2304x1536xbf16>, vector<2x1536xf32> -> vector<2x1536xf32>
    %c0_3 = arith.constant 0 : index
    %c0_4 = arith.constant 0 : index
    %4 = vector.load %arg3[%c0_3, %c0_4] : memref<1x1536xf32, #tpu.memory_space<vmem>>, vector<1x1536xf32>
    %5 = vector.broadcast %4 : vector<1x1536xf32> to vector<2x1536xf32>
    %6 = arith.mulf %3, %5 : vector<2x1536xf32>
    %c0_5 = arith.constant 0 : index
    %c0_6 = arith.constant 0 : index
    %7 = vector.load %arg4[%c0_5, %c0_6] : memref<1x1536xf32, #tpu.memory_space<vmem>>, vector<1x1536xf32>
    %8 = vector.broadcast %7 : vector<1x1536xf32> to vector<2x1536xf32>
    %9 = arith.addf %6, %8 : vector<2x1536xf32>
    %cst_7 = arith.constant 0.000000e+00 : f32
    %10 = vector.broadcast %cst_7 : f32 to vector<2x1536xf32>
    %11 = arith.maximumf %9, %10 : vector<2x1536xf32>
    %12 = arith.truncf %11 : vector<2x1536xf32> to vector<2x1536xbf16>
    %c0_8 = arith.constant 0 : index
    %c0_9 = arith.constant 0 : index
    %13 = vector.load %arg5[%c0_8, %c0_9] : memref<1536x512xi8, #tpu.memory_space<vmem>>, vector<1536x512xi8>
    %14 = arith.sitofp %13 : vector<1536x512xi8> to vector<1536x512xbf16>
    %cst_10 = arith.constant dense<0.000000e+00> : vector<2x512xf32>
    %15 = tpu.matmul %12, %14, %cst_10 {dimension_numbers = #tpu.dot_dimension_numbers<[1], [0], [0], [1], [0, 0, 1, 1], [], []>} : vector<2x1536xbf16>, vector<1536x512xbf16>, vector<2x512xf32> -> vector<2x512xf32>
    %c0_11 = arith.constant 0 : index
    %c0_12 = arith.constant 0 : index
    %16 = vector.load %arg6[%c0_11, %c0_12] : memref<1x512xf32, #tpu.memory_space<vmem>>, vector<1x512xf32>
    %17 = vector.broadcast %16 : vector<1x512xf32> to vector<2x512xf32>
    %18 = arith.mulf %15, %17 : vector<2x512xf32>
    %c0_13 = arith.constant 0 : index
    %c0_14 = arith.constant 0 : index
    %19 = vector.load %arg7[%c0_13, %c0_14] : memref<1x512xf32, #tpu.memory_space<vmem>>, vector<1x512xf32>
    %20 = vector.broadcast %19 : vector<1x512xf32> to vector<2x512xf32>
    %21 = arith.addf %18, %20 : vector<2x512xf32>
    %cst_15 = arith.constant 0.000000e+00 : f32
    %22 = vector.broadcast %cst_15 : f32 to vector<2x512xf32>
    %23 = arith.maximumf %21, %22 : vector<2x512xf32>
    %24 = arith.truncf %23 : vector<2x512xf32> to vector<2x512xbf16>
    %c0_16 = arith.constant 0 : index
    %c0_17 = arith.constant 0 : index
    %25 = vector.load %arg8[%c0_16, %c0_17] : memref<512x128xbf16, #tpu.memory_space<vmem>>, vector<512x128xbf16>
    %cst_18 = arith.constant dense<0.000000e+00> : vector<2x128xf32>
    %26 = tpu.matmul %24, %25, %cst_18 {dimension_numbers = #tpu.dot_dimension_numbers<[1], [0], [0], [1], [0, 0, 1, 1], [], []>} : vector<2x512xbf16>, vector<512x128xbf16>, vector<2x128xf32> -> vector<2x128xf32>
    %c0_19 = arith.constant 0 : index
    %c0_20 = arith.constant 0 : index
    %27 = vector.load %arg9[%c0_19, %c0_20] : memref<1x128xf32, #tpu.memory_space<vmem>>, vector<1x128xf32>
    %28 = vector.broadcast %27 : vector<1x128xf32> to vector<2x128xf32>
    %29 = arith.addf %26, %28 : vector<2x128xf32>
    %cst_21 = arith.constant 0.000000e+00 : f32
    %30 = vector.broadcast %cst_21 : f32 to vector<2x128xf32>
    %31 = arith.maximumf %29, %30 : vector<2x128xf32>
    %32 = arith.truncf %31 : vector<2x128xf32> to vector<2x128xbf16>
    %c0_22 = arith.constant 0 : index
    %c0_23 = arith.constant 0 : index
    %33 = vector.load %arg10[%c0_22, %c0_23] : memref<128x32xbf16, #tpu.memory_space<vmem>>, vector<128x32xbf16>
    %cst_24 = arith.constant dense<0.000000e+00> : vector<2x32xf32>
    %34 = tpu.matmul %32, %33, %cst_24 {dimension_numbers = #tpu.dot_dimension_numbers<[1], [0], [0], [1], [0, 0, 1, 1], [], []>} : vector<2x128xbf16>, vector<128x32xbf16>, vector<2x32xf32> -> vector<2x32xf32>
    %c0_25 = arith.constant 0 : index
    %c0_26 = arith.constant 0 : index
    %35 = vector.load %arg11[%c0_25, %c0_26] : memref<1x32xf32, #tpu.memory_space<vmem>>, vector<1x32xf32>
    %36 = vector.broadcast %35 : vector<1x32xf32> to vector<2x32xf32>
    %37 = arith.addf %34, %36 : vector<2x32xf32>
    %cst_27 = arith.constant 0.000000e+00 : f32
    %38 = vector.broadcast %cst_27 : f32 to vector<2x32xf32>
    %39 = arith.maximumf %37, %38 : vector<2x32xf32>
    %40 = arith.truncf %39 : vector<2x32xf32> to vector<2x32xbf16>
    %c0_28 = arith.constant 0 : index
    %c0_29 = arith.constant 0 : index
    %41 = vector.load %arg12[%c0_28, %c0_29] : memref<32x7xbf16, #tpu.memory_space<vmem>>, vector<32x7xbf16>
    %cst_30 = arith.constant dense<0.000000e+00> : vector<2x7xf32>
    %42 = tpu.matmul %40, %41, %cst_30 {dimension_numbers = #tpu.dot_dimension_numbers<[1], [0], [0], [1], [0, 0, 1, 1], [], []>} : vector<2x32xbf16>, vector<32x7xbf16>, vector<2x7xf32> -> vector<2x7xf32>
    %c0_31 = arith.constant 0 : index
    %c0_32 = arith.constant 0 : index
    %43 = vector.load %arg13[%c0_31, %c0_32] : memref<1x7xf32, #tpu.memory_space<vmem>>, vector<1x7xf32>
    %44 = vector.broadcast %43 : vector<1x7xf32> to vector<2x7xf32>
    %45 = arith.addf %42, %44 : vector<2x7xf32>
    %cst_33 = arith.constant dense<0xFF800000> : vector<2xf32>
    %46 = vector.multi_reduction <maximumf>, %45, %cst_33 [1] : vector<2x7xf32> to vector<2xf32>
    %47 = vector.shape_cast %46 : vector<2xf32> to vector<2x1xf32>
    %48 = vector.broadcast %47 : vector<2x1xf32> to vector<2x7xf32>
    %49 = arith.subf %45, %48 : vector<2x7xf32>
    %50 = math.exp %49 : vector<2x7xf32>
    %cst_34 = arith.constant dense<0.000000e+00> : vector<2xf32>
    %51 = vector.multi_reduction <add>, %50, %cst_34 [1] : vector<2x7xf32> to vector<2xf32>
    %52 = vector.shape_cast %51 : vector<2xf32> to vector<2x1xf32>
    %53 = vector.broadcast %52 : vector<2x1xf32> to vector<2x7xf32>
    %54 = arith.divf %50, %53 : vector<2x7xf32>
    %c0_35 = arith.constant 0 : index
    %c0_36 = arith.constant 0 : index
    %55 = vector.load %arg14[%c0_35, %c0_36] : memref<2x7xf32, #tpu.memory_space<vmem>>, vector<2x7xf32>
    tpu.vector_store %arg14[%c0_35, %c0_36], %54 {strides = array<i32>} : memref<2x7xf32, #tpu.memory_space<vmem>>, vector<2x7xf32>,
    return
  }
  func.func @transform_0(%arg0: i32) -> (i32, i32) {
    %c0_i32 = arith.constant 0 : i32
    %c0_i32_0 = arith.constant 0 : i32
    return %arg0, %c0_i32 : i32, i32
  }
  func.func @transform_1(%arg0: i32) -> (i32, i32) {
    %c0_i32 = arith.constant 0 : i32
    %c0_i32_0 = arith.constant 0 : i32
    %c0_i32_1 = arith.constant 0 : i32
    return %c0_i32, %c0_i32_0 : i32, i32
  }
  func.func @transform_2(%arg0: i32) -> (i32, i32) {
    %c0_i32 = arith.constant 0 : i32
    %c0_i32_0 = arith.constant 0 : i32
    %c0_i32_1 = arith.constant 0 : i32
    return %c0_i32, %c0_i32_0 : i32, i32
  }
  func.func @transform_3(%arg0: i32) -> (i32, i32) {
    %c0_i32 = arith.constant 0 : i32
    %c0_i32_0 = arith.constant 0 : i32
    %c0_i32_1 = arith.constant 0 : i32
    return %c0_i32, %c0_i32_0 : i32, i32
  }
  func.func @transform_4(%arg0: i32) -> (i32, i32) {
    %c0_i32 = arith.constant 0 : i32
    %c0_i32_0 = arith.constant 0 : i32
    %c0_i32_1 = arith.constant 0 : i32
    return %c0_i32, %c0_i32_0 : i32, i32
  }
  func.func @transform_5(%arg0: i32) -> (i32, i32) {
    %c0_i32 = arith.constant 0 : i32
    %c0_i32_0 = arith.constant 0 : i32
    %c0_i32_1 = arith.constant 0 : i32
    return %c0_i32, %c0_i32_0 : i32, i32
  }
  func.func @transform_6(%arg0: i32) -> (i32, i32) {
    %c0_i32 = arith.constant 0 : i32
    %c0_i32_0 = arith.constant 0 : i32
    %c0_i32_1 = arith.constant 0 : i32
    return %c0_i32, %c0_i32_0 : i32, i32
  }
  func.func @transform_7(%arg0: i32) -> (i32, i32) {
    %c0_i32 = arith.constant 0 : i32
    %c0_i32_0 = arith.constant 0 : i32
    %c0_i32_1 = arith.constant 0 : i32
    return %c0_i32, %c0_i32_0 : i32, i32
  }
  func.func @transform_8(%arg0: i32) -> (i32, i32) {
    %c0_i32 = arith.constant 0 : i32
    %c0_i32_0 = arith.constant 0 : i32
    %c0_i32_1 = arith.constant 0 : i32
    return %c0_i32, %c0_i32_0 : i32, i32
  }
  func.func @transform_9(%arg0: i32) -> (i32, i32) {
    %c0_i32 = arith.constant 0 : i32
    %c0_i32_0 = arith.constant 0 : i32
    %c0_i32_1 = arith.constant 0 : i32
    return %c0_i32, %c0_i32_0 : i32, i32
  }
  func.func @transform_10(%arg0: i32) -> (i32, i32) {
    %c0_i32 = arith.constant 0 : i32
    %c0_i32_0 = arith.constant 0 : i32
    %c0_i32_1 = arith.constant 0 : i32
    return %c0_i32, %c0_i32_0 : i32, i32
  }
  func.func @transform_11(%arg0: i32) -> (i32, i32) {
    %c0_i32 = arith.constant 0 : i32
    %c0_i32_0 = arith.constant 0 : i32
    %c0_i32_1 = arith.constant 0 : i32
    return %c0_i32, %c0_i32_0 : i32, i32
  }
  func.func @transform_12(%arg0: i32) -> (i32, i32) {
    %c0_i32 = arith.constant 0 : i32
    %c0_i32_0 = arith.constant 0 : i32
    %c0_i32_1 = arith.constant 0 : i32
    return %c0_i32, %c0_i32_0 : i32, i32
  }
  func.func @transform_13(%arg0: i32) -> (i32, i32) {
    %c0_i32 = arith.constant 0 : i32
    %c0_i32_0 = arith.constant 0 : i32
    return %arg0, %c0_i32 : i32, i32
  }
}

</mosaic_0001>

<llo_original>
// kernel: simple_dnn_forward.1
$region0: #{simple_dnn_forward.1}
  #allocation0 [shape = 'u32[]', space=smem, size = 0x4, offset = 0x4, fixed_abs, tag = 'smem constant byte address 0x4 - core index']
  #allocation1 [shape = 'u32[144,128]{1,0:T(1,128)}', space=vmem, size = 0x12000, scoped, tag = 'internal scratch']
  %s0 = inlined_call_operand.vmem [shape: bf16[2,2304], index: 0, kind: input, shape index: {}]
  %s1 = inlined_call_operand.hbm [shape: s8[2304,1536], index: 1, kind: input, shape index: {}]
  %s2 = inlined_call_operand.hbm [shape: f32[1,1536], index: 2, kind: input, shape index: {}]
  %s3 = inlined_call_operand.hbm [shape: f32[1,1536], index: 3, kind: input, shape index: {}]
  %s4 = inlined_call_operand.hbm [shape: s8[1536,512], index: 4, kind: input, shape index: {}]
  %s5 = inlined_call_operand.hbm [shape: f32[1,512], index: 5, kind: input, shape index: {}]
  %s6 = inlined_call_operand.hbm [shape: f32[1,512], index: 6, kind: input, shape index: {}]
  %s7 = inlined_call_operand.hbm [shape: bf16[512,128], index: 7, kind: input, shape index: {}]
  %s8 = inlined_call_operand.hbm [shape: f32[1,128], index: 8, kind: input, shape index: {}]
  %s9 = inlined_call_operand.vmem [shape: bf16[128,32], index: 9, kind: input, shape index: {}]
  %s10 = inlined_call_operand.hbm [shape: f32[1,32], index: 10, kind: input, shape index: {}]
  %s11 = inlined_call_operand.vmem [shape: bf16[32,7], index: 11, kind: input, shape index: {}]
  %s12 = inlined_call_operand.hbm [shape: f32[1,7], index: 12, kind: input, shape index: {}]
  %s13 = inlined_call_operand.hbm [shape: f32[2,7], index: 13, kind: output, shape index: {}]
  %s14 = sld [smem:[#allocation0]]
  $region102: #{simple_dnn_forward.1} parent=0
    _
  %s16 = ssub.s32 1, %s14
  %s17 = scalar_select 0, %s16, %s14
  $region1: #{simple_dnn_forward.1} parent=0
    #allocation2 [shape = 'u8[3538944]{0}', space=vmem, size = 0x360000, scoped, tag = 'input window, operand 1, single buffered']
    #allocation3 [shape = 's32[1]{0}', space=sflag, size = 0x4, scoped, tag = 'scoped memory for simple_dnn_forward.1']
    #allocation4 [shape = 's32[1]{0}', space=sflag, size = 0x4, scoped, tag = 'scoped memory for simple_dnn_forward.1']
    #allocation5 [shape = 'u8[6144]{0}', space=vmem, size = 0x1800, scoped, tag = 'input window, operand 2, single buffered']
    #allocation6 [shape = 's32[1]{0}', space=sflag, size = 0x4, scoped, tag = 'scoped memory for simple_dnn_forward.1']
    #allocation7 [shape = 'u8[6144]{0}', space=vmem, size = 0x1800, scoped, tag = 'input window, operand 3, single buffered']
    #allocation8 [shape = 'u8[786432]{0}', space=vmem, size = 0xc0000, scoped, tag = 'input window, operand 4, single buffered']
    #allocation9 [shape = 's32[1]{0}', space=sflag, size = 0x4, scoped, tag = 'scoped memory for simple_dnn_forward.1']
    #allocation10 [shape = 'u8[2048]{0}', space=vmem, size = 0x800, scoped, tag = 'input window, operand 5, single buffered']
    #allocation11 [shape = 'u8[2048]{0}', space=vmem, size = 0x800, scoped, tag = 'input window, operand 6, single buffered']
    #allocation12 [shape = 's32[1]{0}', space=sflag, size = 0x4, scoped, tag = 'scoped memory for simple_dnn_forward.1']
    #allocation13 [shape = 'u8[131072]{0}', space=vmem, size = 0x20000, scoped, tag = 'input window, operand 7, single buffered']
    #allocation14 [shape = 'u8[512]{0}', space=vmem, size = 0x400, scoped, tag = 'input window, operand 8, single buffered']
    #allocation15 [shape = 's32[1]{0}', space=sflag, size = 0x4, scoped, tag = 'scoped memory for simple_dnn_forward.1']
    #allocation16 [shape = 'u8[512]{0}', space=vmem, size = 0x400, scoped, tag = 'input window, operand 10, single buffered']
    #allocation17 [shape = 'u8[512]{0}', space=vmem, size = 0x400, scoped, tag = 'input window, operand 12, single buffered']
    #allocation18 [shape = 's32[1]{0}', space=sflag, size = 0x4, scoped, tag = 'scoped memory for simple_dnn_forward.1']
    #allocation19 [shape = 'u8[1024]{0}', space=vmem, size = 0x400, scoped, tag = 'output window, operand 0, single buffered']
    %18 = vsyncpa [#allocation3], 0
    %19 = vsyncpa [#allocation6], 0
    %20 = vsyncpa [#allocation9], 0
    %21 = vsyncpa [#allocation12], 0
    %22 = vsyncpa [#allocation15], 0
    %23 = vsyncpa [#allocation18], 0
    %24 = vsyncpa [#allocation4], 0
    // Predicated region
    $region2: #{simple_dnn_forward.1} parent=1 // pred_check
      _
    $region3: #{simple_dnn_forward.1} parent=1 // pred_check_branch
      %26 = sbr.rel (0) target = $region5
    $region4: #{simple_dnn_forward.1} parent=1 // pred_region
      _
    $region5: #{simple_dnn_forward.1} parent=1 // pred_fallthru
      _
    // Predicated region
    $region6: #{simple_dnn_forward.1} parent=1 // pred_check
      _
    $region7: #{simple_dnn_forward.1} parent=1 // pred_check_branch
      %28 = sbr.rel (0) target = $region9
    $region8: #{simple_dnn_forward.1} parent=1 // pred_region
      %s30 = ssub.s32 110592, 110592
      %31 = vsyncadd [#allocation3], %s30
      %s32 = sshll.u32 [#allocation2], 4
      %s33 = int_to_ptr.vmem [resolvable:$true] %s32
      %38 = dma.hbm_to_vmem [thread:$0]  %s1, 110592, %s33, [#allocation3], 1536, 1536, 96
    $region9: #{simple_dnn_forward.1} parent=1 // pred_fallthru
      _
    // Predicated region
    $region10: #{simple_dnn_forward.1} parent=1 // pred_check
      _
    $region11: #{simple_dnn_forward.1} parent=1 // pred_check_branch
      %40 = sbr.rel (0) target = $region13
    $region12: #{simple_dnn_forward.1} parent=1 // pred_region
      %s42 = ssub.s32 192, 192
      %43 = vsyncadd [#allocation6], %s42
      %s45 = sshll.u32 [#allocation5], 4
      %s46 = int_to_ptr.vmem [resolvable:$true] %s45
      %48 = dma.hbm_to_vmem [thread:$0]  %s2, 192, %s46, [#allocation6]
    $region13: #{simple_dnn_forward.1} parent=1 // pred_fallthru
      _
    // Predicated region
    $region14: #{simple_dnn_forward.1} parent=1 // pred_check
      _
    $region15: #{simple_dnn_forward.1} parent=1 // pred_check_branch
      %50 = sbr.rel (0) target = $region17
    $region16: #{simple_dnn_forward.1} parent=1 // pred_region
      %s52 = ssub.s32 192, 192
      %53 = vsyncadd [#allocation6], %s52
      %s55 = sshll.u32 [#allocation7], 4
      %s56 = int_to_ptr.vmem [resolvable:$true] %s55
      %58 = dma.hbm_to_vmem [thread:$0]  %s3, 192, %s56, [#allocation6]
    $region17: #{simple_dnn_forward.1} parent=1 // pred_fallthru
      _
    // Predicated region
    $region18: #{simple_dnn_forward.1} parent=1 // pred_check
      _
    $region19: #{simple_dnn_forward.1} parent=1 // pred_check_branch
      %60 = sbr.rel (0) target = $region21
    $region20: #{simple_dnn_forward.1} parent=1 // pred_region
      %s62 = ssub.s32 24576, 24576
      %63 = vsyncadd [#allocation9], %s62
      %s64 = sshll.u32 [#allocation8], 4
      %s65 = int_to_ptr.vmem [resolvable:$true] %s64
      %70 = dma.hbm_to_vmem [thread:$0]  %s4, 24576, %s65, [#allocation9], 512, 512, 32
    $region21: #{simple_dnn_forward.1} parent=1 // pred_fallthru
      _
    // Predicated region
    $region22: #{simple_dnn_forward.1} parent=1 // pred_check
      _
    $region23: #{simple_dnn_forward.1} parent=1 // pred_check_branch
      %72 = sbr.rel (0) target = $region25
    $region24: #{simple_dnn_forward.1} parent=1 // pred_region
      %s74 = ssub.s32 64, 64
      %75 = vsyncadd [#allocation9], %s74
      %s77 = sshll.u32 [#allocation10], 4
      %s78 = int_to_ptr.vmem [resolvable:$true] %s77
      %80 = dma.hbm_to_vmem [thread:$0]  %s5, 64, %s78, [#allocation9]
    $region25: #{simple_dnn_forward.1} parent=1 // pred_fallthru
      _
    // Predicated region
    $region26: #{simple_dnn_forward.1} parent=1 // pred_check
      _
    $region27: #{simple_dnn_forward.1} parent=1 // pred_check_branch
      %82 = sbr.rel (0) target = $region29
    $region28: #{simple_dnn_forward.1} parent=1 // pred_region
      %s84 = ssub.s32 64, 64
      %85 = vsyncadd [#allocation12], %s84
      %s87 = sshll.u32 [#allocation11], 4
      %s88 = int_to_ptr.vmem [resolvable:$true] %s87
      %90 = dma.hbm_to_vmem [thread:$0]  %s6, 64, %s88, [#allocation12]
    $region29: #{simple_dnn_forward.1} parent=1 // pred_fallthru
      _
    // Predicated region
    $region30: #{simple_dnn_forward.1} parent=1 // pred_check
      _
    $region31: #{simple_dnn_forward.1} parent=1 // pred_check_branch
      %92 = sbr.rel (0) target = $region33
    $region32: #{simple_dnn_forward.1} parent=1 // pred_region
      %s94 = ssub.s32 4096, 4096
      %95 = vsyncadd [#allocation12], %s94
      %s96 = sshll.u32 [#allocation13], 4
      %s97 = int_to_ptr.vmem [resolvable:$true] %s96
      %102 = dma.hbm_to_vmem [thread:$0]  %s7, 4096, %s97, [#allocation12], 64, 64, 4
    $region33: #{simple_dnn_forward.1} parent=1 // pred_fallthru
      _
    // Predicated region
    $region34: #{simple_dnn_forward.1} parent=1 // pred_check
      _
    $region35: #{simple_dnn_forward.1} parent=1 // pred_check_branch
      %104 = sbr.rel (0) target = $region37
    $region36: #{simple_dnn_forward.1} parent=1 // pred_region
      %s106 = ssub.s32 16, 16
      %107 = vsyncadd [#allocation15], %s106
      %s109 = sshll.u32 [#allocation14], 4
      %s110 = int_to_ptr.vmem [resolvable:$true] %s109
      %112 = dma.hbm_to_vmem [thread:$0]  %s8, 16, %s110, [#allocation15]
    $region37: #{simple_dnn_forward.1} parent=1 // pred_fallthru
      _
    // Predicated region
    $region38: #{simple_dnn_forward.1} parent=1 // pred_check
      _
    $region39: #{simple_dnn_forward.1} parent=1 // pred_check_branch
      %114 = sbr.rel (0) target = $region41
    $region40: #{simple_dnn_forward.1} parent=1 // pred_region
      _
    $region41: #{simple_dnn_forward.1} parent=1 // pred_fallthru
      _
    // Predicated region
    $region42: #{simple_dnn_forward.1} parent=1 // pred_check
      _
    $region43: #{simple_dnn_forward.1} parent=1 // pred_check_branch
      %116 = sbr.rel (0) target = $region45
    $region44: #{simple_dnn_forward.1} parent=1 // pred_region
      %s118 = ssub.s32 16, 16
      %119 = vsyncadd [#allocation15], %s118
      %s121 = sshll.u32 [#allocation16], 4
      %s122 = int_to_ptr.vmem [resolvable:$true] %s121
      %124 = dma.hbm_to_vmem [thread:$0]  %s10, 16, %s122, [#allocation15]
    $region45: #{simple_dnn_forward.1} parent=1 // pred_fallthru
      _
    // Predicated region
    $region46: #{simple_dnn_forward.1} parent=1 // pred_check
      _
    $region47: #{simple_dnn_forward.1} parent=1 // pred_check_branch
      %126 = sbr.rel (0) target = $region49
    $region48: #{simple_dnn_forward.1} parent=1 // pred_region
      _
    $region49: #{simple_dnn_forward.1} parent=1 // pred_fallthru
      _
    // Predicated region
    $region50: #{simple_dnn_forward.1} parent=1 // pred_check
      _
    $region51: #{simple_dnn_forward.1} parent=1 // pred_check_branch
      %128 = sbr.rel (0) target = $region53
    $region52: #{simple_dnn_forward.1} parent=1 // pred_region
      %s130 = ssub.s32 16, 16
      %131 = vsyncadd [#allocation18], %s130
      %s133 = sshll.u32 [#allocation17], 4
      %s134 = int_to_ptr.vmem [resolvable:$true] %s133
      %136 = dma.hbm_to_vmem [thread:$0]  %s12, 16, %s134, [#allocation18]
    $region53: #{simple_dnn_forward.1} parent=1 // pred_fallthru
      _
    // Predicated region
    $region54: #{simple_dnn_forward.1} parent=1 // pred_check
      _
    $region55: #{simple_dnn_forward.1} parent=1 // pred_check_branch
      %138 = sbr.rel (0) target = $region57
    $region56: #{simple_dnn_forward.1} parent=1 // pred_region
      %139 = dma.done [#allocation3], 110592
    $region57: #{simple_dnn_forward.1} parent=1 // pred_fallthru
      _
    // Predicated region
    $region58: #{simple_dnn_forward.1} parent=1 // pred_check
      _
    $region59: #{simple_dnn_forward.1} parent=1 // pred_check_branch
      %141 = sbr.rel (0) target = $region61
    $region60: #{simple_dnn_forward.1} parent=1 // pred_region
      %142 = dma.done [#allocation6], 192
    $region61: #{simple_dnn_forward.1} parent=1 // pred_fallthru
      _
    // Predicated region
    $region62: #{simple_dnn_forward.1} parent=1 // pred_check
      _
    $region63: #{simple_dnn_forward.1} parent=1 // pred_check_branch
      %144 = sbr.rel (0) target = $region65
    $region64: #{simple_dnn_forward.1} parent=1 // pred_region
      %145 = dma.done [#allocation6], 192
    $region65: #{simple_dnn_forward.1} parent=1 // pred_fallthru
      _
    // Predicated region
    $region66: #{simple_dnn_forward.1} parent=1 // pred_check
      _
    $region67: #{simple_dnn_forward.1} parent=1 // pred_check_branch
      %147 = sbr.rel (0) target = $region69
    $region68: #{simple_dnn_forward.1} parent=1 // pred_region
      %148 = dma.done [#allocation9], 24576
    $region69: #{simple_dnn_forward.1} parent=1 // pred_fallthru
      _
    // Predicated region
    $region70: #{simple_dnn_forward.1} parent=1 // pred_check
      _
    $region71: #{simple_dnn_forward.1} parent=1 // pred_check_branch
      %150 = sbr.rel (0) target = $region73
    $region72: #{simple_dnn_forward.1} parent=1 // pred_region
      %151 = dma.done [#allocation9], 64
    $region73: #{simple_dnn_forward.1} parent=1 // pred_fallthru
      _
    // Predicated region
    $region74: #{simple_dnn_forward.1} parent=1 // pred_check
      _
    $region75: #{simple_dnn_forward.1} parent=1 // pred_check_branch
      %153 = sbr.rel (0) target = $region77
    $region76: #{simple_dnn_forward.1} parent=1 // pred_region
      %154 = dma.done [#allocation12], 64
    $region77: #{simple_dnn_forward.1} parent=1 // pred_fallthru
      _
    // Predicated region
    $region78: #{simple_dnn_forward.1} parent=1 // pred_check
      _
    $region79: #{simple_dnn_forward.1} parent=1 // pred_check_branch
      %156 = sbr.rel (0) target = $region81
    $region80: #{simple_dnn_forward.1} parent=1 // pred_region
      %157 = dma.done [#allocation12], 4096
    $region81: #{simple_dnn_forward.1} parent=1 // pred_fallthru
      _
    // Predicated region
    $region82: #{simple_dnn_forward.1} parent=1 // pred_check
      _
    $region83: #{simple_dnn_forward.1} parent=1 // pred_check_branch
      %159 = sbr.rel (0) target = $region85
    $region84: #{simple_dnn_forward.1} parent=1 // pred_region
      %160 = dma.done [#allocation15], 16
    $region85: #{simple_dnn_forward.1} parent=1 // pred_fallthru
      _
    // Predicated region
    $region86: #{simple_dnn_forward.1} parent=1 // pred_check
      _
    $region87: #{simple_dnn_forward.1} parent=1 // pred_check_branch
      %162 = sbr.rel (0) target = $region89
    $region88: #{simple_dnn_forward.1} parent=1 // pred_region
      %163 = dma.done [#allocation15], 16
    $region89: #{simple_dnn_forward.1} parent=1 // pred_fallthru
      _
    // Predicated region
    $region90: #{simple_dnn_forward.1} parent=1 // pred_check
      _
    $region91: #{simple_dnn_forward.1} parent=1 // pred_check_branch
      %165 = sbr.rel (0) target = $region93
    $region92: #{simple_dnn_forward.1} parent=1 // pred_region
      %166 = dma.done [#allocation18], 16
    $region93: #{simple_dnn_forward.1} parent=1 // pred_fallthru
      _
    %v168 = vld [vmem:[%s0] sm:$0xff]
    %v169 = vld [vmem:[%s0 + $0x8] sm:$0xff]
    %v170 = vld [vmem:[%s0 + $0x10] sm:$0x3]
    %v171 = vld [vmem:[#allocation2] sm:$0xff]
    %v172 = vld [vmem:[#allocation2 + $0x8] sm:$0xff]
    %v173 = vld [vmem:[#allocation2 + $0x10] sm:$0xff]
    %v174 = vld [vmem:[#allocation2 + $0x18] sm:$0xff]
    %v175 = vld [vmem:[#allocation2 + $0x20] sm:$0xff]
    %v176 = vld [vmem:[#allocation2 + $0x28] sm:$0xff]
    %v177 = vld [vmem:[#allocation2 + $0x30] sm:$0xff]
    %v178 = vld [vmem:[#allocation2 + $0x38] sm:$0xff]
    %v179 = vld [vmem:[#allocation2 + $0x40] sm:$0xff]
    %v180 = vld [vmem:[#allocation2 + $0x48] sm:$0xff]
    %v181 = vld [vmem:[#allocation2 + $0x50] sm:$0xff]
    %v182 = vld [vmem:[#allocation2 + $0x58] sm:$0xff]
    %v183 = vld [vmem:[#allocation2 + $0x60] sm:$0xff]
    %v184 = vld [vmem:[#allocation2 + $0x68] sm:$0xff]
    %v185 = vld [vmem:[#allocation2 + $0x70] sm:$0xff]
    %v186 = vld [vmem:[#allocation2 + $0x78] sm:$0xff]
    %v187 = vld [vmem:[#allocation2 + $0x80] sm:$0xff]
    %v188 = vld [vmem:[#allocation2 + $0x88] sm:$0xff]
    %v189 = vld [vmem:[#allocation2 + $0x90] sm:$0xff]
    %v190 = vld [vmem:[#allocation2 + $0x98] sm:$0xff]
    %v191 = vld [vmem:[#allocation2 + $0xa0] sm:$0xff]
    %v192 = vld [vmem:[#allocation2 + $0xa8] sm:$0xff]
    %v193 = vld [vmem:[#allocation2 + $0xb0] sm:$0xff]
    %v194 = vld [vmem:[#allocation2 + $0xb8] sm:$0xff]
    %v195 = vld [vmem:[#allocation2 + $0xc0] sm:$0xff]
    %v196 = vld [vmem:[#allocation2 + $0xc8] sm:$0xff]
    %v197 = vld [vmem:[#allocation2 + $0xd0] sm:$0xff]
    %v198 = vld [vmem:[#allocation2 + $0xd8] sm:$0xff]
    %v199 = vld [vmem:[#allocation2 + $0xe0] sm:$0xff]
    %v200 = vld [vmem:[#allocation2 + $0xe8] sm:$0xff]
    %v201 = vld [vmem:[#allocation2 + $0xf0] sm:$0xff]
    %v202 = vld [vmem:[#allocation2 + $0xf8] sm:$0xff]
    %v203 = vld [vmem:[#allocation2 + $0x100] sm:$0xff]
    %v204 = vld [vmem:[#allocation2 + $0x108] sm:$0xff]
    %v205 = vld [vmem:[#allocation2 + $0x110] sm:$0xff]
    %v206 = vld [vmem:[#allocation2 + $0x118] sm:$0xff]
    %v207 = vld [vmem:[#allocation2 + $0x120] sm:$0xff]
    %v208 = vld [vmem:[#allocation2 + $0x128] sm:$0xff]
    %v209 = vld [vmem:[#allocation2 + $0x130] sm:$0xff]
    %v210 = vld [vmem:[#allocation2 + $0x138] sm:$0xff]
    %v211 = vld [vmem:[#allocation2 + $0x140] sm:$0xff]
    %v212 = vld [vmem:[#allocation2 + $0x148] sm:$0xff]
    %v213 = vld [vmem:[#allocation2 + $0x150] sm:$0xff]
    %v214 = vld [vmem:[#allocation2 + $0x158] sm:$0xff]
    %v215 = vld [vmem:[#allocation2 + $0x160] sm:$0xff]
    %v216 = vld [vmem:[#allocation2 + $0x168] sm:$0xff]
    %v217 = vld [vmem:[#allocation2 + $0x170] sm:$0xff]
    %v218 = vld [vmem:[#allocation2 + $0x178] sm:$0xff]
    %v219 = vld [vmem:[#allocation2 + $0x180] sm:$0xff]
    %v220 = vld [vmem:[#allocation2 + $0x188] sm:$0xff]
    %v221 = vld [vmem:[#allocation2 + $0x190] sm:$0xff]
    %v222 = vld [vmem:[#allocation2 + $0x198] sm:$0xff]
    %v223 = vld [vmem:[#allocation2 + $0x1a0] sm:$0xff]
    %v224 = vld [vmem:[#allocation2 + $0x1a8] sm:$0xff]
    %v225 = vld [vmem:[#allocation2 + $0x1b0] sm:$0xff]
    %v226 = vld [vmem:[#allocation2 + $0x1b8] sm:$0xff]
    %v227 = vld [vmem:[#allocation2 + $0x1c0] sm:$0xff]
    %v228 = vld [vmem:[#allocation2 + $0x1c8] sm:$0xff]
    %v229 = vld [vmem:[#allocation2 + $0x1d0] sm:$0xff]
    %v230 = vld [vmem:[#allocation2 + $0x1d8] sm:$0xff]
    %v231 = vld [vmem:[#allocation2 + $0x1e0] sm:$0xff]
    %v232 = vld [vmem:[#allocation2 + $0x1e8] sm:$0xff]
    %v233 = vld [vmem:[#allocation2 + $0x1f0] sm:$0xff]
    %v234 = vld [vmem:[#allocation2 + $0x1f8] sm:$0xff]
    %v235 = vld [vmem:[#allocation2 + $0x200] sm:$0xff]
    %v236 = vld [vmem:[#allocation2 + $0x208] sm:$0xff]
    %v237 = vld [vmem:[#allocation2 + $0x210] sm:$0xff]
    %v238 = vld [vmem:[#allocation2 + $0x218] sm:$0xff]
    %v239 = vld [vmem:[#allocation2 + $0x220] sm:$0xff]
    %v240 = vld [vmem:[#allocation2 + $0x228] sm:$0xff]
    %v241 = vld [vmem:[#allocation2 + $0x230] sm:$0xff]
    %v242 = vld [vmem:[#allocation2 + $0x238] sm:$0xff]
    %v243 = vld [vmem:[#allocation2 + $0x240] sm:$0xff]
    %v244 = vld [vmem:[#allocation2 + $0x248] sm:$0xff]
    %v245 = vld [vmem:[#allocation2 + $0x250] sm:$0xff]
    %v246 = vld [vmem:[#allocation2 + $0x258] sm:$0xff]
    %v247 = vld [vmem:[#allocation2 + $0x260] sm:$0xff]
    %v248 = vld [vmem:[#allocation2 + $0x268] sm:$0xff]
    %v249 = vld [vmem:[#allocation2 + $0x270] sm:$0xff]
    %v250 = vld [vmem:[#allocation2 + $0x278] sm:$0xff]
    %v251 = vld [vmem:[#allocation2 + $0x280] sm:$0xff]
    %v252 = vld [vmem:[#allocation2 + $0x288] sm:$0xff]
    %v253 = vld [vmem:[#allocation2 + $0x290] sm:$0xff]
    %v254 = vld [vmem:[#allocation2 + $0x298] sm:$0xff]
    %v255 = vld [vmem:[#allocation2 + $0x2a0] sm:$0xff]
    %v256 = vld [vmem:[#allocation2 + $0x2a8] sm:$0xff]
    %v257 = vld [vmem:[#allocation2 + $0x2b0] sm:$0xff]
    %v258 = vld [vmem:[#allocation2 + $0x2b8] sm:$0xff]
    %v259 = vld [vmem:[#allocation2 + $0x2c0] sm:$0xff]
    %v260 = vld [vmem:[#allocation2 + $0x2c8] sm:$0xff]
    %v261 = vld [vmem:[#allocation2 + $0x2d0] sm:$0xff]
    %v262 = vld [vmem:[#allocation2 + $0x2d8] sm:$0xff]
    %v263 = vld [vmem:[#allocation2 + $0x2e0] sm:$0xff]
    %v264 = vld [vmem:[#allocation2 + $0x2e8] sm:$0xff]
    %v265 = vld [vmem:[#allocation2 + $0x2f0] sm:$0xff]
    %v266 = vld [vmem:[#allocation2 + $0x2f8] sm:$0xff]
    %v267 = vld [vmem:[#allocation2 + $0x300] sm:$0xff]
    %v268 = vld [vmem:[#allocation2 + $0x308] sm:$0xff]
    %v269 = vld [vmem:[#allocation2 + $0x310] sm:$0xff]
    %v270 = vld [vmem:[#allocation2 + $0x318] sm:$0xff]
    %v271 = vld [vmem:[#allocation2 + $0x320] sm:$0xff]
    %v272 = vld [vmem:[#allocation2 + $0x328] sm:$0xff]
    %v273 = vld [vmem:[#allocation2 + $0x330] sm:$0xff]
    %v274 = vld [vmem:[#allocation2 + $0x338] sm:$0xff]
    %v275 = vld [vmem:[#allocation2 + $0x340] sm:$0xff]
    %v276 = vld [vmem:[#allocation2 + $0x348] sm:$0xff]
    %v277 = vld [vmem:[#allocation2 + $0x350] sm:$0xff]
    %v278 = vld [vmem:[#allocation2 + $0x358] sm:$0xff]
    %v279 = vld [vmem:[#allocation2 + $0x360] sm:$0xff]
    %v280 = vld [vmem:[#allocation2 + $0x368] sm:$0xff]
    %v281 = vld [vmem:[#allocation2 + $0x370] sm:$0xff]
    %v282 = vld [vmem:[#allocation2 + $0x378] sm:$0xff]
    %v283 = vld [vmem:[#allocation2 + $0x380] sm:$0xff]
    %v284 = vld [vmem:[#allocation2 + $0x388] sm:$0xff]
    %v285 = vld [vmem:[#allocation2 + $0x390] sm:$0xff]
    %v286 = vld [vmem:[#allocation2 + $0x398] sm:$0xff]
    %v287 = vld [vmem:[#allocation2 + $0x3a0] sm:$0xff]
    %v288 = vld [vmem:[#allocation2 + $0x3a8] sm:$0xff]
    %v289 = vld [vmem:[#allocation2 + $0x3b0] sm:$0xff]
    %v290 = vld [vmem:[#allocation2 + $0x3b8] sm:$0xff]
    %v291 = vld [vmem:[#allocation2 + $0x3c0] sm:$0xff]
    %v292 = vld [vmem:[#allocation2 + $0x3c8] sm:$0xff]
    %v293 = vld [vmem:[#allocation2 + $0x3d0] sm:$0xff]
    %v294 = vld [vmem:[#allocation2 + $0x3d8] sm:$0xff]
    %v295 = vld [vmem:[#allocation2 + $0x3e0] sm:$0xff]
    %v296 = vld [vmem:[#allocation2 + $0x3e8] sm:$0xff]
    %v297 = vld [vmem:[#allocation2 + $0x3f0] sm:$0xff]
    %v298 = vld [vmem:[#allocation2 + $0x3f8] sm:$0xff]
    %v299 = vld [vmem:[#allocation2 + $0x400] sm:$0xff]
    %v300 = vld [vmem:[#allocation2 + $0x408] sm:$0xff]
    %v301 = vld [vmem:[#allocation2 + $0x410] sm:$0xff]
    %v302 = vld [vmem:[#allocation2 + $0x418] sm:$0xff]
    %v303 = vld [vmem:[#allocation2 + $0x420] sm:$0xff]
    %v304 = vld [vmem:[#allocation2 + $0x428] sm:$0xff]
    %v305 = vld [vmem:[#allocation2 + $0x430] sm:$0xff]
    %v306 = vld [vmem:[#allocation2 + $0x438] sm:$0xff]
    %v307 = vld [vmem:[#allocation2 + $0x440] sm:$0xff]
    %v308 = vld [vmem:[#allocation2 + $0x448] sm:$0xff]
    %v309 = vld [vmem:[#allocation2 + $0x450] sm:$0xff]
    %v310 = vld [vmem:[#allocation2 + $0x458] sm:$0xff]
    %v311 = vld [vmem:[#allocation2 + $0x460] sm:$0xff]
    %v312 = vld [vmem:[#allocation2 + $0x468] sm:$0xff]
    %v313 = vld [vmem:[#allocation2 + $0x470] sm:$0xff]
    %v314 = vld [vmem:[#allocation2 + $0x478] sm:$0xff]
    %v315 = vld [vmem:[#allocation2 + $0x480] sm:$0xff]
    %v316 = vld [vmem:[#allocation2 + $0x488] sm:$0xff]
    %v317 = vld [vmem:[#allocation2 + $0x490] sm:$0xff]
    %v318 = vld [vmem:[#allocation2 + $0x498] sm:$0xff]
    %v319 = vld [vmem:[#allocation2 + $0x4a0] sm:$0xff]
    %v320 = vld [vmem:[#allocation2 + $0x4a8] sm:$0xff]
    %v321 = vld [vmem:[#allocation2 + $0x4b0] sm:$0xff]
    %v322 = vld [vmem:[#allocation2 + $0x4b8] sm:$0xff]
    %v323 = vld [vmem:[#allocation2 + $0x4c0] sm:$0xff]
    %v324 = vld [vmem:[#allocation2 + $0x4c8] sm:$0xff]
    %v325 = vld [vmem:[#allocation2 + $0x4d0] sm:$0xff]
    %v326 = vld [vmem:[#allocation2 + $0x4d8] sm:$0xff]
    %v327 = vld [vmem:[#allocation2 + $0x4e0] sm:$0xff]
    %v328 = vld [vmem:[#allocation2 + $0x4e8] sm:$0xff]
    %v329 = vld [vmem:[#allocation2 + $0x4f0] sm:$0xff]
    %v330 = vld [vmem:[#allocation2 + $0x4f8] sm:$0xff]
    %v331 = vld [vmem:[#allocation2 + $0x500] sm:$0xff]
    %v332 = vld [vmem:[#allocation2 + $0x508] sm:$0xff]
    %v333 = vld [vmem:[#allocation2 + $0x510] sm:$0xff]
    %v334 = vld [vmem:[#allocation2 + $0x518] sm:$0xff]
    %v335 = vld [vmem:[#allocation2 + $0x520] sm:$0xff]
    %v336 = vld [vmem:[#allocation2 + $0x528] sm:$0xff]
    %v337 = vld [vmem:[#allocation2 + $0x530] sm:$0xff]
    %v338 = vld [vmem:[#allocation2 + $0x538] sm:$0xff]
    %v339 = vld [vmem:[#allocation2 + $0x540] sm:$0xff]
    %v340 = vld [vmem:[#allocation2 + $0x548] sm:$0xff]
    %v341 = vld [vmem:[#allocation2 + $0x550] sm:$0xff]
    %v342 = vld [vmem:[#allocation2 + $0x558] sm:$0xff]
    %v343 = vld [vmem:[#allocation2 + $0x560] sm:$0xff]
    %v344 = vld [vmem:[#allocation2 + $0x568] sm:$0xff]
    %v345 = vld [vmem:[#allocation2 + $0x570] sm:$0xff]
    %v346 = vld [vmem:[#allocation2 + $0x578] sm:$0xff]
    %v347 = vld [vmem:[#allocation2 + $0x580] sm:$0xff]
    %v348 = vld [vmem:[#allocation2 + $0x588] sm:$0xff]
    %v349 = vld [vmem:[#allocation2 + $0x590] sm:$0xff]
    %v350 = vld [vmem:[#allocation2 + $0x598] sm:$0xff]
    %v351 = vld [vmem:[#allocation2 + $0x5a0] sm:$0xff]
    %v352 = vld [vmem:[#allocation2 + $0x5a8] sm:$0xff]
    %v353 = vld [vmem:[#allocation2 + $0x5b0] sm:$0xff]
    %v354 = vld [vmem:[#allocation2 + $0x5b8] sm:$0xff]
    %v355 = vld [vmem:[#allocation2 + $0x5c0] sm:$0xff]
    %v356 = vld [vmem:[#allocation2 + $0x5c8] sm:$0xff]
    %v357 = vld [vmem:[#allocation2 + $0x5d0] sm:$0xff]
    %v358 = vld [vmem:[#allocation2 + $0x5d8] sm:$0xff]
    %v359 = vld [vmem:[#allocation2 + $0x5e0] sm:$0xff]
    %v360 = vld [vmem:[#allocation2 + $0x5e8] sm:$0xff]
    %v361 = vld [vmem:[#allocation2 + $0x5f0] sm:$0xff]
    %v362 = vld [vmem:[#allocation2 + $0x5f8] sm:$0xff]
    %v363 = vld [vmem:[#allocation2 + $0x600] sm:$0xff]
    %v364 = vld [vmem:[#allocation2 + $0x608] sm:$0xff]
    %v365 = vld [vmem:[#allocation2 + $0x610] sm:$0xff]
    %v366 = vld [vmem:[#allocation2 + $0x618] sm:$0xff]
    %v367 = vld [vmem:[#allocation2 + $0x620] sm:$0xff]
    %v368 = vld [vmem:[#allocation2 + $0x628] sm:$0xff]
    %v369 = vld [vmem:[#allocation2 + $0x630] sm:$0xff]
    %v370 = vld [vmem:[#allocation2 + $0x638] sm:$0xff]
    %v371 = vld [vmem:[#allocation2 + $0x640] sm:$0xff]
    %v372 = vld [vmem:[#allocation2 + $0x648] sm:$0xff]
    %v373 = vld [vmem:[#allocation2 + $0x650] sm:$0xff]
    %v374 = vld [vmem:[#allocation2 + $0x658] sm:$0xff]
    %v375 = vld [vmem:[#allocation2 + $0x660] sm:$0xff]
    %v376 = vld [vmem:[#allocation2 + $0x668] sm:$0xff]
    %v377 = vld [vmem:[#allocation2 + $0x670] sm:$0xff]
    %v378 = vld [vmem:[#allocation2 + $0x678] sm:$0xff]
    %v379 = vld [vmem:[#allocation2 + $0x680] sm:$0xff]
    %v380 = vld [vmem:[#allocation2 + $0x688] sm:$0xff]
    %v381 = vld [vmem:[#allocation2 + $0x690] sm:$0xff]
    %v382 = vld [vmem:[#allocation2 + $0x698] sm:$0xff]
    %v383 = vld [vmem:[#allocation2 + $0x6a0] sm:$0xff]
    %v384 = vld [vmem:[#allocation2 + $0x6a8] sm:$0xff]
    %v385 = vld [vmem:[#allocation2 + $0x6b0] sm:$0xff]
    %v386 = vld [vmem:[#allocation2 + $0x6b8] sm:$0xff]
    %v387 = vld [vmem:[#allocation2 + $0x6c0] sm:$0xff]
    %v388 = vld [vmem:[#allocation2 + $0x6c8] sm:$0xff]
    %v389 = vld [vmem:[#allocation2 + $0x6d0] sm:$0xff]
    %v390 = vld [vmem:[#allocation2 + $0x6d8] sm:$0xff]
    %v391 = vld [vmem:[#allocation2 + $0x6e0] sm:$0xff]
    %v392 = vld [vmem:[#allocation2 + $0x6e8] sm:$0xff]
    %v393 = vld [vmem:[#allocation2 + $0x6f0] sm:$0xff]
    %v394 = vld [vmem:[#allocation2 + $0x6f8] sm:$0xff]
    %v395 = vld [vmem:[#allocation2 + $0x700] sm:$0xff]
    %v396 = vld [vmem:[#allocation2 + $0x708] sm:$0xff]
    %v397 = vld [vmem:[#allocation2 + $0x710] sm:$0xff]
    %v398 = vld [vmem:[#allocation2 + $0x718] sm:$0xff]
    %v399 = vld [vmem:[#allocation2 + $0x720] sm:$0xff]
    %v400 = vld [vmem:[#allocation2 + $0x728] sm:$0xff]
    %v401 = vld [vmem:[#allocation2 + $0x730] sm:$0xff]
    %v402 = vld [vmem:[#allocation2 + $0x738] sm:$0xff]
    %v403 = vld [vmem:[#allocation2 + $0x740] sm:$0xff]
    %v404 = vld [vmem:[#allocation2 + $0x748] sm:$0xff]
    %v405 = vld [vmem:[#allocation2 + $0x750] sm:$0xff]
    %v406 = vld [vmem:[#allocation2 + $0x758] sm:$0xff]
    %v407 = vld [vmem:[#allocation2 + $0x760] sm:$0xff]
    %v408 = vld [vmem:[#allocation2 + $0x768] sm:$0xff]
    %v409 = vld [vmem:[#allocation2 + $0x770] sm:$0xff]
    %v410 = vld [vmem:[#allocation2 + $0x778] sm:$0xff]
    %v411 = vld [vmem:[#allocation2 + $0x780] sm:$0xff]
    %v412 = vld [vmem:[#allocation2 + $0x788] sm:$0xff]
    %v413 = vld [vmem:[#allocation2 + $0x790] sm:$0xff]
    %v414 = vld [vmem:[#allocation2 + $0x798] sm:$0xff]
    %v415 = vld [vmem:[#allocation2 + $0x7a0] sm:$0xff]
    %v416 = vld [vmem:[#allocation2 + $0x7a8] sm:$0xff]
    %v417 = vld [vmem:[#allocation2 + $0x7b0] sm:$0xff]
    %v418 = vld [vmem:[#allocation2 + $0x7b8] sm:$0xff]
    %v419 = vld [vmem:[#allocation2 + $0x7c0] sm:$0xff]
    %v420 = vld [vmem:[#allocation2 + $0x7c8] sm:$0xff]
    %v421 = vld [vmem:[#allocation2 + $0x7d0] sm:$0xff]
    %v422 = vld [vmem:[#allocation2 + $0x7d8] sm:$0xff]
    %v423 = vld [vmem:[#allocation2 + $0x7e0] sm:$0xff]
    %v424 = vld [vmem:[#allocation2 + $0x7e8] sm:$0xff]
    %v425 = vld [vmem:[#allocation2 + $0x7f0] sm:$0xff]
    %v426 = vld [vmem:[#allocation2 + $0x7f8] sm:$0xff]
    %v427 = vld [vmem:[#allocation2 + $0x800] sm:$0xff]
    %v428 = vld [vmem:[#allocation2 + $0x808] sm:$0xff]
    %v429 = vld [vmem:[#allocation2 + $0x810] sm:$0xff]
    %v430 = vld [vmem:[#allocation2 + $0x818] sm:$0xff]
    %v431 = vld [vmem:[#allocation2 + $0x820] sm:$0xff]
    %v432 = vld [vmem:[#allocation2 + $0x828] sm:$0xff]
    %v433 = vld [vmem:[#allocation2 + $0x830] sm:$0xff]
    %v434 = vld [vmem:[#allocation2 + $0x838] sm:$0xff]
    %v435 = vld [vmem:[#allocation2 + $0x840] sm:$0xff]
    %v436 = vld [vmem:[#allocation2 + $0x848] sm:$0xff]
    %v437 = vld [vmem:[#allocation2 + $0x850] sm:$0xff]
    %v438 = vld [vmem:[#allocation2 + $0x858] sm:$0xff]
    %v439 = vld [vmem:[#allocation2 + $0x860] sm:$0xff]
    %v440 = vld [vmem:[#allocation2 + $0x868] sm:$0xff]
    %v441 = vld [vmem:[#allocation2 + $0x870] sm:$0xff]
    %v442 = vld [vmem:[#allocation2 + $0x878] sm:$0xff]
    %v443 = vld [vmem:[#allocation2 + $0x880] sm:$0xff]
    %v444 = vld [vmem:[#allocation2 + $0x888] sm:$0xff]
    %v445 = vld [vmem:[#allocation2 + $0x890] sm:$0xff]
    %v446 = vld [vmem:[#allocation2 + $0x898] sm:$0xff]
    %v447 = vld [vmem:[#allocation2 + $0x8a0] sm:$0xff]
    %v448 = vld [vmem:[#allocation2 + $0x8a8] sm:$0xff]
    %v449 = vld [vmem:[#allocation2 + $0x8b0] sm:$0xff]
    %v450 = vld [vmem:[#allocation2 + $0x8b8] sm:$0xff]
    %v451 = vld [vmem:[#allocation2 + $0x8c0] sm:$0xff]
    %v452 = vld [vmem:[#allocation2 + $0x8c8] sm:$0xff]
    %v453 = vld [vmem:[#allocation2 + $0x8d0] sm:$0xff]
    %v454 = vld [vmem:[#allocation2 + $0x8d8] sm:$0xff]
    %v455 = vld [vmem:[#allocation2 + $0x8e0] sm:$0xff]
    %v456 = vld [vmem:[#allocation2 + $0x8e8] sm:$0xff]
    %v457 = vld [vmem:[#allocation2 + $0x8f0] sm:$0xff]
    %v458 = vld [vmem:[#allocation2 + $0x8f8] sm:$0xff]
    %v459 = vld [vmem:[#allocation2 + $0x900] sm:$0xff]
    %v460 = vld [vmem:[#allocation2 + $0x908] sm:$0xff]
    %v461 = vld [vmem:[#allocation2 + $0x910] sm:$0xff]
    %v462 = vld [vmem:[#allocation2 + $0x918] sm:$0xff]
    %v463 = vld [vmem:[#allocation2 + $0x920] sm:$0xff]
    %v464 = vld [vmem:[#allocation2 + $0x928] sm:$0xff]
    %v465 = vld [vmem:[#allocation2 + $0x930] sm:$0xff]
    %v466 = vld [vmem:[#allocation2 + $0x938] sm:$0xff]
    %v467 = vld [vmem:[#allocation2 + $0x940] sm:$0xff]
    %v468 = vld [vmem:[#allocation2 + $0x948] sm:$0xff]
    %v469 = vld [vmem:[#allocation2 + $0x950] sm:$0xff]
    %v470 = vld [vmem:[#allocation2 + $0x958] sm:$0xff]
    %v471 = vld [vmem:[#allocation2 + $0x960] sm:$0xff]
    %v472 = vld [vmem:[#allocation2 + $0x968] sm:$0xff]
    %v473 = vld [vmem:[#allocation2 + $0x970] sm:$0xff]
    %v474 = vld [vmem:[#allocation2 + $0x978] sm:$0xff]
    %v475 = vld [vmem:[#allocation2 + $0x980] sm:$0xff]
    %v476 = vld [vmem:[#allocation2 + $0x988] sm:$0xff]
    %v477 = vld [vmem:[#allocation2 + $0x990] sm:$0xff]
    %v478 = vld [vmem:[#allocation2 + $0x998] sm:$0xff]
    %v479 = vld [vmem:[#allocation2 + $0x9a0] sm:$0xff]
    %v480 = vld [vmem:[#allocation2 + $0x9a8] sm:$0xff]
    %v481 = vld [vmem:[#allocation2 + $0x9b0] sm:$0xff]
    %v482 = vld [vmem:[#allocation2 + $0x9b8] sm:$0xff]
    %v483 = vld [vmem:[#allocation2 + $0x9c0] sm:$0xff]
    %v484 = vld [vmem:[#allocation2 + $0x9c8] sm:$0xff]
    %v485 = vld [vmem:[#allocation2 + $0x9d0] sm:$0xff]
    %v486 = vld [vmem:[#allocation2 + $0x9d8] sm:$0xff]
    %v487 = vld [vmem:[#allocation2 + $0x9e0] sm:$0xff]
    %v488 = vld [vmem:[#allocation2 + $0x9e8] sm:$0xff]
    %v489 = vld [vmem:[#allocation2 + $0x9f0] sm:$0xff]
    %v490 = vld [vmem:[#allocation2 + $0x9f8] sm:$0xff]
    %v491 = vld [vmem:[#allocation2 + $0xa00] sm:$0xff]
    %v492 = vld [vmem:[#allocation2 + $0xa08] sm:$0xff]
    %v493 = vld [vmem:[#allocation2 + $0xa10] sm:$0xff]
    %v494 = vld [vmem:[#allocation2 + $0xa18] sm:$0xff]
    %v495 = vld [vmem:[#allocation2 + $0xa20] sm:$0xff]
    %v496 = vld [vmem:[#allocation2 + $0xa28] sm:$0xff]
    %v497 = vld [vmem:[#allocation2 + $0xa30] sm:$0xff]
    %v498 = vld [vmem:[#allocation2 + $0xa38] sm:$0xff]
    %v499 = vld [vmem:[#allocation2 + $0xa40] sm:$0xff]
    %v500 = vld [vmem:[#allocation2 + $0xa48] sm:$0xff]
    %v501 = vld [vmem:[#allocation2 + $0xa50] sm:$0xff]
    %v502 = vld [vmem:[#allocation2 + $0xa58] sm:$0xff]
    %v503 = vld [vmem:[#allocation2 + $0xa60] sm:$0xff]
    %v504 = vld [vmem:[#allocation2 + $0xa68] sm:$0xff]
    %v505 = vld [vmem:[#allocation2 + $0xa70] sm:$0xff]
    %v506 = vld [vmem:[#allocation2 + $0xa78] sm:$0xff]
    %v507 = vld [vmem:[#allocation2 + $0xa80] sm:$0xff]
    %v508 = vld [vmem:[#allocation2 + $0xa88] sm:$0xff]
    %v509 = vld [vmem:[#allocation2 + $0xa90] sm:$0xff]
    %v510 = vld [vmem:[#allocation2 + $0xa98] sm:$0xff]
    %v511 = vld [vmem:[#allocation2 + $0xaa0] sm:$0xff]
    %v512 = vld [vmem:[#allocation2 + $0xaa8] sm:$0xff]
    %v513 = vld [vmem:[#allocation2 + $0xab0] sm:$0xff]
    %v514 = vld [vmem:[#allocation2 + $0xab8] sm:$0xff]
    %v515 = vld [vmem:[#allocation2 + $0xac0] sm:$0xff]
    %v516 = vld [vmem:[#allocation2 + $0xac8] sm:$0xff]
    %v517 = vld [vmem:[#allocation2 + $0xad0] sm:$0xff]
    %v518 = vld [vmem:[#allocation2 + $0xad8] sm:$0xff]
    %v519 = vld [vmem:[#allocation2 + $0xae0] sm:$0xff]
    %v520 = vld [vmem:[#allocation2 + $0xae8] sm:$0xff]
    %v521 = vld [vmem:[#allocation2 + $0xaf0] sm:$0xff]
    %v522 = vld [vmem:[#allocation2 + $0xaf8] sm:$0xff]
    %v523 = vld [vmem:[#allocation2 + $0xb00] sm:$0xff]
    %v524 = vld [vmem:[#allocation2 + $0xb08] sm:$0xff]
    %v525 = vld [vmem:[#allocation2 + $0xb10] sm:$0xff]
    %v526 = vld [vmem:[#allocation2 + $0xb18] sm:$0xff]
    %v527 = vld [vmem:[#allocation2 + $0xb20] sm:$0xff]
    %v528 = vld [vmem:[#allocation2 + $0xb28] sm:$0xff]
    %v529 = vld [vmem:[#allocation2 + $0xb30] sm:$0xff]
    %v530 = vld [vmem:[#allocation2 + $0xb38] sm:$0xff]
    %v531 = vld [vmem:[#allocation2 + $0xb40] sm:$0xff]
    %v532 = vld [vmem:[#allocation2 + $0xb48] sm:$0xff]
    %v533 = vld [vmem:[#allocation2 + $0xb50] sm:$0xff]
    %v534 = vld [vmem:[#allocation2 + $0xb58] sm:$0xff]
    %v535 = vld [vmem:[#allocation2 + $0xb60] sm:$0xff]
    %v536 = vld [vmem:[#allocation2 + $0xb68] sm:$0xff]
    %v537 = vld [vmem:[#allocation2 + $0xb70] sm:$0xff]
    %v538 = vld [vmem:[#allocation2 + $0xb78] sm:$0xff]
    %v539 = vld [vmem:[#allocation2 + $0xb80] sm:$0xff]
    %v540 = vld [vmem:[#allocation2 + $0xb88] sm:$0xff]
    %v541 = vld [vmem:[#allocation2 + $0xb90] sm:$0xff]
    %v542 = vld [vmem:[#allocation2 + $0xb98] sm:$0xff]
    %v543 = vld [vmem:[#allocation2 + $0xba0] sm:$0xff]
    %v544 = vld [vmem:[#allocation2 + $0xba8] sm:$0xff]
    %v545 = vld [vmem:[#allocation2 + $0xbb0] sm:$0xff]
    %v546 = vld [vmem:[#allocation2 + $0xbb8] sm:$0xff]
    %v547 = vld [vmem:[#allocation2 + $0xbc0] sm:$0xff]
    %v548 = vld [vmem:[#allocation2 + $0xbc8] sm:$0xff]
    %v549 = vld [vmem:[#allocation2 + $0xbd0] sm:$0xff]
    %v550 = vld [vmem:[#allocation2 + $0xbd8] sm:$0xff]
    %v551 = vld [vmem:[#allocation2 + $0xbe0] sm:$0xff]
    %v552 = vld [vmem:[#allocation2 + $0xbe8] sm:$0xff]
    %v553 = vld [vmem:[#allocation2 + $0xbf0] sm:$0xff]
    %v554 = vld [vmem:[#allocation2 + $0xbf8] sm:$0xff]
    %v555 = vld [vmem:[#allocation2 + $0xc00] sm:$0xff]
    %v556 = vld [vmem:[#allocation2 + $0xc08] sm:$0xff]
    %v557 = vld [vmem:[#allocation2 + $0xc10] sm:$0xff]
    %v558 = vld [vmem:[#allocation2 + $0xc18] sm:$0xff]
    %v559 = vld [vmem:[#allocation2 + $0xc20] sm:$0xff]
    %v560 = vld [vmem:[#allocation2 + $0xc28] sm:$0xff]
    %v561 = vld [vmem:[#allocation2 + $0xc30] sm:$0xff]
    %v562 = vld [vmem:[#allocation2 + $0xc38] sm:$0xff]
    %v563 = vld [vmem:[#allocation2 + $0xc40] sm:$0xff]
    %v564 = vld [vmem:[#allocation2 + $0xc48] sm:$0xff]
    %v565 = vld [vmem:[#allocation2 + $0xc50] sm:$0xff]
    %v566 = vld [vmem:[#allocation2 + $0xc58] sm:$0xff]
    %v567 = vld [vmem:[#allocation2 + $0xc60] sm:$0xff]
    %v568 = vld [vmem:[#allocation2 + $0xc68] sm:$0xff]
    %v569 = vld [vmem:[#allocation2 + $0xc70] sm:$0xff]
    %v570 = vld [vmem:[#allocation2 + $0xc78] sm:$0xff]
    %v571 = vld [vmem:[#allocation2 + $0xc80] sm:$0xff]
    %v572 = vld [vmem:[#allocation2 + $0xc88] sm:$0xff]
    %v573 = vld [vmem:[#allocation2 + $0xc90] sm:$0xff]
    %v574 = vld [vmem:[#allocation2 + $0xc98] sm:$0xff]
    %v575 = vld [vmem:[#allocation2 + $0xca0] sm:$0xff]
    %v576 = vld [vmem:[#allocation2 + $0xca8] sm:$0xff]
    %v577 = vld [vmem:[#allocation2 + $0xcb0] sm:$0xff]
    %v578 = vld [vmem:[#allocation2 + $0xcb8] sm:$0xff]
    %v579 = vld [vmem:[#allocation2 + $0xcc0] sm:$0xff]
    %v580 = vld [vmem:[#allocation2 + $0xcc8] sm:$0xff]
    %v581 = vld [vmem:[#allocation2 + $0xcd0] sm:$0xff]
    %v582 = vld [vmem:[#allocation2 + $0xcd8] sm:$0xff]
    %v583 = vld [vmem:[#allocation2 + $0xce0] sm:$0xff]
    %v584 = vld [vmem:[#allocation2 + $0xce8] sm:$0xff]
    %v585 = vld [vmem:[#allocation2 + $0xcf0] sm:$0xff]
    %v586 = vld [vmem:[#allocation2 + $0xcf8] sm:$0xff]
    %v587 = vld [vmem:[#allocation2 + $0xd00] sm:$0xff]
    %v588 = vld [vmem:[#allocation2 + $0xd08] sm:$0xff]
    %v589 = vld [vmem:[#allocation2 + $0xd10] sm:$0xff]
    %v590 = vld [vmem:[#allocation2 + $0xd18] sm:$0xff]
    %v591 = vld [vmem:[#allocation2 + $0xd20] sm:$0xff]
    %v592 = vld [vmem:[#allocation2 + $0xd28] sm:$0xff]
    %v593 = vld [vmem:[#allocation2 + $0xd30] sm:$0xff]
    %v594 = vld [vmem:[#allocation2 + $0xd38] sm:$0xff]
    %v595 = vld [vmem:[#allocation2 + $0xd40] sm:$0xff]
    %v596 = vld [vmem:[#allocation2 + $0xd48] sm:$0xff]
    %v597 = vld [vmem:[#allocation2 + $0xd50] sm:$0xff]
    %v598 = vld [vmem:[#allocation2 + $0xd58] sm:$0xff]
    %v599 = vld [vmem:[#allocation2 + $0xd60] sm:$0xff]
    %v600 = vld [vmem:[#allocation2 + $0xd68] sm:$0xff]
    %v601 = vld [vmem:[#allocation2 + $0xd70] sm:$0xff]
    %v602 = vld [vmem:[#allocation2 + $0xd78] sm:$0xff]
    %v603 = vld [vmem:[#allocation2 + $0xd80] sm:$0xff]
    %v604 = vld [vmem:[#allocation2 + $0xd88] sm:$0xff]
    %v605 = vld [vmem:[#allocation2 + $0xd90] sm:$0xff]
    %v606 = vld [vmem:[#allocation2 + $0xd98] sm:$0xff]
    %v607 = vld [vmem:[#allocation2 + $0xda0] sm:$0xff]
    %v608 = vld [vmem:[#allocation2 + $0xda8] sm:$0xff]
    %v609 = vld [vmem:[#allocation2 + $0xdb0] sm:$0xff]
    %v610 = vld [vmem:[#allocation2 + $0xdb8] sm:$0xff]
    %v611 = vld [vmem:[#allocation2 + $0xdc0] sm:$0xff]
    %v612 = vld [vmem:[#allocation2 + $0xdc8] sm:$0xff]
    %v613 = vld [vmem:[#allocation2 + $0xdd0] sm:$0xff]
    %v614 = vld [vmem:[#allocation2 + $0xdd8] sm:$0xff]
    %v615 = vld [vmem:[#allocation2 + $0xde0] sm:$0xff]
    %v616 = vld [vmem:[#allocation2 + $0xde8] sm:$0xff]
    %v617 = vld [vmem:[#allocation2 + $0xdf0] sm:$0xff]
    %v618 = vld [vmem:[#allocation2 + $0xdf8] sm:$0xff]
    %v619 = vld [vmem:[#allocation2 + $0xe00] sm:$0xff]
    %v620 = vld [vmem:[#allocation2 + $0xe08] sm:$0xff]
    %v621 = vld [vmem:[#allocation2 + $0xe10] sm:$0xff]
    %v622 = vld [vmem:[#allocation2 + $0xe18] sm:$0xff]
    %v623 = vld [vmem:[#allocation2 + $0xe20] sm:$0xff]
    %v624 = vld [vmem:[#allocation2 + $0xe28] sm:$0xff]
    %v625 = vld [vmem:[#allocation2 + $0xe30] sm:$0xff]
    %v626 = vld [vmem:[#allocation2 + $0xe38] sm:$0xff]
    %v627 = vld [vmem:[#allocation2 + $0xe40] sm:$0xff]
    %v628 = vld [vmem:[#allocation2 + $0xe48] sm:$0xff]
    %v629 = vld [vmem:[#allocation2 + $0xe50] sm:$0xff]
    %v630 = vld [vmem:[#allocation2 + $0xe58] sm:$0xff]
    %v631 = vld [vmem:[#allocation2 + $0xe60] sm:$0xff]
    %v632 = vld [vmem:[#allocation2 + $0xe68] sm:$0xff]
    %v633 = vld [vmem:[#allocation2 + $0xe70] sm:$0xff]
    %v634 = vld [vmem:[#allocation2 + $0xe78] sm:$0xff]
    %v635 = vld [vmem:[#allocation2 + $0xe80] sm:$0xff]
    %v636 = vld [vmem:[#allocation2 + $0xe88] sm:$0xff]
    %v637 = vld [vmem:[#allocation2 + $0xe90] sm:$0xff]
    %v638 = vld [vmem:[#allocation2 + $0xe98] sm:$0xff]
    %v639 = vld [vmem:[#allocation2 + $0xea0] sm:$0xff]
    %v640 = vld [vmem:[#allocation2 + $0xea8] sm:$0xff]
    %v641 = vld [vmem:[#allocation2 + $0xeb0] sm:$0xff]
    %v642 = vld [vmem:[#allocation2 + $0xeb8] sm:$0xff]
    %v643 = vld [vmem:[#allocation2 + $0xec0] sm:$0xff]
    %v644 = vld [vmem:[#allocation2 + $0xec8] sm:$0xff]
    %v645 = vld [vmem:[#allocation2 + $0xed0] sm:$0xff]
    %v646 = vld [vmem:[#allocation2 + $0xed8] sm:$0xff]
    %v647 = vld [vmem:[#allocation2 + $0xee0] sm:$0xff]
    %v648 = vld [vmem:[#allocation2 + $0xee8] sm:$0xff]
    %v649 = vld [vmem:[#allocation2 + $0xef0] sm:$0xff]
    %v650 = vld [vmem:[#allocation2 + $0xef8] sm:$0xff]
    %v651 = vld [vmem:[#allocation2 + $0xf00] sm:$0xff]
    %v652 = vld [vmem:[#allocation2 + $0xf08] sm:$0xff]
    %v653 = vld [vmem:[#allocation2 + $0xf10] sm:$0xff]
    %v654 = vld [vmem:[#allocation2 + $0xf18] sm:$0xff]
    %v655 = vld [vmem:[#allocation2 + $0xf20] sm:$0xff]
    %v656 = vld [vmem:[#allocation2 + $0xf28] sm:$0xff]
    %v657 = vld [vmem:[#allocation2 + $0xf30] sm:$0xff]
    %v658 = vld [vmem:[#allocation2 + $0xf38] sm:$0xff]
    %v659 = vld [vmem:[#allocation2 + $0xf40] sm:$0xff]
    %v660 = vld [vmem:[#allocation2 + $0xf48] sm:$0xff]
    %v661 = vld [vmem:[#allocation2 + $0xf50] sm:$0xff]
    %v662 = vld [vmem:[#allocation2 + $0xf58] sm:$0xff]
    %v663 = vld [vmem:[#allocation2 + $0xf60] sm:$0xff]
    %v664 = vld [vmem:[#allocation2 + $0xf68] sm:$0xff]
    %v665 = vld [vmem:[#allocation2 + $0xf70] sm:$0xff]
    %v666 = vld [vmem:[#allocation2 + $0xf78] sm:$0xff]
    %v667 = vld [vmem:[#allocation2 + $0xf80] sm:$0xff]
    %v668 = vld [vmem:[#allocation2 + $0xf88] sm:$0xff]
    %v669 = vld [vmem:[#allocation2 + $0xf90] sm:$0xff]
    %v670 = vld [vmem:[#allocation2 + $0xf98] sm:$0xff]
    %v671 = vld [vmem:[#allocation2 + $0xfa0] sm:$0xff]
    %v672 = vld [vmem:[#allocation2 + $0xfa8] sm:$0xff]
    %v673 = vld [vmem:[#allocation2 + $0xfb0] sm:$0xff]
    %v674 = vld [vmem:[#allocation2 + $0xfb8] sm:$0xff]
    %v675 = vld [vmem:[#allocation2 + $0xfc0] sm:$0xff]
    %v676 = vld [vmem:[#allocation2 + $0xfc8] sm:$0xff]
    %v677 = vld [vmem:[#allocation2 + $0xfd0] sm:$0xff]
    %v678 = vld [vmem:[#allocation2 + $0xfd8] sm:$0xff]
    %v679 = vld [vmem:[#allocation2 + $0xfe0] sm:$0xff]
    %v680 = vld [vmem:[#allocation2 + $0xfe8] sm:$0xff]
    %v681 = vld [vmem:[#allocation2 + $0xff0] sm:$0xff]
    %v682 = vld [vmem:[#allocation2 + $0xff8] sm:$0xff]
    %v683 = vld [vmem:[#allocation2 + $0x1000] sm:$0xff]
    %v684 = vld [vmem:[#allocation2 + $0x1008] sm:$0xff]
    %v685 = vld [vmem:[#allocation2 + $0x1010] sm:$0xff]
    %v686 = vld [vmem:[#allocation2 + $0x1018] sm:$0xff]
    %v687 = vld [vmem:[#allocation2 + $0x1020] sm:$0xff]
    %v688 = vld [vmem:[#allocation2 + $0x1028] sm:$0xff]
    %v689 = vld [vmem:[#allocation2 + $0x1030] sm:$0xff]
    %v690 = vld [vmem:[#allocation2 + $0x1038] sm:$0xff]
    %v691 = vld [vmem:[#allocation2 + $0x1040] sm:$0xff]
    %v692 = vld [vmem:[#allocation2 + $0x1048] sm:$0xff]
    %v693 = vld [vmem:[#allocation2 + $0x1050] sm:$0xff]
    %v694 = vld [vmem:[#allocation2 + $0x1058] sm:$0xff]
    %v695 = vld [vmem:[#allocation2 + $0x1060] sm:$0xff]
    %v696 = vld [vmem:[#allocation2 + $0x1068] sm:$0xff]
    %v697 = vld [vmem:[#allocation2 + $0x1070] sm:$0xff]
    %v698 = vld [vmem:[#allocation2 + $0x1078] sm:$0xff]
    %v699 = vld [vmem:[#allocation2 + $0x1080] sm:$0xff]
    %v700 = vld [vmem:[#allocation2 + $0x1088] sm:$0xff]
    %v701 = vld [vmem:[#allocation2 + $0x1090] sm:$0xff]
    %v702 = vld [vmem:[#allocation2 + $0x1098] sm:$0xff]
    %v703 = vld [vmem:[#allocation2 + $0x10a0] sm:$0xff]
    %v704 = vld [vmem:[#allocation2 + $0x10a8] sm:$0xff]
    %v705 = vld [vmem:[#allocation2 + $0x10b0] sm:$0xff]
    %v706 = vld [vmem:[#allocation2 + $0x10b8] sm:$0xff]
    %v707 = vld [vmem:[#allocation2 + $0x10c0] sm:$0xff]
    %v708 = vld [vmem:[#allocation2 + $0x10c8] sm:$0xff]
    %v709 = vld [vmem:[#allocation2 + $0x10d0] sm:$0xff]
    %v710 = vld [vmem:[#allocation2 + $0x10d8] sm:$0xff]
    %v711 = vld [vmem:[#allocation2 + $0x10e0] sm:$0xff]
    %v712 = vld [vmem:[#allocation2 + $0x10e8] sm:$0xff]
    %v713 = vld [vmem:[#allocation2 + $0x10f0] sm:$0xff]
    %v714 = vld [vmem:[#allocation2 + $0x10f8] sm:$0xff]
    %v715 = vld [vmem:[#allocation2 + $0x1100] sm:$0xff]
    %v716 = vld [vmem:[#allocation2 + $0x1108] sm:$0xff]
    %v717 = vld [vmem:[#allocation2 + $0x1110] sm:$0xff]
    %v718 = vld [vmem:[#allocation2 + $0x1118] sm:$0xff]
    %v719 = vld [vmem:[#allocation2 + $0x1120] sm:$0xff]
    %v720 = vld [vmem:[#allocation2 + $0x1128] sm:$0xff]
    %v721 = vld [vmem:[#allocation2 + $0x1130] sm:$0xff]
    %v722 = vld [vmem:[#allocation2 + $0x1138] sm:$0xff]
    %v723 = vld [vmem:[#allocation2 + $0x1140] sm:$0xff]
    %v724 = vld [vmem:[#allocation2 + $0x1148] sm:$0xff]
    %v725 = vld [vmem:[#allocation2 + $0x1150] sm:$0xff]
    %v726 = vld [vmem:[#allocation2 + $0x1158] sm:$0xff]
    %v727 = vld [vmem:[#allocation2 + $0x1160] sm:$0xff]
    %v728 = vld [vmem:[#allocation2 + $0x1168] sm:$0xff]
    %v729 = vld [vmem:[#allocation2 + $0x1170] sm:$0xff]
    %v730 = vld [vmem:[#allocation2 + $0x1178] sm:$0xff]
    %v731 = vld [vmem:[#allocation2 + $0x1180] sm:$0xff]
    %v732 = vld [vmem:[#allocation2 + $0x1188] sm:$0xff]
    %v733 = vld [vmem:[#allocation2 + $0x1190] sm:$0xff]
    %v734 = vld [vmem:[#allocation2 + $0x1198] sm:$0xff]
    %v735 = vld [vmem:[#allocation2 + $0x11a0] sm:$0xff]
    %v736 = vld [vmem:[#allocation2 + $0x11a8] sm:$0xff]
    %v737 = vld [vmem:[#allocation2 + $0x11b0] sm:$0xff]
    %v738 = vld [vmem:[#allocation2 + $0x11b8] sm:$0xff]
    %v739 = vld [vmem:[#allocation2 + $0x11c0] sm:$0xff]
    %v740 = vld [vmem:[#allocation2 + $0x11c8] sm:$0xff]
    %v741 = vld [vmem:[#allocation2 + $0x11d0] sm:$0xff]
    %v742 = vld [vmem:[#allocation2 + $0x11d8] sm:$0xff]
    %v743 = vld [vmem:[#allocation2 + $0x11e0] sm:$0xff]
    %v744 = vld [vmem:[#allocation2 + $0x11e8] sm:$0xff]
    %v745 = vld [vmem:[#allocation2 + $0x11f0] sm:$0xff]
    %v746 = vld [vmem:[#allocation2 + $0x11f8] sm:$0xff]
    %v747 = vld [vmem:[#allocation2 + $0x1200] sm:$0xff]
    %v748 = vld [vmem:[#allocation2 + $0x1208] sm:$0xff]
    %v749 = vld [vmem:[#allocation2 + $0x1210] sm:$0xff]
    %v750 = vld [vmem:[#allocation2 + $0x1218] sm:$0xff]
    %v751 = vld [vmem:[#allocation2 + $0x1220] sm:$0xff]
    %v752 = vld [vmem:[#allocation2 + $0x1228] sm:$0xff]
    %v753 = vld [vmem:[#allocation2 + $0x1230] sm:$0xff]
    %v754 = vld [vmem:[#allocation2 + $0x1238] sm:$0xff]
    %v755 = vld [vmem:[#allocation2 + $0x1240] sm:$0xff]
    %v756 = vld [vmem:[#allocation2 + $0x1248] sm:$0xff]
    %v757 = vld [vmem:[#allocation2 + $0x1250] sm:$0xff]
    %v758 = vld [vmem:[#allocation2 + $0x1258] sm:$0xff]
    %v759 = vld [vmem:[#allocation2 + $0x1260] sm:$0xff]
    %v760 = vld [vmem:[#allocation2 + $0x1268] sm:$0xff]
    %v761 = vld [vmem:[#allocation2 + $0x1270] sm:$0xff]
    %v762 = vld [vmem:[#allocation2 + $0x1278] sm:$0xff]
    %v763 = vld [vmem:[#allocation2 + $0x1280] sm:$0xff]
    %v764 = vld [vmem:[#allocation2 + $0x1288] sm:$0xff]
    %v765 = vld [vmem:[#allocation2 + $0x1290] sm:$0xff]
    %v766 = vld [vmem:[#allocation2 + $0x1298] sm:$0xff]
    %v767 = vld [vmem:[#allocation2 + $0x12a0] sm:$0xff]
    %v768 = vld [vmem:[#allocation2 + $0x12a8] sm:$0xff]
    %v769 = vld [vmem:[#allocation2 + $0x12b0] sm:$0xff]
    %v770 = vld [vmem:[#allocation2 + $0x12b8] sm:$0xff]
    %v771 = vld [vmem:[#allocation2 + $0x12c0] sm:$0xff]
    %v772 = vld [vmem:[#allocation2 + $0x12c8] sm:$0xff]
    %v773 = vld [vmem:[#allocation2 + $0x12d0] sm:$0xff]
    %v774 = vld [vmem:[#allocation2 + $0x12d8] sm:$0xff]
    %v775 = vld [vmem:[#allocation2 + $0x12e0] sm:$0xff]
    %v776 = vld [vmem:[#allocation2 + $0x12e8] sm:$0xff]
    %v777 = vld [vmem:[#allocation2 + $0x12f0] sm:$0xff]
    %v778 = vld [vmem:[#allocation2 + $0x12f8] sm:$0xff]
    %v779 = vld [vmem:[#allocation2 + $0x1300] sm:$0xff]
    %v780 = vld [vmem:[#allocation2 + $0x1308] sm:$0xff]
    %v781 = vld [vmem:[#allocation2 + $0x1310] sm:$0xff]
    %v782 = vld [vmem:[#allocation2 + $0x1318] sm:$0xff]
    %v783 = vld [vmem:[#allocation2 + $0x1320] sm:$0xff]
    %v784 = vld [vmem:[#allocation2 + $0x1328] sm:$0xff]
    %v785 = vld [vmem:[#allocation2 + $0x1330] sm:$0xff]
    %v786 = vld [vmem:[#allocation2 + $0x1338] sm:$0xff]
    %v787 = vld [vmem:[#allocation2 + $0x1340] sm:$0xff]
    %v788 = vld [vmem:[#allocation2 + $0x1348] sm:$0xff]
    %v789 = vld [vmem:[#allocation2 + $0x1350] sm:$0xff]
    %v790 = vld [vmem:[#allocation2 + $0x1358] sm:$0xff]
    %v791 = vld [vmem:[#allocation2 + $0x1360] sm:$0xff]
    %v792 = vld [vmem:[#allocation2 + $0x1368] sm:$0xff]
    %v793 = vld [vmem:[#allocation2 + $0x1370] sm:$0xff]
    %v794 = vld [vmem:[#allocation2 + $0x1378] sm:$0xff]
    %v795 = vld [vmem:[#allocation2 + $0x1380] sm:$0xff]
    %v796 = vld [vmem:[#allocation2 + $0x1388] sm:$0xff]
    %v797 = vld [vmem:[#allocation2 + $0x1390] sm:$0xff]
    %v798 = vld [vmem:[#allocation2 + $0x1398] sm:$0xff]
    %v799 = vld [vmem:[#allocation2 + $0x13a0] sm:$0xff]
    %v800 = vld [vmem:[#allocation2 + $0x13a8] sm:$0xff]
    %v801 = vld [vmem:[#allocation2 + $0x13b0] sm:$0xff]
    %v802 = vld [vmem:[#allocation2 + $0x13b8] sm:$0xff]
    %v803 = vld [vmem:[#allocation2 + $0x13c0] sm:$0xff]
    %v804 = vld [vmem:[#allocation2 + $0x13c8] sm:$0xff]
    %v805 = vld [vmem:[#allocation2 + $0x13d0] sm:$0xff]
    %v806 = vld [vmem:[#allocation2 + $0x13d8] sm:$0xff]
    %v807 = vld [vmem:[#allocation2 + $0x13e0] sm:$0xff]
    %v808 = vld [vmem:[#allocation2 + $0x13e8] sm:$0xff]
    %v809 = vld [vmem:[#allocation2 + $0x13f0] sm:$0xff]
    %v810 = vld [vmem:[#allocation2 + $0x13f8] sm:$0xff]
    %v811 = vld [vmem:[#allocation2 + $0x1400] sm:$0xff]
    %v812 = vld [vmem:[#allocation2 + $0x1408] sm:$0xff]
    %v813 = vld [vmem:[#allocation2 + $0x1410] sm:$0xff]
    %v814 = vld [vmem:[#allocation2 + $0x1418] sm:$0xff]
    %v815 = vld [vmem:[#allocation2 + $0x1420] sm:$0xff]
    %v816 = vld [vmem:[#allocation2 + $0x1428] sm:$0xff]
    %v817 = vld [vmem:[#allocation2 + $0x1430] sm:$0xff]
    %v818 = vld [vmem:[#allocation2 + $0x1438] sm:$0xff]
    %v819 = vld [vmem:[#allocation2 + $0x1440] sm:$0xff]
    %v820 = vld [vmem:[#allocation2 + $0x1448] sm:$0xff]
    %v821 = vld [vmem:[#allocation2 + $0x1450] sm:$0xff]
    %v822 = vld [vmem:[#allocation2 + $0x1458] sm:$0xff]
    %v823 = vld [vmem:[#allocation2 + $0x1460] sm:$0xff]
    %v824 = vld [vmem:[#allocation2 + $0x1468] sm:$0xff]
    %v825 = vld [vmem:[#allocation2 + $0x1470] sm:$0xff]
    %v826 = vld [vmem:[#allocation2 + $0x1478] sm:$0xff]
    %v827 = vld [vmem:[#allocation2 + $0x1480] sm:$0xff]
    %v828 = vld [vmem:[#allocation2 + $0x1488] sm:$0xff]
    %v829 = vld [vmem:[#allocation2 + $0x1490] sm:$0xff]
    %v830 = vld [vmem:[#allocation2 + $0x1498] sm:$0xff]
    %v831 = vld [vmem:[#allocation2 + $0x14a0] sm:$0xff]
    %v832 = vld [vmem:[#allocation2 + $0x14a8] sm:$0xff]
    %v833 = vld [vmem:[#allocation2 + $0x14b0] sm:$0xff]
    %v834 = vld [vmem:[#allocation2 + $0x14b8] sm:$0xff]
    %v835 = vld [vmem:[#allocation2 + $0x14c0] sm:$0xff]
    %v836 = vld [vmem:[#allocation2 + $0x14c8] sm:$0xff]
    %v837 = vld [vmem:[#allocation2 + $0x14d0] sm:$0xff]
    %v838 = vld [vmem:[#allocation2 + $0x14d8] sm:$0xff]
    %v839 = vld [vmem:[#allocation2 + $0x14e0] sm:$0xff]
    %v840 = vld [vmem:[#allocation2 + $0x14e8] sm:$0xff]
    %v841 = vld [vmem:[#allocation2 + $0x14f0] sm:$0xff]
    %v842 = vld [vmem:[#allocation2 + $0x14f8] sm:$0xff]
    %v843 = vld [vmem:[#allocation2 + $0x1500] sm:$0xff]
    %v844 = vld [vmem:[#allocation2 + $0x1508] sm:$0xff]
    %v845 = vld [vmem:[#allocation2 + $0x1510] sm:$0xff]
    %v846 = vld [vmem:[#allocation2 + $0x1518] sm:$0xff]
    %v847 = vld [vmem:[#allocation2 + $0x1520] sm:$0xff]
    %v848 = vld [vmem:[#allocation2 + $0x1528] sm:$0xff]
    %v849 = vld [vmem:[#allocation2 + $0x1530] sm:$0xff]
    %v850 = vld [vmem:[#allocation2 + $0x1538] sm:$0xff]
    %v851 = vld [vmem:[#allocation2 + $0x1540] sm:$0xff]
    %v852 = vld [vmem:[#allocation2 + $0x1548] sm:$0xff]
    %v853 = vld [vmem:[#allocation2 + $0x1550] sm:$0xff]
    %v854 = vld [vmem:[#allocation2 + $0x1558] sm:$0xff]
    %v855 = vld [vmem:[#allocation2 + $0x1560] sm:$0xff]
    %v856 = vld [vmem:[#allocation2 + $0x1568] sm:$0xff]
    %v857 = vld [vmem:[#allocation2 + $0x1570] sm:$0xff]
    %v858 = vld [vmem:[#allocation2 + $0x1578] sm:$0xff]
    %v859 = vld [vmem:[#allocation2 + $0x1580] sm:$0xff]
    %v860 = vld [vmem:[#allocation2 + $0x1588] sm:$0xff]
    %v861 = vld [vmem:[#allocation2 + $0x1590] sm:$0xff]
    %v862 = vld [vmem:[#allocation2 + $0x1598] sm:$0xff]
    %v863 = vld [vmem:[#allocation2 + $0x15a0] sm:$0xff]
    %v864 = vld [vmem:[#allocation2 + $0x15a8] sm:$0xff]
    %v865 = vld [vmem:[#allocation2 + $0x15b0] sm:$0xff]
    %v866 = vld [vmem:[#allocation2 + $0x15b8] sm:$0xff]
    %v867 = vld [vmem:[#allocation2 + $0x15c0] sm:$0xff]
    %v868 = vld [vmem:[#allocation2 + $0x15c8] sm:$0xff]
    %v869 = vld [vmem:[#allocation2 + $0x15d0] sm:$0xff]
    %v870 = vld [vmem:[#allocation2 + $0x15d8] sm:$0xff]
    %v871 = vld [vmem:[#allocation2 + $0x15e0] sm:$0xff]
    %v872 = vld [vmem:[#allocation2 + $0x15e8] sm:$0xff]
    %v873 = vld [vmem:[#allocation2 + $0x15f0] sm:$0xff]
    %v874 = vld [vmem:[#allocation2 + $0x15f8] sm:$0xff]
    %v875 = vld [vmem:[#allocation2 + $0x1600] sm:$0xff]
    %v876 = vld [vmem:[#allocation2 + $0x1608] sm:$0xff]
    %v877 = vld [vmem:[#allocation2 + $0x1610] sm:$0xff]
    %v878 = vld [vmem:[#allocation2 + $0x1618] sm:$0xff]
    %v879 = vld [vmem:[#allocation2 + $0x1620] sm:$0xff]
    %v880 = vld [vmem:[#allocation2 + $0x1628] sm:$0xff]
    %v881 = vld [vmem:[#allocation2 + $0x1630] sm:$0xff]
    %v882 = vld [vmem:[#allocation2 + $0x1638] sm:$0xff]
    %v883 = vld [vmem:[#allocation2 + $0x1640] sm:$0xff]
    %v884 = vld [vmem:[#allocation2 + $0x1648] sm:$0xff]
    %v885 = vld [vmem:[#allocation2 + $0x1650] sm:$0xff]
    %v886 = vld [vmem:[#allocation2 + $0x1658] sm:$0xff]
    %v887 = vld [vmem:[#allocation2 + $0x1660] sm:$0xff]
    %v888 = vld [vmem:[#allocation2 + $0x1668] sm:$0xff]
    %v889 = vld [vmem:[#allocation2 + $0x1670] sm:$0xff]
    %v890 = vld [vmem:[#allocation2 + $0x1678] sm:$0xff]
    %v891 = vld [vmem:[#allocation2 + $0x1680] sm:$0xff]
    %v892 = vld [vmem:[#allocation2 + $0x1688] sm:$0xff]
    %v893 = vld [vmem:[#allocation2 + $0x1690] sm:$0xff]
    %v894 = vld [vmem:[#allocation2 + $0x1698] sm:$0xff]
    %v895 = vld [vmem:[#allocation2 + $0x16a0] sm:$0xff]
    %v896 = vld [vmem:[#allocation2 + $0x16a8] sm:$0xff]
    %v897 = vld [vmem:[#allocation2 + $0x16b0] sm:$0xff]
    %v898 = vld [vmem:[#allocation2 + $0x16b8] sm:$0xff]
    %v899 = vld [vmem:[#allocation2 + $0x16c0] sm:$0xff]
    %v900 = vld [vmem:[#allocation2 + $0x16c8] sm:$0xff]
    %v901 = vld [vmem:[#allocation2 + $0x16d0] sm:$0xff]
    %v902 = vld [vmem:[#allocation2 + $0x16d8] sm:$0xff]
    %v903 = vld [vmem:[#allocation2 + $0x16e0] sm:$0xff]
    %v904 = vld [vmem:[#allocation2 + $0x16e8] sm:$0xff]
    %v905 = vld [vmem:[#allocation2 + $0x16f0] sm:$0xff]
    %v906 = vld [vmem:[#allocation2 + $0x16f8] sm:$0xff]
    %v907 = vld [vmem:[#allocation2 + $0x1700] sm:$0xff]
    %v908 = vld [vmem:[#allocation2 + $0x1708] sm:$0xff]
    %v909 = vld [vmem:[#allocation2 + $0x1710] sm:$0xff]
    %v910 = vld [vmem:[#allocation2 + $0x1718] sm:$0xff]
    %v911 = vld [vmem:[#allocation2 + $0x1720] sm:$0xff]
    %v912 = vld [vmem:[#allocation2 + $0x1728] sm:$0xff]
    %v913 = vld [vmem:[#allocation2 + $0x1730] sm:$0xff]
    %v914 = vld [vmem:[#allocation2 + $0x1738] sm:$0xff]
    %v915 = vld [vmem:[#allocation2 + $0x1740] sm:$0xff]
    %v916 = vld [vmem:[#allocation2 + $0x1748] sm:$0xff]
    %v917 = vld [vmem:[#allocation2 + $0x1750] sm:$0xff]
    %v918 = vld [vmem:[#allocation2 + $0x1758] sm:$0xff]
    %v919 = vld [vmem:[#allocation2 + $0x1760] sm:$0xff]
    %v920 = vld [vmem:[#allocation2 + $0x1768] sm:$0xff]
    %v921 = vld [vmem:[#allocation2 + $0x1770] sm:$0xff]
    %v922 = vld [vmem:[#allocation2 + $0x1778] sm:$0xff]
    %v923 = vld [vmem:[#allocation2 + $0x1780] sm:$0xff]
    %v924 = vld [vmem:[#allocation2 + $0x1788] sm:$0xff]
    %v925 = vld [vmem:[#allocation2 + $0x1790] sm:$0xff]
    %v926 = vld [vmem:[#allocation2 + $0x1798] sm:$0xff]
    %v927 = vld [vmem:[#allocation2 + $0x17a0] sm:$0xff]
    %v928 = vld [vmem:[#allocation2 + $0x17a8] sm:$0xff]
    %v929 = vld [vmem:[#allocation2 + $0x17b0] sm:$0xff]
    %v930 = vld [vmem:[#allocation2 + $0x17b8] sm:$0xff]
    %v931 = vld [vmem:[#allocation2 + $0x17c0] sm:$0xff]
    %v932 = vld [vmem:[#allocation2 + $0x17c8] sm:$0xff]
    %v933 = vld [vmem:[#allocation2 + $0x17d0] sm:$0xff]
    %v934 = vld [vmem:[#allocation2 + $0x17d8] sm:$0xff]
    %v935 = vld [vmem:[#allocation2 + $0x17e0] sm:$0xff]
    %v936 = vld [vmem:[#allocation2 + $0x17e8] sm:$0xff]
    %v937 = vld [vmem:[#allocation2 + $0x17f0] sm:$0xff]
    %v938 = vld [vmem:[#allocation2 + $0x17f8] sm:$0xff]
    %v939 = vld [vmem:[#allocation2 + $0x1800] sm:$0xff]
    %v940 = vld [vmem:[#allocation2 + $0x1808] sm:$0xff]
    %v941 = vld [vmem:[#allocation2 + $0x1810] sm:$0xff]
    %v942 = vld [vmem:[#allocation2 + $0x1818] sm:$0xff]
    %v943 = vld [vmem:[#allocation2 + $0x1820] sm:$0xff]
    %v944 = vld [vmem:[#allocation2 + $0x1828] sm:$0xff]
    %v945 = vld [vmem:[#allocation2 + $0x1830] sm:$0xff]
    %v946 = vld [vmem:[#allocation2 + $0x1838] sm:$0xff]
    %v947 = vld [vmem:[#allocation2 + $0x1840] sm:$0xff]
    %v948 = vld [vmem:[#allocation2 + $0x1848] sm:$0xff]
    %v949 = vld [vmem:[#allocation2 + $0x1850] sm:$0xff]
    %v950 = vld [vmem:[#allocation2 + $0x1858] sm:$0xff]
    %v951 = vld [vmem:[#allocation2 + $0x1860] sm:$0xff]
    %v952 = vld [vmem:[#allocation2 + $0x1868] sm:$0xff]
    %v953 = vld [vmem:[#allocation2 + $0x1870] sm:$0xff]
    %v954 = vld [vmem:[#allocation2 + $0x1878] sm:$0xff]
    %v955 = vld [vmem:[#allocation2 + $0x1880] sm:$0xff]
    %v956 = vld [vmem:[#allocation2 + $0x1888] sm:$0xff]
    %v957 = vld [vmem:[#allocation2 + $0x1890] sm:$0xff]
    %v958 = vld [vmem:[#allocation2 + $0x1898] sm:$0xff]
    %v959 = vld [vmem:[#allocation2 + $0x18a0] sm:$0xff]
    %v960 = vld [vmem:[#allocation2 + $0x18a8] sm:$0xff]
    %v961 = vld [vmem:[#allocation2 + $0x18b0] sm:$0xff]
    %v962 = vld [vmem:[#allocation2 + $0x18b8] sm:$0xff]
    %v963 = vld [vmem:[#allocation2 + $0x18c0] sm:$0xff]
    %v964 = vld [vmem:[#allocation2 + $0x18c8] sm:$0xff]
    %v965 = vld [vmem:[#allocation2 + $0x18d0] sm:$0xff]
    %v966 = vld [vmem:[#allocation2 + $0x18d8] sm:$0xff]
    %v967 = vld [vmem:[#allocation2 + $0x18e0] sm:$0xff]
    %v968 = vld [vmem:[#allocation2 + $0x18e8] sm:$0xff]
    %v969 = vld [vmem:[#allocation2 + $0x18f0] sm:$0xff]
    %v970 = vld [vmem:[#allocation2 + $0x18f8] sm:$0xff]
    %v971 = vld [vmem:[#allocation2 + $0x1900] sm:$0xff]
    %v972 = vld [vmem:[#allocation2 + $0x1908] sm:$0xff]
    %v973 = vld [vmem:[#allocation2 + $0x1910] sm:$0xff]
    %v974 = vld [vmem:[#allocation2 + $0x1918] sm:$0xff]
    %v975 = vld [vmem:[#allocation2 + $0x1920] sm:$0xff]
    %v976 = vld [vmem:[#allocation2 + $0x1928] sm:$0xff]
    %v977 = vld [vmem:[#allocation2 + $0x1930] sm:$0xff]
    %v978 = vld [vmem:[#allocation2 + $0x1938] sm:$0xff]
    %v979 = vld [vmem:[#allocation2 + $0x1940] sm:$0xff]
    %v980 = vld [vmem:[#allocation2 + $0x1948] sm:$0xff]
    %v981 = vld [vmem:[#allocation2 + $0x1950] sm:$0xff]
    %v982 = vld [vmem:[#allocation2 + $0x1958] sm:$0xff]
    %v983 = vld [vmem:[#allocation2 + $0x1960] sm:$0xff]
    %v984 = vld [vmem:[#allocation2 + $0x1968] sm:$0xff]
    %v985 = vld [vmem:[#allocation2 + $0x1970] sm:$0xff]
    %v986 = vld [vmem:[#allocation2 + $0x1978] sm:$0xff]
    %v987 = vld [vmem:[#allocation2 + $0x1980] sm:$0xff]
    %v988 = vld [vmem:[#allocation2 + $0x1988] sm:$0xff]
    %v989 = vld [vmem:[#allocation2 + $0x1990] sm:$0xff]
    %v990 = vld [vmem:[#allocation2 + $0x1998] sm:$0xff]
    %v991 = vld [vmem:[#allocation2 + $0x19a0] sm:$0xff]
    %v992 = vld [vmem:[#allocation2 + $0x19a8] sm:$0xff]
    %v993 = vld [vmem:[#allocation2 + $0x19b0] sm:$0xff]
    %v994 = vld [vmem:[#allocation2 + $0x19b8] sm:$0xff]
    %v995 = vld [vmem:[#allocation2 + $0x19c0] sm:$0xff]
    %v996 = vld [vmem:[#allocation2 + $0x19c8] sm:$0xff]
    %v997 = vld [vmem:[#allocation2 + $0x19d0] sm:$0xff]
    %v998 = vld [vmem:[#allocation2 + $0x19d8] sm:$0xff]
    %v999 = vld [vmem:[#allocation2 + $0x19e0] sm:$0xff]
    %v1000 = vld [vmem:[#allocation2 + $0x19e8] sm:$0xff]
    %v1001 = vld [vmem:[#allocation2 + $0x19f0] sm:$0xff]
    %v1002 = vld [vmem:[#allocation2 + $0x19f8] sm:$0xff]
    %v1003 = vld [vmem:[#allocation2 + $0x1a00] sm:$0xff]
    %v1004 = vld [vmem:[#allocation2 + $0x1a08] sm:$0xff]
    %v1005 = vld [vmem:[#allocation2 + $0x1a10] sm:$0xff]
    %v1006 = vld [vmem:[#allocation2 + $0x1a18] sm:$0xff]
    %v1007 = vld [vmem:[#allocation2 + $0x1a20] sm:$0xff]
    %v1008 = vld [vmem:[#allocation2 + $0x1a28] sm:$0xff]
    %v1009 = vld [vmem:[#allocation2 + $0x1a30] sm:$0xff]
    %v1010 = vld [vmem:[#allocation2 + $0x1a38] sm:$0xff]
    %v1011 = vld [vmem:[#allocation2 + $0x1a40] sm:$0xff]
    %v1012 = vld [vmem:[#allocation2 + $0x1a48] sm:$0xff]
    %v1013 = vld [vmem:[#allocation2 + $0x1a50] sm:$0xff]
    %v1014 = vld [vmem:[#allocation2 + $0x1a58] sm:$0xff]
    %v1015 = vld [vmem:[#allocation2 + $0x1a60] sm:$0xff]
    %v1016 = vld [vmem:[#allocation2 + $0x1a68] sm:$0xff]
    %v1017 = vld [vmem:[#allocation2 + $0x1a70] sm:$0xff]
    %v1018 = vld [vmem:[#allocation2 + $0x1a78] sm:$0xff]
    %v1019 = vld [vmem:[#allocation2 + $0x1a80] sm:$0xff]
    %v1020 = vld [vmem:[#allocation2 + $0x1a88] sm:$0xff]
    %v1021 = vld [vmem:[#allocation2 + $0x1a90] sm:$0xff]
    %v1022 = vld [vmem:[#allocation2 + $0x1a98] sm:$0xff]
    %v1023 = vld [vmem:[#allocation2 + $0x1aa0] sm:$0xff]
    %v1024 = vld [vmem:[#allocation2 + $0x1aa8] sm:$0xff]
    %v1025 = vld [vmem:[#allocation2 + $0x1ab0] sm:$0xff]
    %v1026 = vld [vmem:[#allocation2 + $0x1ab8] sm:$0xff]
    %v1027 = vld [vmem:[#allocation2 + $0x1ac0] sm:$0xff]
    %v1028 = vld [vmem:[#allocation2 + $0x1ac8] sm:$0xff]
    %v1029 = vld [vmem:[#allocation2 + $0x1ad0] sm:$0xff]
    %v1030 = vld [vmem:[#allocation2 + $0x1ad8] sm:$0xff]
    %v1031 = vld [vmem:[#allocation2 + $0x1ae0] sm:$0xff]
    %v1032 = vld [vmem:[#allocation2 + $0x1ae8] sm:$0xff]
    %v1033 = vld [vmem:[#allocation2 + $0x1af0] sm:$0xff]
    %v1034 = vld [vmem:[#allocation2 + $0x1af8] sm:$0xff]
    %v1035 = vunpack.c.l.s8.bf16 %v171
    %v1036 = vunpack.c.l.s8.bf16 %v172
    %v1037 = vunpack.c.l.s8.bf16 %v173
    %v1038 = vunpack.c.l.s8.bf16 %v174
    %v1039 = vunpack.c.l.s8.bf16 %v175
    %v1040 = vunpack.c.l.s8.bf16 %v176
    %v1041 = vunpack.c.l.s8.bf16 %v177
    %v1042 = vunpack.c.l.s8.bf16 %v178
    %v1043 = vunpack.c.l.s8.bf16 %v179
    %v1044 = vunpack.c.l.s8.bf16 %v180
    %v1045 = vunpack.c.l.s8.bf16 %v181
    %v1046 = vunpack.c.l.s8.bf16 %v182
    %v1047 = vunpack.c.h.s8.bf16 %v171
    %v1048 = vunpack.c.h.s8.bf16 %v172
    %v1049 = vunpack.c.h.s8.bf16 %v173
    %v1050 = vunpack.c.h.s8.bf16 %v174
    %v1051 = vunpack.c.h.s8.bf16 %v175
    %v1052 = vunpack.c.h.s8.bf16 %v176
    %v1053 = vunpack.c.h.s8.bf16 %v177
    %v1054 = vunpack.c.h.s8.bf16 %v178
    %v1055 = vunpack.c.h.s8.bf16 %v179
    %v1056 = vunpack.c.h.s8.bf16 %v180
    %v1057 = vunpack.c.h.s8.bf16 %v181
    %v1058 = vunpack.c.h.s8.bf16 %v182
    %v1059 = vunpack.c.l.s8.bf16 %v183
    %v1060 = vunpack.c.l.s8.bf16 %v184
    %v1061 = vunpack.c.l.s8.bf16 %v185
    %v1062 = vunpack.c.l.s8.bf16 %v186
    %v1063 = vunpack.c.l.s8.bf16 %v187
    %v1064 = vunpack.c.l.s8.bf16 %v188
    %v1065 = vunpack.c.l.s8.bf16 %v189
    %v1066 = vunpack.c.l.s8.bf16 %v190
    %v1067 = vunpack.c.l.s8.bf16 %v191
    %v1068 = vunpack.c.l.s8.bf16 %v192
    %v1069 = vunpack.c.l.s8.bf16 %v193
    %v1070 = vunpack.c.l.s8.bf16 %v194
    %v1071 = vunpack.c.h.s8.bf16 %v183
    %v1072 = vunpack.c.h.s8.bf16 %v184
    %v1073 = vunpack.c.h.s8.bf16 %v185
    %v1074 = vunpack.c.h.s8.bf16 %v186
    %v1075 = vunpack.c.h.s8.bf16 %v187
    %v1076 = vunpack.c.h.s8.bf16 %v188
    %v1077 = vunpack.c.h.s8.bf16 %v189
    %v1078 = vunpack.c.h.s8.bf16 %v190
    %v1079 = vunpack.c.h.s8.bf16 %v191
    %v1080 = vunpack.c.h.s8.bf16 %v192
    %v1081 = vunpack.c.h.s8.bf16 %v193
    %v1082 = vunpack.c.h.s8.bf16 %v194
    %v1083 = vunpack.c.l.s8.bf16 %v195
    %v1084 = vunpack.c.l.s8.bf16 %v196
    %v1085 = vunpack.c.l.s8.bf16 %v197
    %v1086 = vunpack.c.l.s8.bf16 %v198
    %v1087 = vunpack.c.l.s8.bf16 %v199
    %v1088 = vunpack.c.l.s8.bf16 %v200
    %v1089 = vunpack.c.l.s8.bf16 %v201
    %v1090 = vunpack.c.l.s8.bf16 %v202
    %v1091 = vunpack.c.l.s8.bf16 %v203
    %v1092 = vunpack.c.l.s8.bf16 %v204
    %v1093 = vunpack.c.l.s8.bf16 %v205
    %v1094 = vunpack.c.l.s8.bf16 %v206
    %v1095 = vunpack.c.h.s8.bf16 %v195
    %v1096 = vunpack.c.h.s8.bf16 %v196
    %v1097 = vunpack.c.h.s8.bf16 %v197
    %v1098 = vunpack.c.h.s8.bf16 %v198
    %v1099 = vunpack.c.h.s8.bf16 %v199
    %v1100 = vunpack.c.h.s8.bf16 %v200
    %v1101 = vunpack.c.h.s8.bf16 %v201
    %v1102 = vunpack.c.h.s8.bf16 %v202
    %v1103 = vunpack.c.h.s8.bf16 %v203
    %v1104 = vunpack.c.h.s8.bf16 %v204
    %v1105 = vunpack.c.h.s8.bf16 %v205
    %v1106 = vunpack.c.h.s8.bf16 %v206
    %v1107 = vunpack.c.l.s8.bf16 %v207
    %v1108 = vunpack.c.l.s8.bf16 %v208
    %v1109 = vunpack.c.l.s8.bf16 %v209
    %v1110 = vunpack.c.l.s8.bf16 %v210
    %v1111 = vunpack.c.l.s8.bf16 %v211
    %v1112 = vunpack.c.l.s8.bf16 %v212
    %v1113 = vunpack.c.l.s8.bf16 %v213
    %v1114 = vunpack.c.l.s8.bf16 %v214
    %v1115 = vunpack.c.l.s8.bf16 %v215
    %v1116 = vunpack.c.l.s8.bf16 %v216
    %v1117 = vunpack.c.l.s8.bf16 %v217
    %v1118 = vunpack.c.l.s8.bf16 %v218
    %v1119 = vunpack.c.h.s8.bf16 %v207
    %v1120 = vunpack.c.h.s8.bf16 %v208
    %v1121 = vunpack.c.h.s8.bf16 %v209
    %v1122 = vunpack.c.h.s8.bf16 %v210
    %v1123 = vunpack.c.h.s8.bf16 %v211
    %v1124 = vunpack.c.h.s8.bf16 %v212
    %v1125 = vunpack.c.h.s8.bf16 %v213
    %v1126 = vunpack.c.h.s8.bf16 %v214
    %v1127 = vunpack.c.h.s8.bf16 %v215
    %v1128 = vunpack.c.h.s8.bf16 %v216
    %v1129 = vunpack.c.h.s8.bf16 %v217
    %v1130 = vunpack.c.h.s8.bf16 %v218
    %v1131 = vunpack.c.l.s8.bf16 %v219
    %v1132 = vunpack.c.l.s8.bf16 %v220
    %v1133 = vunpack.c.l.s8.bf16 %v221
    %v1134 = vunpack.c.l.s8.bf16 %v222
    %v1135 = vunpack.c.l.s8.bf16 %v223
    %v1136 = vunpack.c.l.s8.bf16 %v224
    %v1137 = vunpack.c.l.s8.bf16 %v225
    %v1138 = vunpack.c.l.s8.bf16 %v226
    %v1139 = vunpack.c.l.s8.bf16 %v227
    %v1140 = vunpack.c.l.s8.bf16 %v228
    %v1141 = vunpack.c.l.s8.bf16 %v229
    %v1142 = vunpack.c.l.s8.bf16 %v230
    %v1143 = vunpack.c.h.s8.bf16 %v219
    %v1144 = vunpack.c.h.s8.bf16 %v220
    %v1145 = vunpack.c.h.s8.bf16 %v221
    %v1146 = vunpack.c.h.s8.bf16 %v222
    %v1147 = vunpack.c.h.s8.bf16 %v223
    %v1148 = vunpack.c.h.s8.bf16 %v224
    %v1149 = vunpack.c.h.s8.bf16 %v225
    %v1150 = vunpack.c.h.s8.bf16 %v226
    %v1151 = vunpack.c.h.s8.bf16 %v227
    %v1152 = vunpack.c.h.s8.bf16 %v228
    %v1153 = vunpack.c.h.s8.bf16 %v229
    %v1154 = vunpack.c.h.s8.bf16 %v230
    %v1155 = vunpack.c.l.s8.bf16 %v231
    %v1156 = vunpack.c.l.s8.bf16 %v232
    %v1157 = vunpack.c.l.s8.bf16 %v233
    %v1158 = vunpack.c.l.s8.bf16 %v234
    %v1159 = vunpack.c.l.s8.bf16 %v235
    %v1160 = vunpack.c.l.s8.bf16 %v236
    %v1161 = vunpack.c.l.s8.bf16 %v237
    %v1162 = vunpack.c.l.s8.bf16 %v238
    %v1163 = vunpack.c.l.s8.bf16 %v239
    %v1164 = vunpack.c.l.s8.bf16 %v240
    %v1165 = vunpack.c.l.s8.bf16 %v241
    %v1166 = vunpack.c.l.s8.bf16 %v242
    %v1167 = vunpack.c.h.s8.bf16 %v231
    %v1168 = vunpack.c.h.s8.bf16 %v232
    %v1169 = vunpack.c.h.s8.bf16 %v233
    %v1170 = vunpack.c.h.s8.bf16 %v234
    %v1171 = vunpack.c.h.s8.bf16 %v235
    %v1172 = vunpack.c.h.s8.bf16 %v236
    %v1173 = vunpack.c.h.s8.bf16 %v237
    %v1174 = vunpack.c.h.s8.bf16 %v238
    %v1175 = vunpack.c.h.s8.bf16 %v239
    %v1176 = vunpack.c.h.s8.bf16 %v240
    %v1177 = vunpack.c.h.s8.bf16 %v241
    %v1178 = vunpack.c.h.s8.bf16 %v242
    %v1179 = vunpack.c.l.s8.bf16 %v243
    %v1180 = vunpack.c.l.s8.bf16 %v244
    %v1181 = vunpack.c.l.s8.bf16 %v245
    %v1182 = vunpack.c.l.s8.bf16 %v246
    %v1183 = vunpack.c.l.s8.bf16 %v247
    %v1184 = vunpack.c.l.s8.bf16 %v248
    %v1185 = vunpack.c.l.s8.bf16 %v249
    %v1186 = vunpack.c.l.s8.bf16 %v250
    %v1187 = vunpack.c.l.s8.bf16 %v251
    %v1188 = vunpack.c.l.s8.bf16 %v252
    %v1189 = vunpack.c.l.s8.bf16 %v253
    %v1190 = vunpack.c.l.s8.bf16 %v254
    %v1191 = vunpack.c.h.s8.bf16 %v243
    %v1192 = vunpack.c.h.s8.bf16 %v244
    %v1193 = vunpack.c.h.s8.bf16 %v245
    %v1194 = vunpack.c.h.s8.bf16 %v246
    %v1195 = vunpack.c.h.s8.bf16 %v247
    %v1196 = vunpack.c.h.s8.bf16 %v248
    %v1197 = vunpack.c.h.s8.bf16 %v249
    %v1198 = vunpack.c.h.s8.bf16 %v250
    %v1199 = vunpack.c.h.s8.bf16 %v251
    %v1200 = vunpack.c.h.s8.bf16 %v252
    %v1201 = vunpack.c.h.s8.bf16 %v253
    %v1202 = vunpack.c.h.s8.bf16 %v254
    %v1203 = vunpack.c.l.s8.bf16 %v255
    %v1204 = vunpack.c.l.s8.bf16 %v256
    %v1205 = vunpack.c.l.s8.bf16 %v257
    %v1206 = vunpack.c.l.s8.bf16 %v258
    %v1207 = vunpack.c.l.s8.bf16 %v259
    %v1208 = vunpack.c.l.s8.bf16 %v260
    %v1209 = vunpack.c.l.s8.bf16 %v261
    %v1210 = vunpack.c.l.s8.bf16 %v262
    %v1211 = vunpack.c.l.s8.bf16 %v263
    %v1212 = vunpack.c.l.s8.bf16 %v264
    %v1213 = vunpack.c.l.s8.bf16 %v265
    %v1214 = vunpack.c.l.s8.bf16 %v266
    %v1215 = vunpack.c.h.s8.bf16 %v255
    %v1216 = vunpack.c.h.s8.bf16 %v256
    %v1217 = vunpack.c.h.s8.bf16 %v257
    %v1218 = vunpack.c.h.s8.bf16 %v258
    %v1219 = vunpack.c.h.s8.bf16 %v259
    %v1220 = vunpack.c.h.s8.bf16 %v260
    %v1221 = vunpack.c.h.s8.bf16 %v261
    %v1222 = vunpack.c.h.s8.bf16 %v262
    %v1223 = vunpack.c.h.s8.bf16 %v263
    %v1224 = vunpack.c.h.s8.bf16 %v264
    %v1225 = vunpack.c.h.s8.bf16 %v265
    %v1226 = vunpack.c.h.s8.bf16 %v266
    %v1227 = vunpack.c.l.s8.bf16 %v267
    %v1228 = vunpack.c.l.s8.bf16 %v268
    %v1229 = vunpack.c.l.s8.bf16 %v269
    %v1230 = vunpack.c.l.s8.bf16 %v270
    %v1231 = vunpack.c.l.s8.bf16 %v271
    %v1232 = vunpack.c.l.s8.bf16 %v272
    %v1233 = vunpack.c.l.s8.bf16 %v273
    %v1234 = vunpack.c.l.s8.bf16 %v274
    %v1235 = vunpack.c.l.s8.bf16 %v275
    %v1236 = vunpack.c.l.s8.bf16 %v276
    %v1237 = vunpack.c.l.s8.bf16 %v277
    %v1238 = vunpack.c.l.s8.bf16 %v278
    %v1239 = vunpack.c.h.s8.bf16 %v267
    %v1240 = vunpack.c.h.s8.bf16 %v268
    %v1241 = vunpack.c.h.s8.bf16 %v269
    %v1242 = vunpack.c.h.s8.bf16 %v270
    %v1243 = vunpack.c.h.s8.bf16 %v271
    %v1244 = vunpack.c.h.s8.bf16 %v272
    %v1245 = vunpack.c.h.s8.bf16 %v273
    %v1246 = vunpack.c.h.s8.bf16 %v274
    %v1247 = vunpack.c.h.s8.bf16 %v275
    %v1248 = vunpack.c.h.s8.bf16 %v276
    %v1249 = vunpack.c.h.s8.bf16 %v277
    %v1250 = vunpack.c.h.s8.bf16 %v278
    %v1251 = vunpack.c.l.s8.bf16 %v279
    %v1252 = vunpack.c.l.s8.bf16 %v280
    %v1253 = vunpack.c.l.s8.bf16 %v281
    %v1254 = vunpack.c.l.s8.bf16 %v282
    %v1255 = vunpack.c.l.s8.bf16 %v283
    %v1256 = vunpack.c.l.s8.bf16 %v284
    %v1257 = vunpack.c.l.s8.bf16 %v285
    %v1258 = vunpack.c.l.s8.bf16 %v286
    %v1259 = vunpack.c.l.s8.bf16 %v287
    %v1260 = vunpack.c.l.s8.bf16 %v288
    %v1261 = vunpack.c.l.s8.bf16 %v289
    %v1262 = vunpack.c.l.s8.bf16 %v290
    %v1263 = vunpack.c.h.s8.bf16 %v279
    %v1264 = vunpack.c.h.s8.bf16 %v280
    %v1265 = vunpack.c.h.s8.bf16 %v281
    %v1266 = vunpack.c.h.s8.bf16 %v282
    %v1267 = vunpack.c.h.s8.bf16 %v283
    %v1268 = vunpack.c.h.s8.bf16 %v284
    %v1269 = vunpack.c.h.s8.bf16 %v285
    %v1270 = vunpack.c.h.s8.bf16 %v286
    %v1271 = vunpack.c.h.s8.bf16 %v287
    %v1272 = vunpack.c.h.s8.bf16 %v288
    %v1273 = vunpack.c.h.s8.bf16 %v289
    %v1274 = vunpack.c.h.s8.bf16 %v290
    %v1275 = vunpack.c.l.s8.bf16 %v291
    %v1276 = vunpack.c.l.s8.bf16 %v292
    %v1277 = vunpack.c.l.s8.bf16 %v293
    %v1278 = vunpack.c.l.s8.bf16 %v294
    %v1279 = vunpack.c.l.s8.bf16 %v295
    %v1280 = vunpack.c.l.s8.bf16 %v296
    %v1281 = vunpack.c.l.s8.bf16 %v297
    %v1282 = vunpack.c.l.s8.bf16 %v298
    %v1283 = vunpack.c.l.s8.bf16 %v299
    %v1284 = vunpack.c.l.s8.bf16 %v300
    %v1285 = vunpack.c.l.s8.bf16 %v301
    %v1286 = vunpack.c.l.s8.bf16 %v302
    %v1287 = vunpack.c.h.s8.bf16 %v291
    %v1288 = vunpack.c.h.s8.bf16 %v292
    %v1289 = vunpack.c.h.s8.bf16 %v293
    %v1290 = vunpack.c.h.s8.bf16 %v294
    %v1291 = vunpack.c.h.s8.bf16 %v295
    %v1292 = vunpack.c.h.s8.bf16 %v296
    %v1293 = vunpack.c.h.s8.bf16 %v297
    %v1294 = vunpack.c.h.s8.bf16 %v298
    %v1295 = vunpack.c.h.s8.bf16 %v299
    %v1296 = vunpack.c.h.s8.bf16 %v300
    %v1297 = vunpack.c.h.s8.bf16 %v301
    %v1298 = vunpack.c.h.s8.bf16 %v302
    %v1299 = vunpack.c.l.s8.bf16 %v303
    %v1300 = vunpack.c.l.s8.bf16 %v304
    %v1301 = vunpack.c.l.s8.bf16 %v305
    %v1302 = vunpack.c.l.s8.bf16 %v306
    %v1303 = vunpack.c.l.s8.bf16 %v307
    %v1304 = vunpack.c.l.s8.bf16 %v308
    %v1305 = vunpack.c.l.s8.bf16 %v309
    %v1306 = vunpack.c.l.s8.bf16 %v310
    %v1307 = vunpack.c.l.s8.bf16 %v311
    %v1308 = vunpack.c.l.s8.bf16 %v312
    %v1309 = vunpack.c.l.s8.bf16 %v313
    %v1310 = vunpack.c.l.s8.bf16 %v314
    %v1311 = vunpack.c.h.s8.bf16 %v303
    %v1312 = vunpack.c.h.s8.bf16 %v304
    %v1313 = vunpack.c.h.s8.bf16 %v305
    %v1314 = vunpack.c.h.s8.bf16 %v306
    %v1315 = vunpack.c.h.s8.bf16 %v307
    %v1316 = vunpack.c.h.s8.bf16 %v308
    %v1317 = vunpack.c.h.s8.bf16 %v309
    %v1318 = vunpack.c.h.s8.bf16 %v310
    %v1319 = vunpack.c.h.s8.bf16 %v311
    %v1320 = vunpack.c.h.s8.bf16 %v312
    %v1321 = vunpack.c.h.s8.bf16 %v313
    %v1322 = vunpack.c.h.s8.bf16 %v314
    %v1323 = vunpack.c.l.s8.bf16 %v315
    %v1324 = vunpack.c.l.s8.bf16 %v316
    %v1325 = vunpack.c.l.s8.bf16 %v317
    %v1326 = vunpack.c.l.s8.bf16 %v318
    %v1327 = vunpack.c.l.s8.bf16 %v319
    %v1328 = vunpack.c.l.s8.bf16 %v320
    %v1329 = vunpack.c.l.s8.bf16 %v321
    %v1330 = vunpack.c.l.s8.bf16 %v322
    %v1331 = vunpack.c.l.s8.bf16 %v323
    %v1332 = vunpack.c.l.s8.bf16 %v324
    %v1333 = vunpack.c.l.s8.bf16 %v325
    %v1334 = vunpack.c.l.s8.bf16 %v326
    %v1335 = vunpack.c.h.s8.bf16 %v315
    %v1336 = vunpack.c.h.s8.bf16 %v316
    %v1337 = vunpack.c.h.s8.bf16 %v317
    %v1338 = vunpack.c.h.s8.bf16 %v318
    %v1339 = vunpack.c.h.s8.bf16 %v319
    %v1340 = vunpack.c.h.s8.bf16 %v320
    %v1341 = vunpack.c.h.s8.bf16 %v321
    %v1342 = vunpack.c.h.s8.bf16 %v322
    %v1343 = vunpack.c.h.s8.bf16 %v323
    %v1344 = vunpack.c.h.s8.bf16 %v324
    %v1345 = vunpack.c.h.s8.bf16 %v325
    %v1346 = vunpack.c.h.s8.bf16 %v326
    %v1347 = vunpack.c.l.s8.bf16 %v327
    %v1348 = vunpack.c.l.s8.bf16 %v328
    %v1349 = vunpack.c.l.s8.bf16 %v329
    %v1350 = vunpack.c.l.s8.bf16 %v330
    %v1351 = vunpack.c.l.s8.bf16 %v331
    %v1352 = vunpack.c.l.s8.bf16 %v332
    %v1353 = vunpack.c.l.s8.bf16 %v333
    %v1354 = vunpack.c.l.s8.bf16 %v334
    %v1355 = vunpack.c.l.s8.bf16 %v335
    %v1356 = vunpack.c.l.s8.bf16 %v336
    %v1357 = vunpack.c.l.s8.bf16 %v337
    %v1358 = vunpack.c.l.s8.bf16 %v338
    %v1359 = vunpack.c.h.s8.bf16 %v327
    %v1360 = vunpack.c.h.s8.bf16 %v328
    %v1361 = vunpack.c.h.s8.bf16 %v329
    %v1362 = vunpack.c.h.s8.bf16 %v330
    %v1363 = vunpack.c.h.s8.bf16 %v331
    %v1364 = vunpack.c.h.s8.bf16 %v332
    %v1365 = vunpack.c.h.s8.bf16 %v333
    %v1366 = vunpack.c.h.s8.bf16 %v334
    %v1367 = vunpack.c.h.s8.bf16 %v335
    %v1368 = vunpack.c.h.s8.bf16 %v336
    %v1369 = vunpack.c.h.s8.bf16 %v337
    %v1370 = vunpack.c.h.s8.bf16 %v338
    %v1371 = vunpack.c.l.s8.bf16 %v339
    %v1372 = vunpack.c.l.s8.bf16 %v340
    %v1373 = vunpack.c.l.s8.bf16 %v341
    %v1374 = vunpack.c.l.s8.bf16 %v342
    %v1375 = vunpack.c.l.s8.bf16 %v343
    %v1376 = vunpack.c.l.s8.bf16 %v344
    %v1377 = vunpack.c.l.s8.bf16 %v345
    %v1378 = vunpack.c.l.s8.bf16 %v346
    %v1379 = vunpack.c.l.s8.bf16 %v347
    %v1380 = vunpack.c.l.s8.bf16 %v348
    %v1381 = vunpack.c.l.s8.bf16 %v349
    %v1382 = vunpack.c.l.s8.bf16 %v350
    %v1383 = vunpack.c.h.s8.bf16 %v339
    %v1384 = vunpack.c.h.s8.bf16 %v340
    %v1385 = vunpack.c.h.s8.bf16 %v341
    %v1386 = vunpack.c.h.s8.bf16 %v342
    %v1387 = vunpack.c.h.s8.bf16 %v343
    %v1388 = vunpack.c.h.s8.bf16 %v344
    %v1389 = vunpack.c.h.s8.bf16 %v345
    %v1390 = vunpack.c.h.s8.bf16 %v346
    %v1391 = vunpack.c.h.s8.bf16 %v347
    %v1392 = vunpack.c.h.s8.bf16 %v348
    %v1393 = vunpack.c.h.s8.bf16 %v349
    %v1394 = vunpack.c.h.s8.bf16 %v350
    %v1395 = vunpack.c.l.s8.bf16 %v351
    %v1396 = vunpack.c.l.s8.bf16 %v352
    %v1397 = vunpack.c.l.s8.bf16 %v353
    %v1398 = vunpack.c.l.s8.bf16 %v354
    %v1399 = vunpack.c.l.s8.bf16 %v355
    %v1400 = vunpack.c.l.s8.bf16 %v356
    %v1401 = vunpack.c.l.s8.bf16 %v357
    %v1402 = vunpack.c.l.s8.bf16 %v358
    %v1403 = vunpack.c.l.s8.bf16 %v359
    %v1404 = vunpack.c.l.s8.bf16 %v360
    %v1405 = vunpack.c.l.s8.bf16 %v361
    %v1406 = vunpack.c.l.s8.bf16 %v362
    %v1407 = vunpack.c.h.s8.bf16 %v351
    %v1408 = vunpack.c.h.s8.bf16 %v352
    %v1409 = vunpack.c.h.s8.bf16 %v353
    %v1410 = vunpack.c.h.s8.bf16 %v354
    %v1411 = vunpack.c.h.s8.bf16 %v355
    %v1412 = vunpack.c.h.s8.bf16 %v356
    %v1413 = vunpack.c.h.s8.bf16 %v357
    %v1414 = vunpack.c.h.s8.bf16 %v358
    %v1415 = vunpack.c.h.s8.bf16 %v359
    %v1416 = vunpack.c.h.s8.bf16 %v360
    %v1417 = vunpack.c.h.s8.bf16 %v361
    %v1418 = vunpack.c.h.s8.bf16 %v362
    %v1419 = vunpack.c.l.s8.bf16 %v363
    %v1420 = vunpack.c.l.s8.bf16 %v364
    %v1421 = vunpack.c.l.s8.bf16 %v365
    %v1422 = vunpack.c.l.s8.bf16 %v366
    %v1423 = vunpack.c.l.s8.bf16 %v367
    %v1424 = vunpack.c.l.s8.bf16 %v368
    %v1425 = vunpack.c.l.s8.bf16 %v369
    %v1426 = vunpack.c.l.s8.bf16 %v370
    %v1427 = vunpack.c.l.s8.bf16 %v371
    %v1428 = vunpack.c.l.s8.bf16 %v372
    %v1429 = vunpack.c.l.s8.bf16 %v373
    %v1430 = vunpack.c.l.s8.bf16 %v374
    %v1431 = vunpack.c.h.s8.bf16 %v363
    %v1432 = vunpack.c.h.s8.bf16 %v364
    %v1433 = vunpack.c.h.s8.bf16 %v365
    %v1434 = vunpack.c.h.s8.bf16 %v366
    %v1435 = vunpack.c.h.s8.bf16 %v367
    %v1436 = vunpack.c.h.s8.bf16 %v368
    %v1437 = vunpack.c.h.s8.bf16 %v369
    %v1438 = vunpack.c.h.s8.bf16 %v370
    %v1439 = vunpack.c.h.s8.bf16 %v371
    %v1440 = vunpack.c.h.s8.bf16 %v372
    %v1441 = vunpack.c.h.s8.bf16 %v373
    %v1442 = vunpack.c.h.s8.bf16 %v374
    %v1443 = vunpack.c.l.s8.bf16 %v375
    %v1444 = vunpack.c.l.s8.bf16 %v376
    %v1445 = vunpack.c.l.s8.bf16 %v377
    %v1446 = vunpack.c.l.s8.bf16 %v378
    %v1447 = vunpack.c.l.s8.bf16 %v379
    %v1448 = vunpack.c.l.s8.bf16 %v380
    %v1449 = vunpack.c.l.s8.bf16 %v381
    %v1450 = vunpack.c.l.s8.bf16 %v382
    %v1451 = vunpack.c.l.s8.bf16 %v383
    %v1452 = vunpack.c.l.s8.bf16 %v384
    %v1453 = vunpack.c.l.s8.bf16 %v385
    %v1454 = vunpack.c.l.s8.bf16 %v386
    %v1455 = vunpack.c.h.s8.bf16 %v375
    %v1456 = vunpack.c.h.s8.bf16 %v376
    %v1457 = vunpack.c.h.s8.bf16 %v377
    %v1458 = vunpack.c.h.s8.bf16 %v378
    %v1459 = vunpack.c.h.s8.bf16 %v379
    %v1460 = vunpack.c.h.s8.bf16 %v380
    %v1461 = vunpack.c.h.s8.bf16 %v381
    %v1462 = vunpack.c.h.s8.bf16 %v382
    %v1463 = vunpack.c.h.s8.bf16 %v383
    %v1464 = vunpack.c.h.s8.bf16 %v384
    %v1465 = vunpack.c.h.s8.bf16 %v385
    %v1466 = vunpack.c.h.s8.bf16 %v386
    %v1467 = vunpack.c.l.s8.bf16 %v387
    %v1468 = vunpack.c.l.s8.bf16 %v388
    %v1469 = vunpack.c.l.s8.bf16 %v389
    %v1470 = vunpack.c.l.s8.bf16 %v390
    %v1471 = vunpack.c.l.s8.bf16 %v391
    %v1472 = vunpack.c.l.s8.bf16 %v392
    %v1473 = vunpack.c.l.s8.bf16 %v393
    %v1474 = vunpack.c.l.s8.bf16 %v394
    %v1475 = vunpack.c.l.s8.bf16 %v395
    %v1476 = vunpack.c.l.s8.bf16 %v396
    %v1477 = vunpack.c.l.s8.bf16 %v397
    %v1478 = vunpack.c.l.s8.bf16 %v398
    %v1479 = vunpack.c.h.s8.bf16 %v387
    %v1480 = vunpack.c.h.s8.bf16 %v388
    %v1481 = vunpack.c.h.s8.bf16 %v389
    %v1482 = vunpack.c.h.s8.bf16 %v390
    %v1483 = vunpack.c.h.s8.bf16 %v391
    %v1484 = vunpack.c.h.s8.bf16 %v392
    %v1485 = vunpack.c.h.s8.bf16 %v393
    %v1486 = vunpack.c.h.s8.bf16 %v394
    %v1487 = vunpack.c.h.s8.bf16 %v395
    %v1488 = vunpack.c.h.s8.bf16 %v396
    %v1489 = vunpack.c.h.s8.bf16 %v397
    %v1490 = vunpack.c.h.s8.bf16 %v398
    %v1491 = vunpack.c.l.s8.bf16 %v399
    %v1492 = vunpack.c.l.s8.bf16 %v400
    %v1493 = vunpack.c.l.s8.bf16 %v401
    %v1494 = vunpack.c.l.s8.bf16 %v402
    %v1495 = vunpack.c.l.s8.bf16 %v403
    %v1496 = vunpack.c.l.s8.bf16 %v404
    %v1497 = vunpack.c.l.s8.bf16 %v405
    %v1498 = vunpack.c.l.s8.bf16 %v406
    %v1499 = vunpack.c.l.s8.bf16 %v407
    %v1500 = vunpack.c.l.s8.bf16 %v408
    %v1501 = vunpack.c.l.s8.bf16 %v409
    %v1502 = vunpack.c.l.s8.bf16 %v410
    %v1503 = vunpack.c.h.s8.bf16 %v399
    %v1504 = vunpack.c.h.s8.bf16 %v400
    %v1505 = vunpack.c.h.s8.bf16 %v401
    %v1506 = vunpack.c.h.s8.bf16 %v402
    %v1507 = vunpack.c.h.s8.bf16 %v403
    %v1508 = vunpack.c.h.s8.bf16 %v404
    %v1509 = vunpack.c.h.s8.bf16 %v405
    %v1510 = vunpack.c.h.s8.bf16 %v406
    %v1511 = vunpack.c.h.s8.bf16 %v407
    %v1512 = vunpack.c.h.s8.bf16 %v408
    %v1513 = vunpack.c.h.s8.bf16 %v409
    %v1514 = vunpack.c.h.s8.bf16 %v410
    %v1515 = vunpack.c.l.s8.bf16 %v411
    %v1516 = vunpack.c.l.s8.bf16 %v412
    %v1517 = vunpack.c.l.s8.bf16 %v413
    %v1518 = vunpack.c.l.s8.bf16 %v414
    %v1519 = vunpack.c.l.s8.bf16 %v415
    %v1520 = vunpack.c.l.s8.bf16 %v416
    %v1521 = vunpack.c.l.s8.bf16 %v417
    %v1522 = vunpack.c.l.s8.bf16 %v418
    %v1523 = vunpack.c.l.s8.bf16 %v419
    %v1524 = vunpack.c.l.s8.bf16 %v420
    %v1525 = vunpack.c.l.s8.bf16 %v421
    %v1526 = vunpack.c.l.s8.bf16 %v422
    %v1527 = vunpack.c.h.s8.bf16 %v411
    %v1528 = vunpack.c.h.s8.bf16 %v412
    %v1529 = vunpack.c.h.s8.bf16 %v413
    %v1530 = vunpack.c.h.s8.bf16 %v414
    %v1531 = vunpack.c.h.s8.bf16 %v415
    %v1532 = vunpack.c.h.s8.bf16 %v416
    %v1533 = vunpack.c.h.s8.bf16 %v417
    %v1534 = vunpack.c.h.s8.bf16 %v418
    %v1535 = vunpack.c.h.s8.bf16 %v419
    %v1536 = vunpack.c.h.s8.bf16 %v420
    %v1537 = vunpack.c.h.s8.bf16 %v421
    %v1538 = vunpack.c.h.s8.bf16 %v422
    %v1539 = vunpack.c.l.s8.bf16 %v423
    %v1540 = vunpack.c.l.s8.bf16 %v424
    %v1541 = vunpack.c.l.s8.bf16 %v425
    %v1542 = vunpack.c.l.s8.bf16 %v426
    %v1543 = vunpack.c.l.s8.bf16 %v427
    %v1544 = vunpack.c.l.s8.bf16 %v428
    %v1545 = vunpack.c.l.s8.bf16 %v429
    %v1546 = vunpack.c.l.s8.bf16 %v430
    %v1547 = vunpack.c.l.s8.bf16 %v431
    %v1548 = vunpack.c.l.s8.bf16 %v432
    %v1549 = vunpack.c.l.s8.bf16 %v433
    %v1550 = vunpack.c.l.s8.bf16 %v434
    %v1551 = vunpack.c.h.s8.bf16 %v423
    %v1552 = vunpack.c.h.s8.bf16 %v424
    %v1553 = vunpack.c.h.s8.bf16 %v425
    %v1554 = vunpack.c.h.s8.bf16 %v426
    %v1555 = vunpack.c.h.s8.bf16 %v427
    %v1556 = vunpack.c.h.s8.bf16 %v428
    %v1557 = vunpack.c.h.s8.bf16 %v429
    %v1558 = vunpack.c.h.s8.bf16 %v430
    %v1559 = vunpack.c.h.s8.bf16 %v431
    %v1560 = vunpack.c.h.s8.bf16 %v432
    %v1561 = vunpack.c.h.s8.bf16 %v433
    %v1562 = vunpack.c.h.s8.bf16 %v434
    %v1563 = vunpack.c.l.s8.bf16 %v435
    %v1564 = vunpack.c.l.s8.bf16 %v436
    %v1565 = vunpack.c.l.s8.bf16 %v437
    %v1566 = vunpack.c.l.s8.bf16 %v438
    %v1567 = vunpack.c.l.s8.bf16 %v439
    %v1568 = vunpack.c.l.s8.bf16 %v440
    %v1569 = vunpack.c.l.s8.bf16 %v441
    %v1570 = vunpack.c.l.s8.bf16 %v442
    %v1571 = vunpack.c.l.s8.bf16 %v443
    %v1572 = vunpack.c.l.s8.bf16 %v444
    %v1573 = vunpack.c.l.s8.bf16 %v445
    %v1574 = vunpack.c.l.s8.bf16 %v446
    %v1575 = vunpack.c.h.s8.bf16 %v435
    %v1576 = vunpack.c.h.s8.bf16 %v436
    %v1577 = vunpack.c.h.s8.bf16 %v437
    %v1578 = vunpack.c.h.s8.bf16 %v438
    %v1579 = vunpack.c.h.s8.bf16 %v439
    %v1580 = vunpack.c.h.s8.bf16 %v440
    %v1581 = vunpack.c.h.s8.bf16 %v441
    %v1582 = vunpack.c.h.s8.bf16 %v442
    %v1583 = vunpack.c.h.s8.bf16 %v443
    %v1584 = vunpack.c.h.s8.bf16 %v444
    %v1585 = vunpack.c.h.s8.bf16 %v445
    %v1586 = vunpack.c.h.s8.bf16 %v446
    %v1587 = vunpack.c.l.s8.bf16 %v447
    %v1588 = vunpack.c.l.s8.bf16 %v448
    %v1589 = vunpack.c.l.s8.bf16 %v449
    %v1590 = vunpack.c.l.s8.bf16 %v450
    %v1591 = vunpack.c.l.s8.bf16 %v451
    %v1592 = vunpack.c.l.s8.bf16 %v452
    %v1593 = vunpack.c.l.s8.bf16 %v453
    %v1594 = vunpack.c.l.s8.bf16 %v454
    %v1595 = vunpack.c.l.s8.bf16 %v455
    %v1596 = vunpack.c.l.s8.bf16 %v456
    %v1597 = vunpack.c.l.s8.bf16 %v457
    %v1598 = vunpack.c.l.s8.bf16 %v458
    %v1599 = vunpack.c.h.s8.bf16 %v447
    %v1600 = vunpack.c.h.s8.bf16 %v448
    %v1601 = vunpack.c.h.s8.bf16 %v449
    %v1602 = vunpack.c.h.s8.bf16 %v450
    %v1603 = vunpack.c.h.s8.bf16 %v451
    %v1604 = vunpack.c.h.s8.bf16 %v452
    %v1605 = vunpack.c.h.s8.bf16 %v453
    %v1606 = vunpack.c.h.s8.bf16 %v454
    %v1607 = vunpack.c.h.s8.bf16 %v455
    %v1608 = vunpack.c.h.s8.bf16 %v456
    %v1609 = vunpack.c.h.s8.bf16 %v457
    %v1610 = vunpack.c.h.s8.bf16 %v458
    %v1611 = vunpack.c.l.s8.bf16 %v459
    %v1612 = vunpack.c.l.s8.bf16 %v460
    %v1613 = vunpack.c.l.s8.bf16 %v461
    %v1614 = vunpack.c.l.s8.bf16 %v462
    %v1615 = vunpack.c.l.s8.bf16 %v463
    %v1616 = vunpack.c.l.s8.bf16 %v464
    %v1617 = vunpack.c.l.s8.bf16 %v465
    %v1618 = vunpack.c.l.s8.bf16 %v466
    %v1619 = vunpack.c.l.s8.bf16 %v467
    %v1620 = vunpack.c.l.s8.bf16 %v468
    %v1621 = vunpack.c.l.s8.bf16 %v469
    %v1622 = vunpack.c.l.s8.bf16 %v470
    %v1623 = vunpack.c.h.s8.bf16 %v459
    %v1624 = vunpack.c.h.s8.bf16 %v460
    %v1625 = vunpack.c.h.s8.bf16 %v461
    %v1626 = vunpack.c.h.s8.bf16 %v462
    %v1627 = vunpack.c.h.s8.bf16 %v463
    %v1628 = vunpack.c.h.s8.bf16 %v464
    %v1629 = vunpack.c.h.s8.bf16 %v465
    %v1630 = vunpack.c.h.s8.bf16 %v466
    %v1631 = vunpack.c.h.s8.bf16 %v467
    %v1632 = vunpack.c.h.s8.bf16 %v468
    %v1633 = vunpack.c.h.s8.bf16 %v469
    %v1634 = vunpack.c.h.s8.bf16 %v470
    %v1635 = vunpack.c.l.s8.bf16 %v471
    %v1636 = vunpack.c.l.s8.bf16 %v472
    %v1637 = vunpack.c.l.s8.bf16 %v473
    %v1638 = vunpack.c.l.s8.bf16 %v474
    %v1639 = vunpack.c.l.s8.bf16 %v475
    %v1640 = vunpack.c.l.s8.bf16 %v476
    %v1641 = vunpack.c.l.s8.bf16 %v477
    %v1642 = vunpack.c.l.s8.bf16 %v478
    %v1643 = vunpack.c.l.s8.bf16 %v479
    %v1644 = vunpack.c.l.s8.bf16 %v480
    %v1645 = vunpack.c.l.s8.bf16 %v481
    %v1646 = vunpack.c.l.s8.bf16 %v482
    %v1647 = vunpack.c.h.s8.bf16 %v471
    %v1648 = vunpack.c.h.s8.bf16 %v472
    %v1649 = vunpack.c.h.s8.bf16 %v473
    %v1650 = vunpack.c.h.s8.bf16 %v474
    %v1651 = vunpack.c.h.s8.bf16 %v475
    %v1652 = vunpack.c.h.s8.bf16 %v476
    %v1653 = vunpack.c.h.s8.bf16 %v477
    %v1654 = vunpack.c.h.s8.bf16 %v478
    %v1655 = vunpack.c.h.s8.bf16 %v479
    %v1656 = vunpack.c.h.s8.bf16 %v480
    %v1657 = vunpack.c.h.s8.bf16 %v481
    %v1658 = vunpack.c.h.s8.bf16 %v482
    %v1659 = vunpack.c.l.s8.bf16 %v483
    %v1660 = vunpack.c.l.s8.bf16 %v484
    %v1661 = vunpack.c.l.s8.bf16 %v485
    %v1662 = vunpack.c.l.s8.bf16 %v486
    %v1663 = vunpack.c.l.s8.bf16 %v487
    %v1664 = vunpack.c.l.s8.bf16 %v488
    %v1665 = vunpack.c.l.s8.bf16 %v489
    %v1666 = vunpack.c.l.s8.bf16 %v490
    %v1667 = vunpack.c.l.s8.bf16 %v491
    %v1668 = vunpack.c.l.s8.bf16 %v492
    %v1669 = vunpack.c.l.s8.bf16 %v493
    %v1670 = vunpack.c.l.s8.bf16 %v494
    %v1671 = vunpack.c.h.s8.bf16 %v483
    %v1672 = vunpack.c.h.s8.bf16 %v484
    %v1673 = vunpack.c.h.s8.bf16 %v485
    %v1674 = vunpack.c.h.s8.bf16 %v486
    %v1675 = vunpack.c.h.s8.bf16 %v487
    %v1676 = vunpack.c.h.s8.bf16 %v488
    %v1677 = vunpack.c.h.s8.bf16 %v489
    %v1678 = vunpack.c.h.s8.bf16 %v490
    %v1679 = vunpack.c.h.s8.bf16 %v491
    %v1680 = vunpack.c.h.s8.bf16 %v492
    %v1681 = vunpack.c.h.s8.bf16 %v493
    %v1682 = vunpack.c.h.s8.bf16 %v494
    %v1683 = vunpack.c.l.s8.bf16 %v495
    %v1684 = vunpack.c.l.s8.bf16 %v496
    %v1685 = vunpack.c.l.s8.bf16 %v497
    %v1686 = vunpack.c.l.s8.bf16 %v498
    %v1687 = vunpack.c.l.s8.bf16 %v499
    %v1688 = vunpack.c.l.s8.bf16 %v500
    %v1689 = vunpack.c.l.s8.bf16 %v501
    %v1690 = vunpack.c.l.s8.bf16 %v502
    %v1691 = vunpack.c.l.s8.bf16 %v503
    %v1692 = vunpack.c.l.s8.bf16 %v504
    %v1693 = vunpack.c.l.s8.bf16 %v505
    %v1694 = vunpack.c.l.s8.bf16 %v506
    %v1695 = vunpack.c.h.s8.bf16 %v495
    %v1696 = vunpack.c.h.s8.bf16 %v496
    %v1697 = vunpack.c.h.s8.bf16 %v497
    %v1698 = vunpack.c.h.s8.bf16 %v498
    %v1699 = vunpack.c.h.s8.bf16 %v499
    %v1700 = vunpack.c.h.s8.bf16 %v500
    %v1701 = vunpack.c.h.s8.bf16 %v501
    %v1702 = vunpack.c.h.s8.bf16 %v502
    %v1703 = vunpack.c.h.s8.bf16 %v503
    %v1704 = vunpack.c.h.s8.bf16 %v504
    %v1705 = vunpack.c.h.s8.bf16 %v505
    %v1706 = vunpack.c.h.s8.bf16 %v506
    %v1707 = vunpack.c.l.s8.bf16 %v507
    %v1708 = vunpack.c.l.s8.bf16 %v508
    %v1709 = vunpack.c.l.s8.bf16 %v509
    %v1710 = vunpack.c.l.s8.bf16 %v510
    %v1711 = vunpack.c.l.s8.bf16 %v511
    %v1712 = vunpack.c.l.s8.bf16 %v512
    %v1713 = vunpack.c.l.s8.bf16 %v513
    %v1714 = vunpack.c.l.s8.bf16 %v514
    %v1715 = vunpack.c.l.s8.bf16 %v515
    %v1716 = vunpack.c.l.s8.bf16 %v516
    %v1717 = vunpack.c.l.s8.bf16 %v517
    %v1718 = vunpack.c.l.s8.bf16 %v518
    %v1719 = vunpack.c.h.s8.bf16 %v507
    %v1720 = vunpack.c.h.s8.bf16 %v508
    %v1721 = vunpack.c.h.s8.bf16 %v509
    %v1722 = vunpack.c.h.s8.bf16 %v510
    %v1723 = vunpack.c.h.s8.bf16 %v511
    %v1724 = vunpack.c.h.s8.bf16 %v512
    %v1725 = vunpack.c.h.s8.bf16 %v513
    %v1726 = vunpack.c.h.s8.bf16 %v514
    %v1727 = vunpack.c.h.s8.bf16 %v515
    %v1728 = vunpack.c.h.s8.bf16 %v516
    %v1729 = vunpack.c.h.s8.bf16 %v517
    %v1730 = vunpack.c.h.s8.bf16 %v518
    %v1731 = vunpack.c.l.s8.bf16 %v519
    %v1732 = vunpack.c.l.s8.bf16 %v520
    %v1733 = vunpack.c.l.s8.bf16 %v521
    %v1734 = vunpack.c.l.s8.bf16 %v522
    %v1735 = vunpack.c.l.s8.bf16 %v523
    %v1736 = vunpack.c.l.s8.bf16 %v524
    %v1737 = vunpack.c.l.s8.bf16 %v525
    %v1738 = vunpack.c.l.s8.bf16 %v526
    %v1739 = vunpack.c.l.s8.bf16 %v527
    %v1740 = vunpack.c.l.s8.bf16 %v528
    %v1741 = vunpack.c.l.s8.bf16 %v529
    %v1742 = vunpack.c.l.s8.bf16 %v530
    %v1743 = vunpack.c.h.s8.bf16 %v519
    %v1744 = vunpack.c.h.s8.bf16 %v520
    %v1745 = vunpack.c.h.s8.bf16 %v521
    %v1746 = vunpack.c.h.s8.bf16 %v522
    %v1747 = vunpack.c.h.s8.bf16 %v523
    %v1748 = vunpack.c.h.s8.bf16 %v524
    %v1749 = vunpack.c.h.s8.bf16 %v525
    %v1750 = vunpack.c.h.s8.bf16 %v526
    %v1751 = vunpack.c.h.s8.bf16 %v527
    %v1752 = vunpack.c.h.s8.bf16 %v528
    %v1753 = vunpack.c.h.s8.bf16 %v529
    %v1754 = vunpack.c.h.s8.bf16 %v530
    %v1755 = vunpack.c.l.s8.bf16 %v531
    %v1756 = vunpack.c.l.s8.bf16 %v532
    %v1757 = vunpack.c.l.s8.bf16 %v533
    %v1758 = vunpack.c.l.s8.bf16 %v534
    %v1759 = vunpack.c.l.s8.bf16 %v535
    %v1760 = vunpack.c.l.s8.bf16 %v536
    %v1761 = vunpack.c.l.s8.bf16 %v537
    %v1762 = vunpack.c.l.s8.bf16 %v538
    %v1763 = vunpack.c.l.s8.bf16 %v539
    %v1764 = vunpack.c.l.s8.bf16 %v540
    %v1765 = vunpack.c.l.s8.bf16 %v541
    %v1766 = vunpack.c.l.s8.bf16 %v542
    %v1767 = vunpack.c.h.s8.bf16 %v531
    %v1768 = vunpack.c.h.s8.bf16 %v532
    %v1769 = vunpack.c.h.s8.bf16 %v533
    %v1770 = vunpack.c.h.s8.bf16 %v534
    %v1771 = vunpack.c.h.s8.bf16 %v535
    %v1772 = vunpack.c.h.s8.bf16 %v536
    %v1773 = vunpack.c.h.s8.bf16 %v537
    %v1774 = vunpack.c.h.s8.bf16 %v538
    %v1775 = vunpack.c.h.s8.bf16 %v539
    %v1776 = vunpack.c.h.s8.bf16 %v540
    %v1777 = vunpack.c.h.s8.bf16 %v541
    %v1778 = vunpack.c.h.s8.bf16 %v542
    %v1779 = vunpack.c.l.s8.bf16 %v543
    %v1780 = vunpack.c.l.s8.bf16 %v544
    %v1781 = vunpack.c.l.s8.bf16 %v545
    %v1782 = vunpack.c.l.s8.bf16 %v546
    %v1783 = vunpack.c.l.s8.bf16 %v547
    %v1784 = vunpack.c.l.s8.bf16 %v548
    %v1785 = vunpack.c.l.s8.bf16 %v549
    %v1786 = vunpack.c.l.s8.bf16 %v550
    %v1787 = vunpack.c.l.s8.bf16 %v551
    %v1788 = vunpack.c.l.s8.bf16 %v552
    %v1789 = vunpack.c.l.s8.bf16 %v553
    %v1790 = vunpack.c.l.s8.bf16 %v554
    %v1791 = vunpack.c.h.s8.bf16 %v543
    %v1792 = vunpack.c.h.s8.bf16 %v544
    %v1793 = vunpack.c.h.s8.bf16 %v545
    %v1794 = vunpack.c.h.s8.bf16 %v546
    %v1795 = vunpack.c.h.s8.bf16 %v547
    %v1796 = vunpack.c.h.s8.bf16 %v548
    %v1797 = vunpack.c.h.s8.bf16 %v549
    %v1798 = vunpack.c.h.s8.bf16 %v550
    %v1799 = vunpack.c.h.s8.bf16 %v551
    %v1800 = vunpack.c.h.s8.bf16 %v552
    %v1801 = vunpack.c.h.s8.bf16 %v553
    %v1802 = vunpack.c.h.s8.bf16 %v554
    %v1803 = vunpack.c.l.s8.bf16 %v555
    %v1804 = vunpack.c.l.s8.bf16 %v556
    %v1805 = vunpack.c.l.s8.bf16 %v557
    %v1806 = vunpack.c.l.s8.bf16 %v558
    %v1807 = vunpack.c.l.s8.bf16 %v559
    %v1808 = vunpack.c.l.s8.bf16 %v560
    %v1809 = vunpack.c.l.s8.bf16 %v561
    %v1810 = vunpack.c.l.s8.bf16 %v562
    %v1811 = vunpack.c.l.s8.bf16 %v563
    %v1812 = vunpack.c.l.s8.bf16 %v564
    %v1813 = vunpack.c.l.s8.bf16 %v565
    %v1814 = vunpack.c.l.s8.bf16 %v566
    %v1815 = vunpack.c.h.s8.bf16 %v555
    %v1816 = vunpack.c.h.s8.bf16 %v556
    %v1817 = vunpack.c.h.s8.bf16 %v557
    %v1818 = vunpack.c.h.s8.bf16 %v558
    %v1819 = vunpack.c.h.s8.bf16 %v559
    %v1820 = vunpack.c.h.s8.bf16 %v560
    %v1821 = vunpack.c.h.s8.bf16 %v561
    %v1822 = vunpack.c.h.s8.bf16 %v562
    %v1823 = vunpack.c.h.s8.bf16 %v563
    %v1824 = vunpack.c.h.s8.bf16 %v564
    %v1825 = vunpack.c.h.s8.bf16 %v565
    %v1826 = vunpack.c.h.s8.bf16 %v566
    %v1827 = vunpack.c.l.s8.bf16 %v567
    %v1828 = vunpack.c.l.s8.bf16 %v568
    %v1829 = vunpack.c.l.s8.bf16 %v569
    %v1830 = vunpack.c.l.s8.bf16 %v570
    %v1831 = vunpack.c.l.s8.bf16 %v571
    %v1832 = vunpack.c.l.s8.bf16 %v572
    %v1833 = vunpack.c.l.s8.bf16 %v573
    %v1834 = vunpack.c.l.s8.bf16 %v574
    %v1835 = vunpack.c.l.s8.bf16 %v575
    %v1836 = vunpack.c.l.s8.bf16 %v576
    %v1837 = vunpack.c.l.s8.bf16 %v577
    %v1838 = vunpack.c.l.s8.bf16 %v578
    %v1839 = vunpack.c.h.s8.bf16 %v567
    %v1840 = vunpack.c.h.s8.bf16 %v568
    %v1841 = vunpack.c.h.s8.bf16 %v569
    %v1842 = vunpack.c.h.s8.bf16 %v570
    %v1843 = vunpack.c.h.s8.bf16 %v571
    %v1844 = vunpack.c.h.s8.bf16 %v572
    %v1845 = vunpack.c.h.s8.bf16 %v573
    %v1846 = vunpack.c.h.s8.bf16 %v574
    %v1847 = vunpack.c.h.s8.bf16 %v575
    %v1848 = vunpack.c.h.s8.bf16 %v576
    %v1849 = vunpack.c.h.s8.bf16 %v577
    %v1850 = vunpack.c.h.s8.bf16 %v578
    %v1851 = vunpack.c.l.s8.bf16 %v579
    %v1852 = vunpack.c.l.s8.bf16 %v580
    %v1853 = vunpack.c.l.s8.bf16 %v581
    %v1854 = vunpack.c.l.s8.bf16 %v582
    %v1855 = vunpack.c.l.s8.bf16 %v583
    %v1856 = vunpack.c.l.s8.bf16 %v584
    %v1857 = vunpack.c.l.s8.bf16 %v585
    %v1858 = vunpack.c.l.s8.bf16 %v586
    %v1859 = vunpack.c.l.s8.bf16 %v587
    %v1860 = vunpack.c.l.s8.bf16 %v588
    %v1861 = vunpack.c.l.s8.bf16 %v589
    %v1862 = vunpack.c.l.s8.bf16 %v590
    %v1863 = vunpack.c.h.s8.bf16 %v579
    %v1864 = vunpack.c.h.s8.bf16 %v580
    %v1865 = vunpack.c.h.s8.bf16 %v581
    %v1866 = vunpack.c.h.s8.bf16 %v582
    %v1867 = vunpack.c.h.s8.bf16 %v583
    %v1868 = vunpack.c.h.s8.bf16 %v584
    %v1869 = vunpack.c.h.s8.bf16 %v585
    %v1870 = vunpack.c.h.s8.bf16 %v586
    %v1871 = vunpack.c.h.s8.bf16 %v587
    %v1872 = vunpack.c.h.s8.bf16 %v588
    %v1873 = vunpack.c.h.s8.bf16 %v589
    %v1874 = vunpack.c.h.s8.bf16 %v590
    %v1875 = vunpack.c.l.s8.bf16 %v591
    %v1876 = vunpack.c.l.s8.bf16 %v592
    %v1877 = vunpack.c.l.s8.bf16 %v593
    %v1878 = vunpack.c.l.s8.bf16 %v594
    %v1879 = vunpack.c.l.s8.bf16 %v595
    %v1880 = vunpack.c.l.s8.bf16 %v596
    %v1881 = vunpack.c.l.s8.bf16 %v597
    %v1882 = vunpack.c.l.s8.bf16 %v598
    %v1883 = vunpack.c.l.s8.bf16 %v599
    %v1884 = vunpack.c.l.s8.bf16 %v600
    %v1885 = vunpack.c.l.s8.bf16 %v601
    %v1886 = vunpack.c.l.s8.bf16 %v602
    %v1887 = vunpack.c.h.s8.bf16 %v591
    %v1888 = vunpack.c.h.s8.bf16 %v592
    %v1889 = vunpack.c.h.s8.bf16 %v593
    %v1890 = vunpack.c.h.s8.bf16 %v594
    %v1891 = vunpack.c.h.s8.bf16 %v595
    %v1892 = vunpack.c.h.s8.bf16 %v596
    %v1893 = vunpack.c.h.s8.bf16 %v597
    %v1894 = vunpack.c.h.s8.bf16 %v598
    %v1895 = vunpack.c.h.s8.bf16 %v599
    %v1896 = vunpack.c.h.s8.bf16 %v600
    %v1897 = vunpack.c.h.s8.bf16 %v601
    %v1898 = vunpack.c.h.s8.bf16 %v602
    %v1899 = vunpack.c.l.s8.bf16 %v603
    %v1900 = vunpack.c.l.s8.bf16 %v604
    %v1901 = vunpack.c.l.s8.bf16 %v605
    %v1902 = vunpack.c.l.s8.bf16 %v606
    %v1903 = vunpack.c.l.s8.bf16 %v607
    %v1904 = vunpack.c.l.s8.bf16 %v608
    %v1905 = vunpack.c.l.s8.bf16 %v609
    %v1906 = vunpack.c.l.s8.bf16 %v610
    %v1907 = vunpack.c.l.s8.bf16 %v611
    %v1908 = vunpack.c.l.s8.bf16 %v612
    %v1909 = vunpack.c.l.s8.bf16 %v613
    %v1910 = vunpack.c.l.s8.bf16 %v614
    %v1911 = vunpack.c.h.s8.bf16 %v603
    %v1912 = vunpack.c.h.s8.bf16 %v604
    %v1913 = vunpack.c.h.s8.bf16 %v605
    %v1914 = vunpack.c.h.s8.bf16 %v606
    %v1915 = vunpack.c.h.s8.bf16 %v607
    %v1916 = vunpack.c.h.s8.bf16 %v608
    %v1917 = vunpack.c.h.s8.bf16 %v609
    %v1918 = vunpack.c.h.s8.bf16 %v610
    %v1919 = vunpack.c.h.s8.bf16 %v611
    %v1920 = vunpack.c.h.s8.bf16 %v612
    %v1921 = vunpack.c.h.s8.bf16 %v613
    %v1922 = vunpack.c.h.s8.bf16 %v614
    %v1923 = vunpack.c.l.s8.bf16 %v615
    %v1924 = vunpack.c.l.s8.bf16 %v616
    %v1925 = vunpack.c.l.s8.bf16 %v617
    %v1926 = vunpack.c.l.s8.bf16 %v618
    %v1927 = vunpack.c.l.s8.bf16 %v619
    %v1928 = vunpack.c.l.s8.bf16 %v620
    %v1929 = vunpack.c.l.s8.bf16 %v621
    %v1930 = vunpack.c.l.s8.bf16 %v622
    %v1931 = vunpack.c.l.s8.bf16 %v623
    %v1932 = vunpack.c.l.s8.bf16 %v624
    %v1933 = vunpack.c.l.s8.bf16 %v625
    %v1934 = vunpack.c.l.s8.bf16 %v626
    %v1935 = vunpack.c.h.s8.bf16 %v615
    %v1936 = vunpack.c.h.s8.bf16 %v616
    %v1937 = vunpack.c.h.s8.bf16 %v617
    %v1938 = vunpack.c.h.s8.bf16 %v618
    %v1939 = vunpack.c.h.s8.bf16 %v619
    %v1940 = vunpack.c.h.s8.bf16 %v620
    %v1941 = vunpack.c.h.s8.bf16 %v621
    %v1942 = vunpack.c.h.s8.bf16 %v622
    %v1943 = vunpack.c.h.s8.bf16 %v623
    %v1944 = vunpack.c.h.s8.bf16 %v624
    %v1945 = vunpack.c.h.s8.bf16 %v625
    %v1946 = vunpack.c.h.s8.bf16 %v626
    %v1947 = vunpack.c.l.s8.bf16 %v627
    %v1948 = vunpack.c.l.s8.bf16 %v628
    %v1949 = vunpack.c.l.s8.bf16 %v629
    %v1950 = vunpack.c.l.s8.bf16 %v630
    %v1951 = vunpack.c.l.s8.bf16 %v631
    %v1952 = vunpack.c.l.s8.bf16 %v632
    %v1953 = vunpack.c.l.s8.bf16 %v633
    %v1954 = vunpack.c.l.s8.bf16 %v634
    %v1955 = vunpack.c.l.s8.bf16 %v635
    %v1956 = vunpack.c.l.s8.bf16 %v636
    %v1957 = vunpack.c.l.s8.bf16 %v637
    %v1958 = vunpack.c.l.s8.bf16 %v638
    %v1959 = vunpack.c.h.s8.bf16 %v627
    %v1960 = vunpack.c.h.s8.bf16 %v628
    %v1961 = vunpack.c.h.s8.bf16 %v629
    %v1962 = vunpack.c.h.s8.bf16 %v630
    %v1963 = vunpack.c.h.s8.bf16 %v631
    %v1964 = vunpack.c.h.s8.bf16 %v632
    %v1965 = vunpack.c.h.s8.bf16 %v633
    %v1966 = vunpack.c.h.s8.bf16 %v634
    %v1967 = vunpack.c.h.s8.bf16 %v635
    %v1968 = vunpack.c.h.s8.bf16 %v636
    %v1969 = vunpack.c.h.s8.bf16 %v637
    %v1970 = vunpack.c.h.s8.bf16 %v638
    %v1971 = vunpack.c.l.s8.bf16 %v639
    %v1972 = vunpack.c.l.s8.bf16 %v640
    %v1973 = vunpack.c.l.s8.bf16 %v641
    %v1974 = vunpack.c.l.s8.bf16 %v642
    %v1975 = vunpack.c.l.s8.bf16 %v643
    %v1976 = vunpack.c.l.s8.bf16 %v644
    %v1977 = vunpack.c.l.s8.bf16 %v645
    %v1978 = vunpack.c.l.s8.bf16 %v646
    %v1979 = vunpack.c.l.s8.bf16 %v647
    %v1980 = vunpack.c.l.s8.bf16 %v648
    %v1981 = vunpack.c.l.s8.bf16 %v649
    %v1982 = vunpack.c.l.s8.bf16 %v650
    %v1983 = vunpack.c.h.s8.bf16 %v639
    %v1984 = vunpack.c.h.s8.bf16 %v640
    %v1985 = vunpack.c.h.s8.bf16 %v641
    %v1986 = vunpack.c.h.s8.bf16 %v642
    %v1987 = vunpack.c.h.s8.bf16 %v643
    %v1988 = vunpack.c.h.s8.bf16 %v644
    %v1989 = vunpack.c.h.s8.bf16 %v645
    %v1990 = vunpack.c.h.s8.bf16 %v646
    %v1991 = vunpack.c.h.s8.bf16 %v647
    %v1992 = vunpack.c.h.s8.bf16 %v648
    %v1993 = vunpack.c.h.s8.bf16 %v649
    %v1994 = vunpack.c.h.s8.bf16 %v650
    %v1995 = vunpack.c.l.s8.bf16 %v651
    %v1996 = vunpack.c.l.s8.bf16 %v652
    %v1997 = vunpack.c.l.s8.bf16 %v653
    %v1998 = vunpack.c.l.s8.bf16 %v654
    %v1999 = vunpack.c.l.s8.bf16 %v655
    %v2000 = vunpack.c.l.s8.bf16 %v656
    %v2001 = vunpack.c.l.s8.bf16 %v657
    %v2002 = vunpack.c.l.s8.bf16 %v658
    %v2003 = vunpack.c.l.s8.bf16 %v659
    %v2004 = vunpack.c.l.s8.bf16 %v660
    %v2005 = vunpack.c.l.s8.bf16 %v661
    %v2006 = vunpack.c.l.s8.bf16 %v662
    %v2007 = vunpack.c.h.s8.bf16 %v651
    %v2008 = vunpack.c.h.s8.bf16 %v652
    %v2009 = vunpack.c.h.s8.bf16 %v653
    %v2010 = vunpack.c.h.s8.bf16 %v654
    %v2011 = vunpack.c.h.s8.bf16 %v655
    %v2012 = vunpack.c.h.s8.bf16 %v656
    %v2013 = vunpack.c.h.s8.bf16 %v657
    %v2014 = vunpack.c.h.s8.bf16 %v658
    %v2015 = vunpack.c.h.s8.bf16 %v659
    %v2016 = vunpack.c.h.s8.bf16 %v660
    %v2017 = vunpack.c.h.s8.bf16 %v661
    %v2018 = vunpack.c.h.s8.bf16 %v662
    %v2019 = vunpack.c.l.s8.bf16 %v663
    %v2020 = vunpack.c.l.s8.bf16 %v664
    %v2021 = vunpack.c.l.s8.bf16 %v665
    %v2022 = vunpack.c.l.s8.bf16 %v666
    %v2023 = vunpack.c.l.s8.bf16 %v667
    %v2024 = vunpack.c.l.s8.bf16 %v668
    %v2025 = vunpack.c.l.s8.bf16 %v669
    %v2026 = vunpack.c.l.s8.bf16 %v670
    %v2027 = vunpack.c.l.s8.bf16 %v671
    %v2028 = vunpack.c.l.s8.bf16 %v672
    %v2029 = vunpack.c.l.s8.bf16 %v673
    %v2030 = vunpack.c.l.s8.bf16 %v674
    %v2031 = vunpack.c.h.s8.bf16 %v663
    %v2032 = vunpack.c.h.s8.bf16 %v664
    %v2033 = vunpack.c.h.s8.bf16 %v665
    %v2034 = vunpack.c.h.s8.bf16 %v666
    %v2035 = vunpack.c.h.s8.bf16 %v667
    %v2036 = vunpack.c.h.s8.bf16 %v668
    %v2037 = vunpack.c.h.s8.bf16 %v669
    %v2038 = vunpack.c.h.s8.bf16 %v670
    %v2039 = vunpack.c.h.s8.bf16 %v671
    %v2040 = vunpack.c.h.s8.bf16 %v672
    %v2041 = vunpack.c.h.s8.bf16 %v673
    %v2042 = vunpack.c.h.s8.bf16 %v674
    %v2043 = vunpack.c.l.s8.bf16 %v675
    %v2044 = vunpack.c.l.s8.bf16 %v676
    %v2045 = vunpack.c.l.s8.bf16 %v677
    %v2046 = vunpack.c.l.s8.bf16 %v678
    %v2047 = vunpack.c.l.s8.bf16 %v679
    %v2048 = vunpack.c.l.s8.bf16 %v680
    %v2049 = vunpack.c.l.s8.bf16 %v681
    %v2050 = vunpack.c.l.s8.bf16 %v682
    %v2051 = vunpack.c.l.s8.bf16 %v683
    %v2052 = vunpack.c.l.s8.bf16 %v684
    %v2053 = vunpack.c.l.s8.bf16 %v685
    %v2054 = vunpack.c.l.s8.bf16 %v686
    %v2055 = vunpack.c.h.s8.bf16 %v675
    %v2056 = vunpack.c.h.s8.bf16 %v676
    %v2057 = vunpack.c.h.s8.bf16 %v677
    %v2058 = vunpack.c.h.s8.bf16 %v678
    %v2059 = vunpack.c.h.s8.bf16 %v679
    %v2060 = vunpack.c.h.s8.bf16 %v680
    %v2061 = vunpack.c.h.s8.bf16 %v681
    %v2062 = vunpack.c.h.s8.bf16 %v682
    %v2063 = vunpack.c.h.s8.bf16 %v683
    %v2064 = vunpack.c.h.s8.bf16 %v684
    %v2065 = vunpack.c.h.s8.bf16 %v685
    %v2066 = vunpack.c.h.s8.bf16 %v686
    %v2067 = vunpack.c.l.s8.bf16 %v687
    %v2068 = vunpack.c.l.s8.bf16 %v688
    %v2069 = vunpack.c.l.s8.bf16 %v689
    %v2070 = vunpack.c.l.s8.bf16 %v690
    %v2071 = vunpack.c.l.s8.bf16 %v691
    %v2072 = vunpack.c.l.s8.bf16 %v692
    %v2073 = vunpack.c.l.s8.bf16 %v693
    %v2074 = vunpack.c.l.s8.bf16 %v694
    %v2075 = vunpack.c.l.s8.bf16 %v695
    %v2076 = vunpack.c.l.s8.bf16 %v696
    %v2077 = vunpack.c.l.s8.bf16 %v697
    %v2078 = vunpack.c.l.s8.bf16 %v698
    %v2079 = vunpack.c.h.s8.bf16 %v687
    %v2080 = vunpack.c.h.s8.bf16 %v688
    %v2081 = vunpack.c.h.s8.bf16 %v689
    %v2082 = vunpack.c.h.s8.bf16 %v690
    %v2083 = vunpack.c.h.s8.bf16 %v691
    %v2084 = vunpack.c.h.s8.bf16 %v692
    %v2085 = vunpack.c.h.s8.bf16 %v693
    %v2086 = vunpack.c.h.s8.bf16 %v694
    %v2087 = vunpack.c.h.s8.bf16 %v695
    %v2088 = vunpack.c.h.s8.bf16 %v696
    %v2089 = vunpack.c.h.s8.bf16 %v697
    %v2090 = vunpack.c.h.s8.bf16 %v698
    %v2091 = vunpack.c.l.s8.bf16 %v699
    %v2092 = vunpack.c.l.s8.bf16 %v700
    %v2093 = vunpack.c.l.s8.bf16 %v701
    %v2094 = vunpack.c.l.s8.bf16 %v702
    %v2095 = vunpack.c.l.s8.bf16 %v703
    %v2096 = vunpack.c.l.s8.bf16 %v704
    %v2097 = vunpack.c.l.s8.bf16 %v705
    %v2098 = vunpack.c.l.s8.bf16 %v706
    %v2099 = vunpack.c.l.s8.bf16 %v707
    %v2100 = vunpack.c.l.s8.bf16 %v708
    %v2101 = vunpack.c.l.s8.bf16 %v709
    %v2102 = vunpack.c.l.s8.bf16 %v710
    %v2103 = vunpack.c.h.s8.bf16 %v699
    %v2104 = vunpack.c.h.s8.bf16 %v700
    %v2105 = vunpack.c.h.s8.bf16 %v701
    %v2106 = vunpack.c.h.s8.bf16 %v702
    %v2107 = vunpack.c.h.s8.bf16 %v703
    %v2108 = vunpack.c.h.s8.bf16 %v704
    %v2109 = vunpack.c.h.s8.bf16 %v705
    %v2110 = vunpack.c.h.s8.bf16 %v706
    %v2111 = vunpack.c.h.s8.bf16 %v707
    %v2112 = vunpack.c.h.s8.bf16 %v708
    %v2113 = vunpack.c.h.s8.bf16 %v709
    %v2114 = vunpack.c.h.s8.bf16 %v710
    %v2115 = vunpack.c.l.s8.bf16 %v711
    %v2116 = vunpack.c.l.s8.bf16 %v712
    %v2117 = vunpack.c.l.s8.bf16 %v713
    %v2118 = vunpack.c.l.s8.bf16 %v714
    %v2119 = vunpack.c.l.s8.bf16 %v715
    %v2120 = vunpack.c.l.s8.bf16 %v716
    %v2121 = vunpack.c.l.s8.bf16 %v717
    %v2122 = vunpack.c.l.s8.bf16 %v718
    %v2123 = vunpack.c.l.s8.bf16 %v719
    %v2124 = vunpack.c.l.s8.bf16 %v720
    %v2125 = vunpack.c.l.s8.bf16 %v721
    %v2126 = vunpack.c.l.s8.bf16 %v722
    %v2127 = vunpack.c.h.s8.bf16 %v711
    %v2128 = vunpack.c.h.s8.bf16 %v712
    %v2129 = vunpack.c.h.s8.bf16 %v713
    %v2130 = vunpack.c.h.s8.bf16 %v714
    %v2131 = vunpack.c.h.s8.bf16 %v715
    %v2132 = vunpack.c.h.s8.bf16 %v716
    %v2133 = vunpack.c.h.s8.bf16 %v717
    %v2134 = vunpack.c.h.s8.bf16 %v718
    %v2135 = vunpack.c.h.s8.bf16 %v719
    %v2136 = vunpack.c.h.s8.bf16 %v720
    %v2137 = vunpack.c.h.s8.bf16 %v721
    %v2138 = vunpack.c.h.s8.bf16 %v722
    %v2139 = vunpack.c.l.s8.bf16 %v723
    %v2140 = vunpack.c.l.s8.bf16 %v724
    %v2141 = vunpack.c.l.s8.bf16 %v725
    %v2142 = vunpack.c.l.s8.bf16 %v726
    %v2143 = vunpack.c.l.s8.bf16 %v727
    %v2144 = vunpack.c.l.s8.bf16 %v728
    %v2145 = vunpack.c.l.s8.bf16 %v729
    %v2146 = vunpack.c.l.s8.bf16 %v730
    %v2147 = vunpack.c.l.s8.bf16 %v731
    %v2148 = vunpack.c.l.s8.bf16 %v732
    %v2149 = vunpack.c.l.s8.bf16 %v733
    %v2150 = vunpack.c.l.s8.bf16 %v734
    %v2151 = vunpack.c.h.s8.bf16 %v723
    %v2152 = vunpack.c.h.s8.bf16 %v724
    %v2153 = vunpack.c.h.s8.bf16 %v725
    %v2154 = vunpack.c.h.s8.bf16 %v726
    %v2155 = vunpack.c.h.s8.bf16 %v727
    %v2156 = vunpack.c.h.s8.bf16 %v728
    %v2157 = vunpack.c.h.s8.bf16 %v729
    %v2158 = vunpack.c.h.s8.bf16 %v730
    %v2159 = vunpack.c.h.s8.bf16 %v731
    %v2160 = vunpack.c.h.s8.bf16 %v732
    %v2161 = vunpack.c.h.s8.bf16 %v733
    %v2162 = vunpack.c.h.s8.bf16 %v734
    %v2163 = vunpack.c.l.s8.bf16 %v735
    %v2164 = vunpack.c.l.s8.bf16 %v736
    %v2165 = vunpack.c.l.s8.bf16 %v737
    %v2166 = vunpack.c.l.s8.bf16 %v738
    %v2167 = vunpack.c.l.s8.bf16 %v739
    %v2168 = vunpack.c.l.s8.bf16 %v740
    %v2169 = vunpack.c.l.s8.bf16 %v741
    %v2170 = vunpack.c.l.s8.bf16 %v742
    %v2171 = vunpack.c.l.s8.bf16 %v743
    %v2172 = vunpack.c.l.s8.bf16 %v744
    %v2173 = vunpack.c.l.s8.bf16 %v745
    %v2174 = vunpack.c.l.s8.bf16 %v746
    %v2175 = vunpack.c.h.s8.bf16 %v735
    %v2176 = vunpack.c.h.s8.bf16 %v736
    %v2177 = vunpack.c.h.s8.bf16 %v737
    %v2178 = vunpack.c.h.s8.bf16 %v738
    %v2179 = vunpack.c.h.s8.bf16 %v739
    %v2180 = vunpack.c.h.s8.bf16 %v740
    %v2181 = vunpack.c.h.s8.bf16 %v741
    %v2182 = vunpack.c.h.s8.bf16 %v742
    %v2183 = vunpack.c.h.s8.bf16 %v743
    %v2184 = vunpack.c.h.s8.bf16 %v744
    %v2185 = vunpack.c.h.s8.bf16 %v745
    %v2186 = vunpack.c.h.s8.bf16 %v746
    %v2187 = vunpack.c.l.s8.bf16 %v747
    %v2188 = vunpack.c.l.s8.bf16 %v748
    %v2189 = vunpack.c.l.s8.bf16 %v749
    %v2190 = vunpack.c.l.s8.bf16 %v750
    %v2191 = vunpack.c.l.s8.bf16 %v751
    %v2192 = vunpack.c.l.s8.bf16 %v752
    %v2193 = vunpack.c.l.s8.bf16 %v753
    %v2194 = vunpack.c.l.s8.bf16 %v754
    %v2195 = vunpack.c.l.s8.bf16 %v755
    %v2196 = vunpack.c.l.s8.bf16 %v756
    %v2197 = vunpack.c.l.s8.bf16 %v757
    %v2198 = vunpack.c.l.s8.bf16 %v758
    %v2199 = vunpack.c.h.s8.bf16 %v747
    %v2200 = vunpack.c.h.s8.bf16 %v748
    %v2201 = vunpack.c.h.s8.bf16 %v749
    %v2202 = vunpack.c.h.s8.bf16 %v750
    %v2203 = vunpack.c.h.s8.bf16 %v751
    %v2204 = vunpack.c.h.s8.bf16 %v752
    %v2205 = vunpack.c.h.s8.bf16 %v753
    %v2206 = vunpack.c.h.s8.bf16 %v754
    %v2207 = vunpack.c.h.s8.bf16 %v755
    %v2208 = vunpack.c.h.s8.bf16 %v756
    %v2209 = vunpack.c.h.s8.bf16 %v757
    %v2210 = vunpack.c.h.s8.bf16 %v758
    %v2211 = vunpack.c.l.s8.bf16 %v759
    %v2212 = vunpack.c.l.s8.bf16 %v760
    %v2213 = vunpack.c.l.s8.bf16 %v761
    %v2214 = vunpack.c.l.s8.bf16 %v762
    %v2215 = vunpack.c.l.s8.bf16 %v763
    %v2216 = vunpack.c.l.s8.bf16 %v764
    %v2217 = vunpack.c.l.s8.bf16 %v765
    %v2218 = vunpack.c.l.s8.bf16 %v766
    %v2219 = vunpack.c.l.s8.bf16 %v767
    %v2220 = vunpack.c.l.s8.bf16 %v768
    %v2221 = vunpack.c.l.s8.bf16 %v769
    %v2222 = vunpack.c.l.s8.bf16 %v770
    %v2223 = vunpack.c.h.s8.bf16 %v759
    %v2224 = vunpack.c.h.s8.bf16 %v760
    %v2225 = vunpack.c.h.s8.bf16 %v761
    %v2226 = vunpack.c.h.s8.bf16 %v762
    %v2227 = vunpack.c.h.s8.bf16 %v763
    %v2228 = vunpack.c.h.s8.bf16 %v764
    %v2229 = vunpack.c.h.s8.bf16 %v765
    %v2230 = vunpack.c.h.s8.bf16 %v766
    %v2231 = vunpack.c.h.s8.bf16 %v767
    %v2232 = vunpack.c.h.s8.bf16 %v768
    %v2233 = vunpack.c.h.s8.bf16 %v769
    %v2234 = vunpack.c.h.s8.bf16 %v770
    %v2235 = vunpack.c.l.s8.bf16 %v771
    %v2236 = vunpack.c.l.s8.bf16 %v772
    %v2237 = vunpack.c.l.s8.bf16 %v773
    %v2238 = vunpack.c.l.s8.bf16 %v774
    %v2239 = vunpack.c.l.s8.bf16 %v775
    %v2240 = vunpack.c.l.s8.bf16 %v776
    %v2241 = vunpack.c.l.s8.bf16 %v777
    %v2242 = vunpack.c.l.s8.bf16 %v778
    %v2243 = vunpack.c.l.s8.bf16 %v779
    %v2244 = vunpack.c.l.s8.bf16 %v780
    %v2245 = vunpack.c.l.s8.bf16 %v781
    %v2246 = vunpack.c.l.s8.bf16 %v782
    %v2247 = vunpack.c.h.s8.bf16 %v771
    %v2248 = vunpack.c.h.s8.bf16 %v772
    %v2249 = vunpack.c.h.s8.bf16 %v773
    %v2250 = vunpack.c.h.s8.bf16 %v774
    %v2251 = vunpack.c.h.s8.bf16 %v775
    %v2252 = vunpack.c.h.s8.bf16 %v776
    %v2253 = vunpack.c.h.s8.bf16 %v777
    %v2254 = vunpack.c.h.s8.bf16 %v778
    %v2255 = vunpack.c.h.s8.bf16 %v779
    %v2256 = vunpack.c.h.s8.bf16 %v780
    %v2257 = vunpack.c.h.s8.bf16 %v781
    %v2258 = vunpack.c.h.s8.bf16 %v782
    %v2259 = vunpack.c.l.s8.bf16 %v783
    %v2260 = vunpack.c.l.s8.bf16 %v784
    %v2261 = vunpack.c.l.s8.bf16 %v785
    %v2262 = vunpack.c.l.s8.bf16 %v786
    %v2263 = vunpack.c.l.s8.bf16 %v787
    %v2264 = vunpack.c.l.s8.bf16 %v788
    %v2265 = vunpack.c.l.s8.bf16 %v789
    %v2266 = vunpack.c.l.s8.bf16 %v790
    %v2267 = vunpack.c.l.s8.bf16 %v791
    %v2268 = vunpack.c.l.s8.bf16 %v792
    %v2269 = vunpack.c.l.s8.bf16 %v793
    %v2270 = vunpack.c.l.s8.bf16 %v794
    %v2271 = vunpack.c.h.s8.bf16 %v783
    %v2272 = vunpack.c.h.s8.bf16 %v784
    %v2273 = vunpack.c.h.s8.bf16 %v785
    %v2274 = vunpack.c.h.s8.bf16 %v786
    %v2275 = vunpack.c.h.s8.bf16 %v787
    %v2276 = vunpack.c.h.s8.bf16 %v788
    %v2277 = vunpack.c.h.s8.bf16 %v789
    %v2278 = vunpack.c.h.s8.bf16 %v790
    %v2279 = vunpack.c.h.s8.bf16 %v791
    %v2280 = vunpack.c.h.s8.bf16 %v792
    %v2281 = vunpack.c.h.s8.bf16 %v793
    %v2282 = vunpack.c.h.s8.bf16 %v794
    %v2283 = vunpack.c.l.s8.bf16 %v795
    %v2284 = vunpack.c.l.s8.bf16 %v796
    %v2285 = vunpack.c.l.s8.bf16 %v797
    %v2286 = vunpack.c.l.s8.bf16 %v798
    %v2287 = vunpack.c.l.s8.bf16 %v799
    %v2288 = vunpack.c.l.s8.bf16 %v800
    %v2289 = vunpack.c.l.s8.bf16 %v801
    %v2290 = vunpack.c.l.s8.bf16 %v802
    %v2291 = vunpack.c.l.s8.bf16 %v803
    %v2292 = vunpack.c.l.s8.bf16 %v804
    %v2293 = vunpack.c.l.s8.bf16 %v805
    %v2294 = vunpack.c.l.s8.bf16 %v806
    %v2295 = vunpack.c.h.s8.bf16 %v795
    %v2296 = vunpack.c.h.s8.bf16 %v796
    %v2297 = vunpack.c.h.s8.bf16 %v797
    %v2298 = vunpack.c.h.s8.bf16 %v798
    %v2299 = vunpack.c.h.s8.bf16 %v799
    %v2300 = vunpack.c.h.s8.bf16 %v800
    %v2301 = vunpack.c.h.s8.bf16 %v801
    %v2302 = vunpack.c.h.s8.bf16 %v802
    %v2303 = vunpack.c.h.s8.bf16 %v803
    %v2304 = vunpack.c.h.s8.bf16 %v804
    %v2305 = vunpack.c.h.s8.bf16 %v805
    %v2306 = vunpack.c.h.s8.bf16 %v806
    %v2307 = vunpack.c.l.s8.bf16 %v807
    %v2308 = vunpack.c.l.s8.bf16 %v808
    %v2309 = vunpack.c.l.s8.bf16 %v809
    %v2310 = vunpack.c.l.s8.bf16 %v810
    %v2311 = vunpack.c.l.s8.bf16 %v811
    %v2312 = vunpack.c.l.s8.bf16 %v812
    %v2313 = vunpack.c.l.s8.bf16 %v813
    %v2314 = vunpack.c.l.s8.bf16 %v814
    %v2315 = vunpack.c.l.s8.bf16 %v815
    %v2316 = vunpack.c.l.s8.bf16 %v816
    %v2317 = vunpack.c.l.s8.bf16 %v817
    %v2318 = vunpack.c.l.s8.bf16 %v818
    %v2319 = vunpack.c.h.s8.bf16 %v807
    %v2320 = vunpack.c.h.s8.bf16 %v808
    %v2321 = vunpack.c.h.s8.bf16 %v809
    %v2322 = vunpack.c.h.s8.bf16 %v810
    %v2323 = vunpack.c.h.s8.bf16 %v811
    %v2324 = vunpack.c.h.s8.bf16 %v812
    %v2325 = vunpack.c.h.s8.bf16 %v813
    %v2326 = vunpack.c.h.s8.bf16 %v814
    %v2327 = vunpack.c.h.s8.bf16 %v815
    %v2328 = vunpack.c.h.s8.bf16 %v816
    %v2329 = vunpack.c.h.s8.bf16 %v817
    %v2330 = vunpack.c.h.s8.bf16 %v818
    %v2331 = vunpack.c.l.s8.bf16 %v819
    %v2332 = vunpack.c.l.s8.bf16 %v820
    %v2333 = vunpack.c.l.s8.bf16 %v821
    %v2334 = vunpack.c.l.s8.bf16 %v822
    %v2335 = vunpack.c.l.s8.bf16 %v823
    %v2336 = vunpack.c.l.s8.bf16 %v824
    %v2337 = vunpack.c.l.s8.bf16 %v825
    %v2338 = vunpack.c.l.s8.bf16 %v826
    %v2339 = vunpack.c.l.s8.bf16 %v827
    %v2340 = vunpack.c.l.s8.bf16 %v828
    %v2341 = vunpack.c.l.s8.bf16 %v829
    %v2342 = vunpack.c.l.s8.bf16 %v830
    %v2343 = vunpack.c.h.s8.bf16 %v819
    %v2344 = vunpack.c.h.s8.bf16 %v820
    %v2345 = vunpack.c.h.s8.bf16 %v821
    %v2346 = vunpack.c.h.s8.bf16 %v822
    %v2347 = vunpack.c.h.s8.bf16 %v823
    %v2348 = vunpack.c.h.s8.bf16 %v824
    %v2349 = vunpack.c.h.s8.bf16 %v825
    %v2350 = vunpack.c.h.s8.bf16 %v826
    %v2351 = vunpack.c.h.s8.bf16 %v827
    %v2352 = vunpack.c.h.s8.bf16 %v828
    %v2353 = vunpack.c.h.s8.bf16 %v829
    %v2354 = vunpack.c.h.s8.bf16 %v830
    %v2355 = vunpack.c.l.s8.bf16 %v831
    %v2356 = vunpack.c.l.s8.bf16 %v832
    %v2357 = vunpack.c.l.s8.bf16 %v833
    %v2358 = vunpack.c.l.s8.bf16 %v834
    %v2359 = vunpack.c.l.s8.bf16 %v835
    %v2360 = vunpack.c.l.s8.bf16 %v836
    %v2361 = vunpack.c.l.s8.bf16 %v837
    %v2362 = vunpack.c.l.s8.bf16 %v838
    %v2363 = vunpack.c.l.s8.bf16 %v839
    %v2364 = vunpack.c.l.s8.bf16 %v840
    %v2365 = vunpack.c.l.s8.bf16 %v841
    %v2366 = vunpack.c.l.s8.bf16 %v842
    %v2367 = vunpack.c.h.s8.bf16 %v831
    %v2368 = vunpack.c.h.s8.bf16 %v832
    %v2369 = vunpack.c.h.s8.bf16 %v833
    %v2370 = vunpack.c.h.s8.bf16 %v834
    %v2371 = vunpack.c.h.s8.bf16 %v835
    %v2372 = vunpack.c.h.s8.bf16 %v836
    %v2373 = vunpack.c.h.s8.bf16 %v837
    %v2374 = vunpack.c.h.s8.bf16 %v838
    %v2375 = vunpack.c.h.s8.bf16 %v839
    %v2376 = vunpack.c.h.s8.bf16 %v840
    %v2377 = vunpack.c.h.s8.bf16 %v841
    %v2378 = vunpack.c.h.s8.bf16 %v842
    %v2379 = vunpack.c.l.s8.bf16 %v843
    %v2380 = vunpack.c.l.s8.bf16 %v844
    %v2381 = vunpack.c.l.s8.bf16 %v845
    %v2382 = vunpack.c.l.s8.bf16 %v846
    %v2383 = vunpack.c.l.s8.bf16 %v847
    %v2384 = vunpack.c.l.s8.bf16 %v848
    %v2385 = vunpack.c.l.s8.bf16 %v849
    %v2386 = vunpack.c.l.s8.bf16 %v850
    %v2387 = vunpack.c.l.s8.bf16 %v851
    %v2388 = vunpack.c.l.s8.bf16 %v852
    %v2389 = vunpack.c.l.s8.bf16 %v853
    %v2390 = vunpack.c.l.s8.bf16 %v854
    %v2391 = vunpack.c.h.s8.bf16 %v843
    %v2392 = vunpack.c.h.s8.bf16 %v844
    %v2393 = vunpack.c.h.s8.bf16 %v845
    %v2394 = vunpack.c.h.s8.bf16 %v846
    %v2395 = vunpack.c.h.s8.bf16 %v847
    %v2396 = vunpack.c.h.s8.bf16 %v848
    %v2397 = vunpack.c.h.s8.bf16 %v849
    %v2398 = vunpack.c.h.s8.bf16 %v850
    %v2399 = vunpack.c.h.s8.bf16 %v851
    %v2400 = vunpack.c.h.s8.bf16 %v852
    %v2401 = vunpack.c.h.s8.bf16 %v853
    %v2402 = vunpack.c.h.s8.bf16 %v854
    %v2403 = vunpack.c.l.s8.bf16 %v855
    %v2404 = vunpack.c.l.s8.bf16 %v856
    %v2405 = vunpack.c.l.s8.bf16 %v857
    %v2406 = vunpack.c.l.s8.bf16 %v858
    %v2407 = vunpack.c.l.s8.bf16 %v859
    %v2408 = vunpack.c.l.s8.bf16 %v860
    %v2409 = vunpack.c.l.s8.bf16 %v861
    %v2410 = vunpack.c.l.s8.bf16 %v862
    %v2411 = vunpack.c.l.s8.bf16 %v863
    %v2412 = vunpack.c.l.s8.bf16 %v864
    %v2413 = vunpack.c.l.s8.bf16 %v865
    %v2414 = vunpack.c.l.s8.bf16 %v866
    %v2415 = vunpack.c.h.s8.bf16 %v855
    %v2416 = vunpack.c.h.s8.bf16 %v856
    %v2417 = vunpack.c.h.s8.bf16 %v857
    %v2418 = vunpack.c.h.s8.bf16 %v858
    %v2419 = vunpack.c.h.s8.bf16 %v859
    %v2420 = vunpack.c.h.s8.bf16 %v860
    %v2421 = vunpack.c.h.s8.bf16 %v861
    %v2422 = vunpack.c.h.s8.bf16 %v862
    %v2423 = vunpack.c.h.s8.bf16 %v863
    %v2424 = vunpack.c.h.s8.bf16 %v864
    %v2425 = vunpack.c.h.s8.bf16 %v865
    %v2426 = vunpack.c.h.s8.bf16 %v866
    %v2427 = vunpack.c.l.s8.bf16 %v867
    %v2428 = vunpack.c.l.s8.bf16 %v868
    %v2429 = vunpack.c.l.s8.bf16 %v869
    %v2430 = vunpack.c.l.s8.bf16 %v870
    %v2431 = vunpack.c.l.s8.bf16 %v871
    %v2432 = vunpack.c.l.s8.bf16 %v872
    %v2433 = vunpack.c.l.s8.bf16 %v873
    %v2434 = vunpack.c.l.s8.bf16 %v874
    %v2435 = vunpack.c.l.s8.bf16 %v875
    %v2436 = vunpack.c.l.s8.bf16 %v876
    %v2437 = vunpack.c.l.s8.bf16 %v877
    %v2438 = vunpack.c.l.s8.bf16 %v878
    %v2439 = vunpack.c.h.s8.bf16 %v867
    %v2440 = vunpack.c.h.s8.bf16 %v868
    %v2441 = vunpack.c.h.s8.bf16 %v869
    %v2442 = vunpack.c.h.s8.bf16 %v870
    %v2443 = vunpack.c.h.s8.bf16 %v871
    %v2444 = vunpack.c.h.s8.bf16 %v872
    %v2445 = vunpack.c.h.s8.bf16 %v873
    %v2446 = vunpack.c.h.s8.bf16 %v874
    %v2447 = vunpack.c.h.s8.bf16 %v875
    %v2448 = vunpack.c.h.s8.bf16 %v876
    %v2449 = vunpack.c.h.s8.bf16 %v877
    %v2450 = vunpack.c.h.s8.bf16 %v878
    %v2451 = vunpack.c.l.s8.bf16 %v879
    %v2452 = vunpack.c.l.s8.bf16 %v880
    %v2453 = vunpack.c.l.s8.bf16 %v881
    %v2454 = vunpack.c.l.s8.bf16 %v882
    %v2455 = vunpack.c.l.s8.bf16 %v883
    %v2456 = vunpack.c.l.s8.bf16 %v884
    %v2457 = vunpack.c.l.s8.bf16 %v885
    %v2458 = vunpack.c.l.s8.bf16 %v886
    %v2459 = vunpack.c.l.s8.bf16 %v887
    %v2460 = vunpack.c.l.s8.bf16 %v888
    %v2461 = vunpack.c.l.s8.bf16 %v889
    %v2462 = vunpack.c.l.s8.bf16 %v890
    %v2463 = vunpack.c.h.s8.bf16 %v879
    %v2464 = vunpack.c.h.s8.bf16 %v880
    %v2465 = vunpack.c.h.s8.bf16 %v881
    %v2466 = vunpack.c.h.s8.bf16 %v882
    %v2467 = vunpack.c.h.s8.bf16 %v883
    %v2468 = vunpack.c.h.s8.bf16 %v884
    %v2469 = vunpack.c.h.s8.bf16 %v885
    %v2470 = vunpack.c.h.s8.bf16 %v886
    %v2471 = vunpack.c.h.s8.bf16 %v887
    %v2472 = vunpack.c.h.s8.bf16 %v888
    %v2473 = vunpack.c.h.s8.bf16 %v889
    %v2474 = vunpack.c.h.s8.bf16 %v890
    %v2475 = vunpack.c.l.s8.bf16 %v891
    %v2476 = vunpack.c.l.s8.bf16 %v892
    %v2477 = vunpack.c.l.s8.bf16 %v893
    %v2478 = vunpack.c.l.s8.bf16 %v894
    %v2479 = vunpack.c.l.s8.bf16 %v895
    %v2480 = vunpack.c.l.s8.bf16 %v896
    %v2481 = vunpack.c.l.s8.bf16 %v897
    %v2482 = vunpack.c.l.s8.bf16 %v898
    %v2483 = vunpack.c.l.s8.bf16 %v899
    %v2484 = vunpack.c.l.s8.bf16 %v900
    %v2485 = vunpack.c.l.s8.bf16 %v901
    %v2486 = vunpack.c.l.s8.bf16 %v902
    %v2487 = vunpack.c.h.s8.bf16 %v891
    %v2488 = vunpack.c.h.s8.bf16 %v892
    %v2489 = vunpack.c.h.s8.bf16 %v893
    %v2490 = vunpack.c.h.s8.bf16 %v894
    %v2491 = vunpack.c.h.s8.bf16 %v895
    %v2492 = vunpack.c.h.s8.bf16 %v896
    %v2493 = vunpack.c.h.s8.bf16 %v897
    %v2494 = vunpack.c.h.s8.bf16 %v898
    %v2495 = vunpack.c.h.s8.bf16 %v899
    %v2496 = vunpack.c.h.s8.bf16 %v900
    %v2497 = vunpack.c.h.s8.bf16 %v901
    %v2498 = vunpack.c.h.s8.bf16 %v902
    %v2499 = vunpack.c.l.s8.bf16 %v903
    %v2500 = vunpack.c.l.s8.bf16 %v904
    %v2501 = vunpack.c.l.s8.bf16 %v905
    %v2502 = vunpack.c.l.s8.bf16 %v906
    %v2503 = vunpack.c.l.s8.bf16 %v907
    %v2504 = vunpack.c.l.s8.bf16 %v908
    %v2505 = vunpack.c.l.s8.bf16 %v909
    %v2506 = vunpack.c.l.s8.bf16 %v910
    %v2507 = vunpack.c.l.s8.bf16 %v911
    %v2508 = vunpack.c.l.s8.bf16 %v912
    %v2509 = vunpack.c.l.s8.bf16 %v913
    %v2510 = vunpack.c.l.s8.bf16 %v914
    %v2511 = vunpack.c.h.s8.bf16 %v903
    %v2512 = vunpack.c.h.s8.bf16 %v904
    %v2513 = vunpack.c.h.s8.bf16 %v905
    %v2514 = vunpack.c.h.s8.bf16 %v906
    %v2515 = vunpack.c.h.s8.bf16 %v907
    %v2516 = vunpack.c.h.s8.bf16 %v908
    %v2517 = vunpack.c.h.s8.bf16 %v909
    %v2518 = vunpack.c.h.s8.bf16 %v910
    %v2519 = vunpack.c.h.s8.bf16 %v911
    %v2520 = vunpack.c.h.s8.bf16 %v912
    %v2521 = vunpack.c.h.s8.bf16 %v913
    %v2522 = vunpack.c.h.s8.bf16 %v914
    %v2523 = vunpack.c.l.s8.bf16 %v915
    %v2524 = vunpack.c.l.s8.bf16 %v916
    %v2525 = vunpack.c.l.s8.bf16 %v917
    %v2526 = vunpack.c.l.s8.bf16 %v918
    %v2527 = vunpack.c.l.s8.bf16 %v919
    %v2528 = vunpack.c.l.s8.bf16 %v920
    %v2529 = vunpack.c.l.s8.bf16 %v921
    %v2530 = vunpack.c.l.s8.bf16 %v922
    %v2531 = vunpack.c.l.s8.bf16 %v923
    %v2532 = vunpack.c.l.s8.bf16 %v924
    %v2533 = vunpack.c.l.s8.bf16 %v925
    %v2534 = vunpack.c.l.s8.bf16 %v926
    %v2535 = vunpack.c.h.s8.bf16 %v915
    %v2536 = vunpack.c.h.s8.bf16 %v916
    %v2537 = vunpack.c.h.s8.bf16 %v917
    %v2538 = vunpack.c.h.s8.bf16 %v918
    %v2539 = vunpack.c.h.s8.bf16 %v919
    %v2540 = vunpack.c.h.s8.bf16 %v920
    %v2541 = vunpack.c.h.s8.bf16 %v921
    %v2542 = vunpack.c.h.s8.bf16 %v922
    %v2543 = vunpack.c.h.s8.bf16 %v923
    %v2544 = vunpack.c.h.s8.bf16 %v924
    %v2545 = vunpack.c.h.s8.bf16 %v925
    %v2546 = vunpack.c.h.s8.bf16 %v926
    %v2547 = vunpack.c.l.s8.bf16 %v927
    %v2548 = vunpack.c.l.s8.bf16 %v928
    %v2549 = vunpack.c.l.s8.bf16 %v929
    %v2550 = vunpack.c.l.s8.bf16 %v930
    %v2551 = vunpack.c.l.s8.bf16 %v931
    %v2552 = vunpack.c.l.s8.bf16 %v932
    %v2553 = vunpack.c.l.s8.bf16 %v933
    %v2554 = vunpack.c.l.s8.bf16 %v934
    %v2555 = vunpack.c.l.s8.bf16 %v935
    %v2556 = vunpack.c.l.s8.bf16 %v936
    %v2557 = vunpack.c.l.s8.bf16 %v937
    %v2558 = vunpack.c.l.s8.bf16 %v938
    %v2559 = vunpack.c.h.s8.bf16 %v927
    %v2560 = vunpack.c.h.s8.bf16 %v928
    %v2561 = vunpack.c.h.s8.bf16 %v929
    %v2562 = vunpack.c.h.s8.bf16 %v930
    %v2563 = vunpack.c.h.s8.bf16 %v931
    %v2564 = vunpack.c.h.s8.bf16 %v932
    %v2565 = vunpack.c.h.s8.bf16 %v933
    %v2566 = vunpack.c.h.s8.bf16 %v934
    %v2567 = vunpack.c.h.s8.bf16 %v935
    %v2568 = vunpack.c.h.s8.bf16 %v936
    %v2569 = vunpack.c.h.s8.bf16 %v937
    %v2570 = vunpack.c.h.s8.bf16 %v938
    %v2571 = vunpack.c.l.s8.bf16 %v939
    %v2572 = vunpack.c.l.s8.bf16 %v940
    %v2573 = vunpack.c.l.s8.bf16 %v941
    %v2574 = vunpack.c.l.s8.bf16 %v942
    %v2575 = vunpack.c.l.s8.bf16 %v943
    %v2576 = vunpack.c.l.s8.bf16 %v944
    %v2577 = vunpack.c.l.s8.bf16 %v945
    %v2578 = vunpack.c.l.s8.bf16 %v946
    %v2579 = vunpack.c.l.s8.bf16 %v947
    %v2580 = vunpack.c.l.s8.bf16 %v948
    %v2581 = vunpack.c.l.s8.bf16 %v949
    %v2582 = vunpack.c.l.s8.bf16 %v950
    %v2583 = vunpack.c.h.s8.bf16 %v939
    %v2584 = vunpack.c.h.s8.bf16 %v940
    %v2585 = vunpack.c.h.s8.bf16 %v941
    %v2586 = vunpack.c.h.s8.bf16 %v942
    %v2587 = vunpack.c.h.s8.bf16 %v943
    %v2588 = vunpack.c.h.s8.bf16 %v944
    %v2589 = vunpack.c.h.s8.bf16 %v945
    %v2590 = vunpack.c.h.s8.bf16 %v946
    %v2591 = vunpack.c.h.s8.bf16 %v947
    %v2592 = vunpack.c.h.s8.bf16 %v948
    %v2593 = vunpack.c.h.s8.bf16 %v949
    %v2594 = vunpack.c.h.s8.bf16 %v950
    %v2595 = vunpack.c.l.s8.bf16 %v951
    %v2596 = vunpack.c.l.s8.bf16 %v952
    %v2597 = vunpack.c.l.s8.bf16 %v953
    %v2598 = vunpack.c.l.s8.bf16 %v954
    %v2599 = vunpack.c.l.s8.bf16 %v955
    %v2600 = vunpack.c.l.s8.bf16 %v956
    %v2601 = vunpack.c.l.s8.bf16 %v957
    %v2602 = vunpack.c.l.s8.bf16 %v958
    %v2603 = vunpack.c.l.s8.bf16 %v959
    %v2604 = vunpack.c.l.s8.bf16 %v960
    %v2605 = vunpack.c.l.s8.bf16 %v961
    %v2606 = vunpack.c.l.s8.bf16 %v962
    %v2607 = vunpack.c.h.s8.bf16 %v951
    %v2608 = vunpack.c.h.s8.bf16 %v952
    %v2609 = vunpack.c.h.s8.bf16 %v953
    %v2610 = vunpack.c.h.s8.bf16 %v954
    %v2611 = vunpack.c.h.s8.bf16 %v955
    %v2612 = vunpack.c.h.s8.bf16 %v956
    %v2613 = vunpack.c.h.s8.bf16 %v957
    %v2614 = vunpack.c.h.s8.bf16 %v958
    %v2615 = vunpack.c.h.s8.bf16 %v959
    %v2616 = vunpack.c.h.s8.bf16 %v960
    %v2617 = vunpack.c.h.s8.bf16 %v961
    %v2618 = vunpack.c.h.s8.bf16 %v962
    %v2619 = vunpack.c.l.s8.bf16 %v963
    %v2620 = vunpack.c.l.s8.bf16 %v964
    %v2621 = vunpack.c.l.s8.bf16 %v965
    %v2622 = vunpack.c.l.s8.bf16 %v966
    %v2623 = vunpack.c.l.s8.bf16 %v967
    %v2624 = vunpack.c.l.s8.bf16 %v968
    %v2625 = vunpack.c.l.s8.bf16 %v969
    %v2626 = vunpack.c.l.s8.bf16 %v970
    %v2627 = vunpack.c.l.s8.bf16 %v971
    %v2628 = vunpack.c.l.s8.bf16 %v972
    %v2629 = vunpack.c.l.s8.bf16 %v973
    %v2630 = vunpack.c.l.s8.bf16 %v974
    %v2631 = vunpack.c.h.s8.bf16 %v963
    %v2632 = vunpack.c.h.s8.bf16 %v964
    %v2633 = vunpack.c.h.s8.bf16 %v965
    %v2634 = vunpack.c.h.s8.bf16 %v966
    %v2635 = vunpack.c.h.s8.bf16 %v967
    %v2636 = vunpack.c.h.s8.bf16 %v968
    %v2637 = vunpack.c.h.s8.bf16 %v969
    %v2638 = vunpack.c.h.s8.bf16 %v970
    %v2639 = vunpack.c.h.s8.bf16 %v971
    %v2640 = vunpack.c.h.s8.bf16 %v972
    %v2641 = vunpack.c.h.s8.bf16 %v973
    %v2642 = vunpack.c.h.s8.bf16 %v974
    %v2643 = vunpack.c.l.s8.bf16 %v975
    %v2644 = vunpack.c.l.s8.bf16 %v976
    %v2645 = vunpack.c.l.s8.bf16 %v977
    %v2646 = vunpack.c.l.s8.bf16 %v978
    %v2647 = vunpack.c.l.s8.bf16 %v979
    %v2648 = vunpack.c.l.s8.bf16 %v980
    %v2649 = vunpack.c.l.s8.bf16 %v981
    %v2650 = vunpack.c.l.s8.bf16 %v982
    %v2651 = vunpack.c.l.s8.bf16 %v983
    %v2652 = vunpack.c.l.s8.bf16 %v984
    %v2653 = vunpack.c.l.s8.bf16 %v985
    %v2654 = vunpack.c.l.s8.bf16 %v986
    %v2655 = vunpack.c.h.s8.bf16 %v975
    %v2656 = vunpack.c.h.s8.bf16 %v976
    %v2657 = vunpack.c.h.s8.bf16 %v977
    %v2658 = vunpack.c.h.s8.bf16 %v978
    %v2659 = vunpack.c.h.s8.bf16 %v979
    %v2660 = vunpack.c.h.s8.bf16 %v980
    %v2661 = vunpack.c.h.s8.bf16 %v981
    %v2662 = vunpack.c.h.s8.bf16 %v982
    %v2663 = vunpack.c.h.s8.bf16 %v983
    %v2664 = vunpack.c.h.s8.bf16 %v984
    %v2665 = vunpack.c.h.s8.bf16 %v985
    %v2666 = vunpack.c.h.s8.bf16 %v986
    %v2667 = vunpack.c.l.s8.bf16 %v987
    %v2668 = vunpack.c.l.s8.bf16 %v988
    %v2669 = vunpack.c.l.s8.bf16 %v989
    %v2670 = vunpack.c.l.s8.bf16 %v990
    %v2671 = vunpack.c.l.s8.bf16 %v991
    %v2672 = vunpack.c.l.s8.bf16 %v992
    %v2673 = vunpack.c.l.s8.bf16 %v993
    %v2674 = vunpack.c.l.s8.bf16 %v994
    %v2675 = vunpack.c.l.s8.bf16 %v995
    %v2676 = vunpack.c.l.s8.bf16 %v996
    %v2677 = vunpack.c.l.s8.bf16 %v997
    %v2678 = vunpack.c.l.s8.bf16 %v998
    %v2679 = vunpack.c.h.s8.bf16 %v987
    %v2680 = vunpack.c.h.s8.bf16 %v988
    %v2681 = vunpack.c.h.s8.bf16 %v989
    %v2682 = vunpack.c.h.s8.bf16 %v990
    %v2683 = vunpack.c.h.s8.bf16 %v991
    %v2684 = vunpack.c.h.s8.bf16 %v992
    %v2685 = vunpack.c.h.s8.bf16 %v993
    %v2686 = vunpack.c.h.s8.bf16 %v994
    %v2687 = vunpack.c.h.s8.bf16 %v995
    %v2688 = vunpack.c.h.s8.bf16 %v996
    %v2689 = vunpack.c.h.s8.bf16 %v997
    %v2690 = vunpack.c.h.s8.bf16 %v998
    %v2691 = vunpack.c.l.s8.bf16 %v999
    %v2692 = vunpack.c.l.s8.bf16 %v1000
    %v2693 = vunpack.c.l.s8.bf16 %v1001
    %v2694 = vunpack.c.l.s8.bf16 %v1002
    %v2695 = vunpack.c.l.s8.bf16 %v1003
    %v2696 = vunpack.c.l.s8.bf16 %v1004
    %v2697 = vunpack.c.l.s8.bf16 %v1005
    %v2698 = vunpack.c.l.s8.bf16 %v1006
    %v2699 = vunpack.c.l.s8.bf16 %v1007
    %v2700 = vunpack.c.l.s8.bf16 %v1008
    %v2701 = vunpack.c.l.s8.bf16 %v1009
    %v2702 = vunpack.c.l.s8.bf16 %v1010
    %v2703 = vunpack.c.h.s8.bf16 %v999
    %v2704 = vunpack.c.h.s8.bf16 %v1000
    %v2705 = vunpack.c.h.s8.bf16 %v1001
    %v2706 = vunpack.c.h.s8.bf16 %v1002
    %v2707 = vunpack.c.h.s8.bf16 %v1003
    %v2708 = vunpack.c.h.s8.bf16 %v1004
    %v2709 = vunpack.c.h.s8.bf16 %v1005
    %v2710 = vunpack.c.h.s8.bf16 %v1006
    %v2711 = vunpack.c.h.s8.bf16 %v1007
    %v2712 = vunpack.c.h.s8.bf16 %v1008
    %v2713 = vunpack.c.h.s8.bf16 %v1009
    %v2714 = vunpack.c.h.s8.bf16 %v1010
    %v2715 = vunpack.c.l.s8.bf16 %v1011
    %v2716 = vunpack.c.l.s8.bf16 %v1012
    %v2717 = vunpack.c.l.s8.bf16 %v1013
    %v2718 = vunpack.c.l.s8.bf16 %v1014
    %v2719 = vunpack.c.l.s8.bf16 %v1015
    %v2720 = vunpack.c.l.s8.bf16 %v1016
    %v2721 = vunpack.c.l.s8.bf16 %v1017
    %v2722 = vunpack.c.l.s8.bf16 %v1018
    %v2723 = vunpack.c.l.s8.bf16 %v1019
    %v2724 = vunpack.c.l.s8.bf16 %v1020
    %v2725 = vunpack.c.l.s8.bf16 %v1021
    %v2726 = vunpack.c.l.s8.bf16 %v1022
    %v2727 = vunpack.c.h.s8.bf16 %v1011
    %v2728 = vunpack.c.h.s8.bf16 %v1012
    %v2729 = vunpack.c.h.s8.bf16 %v1013
    %v2730 = vunpack.c.h.s8.bf16 %v1014
    %v2731 = vunpack.c.h.s8.bf16 %v1015
    %v2732 = vunpack.c.h.s8.bf16 %v1016
    %v2733 = vunpack.c.h.s8.bf16 %v1017
    %v2734 = vunpack.c.h.s8.bf16 %v1018
    %v2735 = vunpack.c.h.s8.bf16 %v1019
    %v2736 = vunpack.c.h.s8.bf16 %v1020
    %v2737 = vunpack.c.h.s8.bf16 %v1021
    %v2738 = vunpack.c.h.s8.bf16 %v1022
    %v2739 = vunpack.c.l.s8.bf16 %v1023
    %v2740 = vunpack.c.l.s8.bf16 %v1024
    %v2741 = vunpack.c.l.s8.bf16 %v1025
    %v2742 = vunpack.c.l.s8.bf16 %v1026
    %v2743 = vunpack.c.l.s8.bf16 %v1027
    %v2744 = vunpack.c.l.s8.bf16 %v1028
    %v2745 = vunpack.c.l.s8.bf16 %v1029
    %v2746 = vunpack.c.l.s8.bf16 %v1030
    %v2747 = vunpack.c.l.s8.bf16 %v1031
    %v2748 = vunpack.c.l.s8.bf16 %v1032
    %v2749 = vunpack.c.l.s8.bf16 %v1033
    %v2750 = vunpack.c.l.s8.bf16 %v1034
    %v2751 = vunpack.c.h.s8.bf16 %v1023
    %v2752 = vunpack.c.h.s8.bf16 %v1024
    %v2753 = vunpack.c.h.s8.bf16 %v1025
    %v2754 = vunpack.c.h.s8.bf16 %v1026
    %v2755 = vunpack.c.h.s8.bf16 %v1027
    %v2756 = vunpack.c.h.s8.bf16 %v1028
    %v2757 = vunpack.c.h.s8.bf16 %v1029
    %v2758 = vunpack.c.h.s8.bf16 %v1030
    %v2759 = vunpack.c.h.s8.bf16 %v1031
    %v2760 = vunpack.c.h.s8.bf16 %v1032
    %v2761 = vunpack.c.h.s8.bf16 %v1033
    %v2762 = vunpack.c.h.s8.bf16 %v1034
    %v2766 = vcombine.high %v168, %v168
    %v2768 = vunpack.c.l.s4 1966171168
    %v2769 = vunpack.c.0.s8 %v2768
    %v2770 = vlaneseq
    %v2771 = vshrl.u32 %v2770, 7
    %v2772 = vsub.s32 %v2769, %v2771
    %v2773 = vrot.slane %v168, %v2772
    %v2775 = vunpack.c.l.s4 1966171168
    %v2776 = vunpack.c.0.s8 %v2775
    %v2777 = vlaneseq
    %v2778 = vshrl.u32 %v2777, 7
    %v2779 = vsub.s32 %v2776, %v2778
    %v2780 = vrot.slane %v2766, %v2779
    %v2781 = vcombine.high %v2773, %v2773
    %v2782 = vcombine.high %v2780, %v2780
    %v2784 = vunpack.c.l.s4 1966171168
    %v2785 = vunpack.c.0.s8 %v2784
    %v2786 = vlaneseq
    %v2787 = vshrl.u32 %v2786, 7
    %v2788 = vsub.s32 %v2785, %v2787
    %v2789 = vrot.slane %v2773, %v2788
    %v2791 = vunpack.c.l.s4 1966171168
    %v2792 = vunpack.c.0.s8 %v2791
    %v2793 = vlaneseq
    %v2794 = vshrl.u32 %v2793, 7
    %v2795 = vsub.s32 %v2792, %v2794
    %v2796 = vrot.slane %v2780, %v2795
    %v2798 = vunpack.c.l.s4 1966171168
    %v2799 = vunpack.c.0.s8 %v2798
    %v2800 = vlaneseq
    %v2801 = vshrl.u32 %v2800, 7
    %v2802 = vsub.s32 %v2799, %v2801
    %v2803 = vrot.slane %v2781, %v2802
    %v2805 = vunpack.c.l.s4 1966171168
    %v2806 = vunpack.c.0.s8 %v2805
    %v2807 = vlaneseq
    %v2808 = vshrl.u32 %v2807, 7
    %v2809 = vsub.s32 %v2806, %v2808
    %v2810 = vrot.slane %v2782, %v2809
    %v2811 = vcombine.high %v2789, %v2789
    %v2812 = vcombine.high %v2796, %v2796
    %v2813 = vcombine.high %v2803, %v2803
    %v2814 = vcombine.high %v2810, %v2810
    %v2815 = vcombine.high %v169, %v169
    %v2817 = vunpack.c.l.s4 1966171168
    %v2818 = vunpack.c.0.s8 %v2817
    %v2819 = vlaneseq
    %v2820 = vshrl.u32 %v2819, 7
    %v2821 = vsub.s32 %v2818, %v2820
    %v2822 = vrot.slane %v169, %v2821
    %v2824 = vunpack.c.l.s4 1966171168
    %v2825 = vunpack.c.0.s8 %v2824
    %v2826 = vlaneseq
    %v2827 = vshrl.u32 %v2826, 7
    %v2828 = vsub.s32 %v2825, %v2827
    %v2829 = vrot.slane %v2815, %v2828
    %v2830 = vcombine.high %v2822, %v2822
    %v2831 = vcombine.high %v2829, %v2829
    %v2833 = vunpack.c.l.s4 1966171168
    %v2834 = vunpack.c.0.s8 %v2833
    %v2835 = vlaneseq
    %v2836 = vshrl.u32 %v2835, 7
    %v2837 = vsub.s32 %v2834, %v2836
    %v2838 = vrot.slane %v2822, %v2837
    %v2840 = vunpack.c.l.s4 1966171168
    %v2841 = vunpack.c.0.s8 %v2840
    %v2842 = vlaneseq
    %v2843 = vshrl.u32 %v2842, 7
    %v2844 = vsub.s32 %v2841, %v2843
    %v2845 = vrot.slane %v2829, %v2844
    %v2847 = vunpack.c.l.s4 1966171168
    %v2848 = vunpack.c.0.s8 %v2847
    %v2849 = vlaneseq
    %v2850 = vshrl.u32 %v2849, 7
    %v2851 = vsub.s32 %v2848, %v2850
    %v2852 = vrot.slane %v2830, %v2851
    %v2854 = vunpack.c.l.s4 1966171168
    %v2855 = vunpack.c.0.s8 %v2854
    %v2856 = vlaneseq
    %v2857 = vshrl.u32 %v2856, 7
    %v2858 = vsub.s32 %v2855, %v2857
    %v2859 = vrot.slane %v2831, %v2858
    %v2860 = vcombine.high %v2838, %v2838
    %v2861 = vcombine.high %v2845, %v2845
    %v2862 = vcombine.high %v2852, %v2852
    %v2863 = vcombine.high %v2859, %v2859
    %v2865 = vunpack.c.l.s4 1966171168
    %v2866 = vunpack.c.0.s8 %v2865
    %v2867 = vlaneseq
    %v2868 = vshrl.u32 %v2867, 7
    %v2869 = vsub.s32 %v2866, %v2868
    %v2870 = vrot.slane %v170, %v2869
    %v2871 = vcombine.high %v2870, %v2870
    %v2873 = vunpack.c.l.s4 1966171168
    %v2874 = vunpack.c.0.s8 %v2873
    %v2875 = vlaneseq
    %v2876 = vshrl.u32 %v2875, 7
    %v2877 = vsub.s32 %v2874, %v2876
    %v2878 = vrot.slane %v2870, %v2877
    %v2880 = vunpack.c.l.s4 1966171168
    %v2881 = vunpack.c.0.s8 %v2880
    %v2882 = vlaneseq
    %v2883 = vshrl.u32 %v2882, 7
    %v2884 = vsub.s32 %v2881, %v2883
    %v2885 = vrot.slane %v2871, %v2884
    %2904 = vmatprep.subr.bf16.mxu0 %v1036
    %2905 = vmatpush1.bf16.msra.mxu0 %v1035
    %2906 = vmatprep.subr.bf16.mxu0 %v1048
    %2907 = vmatpush1.bf16.msra.mxu0 %v1047
    %2908 = vmatprep.subr.bf16.mxu0 %v1060
    %2909 = vmatpush1.bf16.msra.mxu0 %v1059
    %2910 = vmatprep.subr.bf16.mxu0 %v1072
    %2911 = vmatpush1.bf16.msra.mxu0 %v1071
    %2912 = vmatprep.subr.bf16.mxu0 %v1084
    %2913 = vmatpush1.bf16.msra.mxu0 %v1083
    %2914 = vmatprep.subr.bf16.mxu0 %v1096
    %2915 = vmatpush1.bf16.msra.mxu0 %v1095
    %2916 = vmatprep.subr.bf16.mxu0 %v1108
    %2917 = vmatpush1.bf16.msra.mxu0 %v1107
    %2918 = vmatprep.subr.bf16.mxu0 %v1120
    %2919 = vmatpush1.bf16.msra.mxu0 %v1119
    %2920 = vmatprep.subr.bf16.mxu0 %v1132
    %2921 = vmatpush1.bf16.msra.mxu0 %v1131
    %2922 = vmatprep.subr.bf16.mxu0 %v1144
    %2923 = vmatpush1.bf16.msra.mxu0 %v1143
    %2924 = vmatprep.subr.bf16.mxu0 %v1156
    %2925 = vmatpush1.bf16.msra.mxu0 %v1155
    %2926 = vmatprep.subr.bf16.mxu0 %v1168
    %2927 = vmatpush1.bf16.msra.mxu0 %v1167
    %2928 = vmatprep.subr.bf16.mxu0 %v1180
    %2929 = vmatpush1.bf16.msra.mxu0 %v1179
    %2930 = vmatprep.subr.bf16.mxu0 %v1192
    %2931 = vmatpush1.bf16.msra.mxu0 %v1191
    %2932 = vmatprep.subr.bf16.mxu0 %v1204
    %2933 = vmatpush1.bf16.msra.mxu0 %v1203
    %2934 = vmatprep.subr.bf16.mxu0 %v1216
    %2935 = vmatpush1.bf16.msra.mxu0 %v1215
    %2936 = vmatprep.mubr.bf16.mxu0 %v2803
    %2937 = vmatmul.mubr.bf16.gmra.mrb[0].mxu0 %v2789
    %v2938 = vpop.f32.mrb[0].mxu0
    %v2939 = vadd.f32 0.0, %v2938
    %v2940 = vpop.f32.mrb[0].mxu0
    %v2941 = vadd.f32 0.0, %v2940
    %v2942 = vpop.f32.mrb[0].mxu0
    %v2943 = vpop.f32.mrb[0].mxu0
    %2944 = vdwg.mxu0
    %2945 = vmatprep.subr.bf16.mxu0 %v1228
    %2946 = vmatpush1.bf16.msra.mxu0 %v1227
    %2947 = vmatprep.subr.bf16.mxu0 %v1240
    %2948 = vmatpush1.bf16.msra.mxu0 %v1239
    %2949 = vmatprep.subr.bf16.mxu0 %v1252
    %2950 = vmatpush1.bf16.msra.mxu0 %v1251
    %2951 = vmatprep.subr.bf16.mxu0 %v1264
    %2952 = vmatpush1.bf16.msra.mxu0 %v1263
    %2953 = vmatprep.subr.bf16.mxu0 %v1276
    %2954 = vmatpush1.bf16.msra.mxu0 %v1275
    %2955 = vmatprep.subr.bf16.mxu0 %v1288
    %2956 = vmatpush1.bf16.msra.mxu0 %v1287
    %2957 = vmatprep.subr.bf16.mxu0 %v1300
    %2958 = vmatpush1.bf16.msra.mxu0 %v1299
    %2959 = vmatprep.subr.bf16.mxu0 %v1312
    %2960 = vmatpush1.bf16.msra.mxu0 %v1311
    %2961 = vmatprep.subr.bf16.mxu0 %v1324
    %2962 = vmatpush1.bf16.msra.mxu0 %v1323
    %2963 = vmatprep.subr.bf16.mxu0 %v1336
    %2964 = vmatpush1.bf16.msra.mxu0 %v1335
    %2965 = vmatprep.subr.bf16.mxu0 %v1348
    %2966 = vmatpush1.bf16.msra.mxu0 %v1347
    %2967 = vmatprep.subr.bf16.mxu0 %v1360
    %2968 = vmatpush1.bf16.msra.mxu0 %v1359
    %2969 = vmatprep.subr.bf16.mxu0 %v1372
    %2970 = vmatpush1.bf16.msra.mxu0 %v1371
    %2971 = vmatprep.subr.bf16.mxu0 %v1384
    %2972 = vmatpush1.bf16.msra.mxu0 %v1383
    %2973 = vmatprep.subr.bf16.mxu0 %v1396
    %2974 = vmatpush1.bf16.msra.mxu0 %v1395
    %2975 = vmatprep.subr.bf16.mxu0 %v1408
    %2976 = vmatpush1.bf16.msra.mxu0 %v1407
    %2977 = vmatprep.mubr.bf16.mxu0 %v2813
    %2978 = vmatmul.mubr.bf16.gmra.mrb[0].mxu0 %v2811
    %v2979 = vpop.f32.mrb[0].mxu0
    %v2980 = vadd.f32 %v2939, %v2979
    %v2981 = vpop.f32.mrb[0].mxu0
    %v2982 = vadd.f32 %v2941, %v2981
    %v2983 = vpop.f32.mrb[0].mxu0
    %v2984 = vpop.f32.mrb[0].mxu0
    %2985 = vdwg.mxu0
    %2986 = vmatprep.subr.bf16.mxu0 %v1420
    %2987 = vmatpush1.bf16.msra.mxu0 %v1419
    %2988 = vmatprep.subr.bf16.mxu0 %v1432
    %2989 = vmatpush1.bf16.msra.mxu0 %v1431
    %2990 = vmatprep.subr.bf16.mxu0 %v1444
    %2991 = vmatpush1.bf16.msra.mxu0 %v1443
    %2992 = vmatprep.subr.bf16.mxu0 %v1456
    %2993 = vmatpush1.bf16.msra.mxu0 %v1455
    %2994 = vmatprep.subr.bf16.mxu0 %v1468
    %2995 = vmatpush1.bf16.msra.mxu0 %v1467
    %2996 = vmatprep.subr.bf16.mxu0 %v1480
    %2997 = vmatpush1.bf16.msra.mxu0 %v1479
    %2998 = vmatprep.subr.bf16.mxu0 %v1492
    %2999 = vmatpush1.bf16.msra.mxu0 %v1491
    %3000 = vmatprep.subr.bf16.mxu0 %v1504
    %3001 = vmatpush1.bf16.msra.mxu0 %v1503
    %3002 = vmatprep.subr.bf16.mxu0 %v1516
    %3003 = vmatpush1.bf16.msra.mxu0 %v1515
    %3004 = vmatprep.subr.bf16.mxu0 %v1528
    %3005 = vmatpush1.bf16.msra.mxu0 %v1527
    %3006 = vmatprep.subr.bf16.mxu0 %v1540
    %3007 = vmatpush1.bf16.msra.mxu0 %v1539
    %3008 = vmatprep.subr.bf16.mxu0 %v1552
    %3009 = vmatpush1.bf16.msra.mxu0 %v1551
    %3010 = vmatprep.subr.bf16.mxu0 %v1564
    %3011 = vmatpush1.bf16.msra.mxu0 %v1563
    %3012 = vmatprep.subr.bf16.mxu0 %v1576
    %3013 = vmatpush1.bf16.msra.mxu0 %v1575
    %3014 = vmatprep.subr.bf16.mxu0 %v1588
    %3015 = vmatpush1.bf16.msra.mxu0 %v1587
    %3016 = vmatprep.subr.bf16.mxu0 %v1600
    %3017 = vmatpush1.bf16.msra.mxu0 %v1599
    %3018 = vmatprep.mubr.bf16.mxu0 %v2810
    %3019 = vmatmul.mubr.bf16.gmra.mrb[0].mxu0 %v2796
    %v3020 = vpop.f32.mrb[0].mxu0
    %v3021 = vadd.f32 %v2980, %v3020
    %v3022 = vpop.f32.mrb[0].mxu0
    %v3023 = vadd.f32 %v2982, %v3022
    %v3024 = vpop.f32.mrb[0].mxu0
    %v3025 = vpop.f32.mrb[0].mxu0
    %3026 = vdwg.mxu0
    %3027 = vmatprep.subr.bf16.mxu0 %v1612
    %3028 = vmatpush1.bf16.msra.mxu0 %v1611
    %3029 = vmatprep.subr.bf16.mxu0 %v1624
    %3030 = vmatpush1.bf16.msra.mxu0 %v1623
    %3031 = vmatprep.subr.bf16.mxu0 %v1636
    %3032 = vmatpush1.bf16.msra.mxu0 %v1635
    %3033 = vmatprep.subr.bf16.mxu0 %v1648
    %3034 = vmatpush1.bf16.msra.mxu0 %v1647
    %3035 = vmatprep.subr.bf16.mxu0 %v1660
    %3036 = vmatpush1.bf16.msra.mxu0 %v1659
    %3037 = vmatprep.subr.bf16.mxu0 %v1672
    %3038 = vmatpush1.bf16.msra.mxu0 %v1671
    %3039 = vmatprep.subr.bf16.mxu0 %v1684
    %3040 = vmatpush1.bf16.msra.mxu0 %v1683
    %3041 = vmatprep.subr.bf16.mxu0 %v1696
    %3042 = vmatpush1.bf16.msra.mxu0 %v1695
    %3043 = vmatprep.subr.bf16.mxu0 %v1708
    %3044 = vmatpush1.bf16.msra.mxu0 %v1707
    %3045 = vmatprep.subr.bf16.mxu0 %v1720
    %3046 = vmatpush1.bf16.msra.mxu0 %v1719
    %3047 = vmatprep.subr.bf16.mxu0 %v1732
    %3048 = vmatpush1.bf16.msra.mxu0 %v1731
    %3049 = vmatprep.subr.bf16.mxu0 %v1744
    %3050 = vmatpush1.bf16.msra.mxu0 %v1743
    %3051 = vmatprep.subr.bf16.mxu0 %v1756
    %3052 = vmatpush1.bf16.msra.mxu0 %v1755
    %3053 = vmatprep.subr.bf16.mxu0 %v1768
    %3054 = vmatpush1.bf16.msra.mxu0 %v1767
    %3055 = vmatprep.subr.bf16.mxu0 %v1780
    %3056 = vmatpush1.bf16.msra.mxu0 %v1779
    %3057 = vmatprep.subr.bf16.mxu0 %v1792
    %3058 = vmatpush1.bf16.msra.mxu0 %v1791
    %3059 = vmatprep.mubr.bf16.mxu0 %v2814
    %3060 = vmatmul.mubr.bf16.gmra.mrb[0].mxu0 %v2812
    %v3061 = vpop.f32.mrb[0].mxu0
    %v3062 = vadd.f32 %v3021, %v3061
    %v3063 = vpop.f32.mrb[0].mxu0
    %v3064 = vadd.f32 %v3023, %v3063
    %v3065 = vpop.f32.mrb[0].mxu0
    %v3066 = vpop.f32.mrb[0].mxu0
    %3067 = vdwg.mxu0
    %3068 = vmatprep.subr.bf16.mxu0 %v1804
    %3069 = vmatpush1.bf16.msra.mxu0 %v1803
    %3070 = vmatprep.subr.bf16.mxu0 %v1816
    %3071 = vmatpush1.bf16.msra.mxu0 %v1815
    %3072 = vmatprep.subr.bf16.mxu0 %v1828
    %3073 = vmatpush1.bf16.msra.mxu0 %v1827
    %3074 = vmatprep.subr.bf16.mxu0 %v1840
    %3075 = vmatpush1.bf16.msra.mxu0 %v1839
    %3076 = vmatprep.subr.bf16.mxu0 %v1852
    %3077 = vmatpush1.bf16.msra.mxu0 %v1851
    %3078 = vmatprep.subr.bf16.mxu0 %v1864
    %3079 = vmatpush1.bf16.msra.mxu0 %v1863
    %3080 = vmatprep.subr.bf16.mxu0 %v1876
    %3081 = vmatpush1.bf16.msra.mxu0 %v1875
    %3082 = vmatprep.subr.bf16.mxu0 %v1888
    %3083 = vmatpush1.bf16.msra.mxu0 %v1887
    %3084 = vmatprep.subr.bf16.mxu0 %v1900
    %3085 = vmatpush1.bf16.msra.mxu0 %v1899
    %3086 = vmatprep.subr.bf16.mxu0 %v1912
    %3087 = vmatpush1.bf16.msra.mxu0 %v1911
    %3088 = vmatprep.subr.bf16.mxu0 %v1924
    %3089 = vmatpush1.bf16.msra.mxu0 %v1923
    %3090 = vmatprep.subr.bf16.mxu0 %v1936
    %3091 = vmatpush1.bf16.msra.mxu0 %v1935
    %3092 = vmatprep.subr.bf16.mxu0 %v1948
    %3093 = vmatpush1.bf16.msra.mxu0 %v1947
    %3094 = vmatprep.subr.bf16.mxu0 %v1960
    %3095 = vmatpush1.bf16.msra.mxu0 %v1959
    %3096 = vmatprep.subr.bf16.mxu0 %v1972
    %3097 = vmatpush1.bf16.msra.mxu0 %v1971
    %3098 = vmatprep.subr.bf16.mxu0 %v1984
    %3099 = vmatpush1.bf16.msra.mxu0 %v1983
    %3100 = vmatprep.mubr.bf16.mxu0 %v2852
    %3101 = vmatmul.mubr.bf16.gmra.mrb[0].mxu0 %v2838
    %v3102 = vpop.f32.mrb[0].mxu0
    %v3103 = vadd.f32 %v3062, %v3102
    %v3104 = vpop.f32.mrb[0].mxu0
    %v3105 = vadd.f32 %v3064, %v3104
    %v3106 = vpop.f32.mrb[0].mxu0
    %v3107 = vpop.f32.mrb[0].mxu0
    %3108 = vdwg.mxu0
    %3109 = vmatprep.subr.bf16.mxu0 %v1996
    %3110 = vmatpush1.bf16.msra.mxu0 %v1995
    %3111 = vmatprep.subr.bf16.mxu0 %v2008
    %3112 = vmatpush1.bf16.msra.mxu0 %v2007
    %3113 = vmatprep.subr.bf16.mxu0 %v2020
    %3114 = vmatpush1.bf16.msra.mxu0 %v2019
    %3115 = vmatprep.subr.bf16.mxu0 %v2032
    %3116 = vmatpush1.bf16.msra.mxu0 %v2031
    %3117 = vmatprep.subr.bf16.mxu0 %v2044
    %3118 = vmatpush1.bf16.msra.mxu0 %v2043
    %3119 = vmatprep.subr.bf16.mxu0 %v2056
    %3120 = vmatpush1.bf16.msra.mxu0 %v2055
    %3121 = vmatprep.subr.bf16.mxu0 %v2068
    %3122 = vmatpush1.bf16.msra.mxu0 %v2067
    %3123 = vmatprep.subr.bf16.mxu0 %v2080
    %3124 = vmatpush1.bf16.msra.mxu0 %v2079
    %3125 = vmatprep.subr.bf16.mxu0 %v2092
    %3126 = vmatpush1.bf16.msra.mxu0 %v2091
    %3127 = vmatprep.subr.bf16.mxu0 %v2104
    %3128 = vmatpush1.bf16.msra.mxu0 %v2103
    %3129 = vmatprep.subr.bf16.mxu0 %v2116
    %3130 = vmatpush1.bf16.msra.mxu0 %v2115
    %3131 = vmatprep.subr.bf16.mxu0 %v2128
    %3132 = vmatpush1.bf16.msra.mxu0 %v2127
    %3133 = vmatprep.subr.bf16.mxu0 %v2140
    %3134 = vmatpush1.bf16.msra.mxu0 %v2139
    %3135 = vmatprep.subr.bf16.mxu0 %v2152
    %3136 = vmatpush1.bf16.msra.mxu0 %v2151
    %3137 = vmatprep.subr.bf16.mxu0 %v2164
    %3138 = vmatpush1.bf16.msra.mxu0 %v2163
    %3139 = vmatprep.subr.bf16.mxu0 %v2176
    %3140 = vmatpush1.bf16.msra.mxu0 %v2175
    %3141 = vmatprep.mubr.bf16.mxu0 %v2862
    %3142 = vmatmul.mubr.bf16.gmra.mrb[0].mxu0 %v2860
    %v3143 = vpop.f32.mrb[0].mxu0
    %v3144 = vadd.f32 %v3103, %v3143
    %v3145 = vpop.f32.mrb[0].mxu0
    %v3146 = vadd.f32 %v3105, %v3145
    %v3147 = vpop.f32.mrb[0].mxu0
    %v3148 = vpop.f32.mrb[0].mxu0
    %3149 = vdwg.mxu0
    %3150 = vmatprep.subr.bf16.mxu0 %v2188
    %3151 = vmatpush1.bf16.msra.mxu0 %v2187
    %3152 = vmatprep.subr.bf16.mxu0 %v2200
    %3153 = vmatpush1.bf16.msra.mxu0 %v2199
    %3154 = vmatprep.subr.bf16.mxu0 %v2212
    %3155 = vmatpush1.bf16.msra.mxu0 %v2211
    %3156 = vmatprep.subr.bf16.mxu0 %v2224
    %3157 = vmatpush1.bf16.msra.mxu0 %v2223
    %3158 = vmatprep.subr.bf16.mxu0 %v2236
    %3159 = vmatpush1.bf16.msra.mxu0 %v2235
    %3160 = vmatprep.subr.bf16.mxu0 %v2248
    %3161 = vmatpush1.bf16.msra.mxu0 %v2247
    %3162 = vmatprep.subr.bf16.mxu0 %v2260
    %3163 = vmatpush1.bf16.msra.mxu0 %v2259
    %3164 = vmatprep.subr.bf16.mxu0 %v2272
    %3165 = vmatpush1.bf16.msra.mxu0 %v2271
    %3166 = vmatprep.subr.bf16.mxu0 %v2284
    %3167 = vmatpush1.bf16.msra.mxu0 %v2283
    %3168 = vmatprep.subr.bf16.mxu0 %v2296
    %3169 = vmatpush1.bf16.msra.mxu0 %v2295
    %3170 = vmatprep.subr.bf16.mxu0 %v2308
    %3171 = vmatpush1.bf16.msra.mxu0 %v2307
    %3172 = vmatprep.subr.bf16.mxu0 %v2320
    %3173 = vmatpush1.bf16.msra.mxu0 %v2319
    %3174 = vmatprep.subr.bf16.mxu0 %v2332
    %3175 = vmatpush1.bf16.msra.mxu0 %v2331
    %3176 = vmatprep.subr.bf16.mxu0 %v2344
    %3177 = vmatpush1.bf16.msra.mxu0 %v2343
    %3178 = vmatprep.subr.bf16.mxu0 %v2356
    %3179 = vmatpush1.bf16.msra.mxu0 %v2355
    %3180 = vmatprep.subr.bf16.mxu0 %v2368
    %3181 = vmatpush1.bf16.msra.mxu0 %v2367
    %3182 = vmatprep.mubr.bf16.mxu0 %v2859
    %3183 = vmatmul.mubr.bf16.gmra.mrb[0].mxu0 %v2845
    %v3184 = vpop.f32.mrb[0].mxu0
    %v3185 = vadd.f32 %v3144, %v3184
    %v3186 = vpop.f32.mrb[0].mxu0
    %v3187 = vadd.f32 %v3146, %v3186
    %v3188 = vpop.f32.mrb[0].mxu0
    %v3189 = vpop.f32.mrb[0].mxu0
    %3190 = vdwg.mxu0
    %3191 = vmatprep.subr.bf16.mxu0 %v2380
    %3192 = vmatpush1.bf16.msra.mxu0 %v2379
    %3193 = vmatprep.subr.bf16.mxu0 %v2392
    %3194 = vmatpush1.bf16.msra.mxu0 %v2391
    %3195 = vmatprep.subr.bf16.mxu0 %v2404
    %3196 = vmatpush1.bf16.msra.mxu0 %v2403
    %3197 = vmatprep.subr.bf16.mxu0 %v2416
    %3198 = vmatpush1.bf16.msra.mxu0 %v2415
    %3199 = vmatprep.subr.bf16.mxu0 %v2428
    %3200 = vmatpush1.bf16.msra.mxu0 %v2427
    %3201 = vmatprep.subr.bf16.mxu0 %v2440
    %3202 = vmatpush1.bf16.msra.mxu0 %v2439
    %3203 = vmatprep.subr.bf16.mxu0 %v2452
    %3204 = vmatpush1.bf16.msra.mxu0 %v2451
    %3205 = vmatprep.subr.bf16.mxu0 %v2464
    %3206 = vmatpush1.bf16.msra.mxu0 %v2463
    %3207 = vmatprep.subr.bf16.mxu0 %v2476
    %3208 = vmatpush1.bf16.msra.mxu0 %v2475
    %3209 = vmatprep.subr.bf16.mxu0 %v2488
    %3210 = vmatpush1.bf16.msra.mxu0 %v2487
    %3211 = vmatprep.subr.bf16.mxu0 %v2500
    %3212 = vmatpush1.bf16.msra.mxu0 %v2499
    %3213 = vmatprep.subr.bf16.mxu0 %v2512
    %3214 = vmatpush1.bf16.msra.mxu0 %v2511
    %3215 = vmatprep.subr.bf16.mxu0 %v2524
    %3216 = vmatpush1.bf16.msra.mxu0 %v2523
    %3217 = vmatprep.subr.bf16.mxu0 %v2536
    %3218 = vmatpush1.bf16.msra.mxu0 %v2535
    %3219 = vmatprep.subr.bf16.mxu0 %v2548
    %3220 = vmatpush1.bf16.msra.mxu0 %v2547
    %3221 = vmatprep.subr.bf16.mxu0 %v2560
    %3222 = vmatpush1.bf16.msra.mxu0 %v2559
    %3223 = vmatprep.mubr.bf16.mxu0 %v2863
    %3224 = vmatmul.mubr.bf16.gmra.mrb[0].mxu0 %v2861
    %v3225 = vpop.f32.mrb[0].mxu0
    %v3226 = vadd.f32 %v3185, %v3225
    %v3227 = vpop.f32.mrb[0].mxu0
    %v3228 = vadd.f32 %v3187, %v3227
    %v3229 = vpop.f32.mrb[0].mxu0
    %v3230 = vpop.f32.mrb[0].mxu0
    %3231 = vdwg.mxu0
    %3232 = vmatprep.subr.bf16.mxu0 %v2572
    %3233 = vmatpush1.bf16.msra.mxu0 %v2571
    %3234 = vmatprep.subr.bf16.mxu0 %v2584
    %3235 = vmatpush1.bf16.msra.mxu0 %v2583
    %3236 = vmatprep.subr.bf16.mxu0 %v2596
    %3237 = vmatpush1.bf16.msra.mxu0 %v2595
    %3238 = vmatprep.subr.bf16.mxu0 %v2608
    %3239 = vmatpush1.bf16.msra.mxu0 %v2607
    %3240 = vmatprep.subr.bf16.mxu0 %v2620
    %3241 = vmatpush1.bf16.msra.mxu0 %v2619
    %3242 = vmatprep.subr.bf16.mxu0 %v2632
    %3243 = vmatpush1.bf16.msra.mxu0 %v2631
    %3244 = vmatprep.subr.bf16.mxu0 %v2644
    %3245 = vmatpush1.bf16.msra.mxu0 %v2643
    %3246 = vmatprep.subr.bf16.mxu0 %v2656
    %3247 = vmatpush1.bf16.msra.mxu0 %v2655
    %3248 = vmatprep.subr.bf16.mxu0 %v2668
    %3249 = vmatpush1.bf16.msra.mxu0 %v2667
    %3250 = vmatprep.subr.bf16.mxu0 %v2680
    %3251 = vmatpush1.bf16.msra.mxu0 %v2679
    %3252 = vmatprep.subr.bf16.mxu0 %v2692
    %3253 = vmatpush1.bf16.msra.mxu0 %v2691
    %3254 = vmatprep.subr.bf16.mxu0 %v2704
    %3255 = vmatpush1.bf16.msra.mxu0 %v2703
    %3256 = vmatprep.subr.bf16.mxu0 %v2716
    %3257 = vmatpush1.bf16.msra.mxu0 %v2715
    %3258 = vmatprep.subr.bf16.mxu0 %v2728
    %3259 = vmatpush1.bf16.msra.mxu0 %v2727
    %3260 = vmatprep.subr.bf16.mxu0 %v2740
    %3261 = vmatpush1.bf16.msra.mxu0 %v2739
    %3262 = vmatprep.subr.bf16.mxu0 %v2752
    %3263 = vmatpush1.bf16.msra.mxu0 %v2751
    %3264 = vmatprep.mubr.bf16.mxu0 %v2885
    %3265 = vmatmul.mubr.bf16.gmra.mrb[0].mxu0 %v2878
    %v3266 = vpop.f32.mrb[0].mxu0
    %v3267 = vadd.f32 %v3226, %v3266
    %v3268 = vpop.f32.mrb[0].mxu0
    %v3269 = vadd.f32 %v3228, %v3268
    %v3270 = vpop.f32.mrb[0].mxu0
    %v3271 = vpop.f32.mrb[0].mxu0
    %3272 = vdwg.mxu0
    %3273 = vmatprep.subr.bf16.mxu0 %v1038
    %3274 = vmatpush1.bf16.msra.mxu0 %v1037
    %3275 = vmatprep.subr.bf16.mxu0 %v1050
    %3276 = vmatpush1.bf16.msra.mxu0 %v1049
    %3277 = vmatprep.subr.bf16.mxu0 %v1062
    %3278 = vmatpush1.bf16.msra.mxu0 %v1061
    %3279 = vmatprep.subr.bf16.mxu0 %v1074
    %3280 = vmatpush1.bf16.msra.mxu0 %v1073
    %3281 = vmatprep.subr.bf16.mxu0 %v1086
    %3282 = vmatpush1.bf16.msra.mxu0 %v1085
    %3283 = vmatprep.subr.bf16.mxu0 %v1098
    %3284 = vmatpush1.bf16.msra.mxu0 %v1097
    %3285 = vmatprep.subr.bf16.mxu0 %v1110
    %3286 = vmatpush1.bf16.msra.mxu0 %v1109
    %3287 = vmatprep.subr.bf16.mxu0 %v1122
    %3288 = vmatpush1.bf16.msra.mxu0 %v1121
    %3289 = vmatprep.subr.bf16.mxu0 %v1134
    %3290 = vmatpush1.bf16.msra.mxu0 %v1133
    %3291 = vmatprep.subr.bf16.mxu0 %v1146
    %3292 = vmatpush1.bf16.msra.mxu0 %v1145
    %3293 = vmatprep.subr.bf16.mxu0 %v1158
    %3294 = vmatpush1.bf16.msra.mxu0 %v1157
    %3295 = vmatprep.subr.bf16.mxu0 %v1170
    %3296 = vmatpush1.bf16.msra.mxu0 %v1169
    %3297 = vmatprep.subr.bf16.mxu0 %v1182
    %3298 = vmatpush1.bf16.msra.mxu0 %v1181
    %3299 = vmatprep.subr.bf16.mxu0 %v1194
    %3300 = vmatpush1.bf16.msra.mxu0 %v1193
    %3301 = vmatprep.subr.bf16.mxu0 %v1206
    %3302 = vmatpush1.bf16.msra.mxu0 %v1205
    %3303 = vmatprep.subr.bf16.mxu0 %v1218
    %3304 = vmatpush1.bf16.msra.mxu0 %v1217
    %3305 = vmatprep.mubr.bf16.mxu0 %v2803
    %3306 = vmatmul.mubr.bf16.gmra.mrb[0].mxu0 %v2789
    %v3307 = vpop.f32.mrb[0].mxu0
    %v3308 = vadd.f32 0.0, %v3307
    %v3309 = vpop.f32.mrb[0].mxu0
    %v3310 = vadd.f32 0.0, %v3309
    %v3311 = vpop.f32.mrb[0].mxu0
    %v3312 = vpop.f32.mrb[0].mxu0
    %3313 = vdwg.mxu0
    %3314 = vmatprep.subr.bf16.mxu0 %v1230
    %3315 = vmatpush1.bf16.msra.mxu0 %v1229
    %3316 = vmatprep.subr.bf16.mxu0 %v1242
    %3317 = vmatpush1.bf16.msra.mxu0 %v1241
    %3318 = vmatprep.subr.bf16.mxu0 %v1254
    %3319 = vmatpush1.bf16.msra.mxu0 %v1253
    %3320 = vmatprep.subr.bf16.mxu0 %v1266
    %3321 = vmatpush1.bf16.msra.mxu0 %v1265
    %3322 = vmatprep.subr.bf16.mxu0 %v1278
    %3323 = vmatpush1.bf16.msra.mxu0 %v1277
    %3324 = vmatprep.subr.bf16.mxu0 %v1290
    %3325 = vmatpush1.bf16.msra.mxu0 %v1289
    %3326 = vmatprep.subr.bf16.mxu0 %v1302
    %3327 = vmatpush1.bf16.msra.mxu0 %v1301
    %3328 = vmatprep.subr.bf16.mxu0 %v1314
    %3329 = vmatpush1.bf16.msra.mxu0 %v1313
    %3330 = vmatprep.subr.bf16.mxu0 %v1326
    %3331 = vmatpush1.bf16.msra.mxu0 %v1325
    %3332 = vmatprep.subr.bf16.mxu0 %v1338
    %3333 = vmatpush1.bf16.msra.mxu0 %v1337
    %3334 = vmatprep.subr.bf16.mxu0 %v1350
    %3335 = vmatpush1.bf16.msra.mxu0 %v1349
    %3336 = vmatprep.subr.bf16.mxu0 %v1362
    %3337 = vmatpush1.bf16.msra.mxu0 %v1361
    %3338 = vmatprep.subr.bf16.mxu0 %v1374
    %3339 = vmatpush1.bf16.msra.mxu0 %v1373
    %3340 = vmatprep.subr.bf16.mxu0 %v1386
    %3341 = vmatpush1.bf16.msra.mxu0 %v1385
    %3342 = vmatprep.subr.bf16.mxu0 %v1398
    %3343 = vmatpush1.bf16.msra.mxu0 %v1397
    %3344 = vmatprep.subr.bf16.mxu0 %v1410
    %3345 = vmatpush1.bf16.msra.mxu0 %v1409
    %3346 = vmatprep.mubr.bf16.mxu0 %v2813
    %3347 = vmatmul.mubr.bf16.gmra.mrb[0].mxu0 %v2811
    %v3348 = vpop.f32.mrb[0].mxu0
    %v3349 = vadd.f32 %v3308, %v3348
    %v3350 = vpop.f32.mrb[0].mxu0
    %v3351 = vadd.f32 %v3310, %v3350
    %v3352 = vpop.f32.mrb[0].mxu0
    %v3353 = vpop.f32.mrb[0].mxu0
    %3354 = vdwg.mxu0
    %3355 = vmatprep.subr.bf16.mxu0 %v1422
    %3356 = vmatpush1.bf16.msra.mxu0 %v1421
    %3357 = vmatprep.subr.bf16.mxu0 %v1434
    %3358 = vmatpush1.bf16.msra.mxu0 %v1433
    %3359 = vmatprep.subr.bf16.mxu0 %v1446
    %3360 = vmatpush1.bf16.msra.mxu0 %v1445
    %3361 = vmatprep.subr.bf16.mxu0 %v1458
    %3362 = vmatpush1.bf16.msra.mxu0 %v1457
    %3363 = vmatprep.subr.bf16.mxu0 %v1470
    %3364 = vmatpush1.bf16.msra.mxu0 %v1469
    %3365 = vmatprep.subr.bf16.mxu0 %v1482
    %3366 = vmatpush1.bf16.msra.mxu0 %v1481
    %3367 = vmatprep.subr.bf16.mxu0 %v1494
    %3368 = vmatpush1.bf16.msra.mxu0 %v1493
    %3369 = vmatprep.subr.bf16.mxu0 %v1506
    %3370 = vmatpush1.bf16.msra.mxu0 %v1505
    %3371 = vmatprep.subr.bf16.mxu0 %v1518
    %3372 = vmatpush1.bf16.msra.mxu0 %v1517
    %3373 = vmatprep.subr.bf16.mxu0 %v1530
    %3374 = vmatpush1.bf16.msra.mxu0 %v1529
    %3375 = vmatprep.subr.bf16.mxu0 %v1542
    %3376 = vmatpush1.bf16.msra.mxu0 %v1541
    %3377 = vmatprep.subr.bf16.mxu0 %v1554
    %3378 = vmatpush1.bf16.msra.mxu0 %v1553
    %3379 = vmatprep.subr.bf16.mxu0 %v1566
    %3380 = vmatpush1.bf16.msra.mxu0 %v1565
    %3381 = vmatprep.subr.bf16.mxu0 %v1578
    %3382 = vmatpush1.bf16.msra.mxu0 %v1577
    %3383 = vmatprep.subr.bf16.mxu0 %v1590
    %3384 = vmatpush1.bf16.msra.mxu0 %v1589
    %3385 = vmatprep.subr.bf16.mxu0 %v1602
    %3386 = vmatpush1.bf16.msra.mxu0 %v1601
    %3387 = vmatprep.mubr.bf16.mxu0 %v2810
    %3388 = vmatmul.mubr.bf16.gmra.mrb[0].mxu0 %v2796
    %v3389 = vpop.f32.mrb[0].mxu0
    %v3390 = vadd.f32 %v3349, %v3389
    %v3391 = vpop.f32.mrb[0].mxu0
    %v3392 = vadd.f32 %v3351, %v3391
    %v3393 = vpop.f32.mrb[0].mxu0
    %v3394 = vpop.f32.mrb[0].mxu0
    %3395 = vdwg.mxu0
    %3396 = vmatprep.subr.bf16.mxu0 %v1614
    %3397 = vmatpush1.bf16.msra.mxu0 %v1613
    %3398 = vmatprep.subr.bf16.mxu0 %v1626
    %3399 = vmatpush1.bf16.msra.mxu0 %v1625
    %3400 = vmatprep.subr.bf16.mxu0 %v1638
    %3401 = vmatpush1.bf16.msra.mxu0 %v1637
    %3402 = vmatprep.subr.bf16.mxu0 %v1650
    %3403 = vmatpush1.bf16.msra.mxu0 %v1649
    %3404 = vmatprep.subr.bf16.mxu0 %v1662
    %3405 = vmatpush1.bf16.msra.mxu0 %v1661
    %3406 = vmatprep.subr.bf16.mxu0 %v1674
    %3407 = vmatpush1.bf16.msra.mxu0 %v1673
    %3408 = vmatprep.subr.bf16.mxu0 %v1686
    %3409 = vmatpush1.bf16.msra.mxu0 %v1685
    %3410 = vmatprep.subr.bf16.mxu0 %v1698
    %3411 = vmatpush1.bf16.msra.mxu0 %v1697
    %3412 = vmatprep.subr.bf16.mxu0 %v1710
    %3413 = vmatpush1.bf16.msra.mxu0 %v1709
    %3414 = vmatprep.subr.bf16.mxu0 %v1722
    %3415 = vmatpush1.bf16.msra.mxu0 %v1721
    %3416 = vmatprep.subr.bf16.mxu0 %v1734
    %3417 = vmatpush1.bf16.msra.mxu0 %v1733
    %3418 = vmatprep.subr.bf16.mxu0 %v1746
    %3419 = vmatpush1.bf16.msra.mxu0 %v1745
    %3420 = vmatprep.subr.bf16.mxu0 %v1758
    %3421 = vmatpush1.bf16.msra.mxu0 %v1757
    %3422 = vmatprep.subr.bf16.mxu0 %v1770
    %3423 = vmatpush1.bf16.msra.mxu0 %v1769
    %3424 = vmatprep.subr.bf16.mxu0 %v1782
    %3425 = vmatpush1.bf16.msra.mxu0 %v1781
    %3426 = vmatprep.subr.bf16.mxu0 %v1794
    %3427 = vmatpush1.bf16.msra.mxu0 %v1793
    %3428 = vmatprep.mubr.bf16.mxu0 %v2814
    %3429 = vmatmul.mubr.bf16.gmra.mrb[0].mxu0 %v2812
    %v3430 = vpop.f32.mrb[0].mxu0
    %v3431 = vadd.f32 %v3390, %v3430
    %v3432 = vpop.f32.mrb[0].mxu0
    %v3433 = vadd.f32 %v3392, %v3432
    %v3434 = vpop.f32.mrb[0].mxu0
    %v3435 = vpop.f32.mrb[0].mxu0
    %3436 = vdwg.mxu0
    %3437 = vmatprep.subr.bf16.mxu0 %v1806
    %3438 = vmatpush1.bf16.msra.mxu0 %v1805
    %3439 = vmatprep.subr.bf16.mxu0 %v1818
    %3440 = vmatpush1.bf16.msra.mxu0 %v1817
    %3441 = vmatprep.subr.bf16.mxu0 %v1830
    %3442 = vmatpush1.bf16.msra.mxu0 %v1829
    %3443 = vmatprep.subr.bf16.mxu0 %v1842
    %3444 = vmatpush1.bf16.msra.mxu0 %v1841
    %3445 = vmatprep.subr.bf16.mxu0 %v1854
    %3446 = vmatpush1.bf16.msra.mxu0 %v1853
    %3447 = vmatprep.subr.bf16.mxu0 %v1866
    %3448 = vmatpush1.bf16.msra.mxu0 %v1865
    %3449 = vmatprep.subr.bf16.mxu0 %v1878
    %3450 = vmatpush1.bf16.msra.mxu0 %v1877
    %3451 = vmatprep.subr.bf16.mxu0 %v1890
    %3452 = vmatpush1.bf16.msra.mxu0 %v1889
    %3453 = vmatprep.subr.bf16.mxu0 %v1902
    %3454 = vmatpush1.bf16.msra.mxu0 %v1901
    %3455 = vmatprep.subr.bf16.mxu0 %v1914
    %3456 = vmatpush1.bf16.msra.mxu0 %v1913
    %3457 = vmatprep.subr.bf16.mxu0 %v1926
    %3458 = vmatpush1.bf16.msra.mxu0 %v1925
    %3459 = vmatprep.subr.bf16.mxu0 %v1938
    %3460 = vmatpush1.bf16.msra.mxu0 %v1937
    %3461 = vmatprep.subr.bf16.mxu0 %v1950
    %3462 = vmatpush1.bf16.msra.mxu0 %v1949
    %3463 = vmatprep.subr.bf16.mxu0 %v1962
    %3464 = vmatpush1.bf16.msra.mxu0 %v1961
    %3465 = vmatprep.subr.bf16.mxu0 %v1974
    %3466 = vmatpush1.bf16.msra.mxu0 %v1973
    %3467 = vmatprep.subr.bf16.mxu0 %v1986
    %3468 = vmatpush1.bf16.msra.mxu0 %v1985
    %3469 = vmatprep.mubr.bf16.mxu0 %v2852
    %3470 = vmatmul.mubr.bf16.gmra.mrb[0].mxu0 %v2838
    %v3471 = vpop.f32.mrb[0].mxu0
    %v3472 = vadd.f32 %v3431, %v3471
    %v3473 = vpop.f32.mrb[0].mxu0
    %v3474 = vadd.f32 %v3433, %v3473
    %v3475 = vpop.f32.mrb[0].mxu0
    %v3476 = vpop.f32.mrb[0].mxu0
    %3477 = vdwg.mxu0
    %3478 = vmatprep.subr.bf16.mxu0 %v1998
    %3479 = vmatpush1.bf16.msra.mxu0 %v1997
    %3480 = vmatprep.subr.bf16.mxu0 %v2010
    %3481 = vmatpush1.bf16.msra.mxu0 %v2009
    %3482 = vmatprep.subr.bf16.mxu0 %v2022
    %3483 = vmatpush1.bf16.msra.mxu0 %v2021
    %3484 = vmatprep.subr.bf16.mxu0 %v2034
    %3485 = vmatpush1.bf16.msra.mxu0 %v2033
    %3486 = vmatprep.subr.bf16.mxu0 %v2046
    %3487 = vmatpush1.bf16.msra.mxu0 %v2045
    %3488 = vmatprep.subr.bf16.mxu0 %v2058
    %3489 = vmatpush1.bf16.msra.mxu0 %v2057
    %3490 = vmatprep.subr.bf16.mxu0 %v2070
    %3491 = vmatpush1.bf16.msra.mxu0 %v2069
    %3492 = vmatprep.subr.bf16.mxu0 %v2082
    %3493 = vmatpush1.bf16.msra.mxu0 %v2081
    %3494 = vmatprep.subr.bf16.mxu0 %v2094
    %3495 = vmatpush1.bf16.msra.mxu0 %v2093
    %3496 = vmatprep.subr.bf16.mxu0 %v2106
    %3497 = vmatpush1.bf16.msra.mxu0 %v2105
    %3498 = vmatprep.subr.bf16.mxu0 %v2118
    %3499 = vmatpush1.bf16.msra.mxu0 %v2117
    %3500 = vmatprep.subr.bf16.mxu0 %v2130
    %3501 = vmatpush1.bf16.msra.mxu0 %v2129
    %3502 = vmatprep.subr.bf16.mxu0 %v2142
    %3503 = vmatpush1.bf16.msra.mxu0 %v2141
    %3504 = vmatprep.subr.bf16.mxu0 %v2154
    %3505 = vmatpush1.bf16.msra.mxu0 %v2153
    %3506 = vmatprep.subr.bf16.mxu0 %v2166
    %3507 = vmatpush1.bf16.msra.mxu0 %v2165
    %3508 = vmatprep.subr.bf16.mxu0 %v2178
    %3509 = vmatpush1.bf16.msra.mxu0 %v2177
    %3510 = vmatprep.mubr.bf16.mxu0 %v2862
    %3511 = vmatmul.mubr.bf16.gmra.mrb[0].mxu0 %v2860
    %v3512 = vpop.f32.mrb[0].mxu0
    %v3513 = vadd.f32 %v3472, %v3512
    %v3514 = vpop.f32.mrb[0].mxu0
    %v3515 = vadd.f32 %v3474, %v3514
    %v3516 = vpop.f32.mrb[0].mxu0
    %v3517 = vpop.f32.mrb[0].mxu0
    %3518 = vdwg.mxu0
    %3519 = vmatprep.subr.bf16.mxu0 %v2190
    %3520 = vmatpush1.bf16.msra.mxu0 %v2189
    %3521 = vmatprep.subr.bf16.mxu0 %v2202
    %3522 = vmatpush1.bf16.msra.mxu0 %v2201
    %3523 = vmatprep.subr.bf16.mxu0 %v2214
    %3524 = vmatpush1.bf16.msra.mxu0 %v2213
    %3525 = vmatprep.subr.bf16.mxu0 %v2226
    %3526 = vmatpush1.bf16.msra.mxu0 %v2225
    %3527 = vmatprep.subr.bf16.mxu0 %v2238
    %3528 = vmatpush1.bf16.msra.mxu0 %v2237
    %3529 = vmatprep.subr.bf16.mxu0 %v2250
    %3530 = vmatpush1.bf16.msra.mxu0 %v2249
    %3531 = vmatprep.subr.bf16.mxu0 %v2262
    %3532 = vmatpush1.bf16.msra.mxu0 %v2261
    %3533 = vmatprep.subr.bf16.mxu0 %v2274
    %3534 = vmatpush1.bf16.msra.mxu0 %v2273
    %3535 = vmatprep.subr.bf16.mxu0 %v2286
    %3536 = vmatpush1.bf16.msra.mxu0 %v2285
    %3537 = vmatprep.subr.bf16.mxu0 %v2298
    %3538 = vmatpush1.bf16.msra.mxu0 %v2297
    %3539 = vmatprep.subr.bf16.mxu0 %v2310
    %3540 = vmatpush1.bf16.msra.mxu0 %v2309
    %3541 = vmatprep.subr.bf16.mxu0 %v2322
    %3542 = vmatpush1.bf16.msra.mxu0 %v2321
    %3543 = vmatprep.subr.bf16.mxu0 %v2334
    %3544 = vmatpush1.bf16.msra.mxu0 %v2333
    %3545 = vmatprep.subr.bf16.mxu0 %v2346
    %3546 = vmatpush1.bf16.msra.mxu0 %v2345
    %3547 = vmatprep.subr.bf16.mxu0 %v2358
    %3548 = vmatpush1.bf16.msra.mxu0 %v2357
    %3549 = vmatprep.subr.bf16.mxu0 %v2370
    %3550 = vmatpush1.bf16.msra.mxu0 %v2369
    %3551 = vmatprep.mubr.bf16.mxu0 %v2859
    %3552 = vmatmul.mubr.bf16.gmra.mrb[0].mxu0 %v2845
    %v3553 = vpop.f32.mrb[0].mxu0
    %v3554 = vadd.f32 %v3513, %v3553
    %v3555 = vpop.f32.mrb[0].mxu0
    %v3556 = vadd.f32 %v3515, %v3555
    %v3557 = vpop.f32.mrb[0].mxu0
    %v3558 = vpop.f32.mrb[0].mxu0
    %3559 = vdwg.mxu0
    %3560 = vmatprep.subr.bf16.mxu0 %v2382
    %3561 = vmatpush1.bf16.msra.mxu0 %v2381
    %3562 = vmatprep.subr.bf16.mxu0 %v2394
    %3563 = vmatpush1.bf16.msra.mxu0 %v2393
    %3564 = vmatprep.subr.bf16.mxu0 %v2406
    %3565 = vmatpush1.bf16.msra.mxu0 %v2405
    %3566 = vmatprep.subr.bf16.mxu0 %v2418
    %3567 = vmatpush1.bf16.msra.mxu0 %v2417
    %3568 = vmatprep.subr.bf16.mxu0 %v2430
    %3569 = vmatpush1.bf16.msra.mxu0 %v2429
    %3570 = vmatprep.subr.bf16.mxu0 %v2442
    %3571 = vmatpush1.bf16.msra.mxu0 %v2441
    %3572 = vmatprep.subr.bf16.mxu0 %v2454
    %3573 = vmatpush1.bf16.msra.mxu0 %v2453
    %3574 = vmatprep.subr.bf16.mxu0 %v2466
    %3575 = vmatpush1.bf16.msra.mxu0 %v2465
    %3576 = vmatprep.subr.bf16.mxu0 %v2478
    %3577 = vmatpush1.bf16.msra.mxu0 %v2477
    %3578 = vmatprep.subr.bf16.mxu0 %v2490
    %3579 = vmatpush1.bf16.msra.mxu0 %v2489
    %3580 = vmatprep.subr.bf16.mxu0 %v2502
    %3581 = vmatpush1.bf16.msra.mxu0 %v2501
    %3582 = vmatprep.subr.bf16.mxu0 %v2514
    %3583 = vmatpush1.bf16.msra.mxu0 %v2513
    %3584 = vmatprep.subr.bf16.mxu0 %v2526
    %3585 = vmatpush1.bf16.msra.mxu0 %v2525
    %3586 = vmatprep.subr.bf16.mxu0 %v2538
    %3587 = vmatpush1.bf16.msra.mxu0 %v2537
    %3588 = vmatprep.subr.bf16.mxu0 %v2550
    %3589 = vmatpush1.bf16.msra.mxu0 %v2549
    %3590 = vmatprep.subr.bf16.mxu0 %v2562
    %3591 = vmatpush1.bf16.msra.mxu0 %v2561
    %3592 = vmatprep.mubr.bf16.mxu0 %v2863
    %3593 = vmatmul.mubr.bf16.gmra.mrb[0].mxu0 %v2861
    %v3594 = vpop.f32.mrb[0].mxu0
    %v3595 = vadd.f32 %v3554, %v3594
    %v3596 = vpop.f32.mrb[0].mxu0
    %v3597 = vadd.f32 %v3556, %v3596
    %v3598 = vpop.f32.mrb[0].mxu0
    %v3599 = vpop.f32.mrb[0].mxu0
    %3600 = vdwg.mxu0
    %3601 = vmatprep.subr.bf16.mxu0 %v2574
    %3602 = vmatpush1.bf16.msra.mxu0 %v2573
    %3603 = vmatprep.subr.bf16.mxu0 %v2586
    %3604 = vmatpush1.bf16.msra.mxu0 %v2585
    %3605 = vmatprep.subr.bf16.mxu0 %v2598
    %3606 = vmatpush1.bf16.msra.mxu0 %v2597
    %3607 = vmatprep.subr.bf16.mxu0 %v2610
    %3608 = vmatpush1.bf16.msra.mxu0 %v2609
    %3609 = vmatprep.subr.bf16.mxu0 %v2622
    %3610 = vmatpush1.bf16.msra.mxu0 %v2621
    %3611 = vmatprep.subr.bf16.mxu0 %v2634
    %3612 = vmatpush1.bf16.msra.mxu0 %v2633
    %3613 = vmatprep.subr.bf16.mxu0 %v2646
    %3614 = vmatpush1.bf16.msra.mxu0 %v2645
    %3615 = vmatprep.subr.bf16.mxu0 %v2658
    %3616 = vmatpush1.bf16.msra.mxu0 %v2657
    %3617 = vmatprep.subr.bf16.mxu0 %v2670
    %3618 = vmatpush1.bf16.msra.mxu0 %v2669
    %3619 = vmatprep.subr.bf16.mxu0 %v2682
    %3620 = vmatpush1.bf16.msra.mxu0 %v2681
    %3621 = vmatprep.subr.bf16.mxu0 %v2694
    %3622 = vmatpush1.bf16.msra.mxu0 %v2693
    %3623 = vmatprep.subr.bf16.mxu0 %v2706
    %3624 = vmatpush1.bf16.msra.mxu0 %v2705
    %3625 = vmatprep.subr.bf16.mxu0 %v2718
    %3626 = vmatpush1.bf16.msra.mxu0 %v2717
    %3627 = vmatprep.subr.bf16.mxu0 %v2730
    %3628 = vmatpush1.bf16.msra.mxu0 %v2729
    %3629 = vmatprep.subr.bf16.mxu0 %v2742
    %3630 = vmatpush1.bf16.msra.mxu0 %v2741
    %3631 = vmatprep.subr.bf16.mxu0 %v2754
    %3632 = vmatpush1.bf16.msra.mxu0 %v2753
    %3633 = vmatprep.mubr.bf16.mxu0 %v2885
    %3634 = vmatmul.mubr.bf16.gmra.mrb[0].mxu0 %v2878
    %v3635 = vpop.f32.mrb[0].mxu0
    %v3636 = vadd.f32 %v3595, %v3635
    %v3637 = vpop.f32.mrb[0].mxu0
    %v3638 = vadd.f32 %v3597, %v3637
    %v3639 = vpop.f32.mrb[0].mxu0
    %v3640 = vpop.f32.mrb[0].mxu0
    %3641 = vdwg.mxu0
    %3642 = vmatprep.subr.bf16.mxu0 %v1040
    %3643 = vmatpush1.bf16.msra.mxu0 %v1039
    %3644 = vmatprep.subr.bf16.mxu0 %v1052
    %3645 = vmatpush1.bf16.msra.mxu0 %v1051
    %3646 = vmatprep.subr.bf16.mxu0 %v1064
    %3647 = vmatpush1.bf16.msra.mxu0 %v1063
    %3648 = vmatprep.subr.bf16.mxu0 %v1076
    %3649 = vmatpush1.bf16.msra.mxu0 %v1075
    %3650 = vmatprep.subr.bf16.mxu0 %v1088
    %3651 = vmatpush1.bf16.msra.mxu0 %v1087
    %3652 = vmatprep.subr.bf16.mxu0 %v1100
    %3653 = vmatpush1.bf16.msra.mxu0 %v1099
    %3654 = vmatprep.subr.bf16.mxu0 %v1112
    %3655 = vmatpush1.bf16.msra.mxu0 %v1111
    %3656 = vmatprep.subr.bf16.mxu0 %v1124
    %3657 = vmatpush1.bf16.msra.mxu0 %v1123
    %3658 = vmatprep.subr.bf16.mxu0 %v1136
    %3659 = vmatpush1.bf16.msra.mxu0 %v1135
    %3660 = vmatprep.subr.bf16.mxu0 %v1148
    %3661 = vmatpush1.bf16.msra.mxu0 %v1147
    %3662 = vmatprep.subr.bf16.mxu0 %v1160
    %3663 = vmatpush1.bf16.msra.mxu0 %v1159
    %3664 = vmatprep.subr.bf16.mxu0 %v1172
    %3665 = vmatpush1.bf16.msra.mxu0 %v1171
    %3666 = vmatprep.subr.bf16.mxu0 %v1184
    %3667 = vmatpush1.bf16.msra.mxu0 %v1183
    %3668 = vmatprep.subr.bf16.mxu0 %v1196
    %3669 = vmatpush1.bf16.msra.mxu0 %v1195
    %3670 = vmatprep.subr.bf16.mxu0 %v1208
    %3671 = vmatpush1.bf16.msra.mxu0 %v1207
    %3672 = vmatprep.subr.bf16.mxu0 %v1220
    %3673 = vmatpush1.bf16.msra.mxu0 %v1219
    %3674 = vmatprep.mubr.bf16.mxu0 %v2803
    %3675 = vmatmul.mubr.bf16.gmra.mrb[0].mxu0 %v2789
    %v3676 = vpop.f32.mrb[0].mxu0
    %v3677 = vadd.f32 0.0, %v3676
    %v3678 = vpop.f32.mrb[0].mxu0
    %v3679 = vadd.f32 0.0, %v3678
    %v3680 = vpop.f32.mrb[0].mxu0
    %v3681 = vpop.f32.mrb[0].mxu0
    %3682 = vdwg.mxu0
    %3683 = vmatprep.subr.bf16.mxu0 %v1232
    %3684 = vmatpush1.bf16.msra.mxu0 %v1231
    %3685 = vmatprep.subr.bf16.mxu0 %v1244
    %3686 = vmatpush1.bf16.msra.mxu0 %v1243
    %3687 = vmatprep.subr.bf16.mxu0 %v1256
    %3688 = vmatpush1.bf16.msra.mxu0 %v1255
    %3689 = vmatprep.subr.bf16.mxu0 %v1268
    %3690 = vmatpush1.bf16.msra.mxu0 %v1267
    %3691 = vmatprep.subr.bf16.mxu0 %v1280
    %3692 = vmatpush1.bf16.msra.mxu0 %v1279
    %3693 = vmatprep.subr.bf16.mxu0 %v1292
    %3694 = vmatpush1.bf16.msra.mxu0 %v1291
    %3695 = vmatprep.subr.bf16.mxu0 %v1304
    %3696 = vmatpush1.bf16.msra.mxu0 %v1303
    %3697 = vmatprep.subr.bf16.mxu0 %v1316
    %3698 = vmatpush1.bf16.msra.mxu0 %v1315
    %3699 = vmatprep.subr.bf16.mxu0 %v1328
    %3700 = vmatpush1.bf16.msra.mxu0 %v1327
    %3701 = vmatprep.subr.bf16.mxu0 %v1340
    %3702 = vmatpush1.bf16.msra.mxu0 %v1339
    %3703 = vmatprep.subr.bf16.mxu0 %v1352
    %3704 = vmatpush1.bf16.msra.mxu0 %v1351
    %3705 = vmatprep.subr.bf16.mxu0 %v1364
    %3706 = vmatpush1.bf16.msra.mxu0 %v1363
    %3707 = vmatprep.subr.bf16.mxu0 %v1376
    %3708 = vmatpush1.bf16.msra.mxu0 %v1375
    %3709 = vmatprep.subr.bf16.mxu0 %v1388
    %3710 = vmatpush1.bf16.msra.mxu0 %v1387
    %3711 = vmatprep.subr.bf16.mxu0 %v1400
    %3712 = vmatpush1.bf16.msra.mxu0 %v1399
    %3713 = vmatprep.subr.bf16.mxu0 %v1412
    %3714 = vmatpush1.bf16.msra.mxu0 %v1411
    %3715 = vmatprep.mubr.bf16.mxu0 %v2813
    %3716 = vmatmul.mubr.bf16.gmra.mrb[0].mxu0 %v2811
    %v3717 = vpop.f32.mrb[0].mxu0
    %v3718 = vadd.f32 %v3677, %v3717
    %v3719 = vpop.f32.mrb[0].mxu0
    %v3720 = vadd.f32 %v3679, %v3719
    %v3721 = vpop.f32.mrb[0].mxu0
    %v3722 = vpop.f32.mrb[0].mxu0
    %3723 = vdwg.mxu0
    %3724 = vmatprep.subr.bf16.mxu0 %v1424
    %3725 = vmatpush1.bf16.msra.mxu0 %v1423
    %3726 = vmatprep.subr.bf16.mxu0 %v1436
    %3727 = vmatpush1.bf16.msra.mxu0 %v1435
    %3728 = vmatprep.subr.bf16.mxu0 %v1448
    %3729 = vmatpush1.bf16.msra.mxu0 %v1447
    %3730 = vmatprep.subr.bf16.mxu0 %v1460
    %3731 = vmatpush1.bf16.msra.mxu0 %v1459
    %3732 = vmatprep.subr.bf16.mxu0 %v1472
    %3733 = vmatpush1.bf16.msra.mxu0 %v1471
    %3734 = vmatprep.subr.bf16.mxu0 %v1484
    %3735 = vmatpush1.bf16.msra.mxu0 %v1483
    %3736 = vmatprep.subr.bf16.mxu0 %v1496
    %3737 = vmatpush1.bf16.msra.mxu0 %v1495
    %3738 = vmatprep.subr.bf16.mxu0 %v1508
    %3739 = vmatpush1.bf16.msra.mxu0 %v1507
    %3740 = vmatprep.subr.bf16.mxu0 %v1520
    %3741 = vmatpush1.bf16.msra.mxu0 %v1519
    %3742 = vmatprep.subr.bf16.mxu0 %v1532
    %3743 = vmatpush1.bf16.msra.mxu0 %v1531
    %3744 = vmatprep.subr.bf16.mxu0 %v1544
    %3745 = vmatpush1.bf16.msra.mxu0 %v1543
    %3746 = vmatprep.subr.bf16.mxu0 %v1556
    %3747 = vmatpush1.bf16.msra.mxu0 %v1555
    %3748 = vmatprep.subr.bf16.mxu0 %v1568
    %3749 = vmatpush1.bf16.msra.mxu0 %v1567
    %3750 = vmatprep.subr.bf16.mxu0 %v1580
    %3751 = vmatpush1.bf16.msra.mxu0 %v1579
    %3752 = vmatprep.subr.bf16.mxu0 %v1592
    %3753 = vmatpush1.bf16.msra.mxu0 %v1591
    %3754 = vmatprep.subr.bf16.mxu0 %v1604
    %3755 = vmatpush1.bf16.msra.mxu0 %v1603
    %3756 = vmatprep.mubr.bf16.mxu0 %v2810
    %3757 = vmatmul.mubr.bf16.gmra.mrb[0].mxu0 %v2796
    %v3758 = vpop.f32.mrb[0].mxu0
    %v3759 = vadd.f32 %v3718, %v3758
    %v3760 = vpop.f32.mrb[0].mxu0
    %v3761 = vadd.f32 %v3720, %v3760
    %v3762 = vpop.f32.mrb[0].mxu0
    %v3763 = vpop.f32.mrb[0].mxu0
    %3764 = vdwg.mxu0
    %3765 = vmatprep.subr.bf16.mxu0 %v1616
    %3766 = vmatpush1.bf16.msra.mxu0 %v1615
    %3767 = vmatprep.subr.bf16.mxu0 %v1628
    %3768 = vmatpush1.bf16.msra.mxu0 %v1627
    %3769 = vmatprep.subr.bf16.mxu0 %v1640
    %3770 = vmatpush1.bf16.msra.mxu0 %v1639
    %3771 = vmatprep.subr.bf16.mxu0 %v1652
    %3772 = vmatpush1.bf16.msra.mxu0 %v1651
    %3773 = vmatprep.subr.bf16.mxu0 %v1664
    %3774 = vmatpush1.bf16.msra.mxu0 %v1663
    %3775 = vmatprep.subr.bf16.mxu0 %v1676
    %3776 = vmatpush1.bf16.msra.mxu0 %v1675
    %3777 = vmatprep.subr.bf16.mxu0 %v1688
    %3778 = vmatpush1.bf16.msra.mxu0 %v1687
    %3779 = vmatprep.subr.bf16.mxu0 %v1700
    %3780 = vmatpush1.bf16.msra.mxu0 %v1699
    %3781 = vmatprep.subr.bf16.mxu0 %v1712
    %3782 = vmatpush1.bf16.msra.mxu0 %v1711
    %3783 = vmatprep.subr.bf16.mxu0 %v1724
    %3784 = vmatpush1.bf16.msra.mxu0 %v1723
    %3785 = vmatprep.subr.bf16.mxu0 %v1736
    %3786 = vmatpush1.bf16.msra.mxu0 %v1735
    %3787 = vmatprep.subr.bf16.mxu0 %v1748
    %3788 = vmatpush1.bf16.msra.mxu0 %v1747
    %3789 = vmatprep.subr.bf16.mxu0 %v1760
    %3790 = vmatpush1.bf16.msra.mxu0 %v1759
    %3791 = vmatprep.subr.bf16.mxu0 %v1772
    %3792 = vmatpush1.bf16.msra.mxu0 %v1771
    %3793 = vmatprep.subr.bf16.mxu0 %v1784
    %3794 = vmatpush1.bf16.msra.mxu0 %v1783
    %3795 = vmatprep.subr.bf16.mxu0 %v1796
    %3796 = vmatpush1.bf16.msra.mxu0 %v1795
    %3797 = vmatprep.mubr.bf16.mxu0 %v2814
    %3798 = vmatmul.mubr.bf16.gmra.mrb[0].mxu0 %v2812
    %v3799 = vpop.f32.mrb[0].mxu0
    %v3800 = vadd.f32 %v3759, %v3799
    %v3801 = vpop.f32.mrb[0].mxu0
    %v3802 = vadd.f32 %v3761, %v3801
    %v3803 = vpop.f32.mrb[0].mxu0
    %v3804 = vpop.f32.mrb[0].mxu0
    %3805 = vdwg.mxu0
    %3806 = vmatprep.subr.bf16.mxu0 %v1808
    %3807 = vmatpush1.bf16.msra.mxu0 %v1807
    %3808 = vmatprep.subr.bf16.mxu0 %v1820
    %3809 = vmatpush1.bf16.msra.mxu0 %v1819
    %3810 = vmatprep.subr.bf16.mxu0 %v1832
    %3811 = vmatpush1.bf16.msra.mxu0 %v1831
    %3812 = vmatprep.subr.bf16.mxu0 %v1844
    %3813 = vmatpush1.bf16.msra.mxu0 %v1843
    %3814 = vmatprep.subr.bf16.mxu0 %v1856
    %3815 = vmatpush1.bf16.msra.mxu0 %v1855
    %3816 = vmatprep.subr.bf16.mxu0 %v1868
    %3817 = vmatpush1.bf16.msra.mxu0 %v1867
    %3818 = vmatprep.subr.bf16.mxu0 %v1880
    %3819 = vmatpush1.bf16.msra.mxu0 %v1879
    %3820 = vmatprep.subr.bf16.mxu0 %v1892
    %3821 = vmatpush1.bf16.msra.mxu0 %v1891
    %3822 = vmatprep.subr.bf16.mxu0 %v1904
    %3823 = vmatpush1.bf16.msra.mxu0 %v1903
    %3824 = vmatprep.subr.bf16.mxu0 %v1916
    %3825 = vmatpush1.bf16.msra.mxu0 %v1915
    %3826 = vmatprep.subr.bf16.mxu0 %v1928
    %3827 = vmatpush1.bf16.msra.mxu0 %v1927
    %3828 = vmatprep.subr.bf16.mxu0 %v1940
    %3829 = vmatpush1.bf16.msra.mxu0 %v1939
    %3830 = vmatprep.subr.bf16.mxu0 %v1952
    %3831 = vmatpush1.bf16.msra.mxu0 %v1951
    %3832 = vmatprep.subr.bf16.mxu0 %v1964
    %3833 = vmatpush1.bf16.msra.mxu0 %v1963
    %3834 = vmatprep.subr.bf16.mxu0 %v1976
    %3835 = vmatpush1.bf16.msra.mxu0 %v1975
    %3836 = vmatprep.subr.bf16.mxu0 %v1988
    %3837 = vmatpush1.bf16.msra.mxu0 %v1987
    %3838 = vmatprep.mubr.bf16.mxu0 %v2852
    %3839 = vmatmul.mubr.bf16.gmra.mrb[0].mxu0 %v2838
    %v3840 = vpop.f32.mrb[0].mxu0
    %v3841 = vadd.f32 %v3800, %v3840
    %v3842 = vpop.f32.mrb[0].mxu0
    %v3843 = vadd.f32 %v3802, %v3842
    %v3844 = vpop.f32.mrb[0].mxu0
    %v3845 = vpop.f32.mrb[0].mxu0
    %3846 = vdwg.mxu0
    %3847 = vmatprep.subr.bf16.mxu0 %v2000
    %3848 = vmatpush1.bf16.msra.mxu0 %v1999
    %3849 = vmatprep.subr.bf16.mxu0 %v2012
    %3850 = vmatpush1.bf16.msra.mxu0 %v2011
    %3851 = vmatprep.subr.bf16.mxu0 %v2024
    %3852 = vmatpush1.bf16.msra.mxu0 %v2023
    %3853 = vmatprep.subr.bf16.mxu0 %v2036
    %3854 = vmatpush1.bf16.msra.mxu0 %v2035
    %3855 = vmatprep.subr.bf16.mxu0 %v2048
    %3856 = vmatpush1.bf16.msra.mxu0 %v2047
    %3857 = vmatprep.subr.bf16.mxu0 %v2060
    %3858 = vmatpush1.bf16.msra.mxu0 %v2059
    %3859 = vmatprep.subr.bf16.mxu0 %v2072
    %3860 = vmatpush1.bf16.msra.mxu0 %v2071
    %3861 = vmatprep.subr.bf16.mxu0 %v2084
    %3862 = vmatpush1.bf16.msra.mxu0 %v2083
    %3863 = vmatprep.subr.bf16.mxu0 %v2096
    %3864 = vmatpush1.bf16.msra.mxu0 %v2095
    %3865 = vmatprep.subr.bf16.mxu0 %v2108
    %3866 = vmatpush1.bf16.msra.mxu0 %v2107
    %3867 = vmatprep.subr.bf16.mxu0 %v2120
    %3868 = vmatpush1.bf16.msra.mxu0 %v2119
    %3869 = vmatprep.subr.bf16.mxu0 %v2132
    %3870 = vmatpush1.bf16.msra.mxu0 %v2131
    %3871 = vmatprep.subr.bf16.mxu0 %v2144
    %3872 = vmatpush1.bf16.msra.mxu0 %v2143
    %3873 = vmatprep.subr.bf16.mxu0 %v2156
    %3874 = vmatpush1.bf16.msra.mxu0 %v2155
    %3875 = vmatprep.subr.bf16.mxu0 %v2168
    %3876 = vmatpush1.bf16.msra.mxu0 %v2167
    %3877 = vmatprep.subr.bf16.mxu0 %v2180
    %3878 = vmatpush1.bf16.msra.mxu0 %v2179
    %3879 = vmatprep.mubr.bf16.mxu0 %v2862
    %3880 = vmatmul.mubr.bf16.gmra.mrb[0].mxu0 %v2860
    %v3881 = vpop.f32.mrb[0].mxu0
    %v3882 = vadd.f32 %v3841, %v3881
    %v3883 = vpop.f32.mrb[0].mxu0
    %v3884 = vadd.f32 %v3843, %v3883
    %v3885 = vpop.f32.mrb[0].mxu0
    %v3886 = vpop.f32.mrb[0].mxu0
    %3887 = vdwg.mxu0
    %3888 = vmatprep.subr.bf16.mxu0 %v2192
    %3889 = vmatpush1.bf16.msra.mxu0 %v2191
    %3890 = vmatprep.subr.bf16.mxu0 %v2204
    %3891 = vmatpush1.bf16.msra.mxu0 %v2203
    %3892 = vmatprep.subr.bf16.mxu0 %v2216
    %3893 = vmatpush1.bf16.msra.mxu0 %v2215
    %3894 = vmatprep.subr.bf16.mxu0 %v2228
    %3895 = vmatpush1.bf16.msra.mxu0 %v2227
    %3896 = vmatprep.subr.bf16.mxu0 %v2240
    %3897 = vmatpush1.bf16.msra.mxu0 %v2239
    %3898 = vmatprep.subr.bf16.mxu0 %v2252
    %3899 = vmatpush1.bf16.msra.mxu0 %v2251
    %3900 = vmatprep.subr.bf16.mxu0 %v2264
    %3901 = vmatpush1.bf16.msra.mxu0 %v2263
    %3902 = vmatprep.subr.bf16.mxu0 %v2276
    %3903 = vmatpush1.bf16.msra.mxu0 %v2275
    %3904 = vmatprep.subr.bf16.mxu0 %v2288
    %3905 = vmatpush1.bf16.msra.mxu0 %v2287
    %3906 = vmatprep.subr.bf16.mxu0 %v2300
    %3907 = vmatpush1.bf16.msra.mxu0 %v2299
    %3908 = vmatprep.subr.bf16.mxu0 %v2312
    %3909 = vmatpush1.bf16.msra.mxu0 %v2311
    %3910 = vmatprep.subr.bf16.mxu0 %v2324
    %3911 = vmatpush1.bf16.msra.mxu0 %v2323
    %3912 = vmatprep.subr.bf16.mxu0 %v2336
    %3913 = vmatpush1.bf16.msra.mxu0 %v2335
    %3914 = vmatprep.subr.bf16.mxu0 %v2348
    %3915 = vmatpush1.bf16.msra.mxu0 %v2347
    %3916 = vmatprep.subr.bf16.mxu0 %v2360
    %3917 = vmatpush1.bf16.msra.mxu0 %v2359
    %3918 = vmatprep.subr.bf16.mxu0 %v2372
    %3919 = vmatpush1.bf16.msra.mxu0 %v2371
    %3920 = vmatprep.mubr.bf16.mxu0 %v2859
    %3921 = vmatmul.mubr.bf16.gmra.mrb[0].mxu0 %v2845
    %v3922 = vpop.f32.mrb[0].mxu0
    %v3923 = vadd.f32 %v3882, %v3922
    %v3924 = vpop.f32.mrb[0].mxu0
    %v3925 = vadd.f32 %v3884, %v3924
    %v3926 = vpop.f32.mrb[0].mxu0
    %v3927 = vpop.f32.mrb[0].mxu0
    %3928 = vdwg.mxu0
    %3929 = vmatprep.subr.bf16.mxu0 %v2384
    %3930 = vmatpush1.bf16.msra.mxu0 %v2383
    %3931 = vmatprep.subr.bf16.mxu0 %v2396
    %3932 = vmatpush1.bf16.msra.mxu0 %v2395
    %3933 = vmatprep.subr.bf16.mxu0 %v2408
    %3934 = vmatpush1.bf16.msra.mxu0 %v2407
    %3935 = vmatprep.subr.bf16.mxu0 %v2420
    %3936 = vmatpush1.bf16.msra.mxu0 %v2419
    %3937 = vmatprep.subr.bf16.mxu0 %v2432
    %3938 = vmatpush1.bf16.msra.mxu0 %v2431
    %3939 = vmatprep.subr.bf16.mxu0 %v2444
    %3940 = vmatpush1.bf16.msra.mxu0 %v2443
    %3941 = vmatprep.subr.bf16.mxu0 %v2456
    %3942 = vmatpush1.bf16.msra.mxu0 %v2455
    %3943 = vmatprep.subr.bf16.mxu0 %v2468
    %3944 = vmatpush1.bf16.msra.mxu0 %v2467
    %3945 = vmatprep.subr.bf16.mxu0 %v2480
    %3946 = vmatpush1.bf16.msra.mxu0 %v2479
    %3947 = vmatprep.subr.bf16.mxu0 %v2492
    %3948 = vmatpush1.bf16.msra.mxu0 %v2491
    %3949 = vmatprep.subr.bf16.mxu0 %v2504
    %3950 = vmatpush1.bf16.msra.mxu0 %v2503
    %3951 = vmatprep.subr.bf16.mxu0 %v2516
    %3952 = vmatpush1.bf16.msra.mxu0 %v2515
    %3953 = vmatprep.subr.bf16.mxu0 %v2528
    %3954 = vmatpush1.bf16.msra.mxu0 %v2527
    %3955 = vmatprep.subr.bf16.mxu0 %v2540
    %3956 = vmatpush1.bf16.msra.mxu0 %v2539
    %3957 = vmatprep.subr.bf16.mxu0 %v2552
    %3958 = vmatpush1.bf16.msra.mxu0 %v2551
    %3959 = vmatprep.subr.bf16.mxu0 %v2564
    %3960 = vmatpush1.bf16.msra.mxu0 %v2563
    %3961 = vmatprep.mubr.bf16.mxu0 %v2863
    %3962 = vmatmul.mubr.bf16.gmra.mrb[0].mxu0 %v2861
    %v3963 = vpop.f32.mrb[0].mxu0
    %v3964 = vadd.f32 %v3923, %v3963
    %v3965 = vpop.f32.mrb[0].mxu0
    %v3966 = vadd.f32 %v3925, %v3965
    %v3967 = vpop.f32.mrb[0].mxu0
    %v3968 = vpop.f32.mrb[0].mxu0
    %3969 = vdwg.mxu0
    %3970 = vmatprep.subr.bf16.mxu0 %v2576
    %3971 = vmatpush1.bf16.msra.mxu0 %v2575
    %3972 = vmatprep.subr.bf16.mxu0 %v2588
    %3973 = vmatpush1.bf16.msra.mxu0 %v2587
    %3974 = vmatprep.subr.bf16.mxu0 %v2600
    %3975 = vmatpush1.bf16.msra.mxu0 %v2599
    %3976 = vmatprep.subr.bf16.mxu0 %v2612
    %3977 = vmatpush1.bf16.msra.mxu0 %v2611
    %3978 = vmatprep.subr.bf16.mxu0 %v2624
    %3979 = vmatpush1.bf16.msra.mxu0 %v2623
    %3980 = vmatprep.subr.bf16.mxu0 %v2636
    %3981 = vmatpush1.bf16.msra.mxu0 %v2635
    %3982 = vmatprep.subr.bf16.mxu0 %v2648
    %3983 = vmatpush1.bf16.msra.mxu0 %v2647
    %3984 = vmatprep.subr.bf16.mxu0 %v2660
    %3985 = vmatpush1.bf16.msra.mxu0 %v2659
    %3986 = vmatprep.subr.bf16.mxu0 %v2672
    %3987 = vmatpush1.bf16.msra.mxu0 %v2671
    %3988 = vmatprep.subr.bf16.mxu0 %v2684
    %3989 = vmatpush1.bf16.msra.mxu0 %v2683
    %3990 = vmatprep.subr.bf16.mxu0 %v2696
    %3991 = vmatpush1.bf16.msra.mxu0 %v2695
    %3992 = vmatprep.subr.bf16.mxu0 %v2708
    %3993 = vmatpush1.bf16.msra.mxu0 %v2707
    %3994 = vmatprep.subr.bf16.mxu0 %v2720
    %3995 = vmatpush1.bf16.msra.mxu0 %v2719
    %3996 = vmatprep.subr.bf16.mxu0 %v2732
    %3997 = vmatpush1.bf16.msra.mxu0 %v2731
    %3998 = vmatprep.subr.bf16.mxu0 %v2744
    %3999 = vmatpush1.bf16.msra.mxu0 %v2743
    %4000 = vmatprep.subr.bf16.mxu0 %v2756
    %4001 = vmatpush1.bf16.msra.mxu0 %v2755
    %4002 = vmatprep.mubr.bf16.mxu0 %v2885
    %4003 = vmatmul.mubr.bf16.gmra.mrb[0].mxu0 %v2878
    %v4004 = vpop.f32.mrb[0].mxu0
    %v4005 = vadd.f32 %v3964, %v4004
    %v4006 = vpop.f32.mrb[0].mxu0
    %v4007 = vadd.f32 %v3966, %v4006
    %v4008 = vpop.f32.mrb[0].mxu0
    %v4009 = vpop.f32.mrb[0].mxu0
    %4010 = vdwg.mxu0
    %4011 = vmatprep.subr.bf16.mxu0 %v1042
    %4012 = vmatpush1.bf16.msra.mxu0 %v1041
    %4013 = vmatprep.subr.bf16.mxu0 %v1054
    %4014 = vmatpush1.bf16.msra.mxu0 %v1053
    %4015 = vmatprep.subr.bf16.mxu0 %v1066
    %4016 = vmatpush1.bf16.msra.mxu0 %v1065
    %4017 = vmatprep.subr.bf16.mxu0 %v1078
    %4018 = vmatpush1.bf16.msra.mxu0 %v1077
    %4019 = vmatprep.subr.bf16.mxu0 %v1090
    %4020 = vmatpush1.bf16.msra.mxu0 %v1089
    %4021 = vmatprep.subr.bf16.mxu0 %v1102
    %4022 = vmatpush1.bf16.msra.mxu0 %v1101
    %4023 = vmatprep.subr.bf16.mxu0 %v1114
    %4024 = vmatpush1.bf16.msra.mxu0 %v1113
    %4025 = vmatprep.subr.bf16.mxu0 %v1126
    %4026 = vmatpush1.bf16.msra.mxu0 %v1125
    %4027 = vmatprep.subr.bf16.mxu0 %v1138
    %4028 = vmatpush1.bf16.msra.mxu0 %v1137
    %4029 = vmatprep.subr.bf16.mxu0 %v1150
    %4030 = vmatpush1.bf16.msra.mxu0 %v1149
    %4031 = vmatprep.subr.bf16.mxu0 %v1162
    %4032 = vmatpush1.bf16.msra.mxu0 %v1161
    %4033 = vmatprep.subr.bf16.mxu0 %v1174
    %4034 = vmatpush1.bf16.msra.mxu0 %v1173
    %4035 = vmatprep.subr.bf16.mxu0 %v1186
    %4036 = vmatpush1.bf16.msra.mxu0 %v1185
    %4037 = vmatprep.subr.bf16.mxu0 %v1198
    %4038 = vmatpush1.bf16.msra.mxu0 %v1197
    %4039 = vmatprep.subr.bf16.mxu0 %v1210
    %4040 = vmatpush1.bf16.msra.mxu0 %v1209
    %4041 = vmatprep.subr.bf16.mxu0 %v1222
    %4042 = vmatpush1.bf16.msra.mxu0 %v1221
    %4043 = vmatprep.mubr.bf16.mxu0 %v2803
    %4044 = vmatmul.mubr.bf16.gmra.mrb[0].mxu0 %v2789
    %v4045 = vpop.f32.mrb[0].mxu0
    %v4046 = vadd.f32 0.0, %v4045
    %v4047 = vpop.f32.mrb[0].mxu0
    %v4048 = vadd.f32 0.0, %v4047
    %v4049 = vpop.f32.mrb[0].mxu0
    %v4050 = vpop.f32.mrb[0].mxu0
    %4051 = vdwg.mxu0
    %4052 = vmatprep.subr.bf16.mxu0 %v1234
    %4053 = vmatpush1.bf16.msra.mxu0 %v1233
    %4054 = vmatprep.subr.bf16.mxu0 %v1246
    %4055 = vmatpush1.bf16.msra.mxu0 %v1245
    %4056 = vmatprep.subr.bf16.mxu0 %v1258
    %4057 = vmatpush1.bf16.msra.mxu0 %v1257
    %4058 = vmatprep.subr.bf16.mxu0 %v1270
    %4059 = vmatpush1.bf16.msra.mxu0 %v1269
    %4060 = vmatprep.subr.bf16.mxu0 %v1282
    %4061 = vmatpush1.bf16.msra.mxu0 %v1281
    %4062 = vmatprep.subr.bf16.mxu0 %v1294
    %4063 = vmatpush1.bf16.msra.mxu0 %v1293
    %4064 = vmatprep.subr.bf16.mxu0 %v1306
    %4065 = vmatpush1.bf16.msra.mxu0 %v1305
    %4066 = vmatprep.subr.bf16.mxu0 %v1318
    %4067 = vmatpush1.bf16.msra.mxu0 %v1317
    %4068 = vmatprep.subr.bf16.mxu0 %v1330
    %4069 = vmatpush1.bf16.msra.mxu0 %v1329
    %4070 = vmatprep.subr.bf16.mxu0 %v1342
    %4071 = vmatpush1.bf16.msra.mxu0 %v1341
    %4072 = vmatprep.subr.bf16.mxu0 %v1354
    %4073 = vmatpush1.bf16.msra.mxu0 %v1353
    %4074 = vmatprep.subr.bf16.mxu0 %v1366
    %4075 = vmatpush1.bf16.msra.mxu0 %v1365
    %4076 = vmatprep.subr.bf16.mxu0 %v1378
    %4077 = vmatpush1.bf16.msra.mxu0 %v1377
    %4078 = vmatprep.subr.bf16.mxu0 %v1390
    %4079 = vmatpush1.bf16.msra.mxu0 %v1389
    %4080 = vmatprep.subr.bf16.mxu0 %v1402
    %4081 = vmatpush1.bf16.msra.mxu0 %v1401
    %4082 = vmatprep.subr.bf16.mxu0 %v1414
    %4083 = vmatpush1.bf16.msra.mxu0 %v1413
    %4084 = vmatprep.mubr.bf16.mxu0 %v2813
    %4085 = vmatmul.mubr.bf16.gmra.mrb[0].mxu0 %v2811
    %v4086 = vpop.f32.mrb[0].mxu0
    %v4087 = vadd.f32 %v4046, %v4086
    %v4088 = vpop.f32.mrb[0].mxu0
    %v4089 = vadd.f32 %v4048, %v4088
    %v4090 = vpop.f32.mrb[0].mxu0
    %v4091 = vpop.f32.mrb[0].mxu0
    %4092 = vdwg.mxu0
    %4093 = vmatprep.subr.bf16.mxu0 %v1426
    %4094 = vmatpush1.bf16.msra.mxu0 %v1425
    %4095 = vmatprep.subr.bf16.mxu0 %v1438
    %4096 = vmatpush1.bf16.msra.mxu0 %v1437
    %4097 = vmatprep.subr.bf16.mxu0 %v1450
    %4098 = vmatpush1.bf16.msra.mxu0 %v1449
    %4099 = vmatprep.subr.bf16.mxu0 %v1462
    %4100 = vmatpush1.bf16.msra.mxu0 %v1461
    %4101 = vmatprep.subr.bf16.mxu0 %v1474
    %4102 = vmatpush1.bf16.msra.mxu0 %v1473
    %4103 = vmatprep.subr.bf16.mxu0 %v1486
    %4104 = vmatpush1.bf16.msra.mxu0 %v1485
    %4105 = vmatprep.subr.bf16.mxu0 %v1498
    %4106 = vmatpush1.bf16.msra.mxu0 %v1497
    %4107 = vmatprep.subr.bf16.mxu0 %v1510
    %4108 = vmatpush1.bf16.msra.mxu0 %v1509
    %4109 = vmatprep.subr.bf16.mxu0 %v1522
    %4110 = vmatpush1.bf16.msra.mxu0 %v1521
    %4111 = vmatprep.subr.bf16.mxu0 %v1534
    %4112 = vmatpush1.bf16.msra.mxu0 %v1533
    %4113 = vmatprep.subr.bf16.mxu0 %v1546
    %4114 = vmatpush1.bf16.msra.mxu0 %v1545
    %4115 = vmatprep.subr.bf16.mxu0 %v1558
    %4116 = vmatpush1.bf16.msra.mxu0 %v1557
    %4117 = vmatprep.subr.bf16.mxu0 %v1570
    %4118 = vmatpush1.bf16.msra.mxu0 %v1569
    %4119 = vmatprep.subr.bf16.mxu0 %v1582
    %4120 = vmatpush1.bf16.msra.mxu0 %v1581
    %4121 = vmatprep.subr.bf16.mxu0 %v1594
    %4122 = vmatpush1.bf16.msra.mxu0 %v1593
    %4123 = vmatprep.subr.bf16.mxu0 %v1606
    %4124 = vmatpush1.bf16.msra.mxu0 %v1605
    %4125 = vmatprep.mubr.bf16.mxu0 %v2810
    %4126 = vmatmul.mubr.bf16.gmra.mrb[0].mxu0 %v2796
    %v4127 = vpop.f32.mrb[0].mxu0
    %v4128 = vadd.f32 %v4087, %v4127
    %v4129 = vpop.f32.mrb[0].mxu0
    %v4130 = vadd.f32 %v4089, %v4129
    %v4131 = vpop.f32.mrb[0].mxu0
    %v4132 = vpop.f32.mrb[0].mxu0
    %4133 = vdwg.mxu0
    %4134 = vmatprep.subr.bf16.mxu0 %v1618
    %4135 = vmatpush1.bf16.msra.mxu0 %v1617
    %4136 = vmatprep.subr.bf16.mxu0 %v1630
    %4137 = vmatpush1.bf16.msra.mxu0 %v1629
    %4138 = vmatprep.subr.bf16.mxu0 %v1642
    %4139 = vmatpush1.bf16.msra.mxu0 %v1641
    %4140 = vmatprep.subr.bf16.mxu0 %v1654
    %4141 = vmatpush1.bf16.msra.mxu0 %v1653
    %4142 = vmatprep.subr.bf16.mxu0 %v1666
    %4143 = vmatpush1.bf16.msra.mxu0 %v1665
    %4144 = vmatprep.subr.bf16.mxu0 %v1678
    %4145 = vmatpush1.bf16.msra.mxu0 %v1677
    %4146 = vmatprep.subr.bf16.mxu0 %v1690
    %4147 = vmatpush1.bf16.msra.mxu0 %v1689
    %4148 = vmatprep.subr.bf16.mxu0 %v1702
    %4149 = vmatpush1.bf16.msra.mxu0 %v1701
    %4150 = vmatprep.subr.bf16.mxu0 %v1714
    %4151 = vmatpush1.bf16.msra.mxu0 %v1713
    %4152 = vmatprep.subr.bf16.mxu0 %v1726
    %4153 = vmatpush1.bf16.msra.mxu0 %v1725
    %4154 = vmatprep.subr.bf16.mxu0 %v1738
    %4155 = vmatpush1.bf16.msra.mxu0 %v1737
    %4156 = vmatprep.subr.bf16.mxu0 %v1750
    %4157 = vmatpush1.bf16.msra.mxu0 %v1749
    %4158 = vmatprep.subr.bf16.mxu0 %v1762
    %4159 = vmatpush1.bf16.msra.mxu0 %v1761
    %4160 = vmatprep.subr.bf16.mxu0 %v1774
    %4161 = vmatpush1.bf16.msra.mxu0 %v1773
    %4162 = vmatprep.subr.bf16.mxu0 %v1786
    %4163 = vmatpush1.bf16.msra.mxu0 %v1785
    %4164 = vmatprep.subr.bf16.mxu0 %v1798
    %4165 = vmatpush1.bf16.msra.mxu0 %v1797
    %4166 = vmatprep.mubr.bf16.mxu0 %v2814
    %4167 = vmatmul.mubr.bf16.gmra.mrb[0].mxu0 %v2812
    %v4168 = vpop.f32.mrb[0].mxu0
    %v4169 = vadd.f32 %v4128, %v4168
    %v4170 = vpop.f32.mrb[0].mxu0
    %v4171 = vadd.f32 %v4130, %v4170
    %v4172 = vpop.f32.mrb[0].mxu0
    %v4173 = vpop.f32.mrb[0].mxu0
    %4174 = vdwg.mxu0
    %4175 = vmatprep.subr.bf16.mxu0 %v1810
    %4176 = vmatpush1.bf16.msra.mxu0 %v1809
    %4177 = vmatprep.subr.bf16.mxu0 %v1822
    %4178 = vmatpush1.bf16.msra.mxu0 %v1821
    %4179 = vmatprep.subr.bf16.mxu0 %v1834
    %4180 = vmatpush1.bf16.msra.mxu0 %v1833
    %4181 = vmatprep.subr.bf16.mxu0 %v1846
    %4182 = vmatpush1.bf16.msra.mxu0 %v1845
    %4183 = vmatprep.subr.bf16.mxu0 %v1858
    %4184 = vmatpush1.bf16.msra.mxu0 %v1857
    %4185 = vmatprep.subr.bf16.mxu0 %v1870
    %4186 = vmatpush1.bf16.msra.mxu0 %v1869
    %4187 = vmatprep.subr.bf16.mxu0 %v1882
    %4188 = vmatpush1.bf16.msra.mxu0 %v1881
    %4189 = vmatprep.subr.bf16.mxu0 %v1894
    %4190 = vmatpush1.bf16.msra.mxu0 %v1893
    %4191 = vmatprep.subr.bf16.mxu0 %v1906
    %4192 = vmatpush1.bf16.msra.mxu0 %v1905
    %4193 = vmatprep.subr.bf16.mxu0 %v1918
    %4194 = vmatpush1.bf16.msra.mxu0 %v1917
    %4195 = vmatprep.subr.bf16.mxu0 %v1930
    %4196 = vmatpush1.bf16.msra.mxu0 %v1929
    %4197 = vmatprep.subr.bf16.mxu0 %v1942
    %4198 = vmatpush1.bf16.msra.mxu0 %v1941
    %4199 = vmatprep.subr.bf16.mxu0 %v1954
    %4200 = vmatpush1.bf16.msra.mxu0 %v1953
    %4201 = vmatprep.subr.bf16.mxu0 %v1966
    %4202 = vmatpush1.bf16.msra.mxu0 %v1965
    %4203 = vmatprep.subr.bf16.mxu0 %v1978
    %4204 = vmatpush1.bf16.msra.mxu0 %v1977
    %4205 = vmatprep.subr.bf16.mxu0 %v1990
    %4206 = vmatpush1.bf16.msra.mxu0 %v1989
    %4207 = vmatprep.mubr.bf16.mxu0 %v2852
    %4208 = vmatmul.mubr.bf16.gmra.mrb[0].mxu0 %v2838
    %v4209 = vpop.f32.mrb[0].mxu0
    %v4210 = vadd.f32 %v4169, %v4209
    %v4211 = vpop.f32.mrb[0].mxu0
    %v4212 = vadd.f32 %v4171, %v4211
    %v4213 = vpop.f32.mrb[0].mxu0
    %v4214 = vpop.f32.mrb[0].mxu0
    %4215 = vdwg.mxu0
    %4216 = vmatprep.subr.bf16.mxu0 %v2002
    %4217 = vmatpush1.bf16.msra.mxu0 %v2001
    %4218 = vmatprep.subr.bf16.mxu0 %v2014
    %4219 = vmatpush1.bf16.msra.mxu0 %v2013
    %4220 = vmatprep.subr.bf16.mxu0 %v2026
    %4221 = vmatpush1.bf16.msra.mxu0 %v2025
    %4222 = vmatprep.subr.bf16.mxu0 %v2038
    %4223 = vmatpush1.bf16.msra.mxu0 %v2037
    %4224 = vmatprep.subr.bf16.mxu0 %v2050
    %4225 = vmatpush1.bf16.msra.mxu0 %v2049
    %4226 = vmatprep.subr.bf16.mxu0 %v2062
    %4227 = vmatpush1.bf16.msra.mxu0 %v2061
    %4228 = vmatprep.subr.bf16.mxu0 %v2074
    %4229 = vmatpush1.bf16.msra.mxu0 %v2073
    %4230 = vmatprep.subr.bf16.mxu0 %v2086
    %4231 = vmatpush1.bf16.msra.mxu0 %v2085
    %4232 = vmatprep.subr.bf16.mxu0 %v2098
    %4233 = vmatpush1.bf16.msra.mxu0 %v2097
    %4234 = vmatprep.subr.bf16.mxu0 %v2110
    %4235 = vmatpush1.bf16.msra.mxu0 %v2109
    %4236 = vmatprep.subr.bf16.mxu0 %v2122
    %4237 = vmatpush1.bf16.msra.mxu0 %v2121
    %4238 = vmatprep.subr.bf16.mxu0 %v2134
    %4239 = vmatpush1.bf16.msra.mxu0 %v2133
    %4240 = vmatprep.subr.bf16.mxu0 %v2146
    %4241 = vmatpush1.bf16.msra.mxu0 %v2145
    %4242 = vmatprep.subr.bf16.mxu0 %v2158
    %4243 = vmatpush1.bf16.msra.mxu0 %v2157
    %4244 = vmatprep.subr.bf16.mxu0 %v2170
    %4245 = vmatpush1.bf16.msra.mxu0 %v2169
    %4246 = vmatprep.subr.bf16.mxu0 %v2182
    %4247 = vmatpush1.bf16.msra.mxu0 %v2181
    %4248 = vmatprep.mubr.bf16.mxu0 %v2862
    %4249 = vmatmul.mubr.bf16.gmra.mrb[0].mxu0 %v2860
    %v4250 = vpop.f32.mrb[0].mxu0
    %v4251 = vadd.f32 %v4210, %v4250
    %v4252 = vpop.f32.mrb[0].mxu0
    %v4253 = vadd.f32 %v4212, %v4252
    %v4254 = vpop.f32.mrb[0].mxu0
    %v4255 = vpop.f32.mrb[0].mxu0
    %4256 = vdwg.mxu0
    %4257 = vmatprep.subr.bf16.mxu0 %v2194
    %4258 = vmatpush1.bf16.msra.mxu0 %v2193
    %4259 = vmatprep.subr.bf16.mxu0 %v2206
    %4260 = vmatpush1.bf16.msra.mxu0 %v2205
    %4261 = vmatprep.subr.bf16.mxu0 %v2218
    %4262 = vmatpush1.bf16.msra.mxu0 %v2217
    %4263 = vmatprep.subr.bf16.mxu0 %v2230
    %4264 = vmatpush1.bf16.msra.mxu0 %v2229
    %4265 = vmatprep.subr.bf16.mxu0 %v2242
    %4266 = vmatpush1.bf16.msra.mxu0 %v2241
    %4267 = vmatprep.subr.bf16.mxu0 %v2254
    %4268 = vmatpush1.bf16.msra.mxu0 %v2253
    %4269 = vmatprep.subr.bf16.mxu0 %v2266
    %4270 = vmatpush1.bf16.msra.mxu0 %v2265
    %4271 = vmatprep.subr.bf16.mxu0 %v2278
    %4272 = vmatpush1.bf16.msra.mxu0 %v2277
    %4273 = vmatprep.subr.bf16.mxu0 %v2290
    %4274 = vmatpush1.bf16.msra.mxu0 %v2289
    %4275 = vmatprep.subr.bf16.mxu0 %v2302
    %4276 = vmatpush1.bf16.msra.mxu0 %v2301
    %4277 = vmatprep.subr.bf16.mxu0 %v2314
    %4278 = vmatpush1.bf16.msra.mxu0 %v2313
    %4279 = vmatprep.subr.bf16.mxu0 %v2326
    %4280 = vmatpush1.bf16.msra.mxu0 %v2325
    %4281 = vmatprep.subr.bf16.mxu0 %v2338
    %4282 = vmatpush1.bf16.msra.mxu0 %v2337
    %4283 = vmatprep.subr.bf16.mxu0 %v2350
    %4284 = vmatpush1.bf16.msra.mxu0 %v2349
    %4285 = vmatprep.subr.bf16.mxu0 %v2362
    %4286 = vmatpush1.bf16.msra.mxu0 %v2361
    %4287 = vmatprep.subr.bf16.mxu0 %v2374
    %4288 = vmatpush1.bf16.msra.mxu0 %v2373
    %4289 = vmatprep.mubr.bf16.mxu0 %v2859
    %4290 = vmatmul.mubr.bf16.gmra.mrb[0].mxu0 %v2845
    %v4291 = vpop.f32.mrb[0].mxu0
    %v4292 = vadd.f32 %v4251, %v4291
    %v4293 = vpop.f32.mrb[0].mxu0
    %v4294 = vadd.f32 %v4253, %v4293
    %v4295 = vpop.f32.mrb[0].mxu0
    %v4296 = vpop.f32.mrb[0].mxu0
    %4297 = vdwg.mxu0
    %4298 = vmatprep.subr.bf16.mxu0 %v2386
    %4299 = vmatpush1.bf16.msra.mxu0 %v2385
    %4300 = vmatprep.subr.bf16.mxu0 %v2398
    %4301 = vmatpush1.bf16.msra.mxu0 %v2397
    %4302 = vmatprep.subr.bf16.mxu0 %v2410
    %4303 = vmatpush1.bf16.msra.mxu0 %v2409
    %4304 = vmatprep.subr.bf16.mxu0 %v2422
    %4305 = vmatpush1.bf16.msra.mxu0 %v2421
    %4306 = vmatprep.subr.bf16.mxu0 %v2434
    %4307 = vmatpush1.bf16.msra.mxu0 %v2433
    %4308 = vmatprep.subr.bf16.mxu0 %v2446
    %4309 = vmatpush1.bf16.msra.mxu0 %v2445
    %4310 = vmatprep.subr.bf16.mxu0 %v2458
    %4311 = vmatpush1.bf16.msra.mxu0 %v2457
    %4312 = vmatprep.subr.bf16.mxu0 %v2470
    %4313 = vmatpush1.bf16.msra.mxu0 %v2469
    %4314 = vmatprep.subr.bf16.mxu0 %v2482
    %4315 = vmatpush1.bf16.msra.mxu0 %v2481
    %4316 = vmatprep.subr.bf16.mxu0 %v2494
    %4317 = vmatpush1.bf16.msra.mxu0 %v2493
    %4318 = vmatprep.subr.bf16.mxu0 %v2506
    %4319 = vmatpush1.bf16.msra.mxu0 %v2505
    %4320 = vmatprep.subr.bf16.mxu0 %v2518
    %4321 = vmatpush1.bf16.msra.mxu0 %v2517
    %4322 = vmatprep.subr.bf16.mxu0 %v2530
    %4323 = vmatpush1.bf16.msra.mxu0 %v2529
    %4324 = vmatprep.subr.bf16.mxu0 %v2542
    %4325 = vmatpush1.bf16.msra.mxu0 %v2541
    %4326 = vmatprep.subr.bf16.mxu0 %v2554
    %4327 = vmatpush1.bf16.msra.mxu0 %v2553
    %4328 = vmatprep.subr.bf16.mxu0 %v2566
    %4329 = vmatpush1.bf16.msra.mxu0 %v2565
    %4330 = vmatprep.mubr.bf16.mxu0 %v2863
    %4331 = vmatmul.mubr.bf16.gmra.mrb[0].mxu0 %v2861
    %v4332 = vpop.f32.mrb[0].mxu0
    %v4333 = vadd.f32 %v4292, %v4332
    %v4334 = vpop.f32.mrb[0].mxu0
    %v4335 = vadd.f32 %v4294, %v4334
    %v4336 = vpop.f32.mrb[0].mxu0
    %v4337 = vpop.f32.mrb[0].mxu0
    %4338 = vdwg.mxu0
    %4339 = vmatprep.subr.bf16.mxu0 %v2578
    %4340 = vmatpush1.bf16.msra.mxu0 %v2577
    %4341 = vmatprep.subr.bf16.mxu0 %v2590
    %4342 = vmatpush1.bf16.msra.mxu0 %v2589
    %4343 = vmatprep.subr.bf16.mxu0 %v2602
    %4344 = vmatpush1.bf16.msra.mxu0 %v2601
    %4345 = vmatprep.subr.bf16.mxu0 %v2614
    %4346 = vmatpush1.bf16.msra.mxu0 %v2613
    %4347 = vmatprep.subr.bf16.mxu0 %v2626
    %4348 = vmatpush1.bf16.msra.mxu0 %v2625
    %4349 = vmatprep.subr.bf16.mxu0 %v2638
    %4350 = vmatpush1.bf16.msra.mxu0 %v2637
    %4351 = vmatprep.subr.bf16.mxu0 %v2650
    %4352 = vmatpush1.bf16.msra.mxu0 %v2649
    %4353 = vmatprep.subr.bf16.mxu0 %v2662
    %4354 = vmatpush1.bf16.msra.mxu0 %v2661
    %4355 = vmatprep.subr.bf16.mxu0 %v2674
    %4356 = vmatpush1.bf16.msra.mxu0 %v2673
    %4357 = vmatprep.subr.bf16.mxu0 %v2686
    %4358 = vmatpush1.bf16.msra.mxu0 %v2685
    %4359 = vmatprep.subr.bf16.mxu0 %v2698
    %4360 = vmatpush1.bf16.msra.mxu0 %v2697
    %4361 = vmatprep.subr.bf16.mxu0 %v2710
    %4362 = vmatpush1.bf16.msra.mxu0 %v2709
    %4363 = vmatprep.subr.bf16.mxu0 %v2722
    %4364 = vmatpush1.bf16.msra.mxu0 %v2721
    %4365 = vmatprep.subr.bf16.mxu0 %v2734
    %4366 = vmatpush1.bf16.msra.mxu0 %v2733
    %4367 = vmatprep.subr.bf16.mxu0 %v2746
    %4368 = vmatpush1.bf16.msra.mxu0 %v2745
    %4369 = vmatprep.subr.bf16.mxu0 %v2758
    %4370 = vmatpush1.bf16.msra.mxu0 %v2757
    %4371 = vmatprep.mubr.bf16.mxu0 %v2885
    %4372 = vmatmul.mubr.bf16.gmra.mrb[0].mxu0 %v2878
    %v4373 = vpop.f32.mrb[0].mxu0
    %v4374 = vadd.f32 %v4333, %v4373
    %v4375 = vpop.f32.mrb[0].mxu0
    %v4376 = vadd.f32 %v4335, %v4375
    %v4377 = vpop.f32.mrb[0].mxu0
    %v4378 = vpop.f32.mrb[0].mxu0
    %4379 = vdwg.mxu0
    %4380 = vmatprep.subr.bf16.mxu0 %v1044
    %4381 = vmatpush1.bf16.msra.mxu0 %v1043
    %4382 = vmatprep.subr.bf16.mxu0 %v1056
    %4383 = vmatpush1.bf16.msra.mxu0 %v1055
    %4384 = vmatprep.subr.bf16.mxu0 %v1068
    %4385 = vmatpush1.bf16.msra.mxu0 %v1067
    %4386 = vmatprep.subr.bf16.mxu0 %v1080
    %4387 = vmatpush1.bf16.msra.mxu0 %v1079
    %4388 = vmatprep.subr.bf16.mxu0 %v1092
    %4389 = vmatpush1.bf16.msra.mxu0 %v1091
    %4390 = vmatprep.subr.bf16.mxu0 %v1104
    %4391 = vmatpush1.bf16.msra.mxu0 %v1103
    %4392 = vmatprep.subr.bf16.mxu0 %v1116
    %4393 = vmatpush1.bf16.msra.mxu0 %v1115
    %4394 = vmatprep.subr.bf16.mxu0 %v1128
    %4395 = vmatpush1.bf16.msra.mxu0 %v1127
    %4396 = vmatprep.subr.bf16.mxu0 %v1140
    %4397 = vmatpush1.bf16.msra.mxu0 %v1139
    %4398 = vmatprep.subr.bf16.mxu0 %v1152
    %4399 = vmatpush1.bf16.msra.mxu0 %v1151
    %4400 = vmatprep.subr.bf16.mxu0 %v1164
    %4401 = vmatpush1.bf16.msra.mxu0 %v1163
    %4402 = vmatprep.subr.bf16.mxu0 %v1176
    %4403 = vmatpush1.bf16.msra.mxu0 %v1175
    %4404 = vmatprep.subr.bf16.mxu0 %v1188
    %4405 = vmatpush1.bf16.msra.mxu0 %v1187
    %4406 = vmatprep.subr.bf16.mxu0 %v1200
    %4407 = vmatpush1.bf16.msra.mxu0 %v1199
    %4408 = vmatprep.subr.bf16.mxu0 %v1212
    %4409 = vmatpush1.bf16.msra.mxu0 %v1211
    %4410 = vmatprep.subr.bf16.mxu0 %v1224
    %4411 = vmatpush1.bf16.msra.mxu0 %v1223
    %4412 = vmatprep.mubr.bf16.mxu0 %v2803
    %4413 = vmatmul.mubr.bf16.gmra.mrb[0].mxu0 %v2789
    %v4414 = vpop.f32.mrb[0].mxu0
    %v4415 = vadd.f32 0.0, %v4414
    %v4416 = vpop.f32.mrb[0].mxu0
    %v4417 = vadd.f32 0.0, %v4416
    %v4418 = vpop.f32.mrb[0].mxu0
    %v4419 = vpop.f32.mrb[0].mxu0
    %4420 = vdwg.mxu0
    %4421 = vmatprep.subr.bf16.mxu0 %v1236
    %4422 = vmatpush1.bf16.msra.mxu0 %v1235
    %4423 = vmatprep.subr.bf16.mxu0 %v1248
    %4424 = vmatpush1.bf16.msra.mxu0 %v1247
    %4425 = vmatprep.subr.bf16.mxu0 %v1260
    %4426 = vmatpush1.bf16.msra.mxu0 %v1259
    %4427 = vmatprep.subr.bf16.mxu0 %v1272
    %4428 = vmatpush1.bf16.msra.mxu0 %v1271
    %4429 = vmatprep.subr.bf16.mxu0 %v1284
    %4430 = vmatpush1.bf16.msra.mxu0 %v1283
    %4431 = vmatprep.subr.bf16.mxu0 %v1296
    %4432 = vmatpush1.bf16.msra.mxu0 %v1295
    %4433 = vmatprep.subr.bf16.mxu0 %v1308
    %4434 = vmatpush1.bf16.msra.mxu0 %v1307
    %4435 = vmatprep.subr.bf16.mxu0 %v1320
    %4436 = vmatpush1.bf16.msra.mxu0 %v1319
    %4437 = vmatprep.subr.bf16.mxu0 %v1332
    %4438 = vmatpush1.bf16.msra.mxu0 %v1331
    %4439 = vmatprep.subr.bf16.mxu0 %v1344
    %4440 = vmatpush1.bf16.msra.mxu0 %v1343
    %4441 = vmatprep.subr.bf16.mxu0 %v1356
    %4442 = vmatpush1.bf16.msra.mxu0 %v1355
    %4443 = vmatprep.subr.bf16.mxu0 %v1368
    %4444 = vmatpush1.bf16.msra.mxu0 %v1367
    %4445 = vmatprep.subr.bf16.mxu0 %v1380
    %4446 = vmatpush1.bf16.msra.mxu0 %v1379
    %4447 = vmatprep.subr.bf16.mxu0 %v1392
    %4448 = vmatpush1.bf16.msra.mxu0 %v1391
    %4449 = vmatprep.subr.bf16.mxu0 %v1404
    %4450 = vmatpush1.bf16.msra.mxu0 %v1403
    %4451 = vmatprep.subr.bf16.mxu0 %v1416
    %4452 = vmatpush1.bf16.msra.mxu0 %v1415
    %4453 = vmatprep.mubr.bf16.mxu0 %v2813
    %4454 = vmatmul.mubr.bf16.gmra.mrb[0].mxu0 %v2811
    %v4455 = vpop.f32.mrb[0].mxu0
    %v4456 = vadd.f32 %v4415, %v4455
    %v4457 = vpop.f32.mrb[0].mxu0
    %v4458 = vadd.f32 %v4417, %v4457
    %v4459 = vpop.f32.mrb[0].mxu0
    %v4460 = vpop.f32.mrb[0].mxu0
    %4461 = vdwg.mxu0
    %4462 = vmatprep.subr.bf16.mxu0 %v1428
    %4463 = vmatpush1.bf16.msra.mxu0 %v1427
    %4464 = vmatprep.subr.bf16.mxu0 %v1440
    %4465 = vmatpush1.bf16.msra.mxu0 %v1439
    %4466 = vmatprep.subr.bf16.mxu0 %v1452
    %4467 = vmatpush1.bf16.msra.mxu0 %v1451
    %4468 = vmatprep.subr.bf16.mxu0 %v1464
    %4469 = vmatpush1.bf16.msra.mxu0 %v1463
    %4470 = vmatprep.subr.bf16.mxu0 %v1476
    %4471 = vmatpush1.bf16.msra.mxu0 %v1475
    %4472 = vmatprep.subr.bf16.mxu0 %v1488
    %4473 = vmatpush1.bf16.msra.mxu0 %v1487
    %4474 = vmatprep.subr.bf16.mxu0 %v1500
    %4475 = vmatpush1.bf16.msra.mxu0 %v1499
    %4476 = vmatprep.subr.bf16.mxu0 %v1512
    %4477 = vmatpush1.bf16.msra.mxu0 %v1511
    %4478 = vmatprep.subr.bf16.mxu0 %v1524
    %4479 = vmatpush1.bf16.msra.mxu0 %v1523
    %4480 = vmatprep.subr.bf16.mxu0 %v1536
    %4481 = vmatpush1.bf16.msra.mxu0 %v1535
    %4482 = vmatprep.subr.bf16.mxu0 %v1548
    %4483 = vmatpush1.bf16.msra.mxu0 %v1547
    %4484 = vmatprep.subr.bf16.mxu0 %v1560
    %4485 = vmatpush1.bf16.msra.mxu0 %v1559
    %4486 = vmatprep.subr.bf16.mxu0 %v1572
    %4487 = vmatpush1.bf16.msra.mxu0 %v1571
    %4488 = vmatprep.subr.bf16.mxu0 %v1584
    %4489 = vmatpush1.bf16.msra.mxu0 %v1583
    %4490 = vmatprep.subr.bf16.mxu0 %v1596
    %4491 = vmatpush1.bf16.msra.mxu0 %v1595
    %4492 = vmatprep.subr.bf16.mxu0 %v1608
    %4493 = vmatpush1.bf16.msra.mxu0 %v1607
    %4494 = vmatprep.mubr.bf16.mxu0 %v2810
    %4495 = vmatmul.mubr.bf16.gmra.mrb[0].mxu0 %v2796
    %v4496 = vpop.f32.mrb[0].mxu0
    %v4497 = vadd.f32 %v4456, %v4496
    %v4498 = vpop.f32.mrb[0].mxu0
    %v4499 = vadd.f32 %v4458, %v4498
    %v4500 = vpop.f32.mrb[0].mxu0
    %v4501 = vpop.f32.mrb[0].mxu0
    %4502 = vdwg.mxu0
    %4503 = vmatprep.subr.bf16.mxu0 %v1620
    %4504 = vmatpush1.bf16.msra.mxu0 %v1619
    %4505 = vmatprep.subr.bf16.mxu0 %v1632
    %4506 = vmatpush1.bf16.msra.mxu0 %v1631
    %4507 = vmatprep.subr.bf16.mxu0 %v1644
    %4508 = vmatpush1.bf16.msra.mxu0 %v1643
    %4509 = vmatprep.subr.bf16.mxu0 %v1656
    %4510 = vmatpush1.bf16.msra.mxu0 %v1655
    %4511 = vmatprep.subr.bf16.mxu0 %v1668
    %4512 = vmatpush1.bf16.msra.mxu0 %v1667
    %4513 = vmatprep.subr.bf16.mxu0 %v1680
    %4514 = vmatpush1.bf16.msra.mxu0 %v1679
    %4515 = vmatprep.subr.bf16.mxu0 %v1692
    %4516 = vmatpush1.bf16.msra.mxu0 %v1691
    %4517 = vmatprep.subr.bf16.mxu0 %v1704
    %4518 = vmatpush1.bf16.msra.mxu0 %v1703
    %4519 = vmatprep.subr.bf16.mxu0 %v1716
    %4520 = vmatpush1.bf16.msra.mxu0 %v1715
    %4521 = vmatprep.subr.bf16.mxu0 %v1728
    %4522 = vmatpush1.bf16.msra.mxu0 %v1727
    %4523 = vmatprep.subr.bf16.mxu0 %v1740
    %4524 = vmatpush1.bf16.msra.mxu0 %v1739
    %4525 = vmatprep.subr.bf16.mxu0 %v1752
    %4526 = vmatpush1.bf16.msra.mxu0 %v1751
    %4527 = vmatprep.subr.bf16.mxu0 %v1764
    %4528 = vmatpush1.bf16.msra.mxu0 %v1763
    %4529 = vmatprep.subr.bf16.mxu0 %v1776
    %4530 = vmatpush1.bf16.msra.mxu0 %v1775
    %4531 = vmatprep.subr.bf16.mxu0 %v1788
    %4532 = vmatpush1.bf16.msra.mxu0 %v1787
    %4533 = vmatprep.subr.bf16.mxu0 %v1800
    %4534 = vmatpush1.bf16.msra.mxu0 %v1799
    %4535 = vmatprep.mubr.bf16.mxu0 %v2814
    %4536 = vmatmul.mubr.bf16.gmra.mrb[0].mxu0 %v2812
    %v4537 = vpop.f32.mrb[0].mxu0
    %v4538 = vadd.f32 %v4497, %v4537
    %v4539 = vpop.f32.mrb[0].mxu0
    %v4540 = vadd.f32 %v4499, %v4539
    %v4541 = vpop.f32.mrb[0].mxu0
    %v4542 = vpop.f32.mrb[0].mxu0
    %4543 = vdwg.mxu0
    %4544 = vmatprep.subr.bf16.mxu0 %v1812
    %4545 = vmatpush1.bf16.msra.mxu0 %v1811
    %4546 = vmatprep.subr.bf16.mxu0 %v1824
    %4547 = vmatpush1.bf16.msra.mxu0 %v1823
    %4548 = vmatprep.subr.bf16.mxu0 %v1836
    %4549 = vmatpush1.bf16.msra.mxu0 %v1835
    %4550 = vmatprep.subr.bf16.mxu0 %v1848
    %4551 = vmatpush1.bf16.msra.mxu0 %v1847
    %4552 = vmatprep.subr.bf16.mxu0 %v1860
    %4553 = vmatpush1.bf16.msra.mxu0 %v1859
    %4554 = vmatprep.subr.bf16.mxu0 %v1872
    %4555 = vmatpush1.bf16.msra.mxu0 %v1871
    %4556 = vmatprep.subr.bf16.mxu0 %v1884
    %4557 = vmatpush1.bf16.msra.mxu0 %v1883
    %4558 = vmatprep.subr.bf16.mxu0 %v1896
    %4559 = vmatpush1.bf16.msra.mxu0 %v1895
    %4560 = vmatprep.subr.bf16.mxu0 %v1908
    %4561 = vmatpush1.bf16.msra.mxu0 %v1907
    %4562 = vmatprep.subr.bf16.mxu0 %v1920
    %4563 = vmatpush1.bf16.msra.mxu0 %v1919
    %4564 = vmatprep.subr.bf16.mxu0 %v1932
    %4565 = vmatpush1.bf16.msra.mxu0 %v1931
    %4566 = vmatprep.subr.bf16.mxu0 %v1944
    %4567 = vmatpush1.bf16.msra.mxu0 %v1943
    %4568 = vmatprep.subr.bf16.mxu0 %v1956
    %4569 = vmatpush1.bf16.msra.mxu0 %v1955
    %4570 = vmatprep.subr.bf16.mxu0 %v1968
    %4571 = vmatpush1.bf16.msra.mxu0 %v1967
    %4572 = vmatprep.subr.bf16.mxu0 %v1980
    %4573 = vmatpush1.bf16.msra.mxu0 %v1979
    %4574 = vmatprep.subr.bf16.mxu0 %v1992
    %4575 = vmatpush1.bf16.msra.mxu0 %v1991
    %4576 = vmatprep.mubr.bf16.mxu0 %v2852
    %4577 = vmatmul.mubr.bf16.gmra.mrb[0].mxu0 %v2838
    %v4578 = vpop.f32.mrb[0].mxu0
    %v4579 = vadd.f32 %v4538, %v4578
    %v4580 = vpop.f32.mrb[0].mxu0
    %v4581 = vadd.f32 %v4540, %v4580
    %v4582 = vpop.f32.mrb[0].mxu0
    %v4583 = vpop.f32.mrb[0].mxu0
    %4584 = vdwg.mxu0
    %4585 = vmatprep.subr.bf16.mxu0 %v2004
    %4586 = vmatpush1.bf16.msra.mxu0 %v2003
    %4587 = vmatprep.subr.bf16.mxu0 %v2016
    %4588 = vmatpush1.bf16.msra.mxu0 %v2015
    %4589 = vmatprep.subr.bf16.mxu0 %v2028
    %4590 = vmatpush1.bf16.msra.mxu0 %v2027
    %4591 = vmatprep.subr.bf16.mxu0 %v2040
    %4592 = vmatpush1.bf16.msra.mxu0 %v2039
    %4593 = vmatprep.subr.bf16.mxu0 %v2052
    %4594 = vmatpush1.bf16.msra.mxu0 %v2051
    %4595 = vmatprep.subr.bf16.mxu0 %v2064
    %4596 = vmatpush1.bf16.msra.mxu0 %v2063
    %4597 = vmatprep.subr.bf16.mxu0 %v2076
    %4598 = vmatpush1.bf16.msra.mxu0 %v2075
    %4599 = vmatprep.subr.bf16.mxu0 %v2088
    %4600 = vmatpush1.bf16.msra.mxu0 %v2087
    %4601 = vmatprep.subr.bf16.mxu0 %v2100
    %4602 = vmatpush1.bf16.msra.mxu0 %v2099
    %4603 = vmatprep.subr.bf16.mxu0 %v2112
    %4604 = vmatpush1.bf16.msra.mxu0 %v2111
    %4605 = vmatprep.subr.bf16.mxu0 %v2124
    %4606 = vmatpush1.bf16.msra.mxu0 %v2123
    %4607 = vmatprep.subr.bf16.mxu0 %v2136
    %4608 = vmatpush1.bf16.msra.mxu0 %v2135
    %4609 = vmatprep.subr.bf16.mxu0 %v2148
    %4610 = vmatpush1.bf16.msra.mxu0 %v2147
    %4611 = vmatprep.subr.bf16.mxu0 %v2160
    %4612 = vmatpush1.bf16.msra.mxu0 %v2159
    %4613 = vmatprep.subr.bf16.mxu0 %v2172
    %4614 = vmatpush1.bf16.msra.mxu0 %v2171
    %4615 = vmatprep.subr.bf16.mxu0 %v2184
    %4616 = vmatpush1.bf16.msra.mxu0 %v2183
    %4617 = vmatprep.mubr.bf16.mxu0 %v2862
    %4618 = vmatmul.mubr.bf16.gmra.mrb[0].mxu0 %v2860
    %v4619 = vpop.f32.mrb[0].mxu0
    %v4620 = vadd.f32 %v4579, %v4619
    %v4621 = vpop.f32.mrb[0].mxu0
    %v4622 = vadd.f32 %v4581, %v4621
    %v4623 = vpop.f32.mrb[0].mxu0
    %v4624 = vpop.f32.mrb[0].mxu0
    %4625 = vdwg.mxu0
    %4626 = vmatprep.subr.bf16.mxu0 %v2196
    %4627 = vmatpush1.bf16.msra.mxu0 %v2195
    %4628 = vmatprep.subr.bf16.mxu0 %v2208
    %4629 = vmatpush1.bf16.msra.mxu0 %v2207
    %4630 = vmatprep.subr.bf16.mxu0 %v2220
    %4631 = vmatpush1.bf16.msra.mxu0 %v2219
    %4632 = vmatprep.subr.bf16.mxu0 %v2232
    %4633 = vmatpush1.bf16.msra.mxu0 %v2231
    %4634 = vmatprep.subr.bf16.mxu0 %v2244
    %4635 = vmatpush1.bf16.msra.mxu0 %v2243
    %4636 = vmatprep.subr.bf16.mxu0 %v2256
    %4637 = vmatpush1.bf16.msra.mxu0 %v2255
    %4638 = vmatprep.subr.bf16.mxu0 %v2268
    %4639 = vmatpush1.bf16.msra.mxu0 %v2267
    %4640 = vmatprep.subr.bf16.mxu0 %v2280
    %4641 = vmatpush1.bf16.msra.mxu0 %v2279
    %4642 = vmatprep.subr.bf16.mxu0 %v2292
    %4643 = vmatpush1.bf16.msra.mxu0 %v2291
    %4644 = vmatprep.subr.bf16.mxu0 %v2304
    %4645 = vmatpush1.bf16.msra.mxu0 %v2303
    %4646 = vmatprep.subr.bf16.mxu0 %v2316
    %4647 = vmatpush1.bf16.msra.mxu0 %v2315
    %4648 = vmatprep.subr.bf16.mxu0 %v2328
    %4649 = vmatpush1.bf16.msra.mxu0 %v2327
    %4650 = vmatprep.subr.bf16.mxu0 %v2340
    %4651 = vmatpush1.bf16.msra.mxu0 %v2339
    %4652 = vmatprep.subr.bf16.mxu0 %v2352
    %4653 = vmatpush1.bf16.msra.mxu0 %v2351
    %4654 = vmatprep.subr.bf16.mxu0 %v2364
    %4655 = vmatpush1.bf16.msra.mxu0 %v2363
    %4656 = vmatprep.subr.bf16.mxu0 %v2376
    %4657 = vmatpush1.bf16.msra.mxu0 %v2375
    %4658 = vmatprep.mubr.bf16.mxu0 %v2859
    %4659 = vmatmul.mubr.bf16.gmra.mrb[0].mxu0 %v2845
    %v4660 = vpop.f32.mrb[0].mxu0
    %v4661 = vadd.f32 %v4620, %v4660
    %v4662 = vpop.f32.mrb[0].mxu0
    %v4663 = vadd.f32 %v4622, %v4662
    %v4664 = vpop.f32.mrb[0].mxu0
    %v4665 = vpop.f32.mrb[0].mxu0
    %4666 = vdwg.mxu0
    %4667 = vmatprep.subr.bf16.mxu0 %v2388
    %4668 = vmatpush1.bf16.msra.mxu0 %v2387
    %4669 = vmatprep.subr.bf16.mxu0 %v2400
    %4670 = vmatpush1.bf16.msra.mxu0 %v2399
    %4671 = vmatprep.subr.bf16.mxu0 %v2412
    %4672 = vmatpush1.bf16.msra.mxu0 %v2411
    %4673 = vmatprep.subr.bf16.mxu0 %v2424
    %4674 = vmatpush1.bf16.msra.mxu0 %v2423
    %4675 = vmatprep.subr.bf16.mxu0 %v2436
    %4676 = vmatpush1.bf16.msra.mxu0 %v2435
    %4677 = vmatprep.subr.bf16.mxu0 %v2448
    %4678 = vmatpush1.bf16.msra.mxu0 %v2447
    %4679 = vmatprep.subr.bf16.mxu0 %v2460
    %4680 = vmatpush1.bf16.msra.mxu0 %v2459
    %4681 = vmatprep.subr.bf16.mxu0 %v2472
    %4682 = vmatpush1.bf16.msra.mxu0 %v2471
    %4683 = vmatprep.subr.bf16.mxu0 %v2484
    %4684 = vmatpush1.bf16.msra.mxu0 %v2483
    %4685 = vmatprep.subr.bf16.mxu0 %v2496
    %4686 = vmatpush1.bf16.msra.mxu0 %v2495
    %4687 = vmatprep.subr.bf16.mxu0 %v2508
    %4688 = vmatpush1.bf16.msra.mxu0 %v2507
    %4689 = vmatprep.subr.bf16.mxu0 %v2520
    %4690 = vmatpush1.bf16.msra.mxu0 %v2519
    %4691 = vmatprep.subr.bf16.mxu0 %v2532
    %4692 = vmatpush1.bf16.msra.mxu0 %v2531
    %4693 = vmatprep.subr.bf16.mxu0 %v2544
    %4694 = vmatpush1.bf16.msra.mxu0 %v2543
    %4695 = vmatprep.subr.bf16.mxu0 %v2556
    %4696 = vmatpush1.bf16.msra.mxu0 %v2555
    %4697 = vmatprep.subr.bf16.mxu0 %v2568
    %4698 = vmatpush1.bf16.msra.mxu0 %v2567
    %4699 = vmatprep.mubr.bf16.mxu0 %v2863
    %4700 = vmatmul.mubr.bf16.gmra.mrb[0].mxu0 %v2861
    %v4701 = vpop.f32.mrb[0].mxu0
    %v4702 = vadd.f32 %v4661, %v4701
    %v4703 = vpop.f32.mrb[0].mxu0
    %v4704 = vadd.f32 %v4663, %v4703
    %v4705 = vpop.f32.mrb[0].mxu0
    %v4706 = vpop.f32.mrb[0].mxu0
    %4707 = vdwg.mxu0
    %4708 = vmatprep.subr.bf16.mxu0 %v2580
    %4709 = vmatpush1.bf16.msra.mxu0 %v2579
    %4710 = vmatprep.subr.bf16.mxu0 %v2592
    %4711 = vmatpush1.bf16.msra.mxu0 %v2591
    %4712 = vmatprep.subr.bf16.mxu0 %v2604
    %4713 = vmatpush1.bf16.msra.mxu0 %v2603
    %4714 = vmatprep.subr.bf16.mxu0 %v2616
    %4715 = vmatpush1.bf16.msra.mxu0 %v2615
    %4716 = vmatprep.subr.bf16.mxu0 %v2628
    %4717 = vmatpush1.bf16.msra.mxu0 %v2627
    %4718 = vmatprep.subr.bf16.mxu0 %v2640
    %4719 = vmatpush1.bf16.msra.mxu0 %v2639
    %4720 = vmatprep.subr.bf16.mxu0 %v2652
    %4721 = vmatpush1.bf16.msra.mxu0 %v2651
    %4722 = vmatprep.subr.bf16.mxu0 %v2664
    %4723 = vmatpush1.bf16.msra.mxu0 %v2663
    %4724 = vmatprep.subr.bf16.mxu0 %v2676
    %4725 = vmatpush1.bf16.msra.mxu0 %v2675
    %4726 = vmatprep.subr.bf16.mxu0 %v2688
    %4727 = vmatpush1.bf16.msra.mxu0 %v2687
    %4728 = vmatprep.subr.bf16.mxu0 %v2700
    %4729 = vmatpush1.bf16.msra.mxu0 %v2699
    %4730 = vmatprep.subr.bf16.mxu0 %v2712
    %4731 = vmatpush1.bf16.msra.mxu0 %v2711
    %4732 = vmatprep.subr.bf16.mxu0 %v2724
    %4733 = vmatpush1.bf16.msra.mxu0 %v2723
    %4734 = vmatprep.subr.bf16.mxu0 %v2736
    %4735 = vmatpush1.bf16.msra.mxu0 %v2735
    %4736 = vmatprep.subr.bf16.mxu0 %v2748
    %4737 = vmatpush1.bf16.msra.mxu0 %v2747
    %4738 = vmatprep.subr.bf16.mxu0 %v2760
    %4739 = vmatpush1.bf16.msra.mxu0 %v2759
    %4740 = vmatprep.mubr.bf16.mxu0 %v2885
    %4741 = vmatmul.mubr.bf16.gmra.mrb[0].mxu0 %v2878
    %v4742 = vpop.f32.mrb[0].mxu0
    %v4743 = vadd.f32 %v4702, %v4742
    %v4744 = vpop.f32.mrb[0].mxu0
    %v4745 = vadd.f32 %v4704, %v4744
    %v4746 = vpop.f32.mrb[0].mxu0
    %v4747 = vpop.f32.mrb[0].mxu0
    %4748 = vdwg.mxu0
    %4749 = vmatprep.subr.bf16.mxu0 %v1046
    %4750 = vmatpush1.bf16.msra.mxu0 %v1045
    %4751 = vmatprep.subr.bf16.mxu0 %v1058
    %4752 = vmatpush1.bf16.msra.mxu0 %v1057
    %4753 = vmatprep.subr.bf16.mxu0 %v1070
    %4754 = vmatpush1.bf16.msra.mxu0 %v1069
    %4755 = vmatprep.subr.bf16.mxu0 %v1082
    %4756 = vmatpush1.bf16.msra.mxu0 %v1081
    %4757 = vmatprep.subr.bf16.mxu0 %v1094
    %4758 = vmatpush1.bf16.msra.mxu0 %v1093
    %4759 = vmatprep.subr.bf16.mxu0 %v1106
    %4760 = vmatpush1.bf16.msra.mxu0 %v1105
    %4761 = vmatprep.subr.bf16.mxu0 %v1118
    %4762 = vmatpush1.bf16.msra.mxu0 %v1117
    %4763 = vmatprep.subr.bf16.mxu0 %v1130
    %4764 = vmatpush1.bf16.msra.mxu0 %v1129
    %4765 = vmatprep.subr.bf16.mxu0 %v1142
    %4766 = vmatpush1.bf16.msra.mxu0 %v1141
    %4767 = vmatprep.subr.bf16.mxu0 %v1154
    %4768 = vmatpush1.bf16.msra.mxu0 %v1153
    %4769 = vmatprep.subr.bf16.mxu0 %v1166
    %4770 = vmatpush1.bf16.msra.mxu0 %v1165
    %4771 = vmatprep.subr.bf16.mxu0 %v1178
    %4772 = vmatpush1.bf16.msra.mxu0 %v1177
    %4773 = vmatprep.subr.bf16.mxu0 %v1190
    %4774 = vmatpush1.bf16.msra.mxu0 %v1189
    %4775 = vmatprep.subr.bf16.mxu0 %v1202
    %4776 = vmatpush1.bf16.msra.mxu0 %v1201
    %4777 = vmatprep.subr.bf16.mxu0 %v1214
    %4778 = vmatpush1.bf16.msra.mxu0 %v1213
    %4779 = vmatprep.subr.bf16.mxu0 %v1226
    %4780 = vmatpush1.bf16.msra.mxu0 %v1225
    %4781 = vmatprep.mubr.bf16.mxu0 %v2803
    %4782 = vmatmul.mubr.bf16.gmra.mrb[0].mxu0 %v2789
    %v4783 = vpop.f32.mrb[0].mxu0
    %v4784 = vadd.f32 0.0, %v4783
    %v4785 = vpop.f32.mrb[0].mxu0
    %v4786 = vadd.f32 0.0, %v4785
    %v4787 = vpop.f32.mrb[0].mxu0
    %v4788 = vpop.f32.mrb[0].mxu0
    %4789 = vdwg.mxu0
    %4790 = vmatprep.subr.bf16.mxu0 %v1238
    %4791 = vmatpush1.bf16.msra.mxu0 %v1237
    %4792 = vmatprep.subr.bf16.mxu0 %v1250
    %4793 = vmatpush1.bf16.msra.mxu0 %v1249
    %4794 = vmatprep.subr.bf16.mxu0 %v1262
    %4795 = vmatpush1.bf16.msra.mxu0 %v1261
    %4796 = vmatprep.subr.bf16.mxu0 %v1274
    %4797 = vmatpush1.bf16.msra.mxu0 %v1273
    %4798 = vmatprep.subr.bf16.mxu0 %v1286
    %4799 = vmatpush1.bf16.msra.mxu0 %v1285
    %4800 = vmatprep.subr.bf16.mxu0 %v1298
    %4801 = vmatpush1.bf16.msra.mxu0 %v1297
    %4802 = vmatprep.subr.bf16.mxu0 %v1310
    %4803 = vmatpush1.bf16.msra.mxu0 %v1309
    %4804 = vmatprep.subr.bf16.mxu0 %v1322
    %4805 = vmatpush1.bf16.msra.mxu0 %v1321
    %4806 = vmatprep.subr.bf16.mxu0 %v1334
    %4807 = vmatpush1.bf16.msra.mxu0 %v1333
    %4808 = vmatprep.subr.bf16.mxu0 %v1346
    %4809 = vmatpush1.bf16.msra.mxu0 %v1345
    %4810 = vmatprep.subr.bf16.mxu0 %v1358
    %4811 = vmatpush1.bf16.msra.mxu0 %v1357
    %4812 = vmatprep.subr.bf16.mxu0 %v1370
    %4813 = vmatpush1.bf16.msra.mxu0 %v1369
    %4814 = vmatprep.subr.bf16.mxu0 %v1382
    %4815 = vmatpush1.bf16.msra.mxu0 %v1381
    %4816 = vmatprep.subr.bf16.mxu0 %v1394
    %4817 = vmatpush1.bf16.msra.mxu0 %v1393
    %4818 = vmatprep.subr.bf16.mxu0 %v1406
    %4819 = vmatpush1.bf16.msra.mxu0 %v1405
    %4820 = vmatprep.subr.bf16.mxu0 %v1418
    %4821 = vmatpush1.bf16.msra.mxu0 %v1417
    %4822 = vmatprep.mubr.bf16.mxu0 %v2813
    %4823 = vmatmul.mubr.bf16.gmra.mrb[0].mxu0 %v2811
    %v4824 = vpop.f32.mrb[0].mxu0
    %v4825 = vadd.f32 %v4784, %v4824
    %v4826 = vpop.f32.mrb[0].mxu0
    %v4827 = vadd.f32 %v4786, %v4826
    %v4828 = vpop.f32.mrb[0].mxu0
    %v4829 = vpop.f32.mrb[0].mxu0
    %4830 = vdwg.mxu0
    %4831 = vmatprep.subr.bf16.mxu0 %v1430
    %4832 = vmatpush1.bf16.msra.mxu0 %v1429
    %4833 = vmatprep.subr.bf16.mxu0 %v1442
    %4834 = vmatpush1.bf16.msra.mxu0 %v1441
    %4835 = vmatprep.subr.bf16.mxu0 %v1454
    %4836 = vmatpush1.bf16.msra.mxu0 %v1453
    %4837 = vmatprep.subr.bf16.mxu0 %v1466
    %4838 = vmatpush1.bf16.msra.mxu0 %v1465
    %4839 = vmatprep.subr.bf16.mxu0 %v1478
    %4840 = vmatpush1.bf16.msra.mxu0 %v1477
    %4841 = vmatprep.subr.bf16.mxu0 %v1490
    %4842 = vmatpush1.bf16.msra.mxu0 %v1489
    %4843 = vmatprep.subr.bf16.mxu0 %v1502
    %4844 = vmatpush1.bf16.msra.mxu0 %v1501
    %4845 = vmatprep.subr.bf16.mxu0 %v1514
    %4846 = vmatpush1.bf16.msra.mxu0 %v1513
    %4847 = vmatprep.subr.bf16.mxu0 %v1526
    %4848 = vmatpush1.bf16.msra.mxu0 %v1525
    %4849 = vmatprep.subr.bf16.mxu0 %v1538
    %4850 = vmatpush1.bf16.msra.mxu0 %v1537
    %4851 = vmatprep.subr.bf16.mxu0 %v1550
    %4852 = vmatpush1.bf16.msra.mxu0 %v1549
    %4853 = vmatprep.subr.bf16.mxu0 %v1562
    %4854 = vmatpush1.bf16.msra.mxu0 %v1561
    %4855 = vmatprep.subr.bf16.mxu0 %v1574
    %4856 = vmatpush1.bf16.msra.mxu0 %v1573
    %4857 = vmatprep.subr.bf16.mxu0 %v1586
    %4858 = vmatpush1.bf16.msra.mxu0 %v1585
    %4859 = vmatprep.subr.bf16.mxu0 %v1598
    %4860 = vmatpush1.bf16.msra.mxu0 %v1597
    %4861 = vmatprep.subr.bf16.mxu0 %v1610
    %4862 = vmatpush1.bf16.msra.mxu0 %v1609
    %4863 = vmatprep.mubr.bf16.mxu0 %v2810
    %4864 = vmatmul.mubr.bf16.gmra.mrb[0].mxu0 %v2796
    %v4865 = vpop.f32.mrb[0].mxu0
    %v4866 = vadd.f32 %v4825, %v4865
    %v4867 = vpop.f32.mrb[0].mxu0
    %v4868 = vadd.f32 %v4827, %v4867
    %v4869 = vpop.f32.mrb[0].mxu0
    %v4870 = vpop.f32.mrb[0].mxu0
    %4871 = vdwg.mxu0
    %4872 = vmatprep.subr.bf16.mxu0 %v1622
    %4873 = vmatpush1.bf16.msra.mxu0 %v1621
    %4874 = vmatprep.subr.bf16.mxu0 %v1634
    %4875 = vmatpush1.bf16.msra.mxu0 %v1633
    %4876 = vmatprep.subr.bf16.mxu0 %v1646
    %4877 = vmatpush1.bf16.msra.mxu0 %v1645
    %4878 = vmatprep.subr.bf16.mxu0 %v1658
    %4879 = vmatpush1.bf16.msra.mxu0 %v1657
    %4880 = vmatprep.subr.bf16.mxu0 %v1670
    %4881 = vmatpush1.bf16.msra.mxu0 %v1669
    %4882 = vmatprep.subr.bf16.mxu0 %v1682
    %4883 = vmatpush1.bf16.msra.mxu0 %v1681
    %4884 = vmatprep.subr.bf16.mxu0 %v1694
    %4885 = vmatpush1.bf16.msra.mxu0 %v1693
    %4886 = vmatprep.subr.bf16.mxu0 %v1706
    %4887 = vmatpush1.bf16.msra.mxu0 %v1705
    %4888 = vmatprep.subr.bf16.mxu0 %v1718
    %4889 = vmatpush1.bf16.msra.mxu0 %v1717
    %4890 = vmatprep.subr.bf16.mxu0 %v1730
    %4891 = vmatpush1.bf16.msra.mxu0 %v1729
    %4892 = vmatprep.subr.bf16.mxu0 %v1742
    %4893 = vmatpush1.bf16.msra.mxu0 %v1741
    %4894 = vmatprep.subr.bf16.mxu0 %v1754
    %4895 = vmatpush1.bf16.msra.mxu0 %v1753
    %4896 = vmatprep.subr.bf16.mxu0 %v1766
    %4897 = vmatpush1.bf16.msra.mxu0 %v1765
    %4898 = vmatprep.subr.bf16.mxu0 %v1778
    %4899 = vmatpush1.bf16.msra.mxu0 %v1777
    %4900 = vmatprep.subr.bf16.mxu0 %v1790
    %4901 = vmatpush1.bf16.msra.mxu0 %v1789
    %4902 = vmatprep.subr.bf16.mxu0 %v1802
    %4903 = vmatpush1.bf16.msra.mxu0 %v1801
    %4904 = vmatprep.mubr.bf16.mxu0 %v2814
    %4905 = vmatmul.mubr.bf16.gmra.mrb[0].mxu0 %v2812
    %v4906 = vpop.f32.mrb[0].mxu0
    %v4907 = vadd.f32 %v4866, %v4906
    %v4908 = vpop.f32.mrb[0].mxu0
    %v4909 = vadd.f32 %v4868, %v4908
    %v4910 = vpop.f32.mrb[0].mxu0
    %v4911 = vpop.f32.mrb[0].mxu0
    %4912 = vdwg.mxu0
    %4913 = vmatprep.subr.bf16.mxu0 %v1814
    %4914 = vmatpush1.bf16.msra.mxu0 %v1813
    %4915 = vmatprep.subr.bf16.mxu0 %v1826
    %4916 = vmatpush1.bf16.msra.mxu0 %v1825
    %4917 = vmatprep.subr.bf16.mxu0 %v1838
    %4918 = vmatpush1.bf16.msra.mxu0 %v1837
    %4919 = vmatprep.subr.bf16.mxu0 %v1850
    %4920 = vmatpush1.bf16.msra.mxu0 %v1849
    %4921 = vmatprep.subr.bf16.mxu0 %v1862
    %4922 = vmatpush1.bf16.msra.mxu0 %v1861
    %4923 = vmatprep.subr.bf16.mxu0 %v1874
    %4924 = vmatpush1.bf16.msra.mxu0 %v1873
    %4925 = vmatprep.subr.bf16.mxu0 %v1886
    %4926 = vmatpush1.bf16.msra.mxu0 %v1885
    %4927 = vmatprep.subr.bf16.mxu0 %v1898
    %4928 = vmatpush1.bf16.msra.mxu0 %v1897
    %4929 = vmatprep.subr.bf16.mxu0 %v1910
    %4930 = vmatpush1.bf16.msra.mxu0 %v1909
    %4931 = vmatprep.subr.bf16.mxu0 %v1922
    %4932 = vmatpush1.bf16.msra.mxu0 %v1921
    %4933 = vmatprep.subr.bf16.mxu0 %v1934
    %4934 = vmatpush1.bf16.msra.mxu0 %v1933
    %4935 = vmatprep.subr.bf16.mxu0 %v1946
    %4936 = vmatpush1.bf16.msra.mxu0 %v1945
    %4937 = vmatprep.subr.bf16.mxu0 %v1958
    %4938 = vmatpush1.bf16.msra.mxu0 %v1957
    %4939 = vmatprep.subr.bf16.mxu0 %v1970
    %4940 = vmatpush1.bf16.msra.mxu0 %v1969
    %4941 = vmatprep.subr.bf16.mxu0 %v1982
    %4942 = vmatpush1.bf16.msra.mxu0 %v1981
    %4943 = vmatprep.subr.bf16.mxu0 %v1994
    %4944 = vmatpush1.bf16.msra.mxu0 %v1993
    %4945 = vmatprep.mubr.bf16.mxu0 %v2852
    %4946 = vmatmul.mubr.bf16.gmra.mrb[0].mxu0 %v2838
    %v4947 = vpop.f32.mrb[0].mxu0
    %v4948 = vadd.f32 %v4907, %v4947
    %v4949 = vpop.f32.mrb[0].mxu0
    %v4950 = vadd.f32 %v4909, %v4949
    %v4951 = vpop.f32.mrb[0].mxu0
    %v4952 = vpop.f32.mrb[0].mxu0
    %4953 = vdwg.mxu0
    %4954 = vmatprep.subr.bf16.mxu0 %v2006
    %4955 = vmatpush1.bf16.msra.mxu0 %v2005
    %4956 = vmatprep.subr.bf16.mxu0 %v2018
    %4957 = vmatpush1.bf16.msra.mxu0 %v2017
    %4958 = vmatprep.subr.bf16.mxu0 %v2030
    %4959 = vmatpush1.bf16.msra.mxu0 %v2029
    %4960 = vmatprep.subr.bf16.mxu0 %v2042
    %4961 = vmatpush1.bf16.msra.mxu0 %v2041
    %4962 = vmatprep.subr.bf16.mxu0 %v2054
    %4963 = vmatpush1.bf16.msra.mxu0 %v2053
    %4964 = vmatprep.subr.bf16.mxu0 %v2066
    %4965 = vmatpush1.bf16.msra.mxu0 %v2065
    %4966 = vmatprep.subr.bf16.mxu0 %v2078
    %4967 = vmatpush1.bf16.msra.mxu0 %v2077
    %4968 = vmatprep.subr.bf16.mxu0 %v2090
    %4969 = vmatpush1.bf16.msra.mxu0 %v2089
    %4970 = vmatprep.subr.bf16.mxu0 %v2102
    %4971 = vmatpush1.bf16.msra.mxu0 %v2101
    %4972 = vmatprep.subr.bf16.mxu0 %v2114
    %4973 = vmatpush1.bf16.msra.mxu0 %v2113
    %4974 = vmatprep.subr.bf16.mxu0 %v2126
    %4975 = vmatpush1.bf16.msra.mxu0 %v2125
    %4976 = vmatprep.subr.bf16.mxu0 %v2138
    %4977 = vmatpush1.bf16.msra.mxu0 %v2137
    %4978 = vmatprep.subr.bf16.mxu0 %v2150
    %4979 = vmatpush1.bf16.msra.mxu0 %v2149
    %4980 = vmatprep.subr.bf16.mxu0 %v2162
    %4981 = vmatpush1.bf16.msra.mxu0 %v2161
    %4982 = vmatprep.subr.bf16.mxu0 %v2174
    %4983 = vmatpush1.bf16.msra.mxu0 %v2173
    %4984 = vmatprep.subr.bf16.mxu0 %v2186
    %4985 = vmatpush1.bf16.msra.mxu0 %v2185
    %4986 = vmatprep.mubr.bf16.mxu0 %v2862
    %4987 = vmatmul.mubr.bf16.gmra.mrb[0].mxu0 %v2860
    %v4988 = vpop.f32.mrb[0].mxu0
    %v4989 = vadd.f32 %v4948, %v4988
    %v4990 = vpop.f32.mrb[0].mxu0
    %v4991 = vadd.f32 %v4950, %v4990
    %v4992 = vpop.f32.mrb[0].mxu0
    %v4993 = vpop.f32.mrb[0].mxu0
    %4994 = vdwg.mxu0
    %4995 = vmatprep.subr.bf16.mxu0 %v2198
    %4996 = vmatpush1.bf16.msra.mxu0 %v2197
    %4997 = vmatprep.subr.bf16.mxu0 %v2210
    %4998 = vmatpush1.bf16.msra.mxu0 %v2209
    %4999 = vmatprep.subr.bf16.mxu0 %v2222
    %5000 = vmatpush1.bf16.msra.mxu0 %v2221
    %5001 = vmatprep.subr.bf16.mxu0 %v2234
    %5002 = vmatpush1.bf16.msra.mxu0 %v2233
    %5003 = vmatprep.subr.bf16.mxu0 %v2246
    %5004 = vmatpush1.bf16.msra.mxu0 %v2245
    %5005 = vmatprep.subr.bf16.mxu0 %v2258
    %5006 = vmatpush1.bf16.msra.mxu0 %v2257
    %5007 = vmatprep.subr.bf16.mxu0 %v2270
    %5008 = vmatpush1.bf16.msra.mxu0 %v2269
    %5009 = vmatprep.subr.bf16.mxu0 %v2282
    %5010 = vmatpush1.bf16.msra.mxu0 %v2281
    %5011 = vmatprep.subr.bf16.mxu0 %v2294
    %5012 = vmatpush1.bf16.msra.mxu0 %v2293
    %5013 = vmatprep.subr.bf16.mxu0 %v2306
    %5014 = vmatpush1.bf16.msra.mxu0 %v2305
    %5015 = vmatprep.subr.bf16.mxu0 %v2318
    %5016 = vmatpush1.bf16.msra.mxu0 %v2317
    %5017 = vmatprep.subr.bf16.mxu0 %v2330
    %5018 = vmatpush1.bf16.msra.mxu0 %v2329
    %5019 = vmatprep.subr.bf16.mxu0 %v2342
    %5020 = vmatpush1.bf16.msra.mxu0 %v2341
    %5021 = vmatprep.subr.bf16.mxu0 %v2354
    %5022 = vmatpush1.bf16.msra.mxu0 %v2353
    %5023 = vmatprep.subr.bf16.mxu0 %v2366
    %5024 = vmatpush1.bf16.msra.mxu0 %v2365
    %5025 = vmatprep.subr.bf16.mxu0 %v2378
    %5026 = vmatpush1.bf16.msra.mxu0 %v2377
    %5027 = vmatprep.mubr.bf16.mxu0 %v2859
    %5028 = vmatmul.mubr.bf16.gmra.mrb[0].mxu0 %v2845
    %v5029 = vpop.f32.mrb[0].mxu0
    %v5030 = vadd.f32 %v4989, %v5029
    %v5031 = vpop.f32.mrb[0].mxu0
    %v5032 = vadd.f32 %v4991, %v5031
    %v5033 = vpop.f32.mrb[0].mxu0
    %v5034 = vpop.f32.mrb[0].mxu0
    %5035 = vdwg.mxu0
    %5036 = vmatprep.subr.bf16.mxu0 %v2390
    %5037 = vmatpush1.bf16.msra.mxu0 %v2389
    %5038 = vmatprep.subr.bf16.mxu0 %v2402
    %5039 = vmatpush1.bf16.msra.mxu0 %v2401
    %5040 = vmatprep.subr.bf16.mxu0 %v2414
    %5041 = vmatpush1.bf16.msra.mxu0 %v2413
    %5042 = vmatprep.subr.bf16.mxu0 %v2426
    %5043 = vmatpush1.bf16.msra.mxu0 %v2425
    %5044 = vmatprep.subr.bf16.mxu0 %v2438
    %5045 = vmatpush1.bf16.msra.mxu0 %v2437
    %5046 = vmatprep.subr.bf16.mxu0 %v2450
    %5047 = vmatpush1.bf16.msra.mxu0 %v2449
    %5048 = vmatprep.subr.bf16.mxu0 %v2462
    %5049 = vmatpush1.bf16.msra.mxu0 %v2461
    %5050 = vmatprep.subr.bf16.mxu0 %v2474
    %5051 = vmatpush1.bf16.msra.mxu0 %v2473
    %5052 = vmatprep.subr.bf16.mxu0 %v2486
    %5053 = vmatpush1.bf16.msra.mxu0 %v2485
    %5054 = vmatprep.subr.bf16.mxu0 %v2498
    %5055 = vmatpush1.bf16.msra.mxu0 %v2497
    %5056 = vmatprep.subr.bf16.mxu0 %v2510
    %5057 = vmatpush1.bf16.msra.mxu0 %v2509
    %5058 = vmatprep.subr.bf16.mxu0 %v2522
    %5059 = vmatpush1.bf16.msra.mxu0 %v2521
    %5060 = vmatprep.subr.bf16.mxu0 %v2534
    %5061 = vmatpush1.bf16.msra.mxu0 %v2533
    %5062 = vmatprep.subr.bf16.mxu0 %v2546
    %5063 = vmatpush1.bf16.msra.mxu0 %v2545
    %5064 = vmatprep.subr.bf16.mxu0 %v2558
    %5065 = vmatpush1.bf16.msra.mxu0 %v2557
    %5066 = vmatprep.subr.bf16.mxu0 %v2570
    %5067 = vmatpush1.bf16.msra.mxu0 %v2569
    %5068 = vmatprep.mubr.bf16.mxu0 %v2863
    %5069 = vmatmul.mubr.bf16.gmra.mrb[0].mxu0 %v2861
    %v5070 = vpop.f32.mrb[0].mxu0
    %v5071 = vadd.f32 %v5030, %v5070
    %v5072 = vpop.f32.mrb[0].mxu0
    %v5073 = vadd.f32 %v5032, %v5072
    %v5074 = vpop.f32.mrb[0].mxu0
    %v5075 = vpop.f32.mrb[0].mxu0
    %5076 = vdwg.mxu0
    %5077 = vmatprep.subr.bf16.mxu0 %v2582
    %5078 = vmatpush1.bf16.msra.mxu0 %v2581
    %5079 = vmatprep.subr.bf16.mxu0 %v2594
    %5080 = vmatpush1.bf16.msra.mxu0 %v2593
    %5081 = vmatprep.subr.bf16.mxu0 %v2606
    %5082 = vmatpush1.bf16.msra.mxu0 %v2605
    %5083 = vmatprep.subr.bf16.mxu0 %v2618
    %5084 = vmatpush1.bf16.msra.mxu0 %v2617
    %5085 = vmatprep.subr.bf16.mxu0 %v2630
    %5086 = vmatpush1.bf16.msra.mxu0 %v2629
    %5087 = vmatprep.subr.bf16.mxu0 %v2642
    %5088 = vmatpush1.bf16.msra.mxu0 %v2641
    %5089 = vmatprep.subr.bf16.mxu0 %v2654
    %5090 = vmatpush1.bf16.msra.mxu0 %v2653
    %5091 = vmatprep.subr.bf16.mxu0 %v2666
    %5092 = vmatpush1.bf16.msra.mxu0 %v2665
    %5093 = vmatprep.subr.bf16.mxu0 %v2678
    %5094 = vmatpush1.bf16.msra.mxu0 %v2677
    %5095 = vmatprep.subr.bf16.mxu0 %v2690
    %5096 = vmatpush1.bf16.msra.mxu0 %v2689
    %5097 = vmatprep.subr.bf16.mxu0 %v2702
    %5098 = vmatpush1.bf16.msra.mxu0 %v2701
    %5099 = vmatprep.subr.bf16.mxu0 %v2714
    %5100 = vmatpush1.bf16.msra.mxu0 %v2713
    %5101 = vmatprep.subr.bf16.mxu0 %v2726
    %5102 = vmatpush1.bf16.msra.mxu0 %v2725
    %5103 = vmatprep.subr.bf16.mxu0 %v2738
    %5104 = vmatpush1.bf16.msra.mxu0 %v2737
    %5105 = vmatprep.subr.bf16.mxu0 %v2750
    %5106 = vmatpush1.bf16.msra.mxu0 %v2749
    %5107 = vmatprep.subr.bf16.mxu0 %v2762
    %5108 = vmatpush1.bf16.msra.mxu0 %v2761
    %5109 = vmatprep.mubr.bf16.mxu0 %v2885
    %5110 = vmatmul.mubr.bf16.gmra.mrb[0].mxu0 %v2878
    %v5111 = vpop.f32.mrb[0].mxu0
    %v5112 = vadd.f32 %v5071, %v5111
    %v5113 = vpop.f32.mrb[0].mxu0
    %v5114 = vadd.f32 %v5073, %v5113
    %v5115 = vpop.f32.mrb[0].mxu0
    %v5116 = vpop.f32.mrb[0].mxu0
    %5117 = vdwg.mxu0
    %v5118 = vld [vmem:[#allocation5] sm:$0xff]
    %v5119 = vld [vmem:[#allocation5 + $0x8] sm:$0xf]
    %v5122 = vlaneseq
    %v5123 = vshrl.u32 %v5122, 7
    %v5124 = vsub.s32 0, %v5123
    %v5125 = vrot.slane %v5118, %v5124
    %v5126 = vlaneseq
    %v5127 = vshrl.u32 %v5126, 7
    %v5128 = vsub.s32 1, %v5127
    %v5129 = vrot.slane %v5118, %v5128
    %v5130 = vlaneseq
    %v5131 = vshrl.u32 %v5130, 7
    %v5132 = vsub.s32 2, %v5131
    %v5133 = vrot.slane %v5118, %v5132
    %v5134 = vlaneseq
    %v5135 = vshrl.u32 %v5134, 7
    %v5136 = vsub.s32 3, %v5135
    %v5137 = vrot.slane %v5118, %v5136
    %v5138 = vlaneseq
    %v5139 = vshrl.u32 %v5138, 7
    %v5140 = vsub.s32 4, %v5139
    %v5141 = vrot.slane %v5118, %v5140
    %v5142 = vlaneseq
    %v5143 = vshrl.u32 %v5142, 7
    %v5144 = vsub.s32 5, %v5143
    %v5145 = vrot.slane %v5118, %v5144
    %v5146 = vlaneseq
    %v5147 = vshrl.u32 %v5146, 7
    %v5148 = vsub.s32 6, %v5147
    %v5149 = vrot.slane %v5118, %v5148
    %v5150 = vlaneseq
    %v5151 = vshrl.u32 %v5150, 7
    %v5152 = vsub.s32 7, %v5151
    %v5153 = vrot.slane %v5118, %v5152
    %v5154 = vlaneseq
    %v5155 = vshrl.u32 %v5154, 7
    %v5156 = vsub.s32 0, %v5155
    %v5157 = vrot.slane %v5119, %v5156
    %v5158 = vlaneseq
    %v5159 = vshrl.u32 %v5158, 7
    %v5160 = vsub.s32 1, %v5159
    %v5161 = vrot.slane %v5119, %v5160
    %v5162 = vlaneseq
    %v5163 = vshrl.u32 %v5162, 7
    %v5164 = vsub.s32 2, %v5163
    %v5165 = vrot.slane %v5119, %v5164
    %v5166 = vlaneseq
    %v5167 = vshrl.u32 %v5166, 7
    %v5168 = vsub.s32 3, %v5167
    %v5169 = vrot.slane %v5119, %v5168
    %v5182 = vmul.f32 %v3267, %v5125
    %v5183 = vmul.f32 %v3269, %v5129
    %v5184 = vmul.f32 %v3636, %v5133
    %v5185 = vmul.f32 %v3638, %v5137
    %v5186 = vmul.f32 %v4005, %v5141
    %v5187 = vmul.f32 %v4007, %v5145
    %v5188 = vmul.f32 %v4374, %v5149
    %v5189 = vmul.f32 %v4376, %v5153
    %v5190 = vmul.f32 %v4743, %v5157
    %v5191 = vmul.f32 %v4745, %v5161
    %v5192 = vmul.f32 %v5112, %v5165
    %v5193 = vmul.f32 %v5114, %v5169
    %v5194 = vld [vmem:[#allocation7] sm:$0xff]
    %v5195 = vld [vmem:[#allocation7 + $0x8] sm:$0xf]
    %v5198 = vlaneseq
    %v5199 = vshrl.u32 %v5198, 7
    %v5200 = vsub.s32 0, %v5199
    %v5201 = vrot.slane %v5194, %v5200
    %v5202 = vlaneseq
    %v5203 = vshrl.u32 %v5202, 7
    %v5204 = vsub.s32 1, %v5203
    %v5205 = vrot.slane %v5194, %v5204
    %v5206 = vlaneseq
    %v5207 = vshrl.u32 %v5206, 7
    %v5208 = vsub.s32 2, %v5207
    %v5209 = vrot.slane %v5194, %v5208
    %v5210 = vlaneseq
    %v5211 = vshrl.u32 %v5210, 7
    %v5212 = vsub.s32 3, %v5211
    %v5213 = vrot.slane %v5194, %v5212
    %v5214 = vlaneseq
    %v5215 = vshrl.u32 %v5214, 7
    %v5216 = vsub.s32 4, %v5215
    %v5217 = vrot.slane %v5194, %v5216
    %v5218 = vlaneseq
    %v5219 = vshrl.u32 %v5218, 7
    %v5220 = vsub.s32 5, %v5219
    %v5221 = vrot.slane %v5194, %v5220
    %v5222 = vlaneseq
    %v5223 = vshrl.u32 %v5222, 7
    %v5224 = vsub.s32 6, %v5223
    %v5225 = vrot.slane %v5194, %v5224
    %v5226 = vlaneseq
    %v5227 = vshrl.u32 %v5226, 7
    %v5228 = vsub.s32 7, %v5227
    %v5229 = vrot.slane %v5194, %v5228
    %v5230 = vlaneseq
    %v5231 = vshrl.u32 %v5230, 7
    %v5232 = vsub.s32 0, %v5231
    %v5233 = vrot.slane %v5195, %v5232
    %v5234 = vlaneseq
    %v5235 = vshrl.u32 %v5234, 7
    %v5236 = vsub.s32 1, %v5235
    %v5237 = vrot.slane %v5195, %v5236
    %v5238 = vlaneseq
    %v5239 = vshrl.u32 %v5238, 7
    %v5240 = vsub.s32 2, %v5239
    %v5241 = vrot.slane %v5195, %v5240
    %v5242 = vlaneseq
    %v5243 = vshrl.u32 %v5242, 7
    %v5244 = vsub.s32 3, %v5243
    %v5245 = vrot.slane %v5195, %v5244
    %v5258 = vadd.f32 %v5182, %v5201
    %v5259 = vadd.f32 %v5183, %v5205
    %v5260 = vadd.f32 %v5184, %v5209
    %v5261 = vadd.f32 %v5185, %v5213
    %v5262 = vadd.f32 %v5186, %v5217
    %v5263 = vadd.f32 %v5187, %v5221
    %v5264 = vadd.f32 %v5188, %v5225
    %v5265 = vadd.f32 %v5189, %v5229
    %v5266 = vadd.f32 %v5190, %v5233
    %v5267 = vadd.f32 %v5191, %v5237
    %v5268 = vadd.f32 %v5192, %v5241
    %v5269 = vadd.f32 %v5193, %v5245
    %v5270 = vmax.f32 %v5258, 0.0
    %v5271 = vmax.f32 %v5259, 0.0
    %v5272 = vmax.f32 %v5260, 0.0
    %v5273 = vmax.f32 %v5261, 0.0
    %v5274 = vmax.f32 %v5262, 0.0
    %v5275 = vmax.f32 %v5263, 0.0
    %v5276 = vmax.f32 %v5264, 0.0
    %v5277 = vmax.f32 %v5265, 0.0
    %v5278 = vmax.f32 %v5266, 0.0
    %v5279 = vmax.f32 %v5267, 0.0
    %v5280 = vmax.f32 %v5268, 0.0
    %v5281 = vmax.f32 %v5269, 0.0
    %v5282 = vpack.c.bf16 %v5270, %v5270
    %v5283 = vpack.c.bf16 %v5271, %v5271
    %v5284 = vpack.c.bf16 %v5272, %v5272
    %v5285 = vpack.c.bf16 %v5273, %v5273
    %v5286 = vpack.c.bf16 %v5274, %v5274
    %v5287 = vpack.c.bf16 %v5275, %v5275
    %v5288 = vpack.c.bf16 %v5276, %v5276
    %v5289 = vpack.c.bf16 %v5277, %v5277
    %v5290 = vpack.c.bf16 %v5278, %v5278
    %v5291 = vpack.c.bf16 %v5279, %v5279
    %v5292 = vpack.c.bf16 %v5280, %v5280
    %v5293 = vpack.c.bf16 %v5281, %v5281
    %v5294 = vld [vmem:[#allocation8] sm:$0xff]
    %v5295 = vld [vmem:[#allocation8 + $0x8] sm:$0xff]
    %v5296 = vld [vmem:[#allocation8 + $0x10] sm:$0xff]
    %v5297 = vld [vmem:[#allocation8 + $0x18] sm:$0xff]
    %v5298 = vld [vmem:[#allocation8 + $0x20] sm:$0xff]
    %v5299 = vld [vmem:[#allocation8 + $0x28] sm:$0xff]
    %v5300 = vld [vmem:[#allocation8 + $0x30] sm:$0xff]
    %v5301 = vld [vmem:[#allocation8 + $0x38] sm:$0xff]
    %v5302 = vld [vmem:[#allocation8 + $0x40] sm:$0xff]
    %v5303 = vld [vmem:[#allocation8 + $0x48] sm:$0xff]
    %v5304 = vld [vmem:[#allocation8 + $0x50] sm:$0xff]
    %v5305 = vld [vmem:[#allocation8 + $0x58] sm:$0xff]
    %v5306 = vld [vmem:[#allocation8 + $0x60] sm:$0xff]
    %v5307 = vld [vmem:[#allocation8 + $0x68] sm:$0xff]
    %v5308 = vld [vmem:[#allocation8 + $0x70] sm:$0xff]
    %v5309 = vld [vmem:[#allocation8 + $0x78] sm:$0xff]
    %v5310 = vld [vmem:[#allocation8 + $0x80] sm:$0xff]
    %v5311 = vld [vmem:[#allocation8 + $0x88] sm:$0xff]
    %v5312 = vld [vmem:[#allocation8 + $0x90] sm:$0xff]
    %v5313 = vld [vmem:[#allocation8 + $0x98] sm:$0xff]
    %v5314 = vld [vmem:[#allocation8 + $0xa0] sm:$0xff]
    %v5315 = vld [vmem:[#allocation8 + $0xa8] sm:$0xff]
    %v5316 = vld [vmem:[#allocation8 + $0xb0] sm:$0xff]
    %v5317 = vld [vmem:[#allocation8 + $0xb8] sm:$0xff]
    %v5318 = vld [vmem:[#allocation8 + $0xc0] sm:$0xff]
    %v5319 = vld [vmem:[#allocation8 + $0xc8] sm:$0xff]
    %v5320 = vld [vmem:[#allocation8 + $0xd0] sm:$0xff]
    %v5321 = vld [vmem:[#allocation8 + $0xd8] sm:$0xff]
    %v5322 = vld [vmem:[#allocation8 + $0xe0] sm:$0xff]
    %v5323 = vld [vmem:[#allocation8 + $0xe8] sm:$0xff]
    %v5324 = vld [vmem:[#allocation8 + $0xf0] sm:$0xff]
    %v5325 = vld [vmem:[#allocation8 + $0xf8] sm:$0xff]
    %v5326 = vld [vmem:[#allocation8 + $0x100] sm:$0xff]
    %v5327 = vld [vmem:[#allocation8 + $0x108] sm:$0xff]
    %v5328 = vld [vmem:[#allocation8 + $0x110] sm:$0xff]
    %v5329 = vld [vmem:[#allocation8 + $0x118] sm:$0xff]
    %v5330 = vld [vmem:[#allocation8 + $0x120] sm:$0xff]
    %v5331 = vld [vmem:[#allocation8 + $0x128] sm:$0xff]
    %v5332 = vld [vmem:[#allocation8 + $0x130] sm:$0xff]
    %v5333 = vld [vmem:[#allocation8 + $0x138] sm:$0xff]
    %v5334 = vld [vmem:[#allocation8 + $0x140] sm:$0xff]
    %v5335 = vld [vmem:[#allocation8 + $0x148] sm:$0xff]
    %v5336 = vld [vmem:[#allocation8 + $0x150] sm:$0xff]
    %v5337 = vld [vmem:[#allocation8 + $0x158] sm:$0xff]
    %v5338 = vld [vmem:[#allocation8 + $0x160] sm:$0xff]
    %v5339 = vld [vmem:[#allocation8 + $0x168] sm:$0xff]
    %v5340 = vld [vmem:[#allocation8 + $0x170] sm:$0xff]
    %v5341 = vld [vmem:[#allocation8 + $0x178] sm:$0xff]
    %v5342 = vld [vmem:[#allocation8 + $0x180] sm:$0xff]
    %v5343 = vld [vmem:[#allocation8 + $0x188] sm:$0xff]
    %v5344 = vld [vmem:[#allocation8 + $0x190] sm:$0xff]
    %v5345 = vld [vmem:[#allocation8 + $0x198] sm:$0xff]
    %v5346 = vld [vmem:[#allocation8 + $0x1a0] sm:$0xff]
    %v5347 = vld [vmem:[#allocation8 + $0x1a8] sm:$0xff]
    %v5348 = vld [vmem:[#allocation8 + $0x1b0] sm:$0xff]
    %v5349 = vld [vmem:[#allocation8 + $0x1b8] sm:$0xff]
    %v5350 = vld [vmem:[#allocation8 + $0x1c0] sm:$0xff]
    %v5351 = vld [vmem:[#allocation8 + $0x1c8] sm:$0xff]
    %v5352 = vld [vmem:[#allocation8 + $0x1d0] sm:$0xff]
    %v5353 = vld [vmem:[#allocation8 + $0x1d8] sm:$0xff]
    %v5354 = vld [vmem:[#allocation8 + $0x1e0] sm:$0xff]
    %v5355 = vld [vmem:[#allocation8 + $0x1e8] sm:$0xff]
    %v5356 = vld [vmem:[#allocation8 + $0x1f0] sm:$0xff]
    %v5357 = vld [vmem:[#allocation8 + $0x1f8] sm:$0xff]
    %v5358 = vld [vmem:[#allocation8 + $0x200] sm:$0xff]
    %v5359 = vld [vmem:[#allocation8 + $0x208] sm:$0xff]
    %v5360 = vld [vmem:[#allocation8 + $0x210] sm:$0xff]
    %v5361 = vld [vmem:[#allocation8 + $0x218] sm:$0xff]
    %v5362 = vld [vmem:[#allocation8 + $0x220] sm:$0xff]
    %v5363 = vld [vmem:[#allocation8 + $0x228] sm:$0xff]
    %v5364 = vld [vmem:[#allocation8 + $0x230] sm:$0xff]
    %v5365 = vld [vmem:[#allocation8 + $0x238] sm:$0xff]
    %v5366 = vld [vmem:[#allocation8 + $0x240] sm:$0xff]
    %v5367 = vld [vmem:[#allocation8 + $0x248] sm:$0xff]
    %v5368 = vld [vmem:[#allocation8 + $0x250] sm:$0xff]
    %v5369 = vld [vmem:[#allocation8 + $0x258] sm:$0xff]
    %v5370 = vld [vmem:[#allocation8 + $0x260] sm:$0xff]
    %v5371 = vld [vmem:[#allocation8 + $0x268] sm:$0xff]
    %v5372 = vld [vmem:[#allocation8 + $0x270] sm:$0xff]
    %v5373 = vld [vmem:[#allocation8 + $0x278] sm:$0xff]
    %v5374 = vld [vmem:[#allocation8 + $0x280] sm:$0xff]
    %v5375 = vld [vmem:[#allocation8 + $0x288] sm:$0xff]
    %v5376 = vld [vmem:[#allocation8 + $0x290] sm:$0xff]
    %v5377 = vld [vmem:[#allocation8 + $0x298] sm:$0xff]
    %v5378 = vld [vmem:[#allocation8 + $0x2a0] sm:$0xff]
    %v5379 = vld [vmem:[#allocation8 + $0x2a8] sm:$0xff]
    %v5380 = vld [vmem:[#allocation8 + $0x2b0] sm:$0xff]
    %v5381 = vld [vmem:[#allocation8 + $0x2b8] sm:$0xff]
    %v5382 = vld [vmem:[#allocation8 + $0x2c0] sm:$0xff]
    %v5383 = vld [vmem:[#allocation8 + $0x2c8] sm:$0xff]
    %v5384 = vld [vmem:[#allocation8 + $0x2d0] sm:$0xff]
    %v5385 = vld [vmem:[#allocation8 + $0x2d8] sm:$0xff]
    %v5386 = vld [vmem:[#allocation8 + $0x2e0] sm:$0xff]
    %v5387 = vld [vmem:[#allocation8 + $0x2e8] sm:$0xff]
    %v5388 = vld [vmem:[#allocation8 + $0x2f0] sm:$0xff]
    %v5389 = vld [vmem:[#allocation8 + $0x2f8] sm:$0xff]
    %v5390 = vld [vmem:[#allocation8 + $0x300] sm:$0xff]
    %v5391 = vld [vmem:[#allocation8 + $0x308] sm:$0xff]
    %v5392 = vld [vmem:[#allocation8 + $0x310] sm:$0xff]
    %v5393 = vld [vmem:[#allocation8 + $0x318] sm:$0xff]
    %v5394 = vld [vmem:[#allocation8 + $0x320] sm:$0xff]
    %v5395 = vld [vmem:[#allocation8 + $0x328] sm:$0xff]
    %v5396 = vld [vmem:[#allocation8 + $0x330] sm:$0xff]
    %v5397 = vld [vmem:[#allocation8 + $0x338] sm:$0xff]
    %v5398 = vld [vmem:[#allocation8 + $0x340] sm:$0xff]
    %v5399 = vld [vmem:[#allocation8 + $0x348] sm:$0xff]
    %v5400 = vld [vmem:[#allocation8 + $0x350] sm:$0xff]
    %v5401 = vld [vmem:[#allocation8 + $0x358] sm:$0xff]
    %v5402 = vld [vmem:[#allocation8 + $0x360] sm:$0xff]
    %v5403 = vld [vmem:[#allocation8 + $0x368] sm:$0xff]
    %v5404 = vld [vmem:[#allocation8 + $0x370] sm:$0xff]
    %v5405 = vld [vmem:[#allocation8 + $0x378] sm:$0xff]
    %v5406 = vld [vmem:[#allocation8 + $0x380] sm:$0xff]
    %v5407 = vld [vmem:[#allocation8 + $0x388] sm:$0xff]
    %v5408 = vld [vmem:[#allocation8 + $0x390] sm:$0xff]
    %v5409 = vld [vmem:[#allocation8 + $0x398] sm:$0xff]
    %v5410 = vld [vmem:[#allocation8 + $0x3a0] sm:$0xff]
    %v5411 = vld [vmem:[#allocation8 + $0x3a8] sm:$0xff]
    %v5412 = vld [vmem:[#allocation8 + $0x3b0] sm:$0xff]
    %v5413 = vld [vmem:[#allocation8 + $0x3b8] sm:$0xff]
    %v5414 = vld [vmem:[#allocation8 + $0x3c0] sm:$0xff]
    %v5415 = vld [vmem:[#allocation8 + $0x3c8] sm:$0xff]
    %v5416 = vld [vmem:[#allocation8 + $0x3d0] sm:$0xff]
    %v5417 = vld [vmem:[#allocation8 + $0x3d8] sm:$0xff]
    %v5418 = vld [vmem:[#allocation8 + $0x3e0] sm:$0xff]
    %v5419 = vld [vmem:[#allocation8 + $0x3e8] sm:$0xff]
    %v5420 = vld [vmem:[#allocation8 + $0x3f0] sm:$0xff]
    %v5421 = vld [vmem:[#allocation8 + $0x3f8] sm:$0xff]
    %v5422 = vld [vmem:[#allocation8 + $0x400] sm:$0xff]
    %v5423 = vld [vmem:[#allocation8 + $0x408] sm:$0xff]
    %v5424 = vld [vmem:[#allocation8 + $0x410] sm:$0xff]
    %v5425 = vld [vmem:[#allocation8 + $0x418] sm:$0xff]
    %v5426 = vld [vmem:[#allocation8 + $0x420] sm:$0xff]
    %v5427 = vld [vmem:[#allocation8 + $0x428] sm:$0xff]
    %v5428 = vld [vmem:[#allocation8 + $0x430] sm:$0xff]
    %v5429 = vld [vmem:[#allocation8 + $0x438] sm:$0xff]
    %v5430 = vld [vmem:[#allocation8 + $0x440] sm:$0xff]
    %v5431 = vld [vmem:[#allocation8 + $0x448] sm:$0xff]
    %v5432 = vld [vmem:[#allocation8 + $0x450] sm:$0xff]
    %v5433 = vld [vmem:[#allocation8 + $0x458] sm:$0xff]
    %v5434 = vld [vmem:[#allocation8 + $0x460] sm:$0xff]
    %v5435 = vld [vmem:[#allocation8 + $0x468] sm:$0xff]
    %v5436 = vld [vmem:[#allocation8 + $0x470] sm:$0xff]
    %v5437 = vld [vmem:[#allocation8 + $0x478] sm:$0xff]
    %v5438 = vld [vmem:[#allocation8 + $0x480] sm:$0xff]
    %v5439 = vld [vmem:[#allocation8 + $0x488] sm:$0xff]
    %v5440 = vld [vmem:[#allocation8 + $0x490] sm:$0xff]
    %v5441 = vld [vmem:[#allocation8 + $0x498] sm:$0xff]
    %v5442 = vld [vmem:[#allocation8 + $0x4a0] sm:$0xff]
    %v5443 = vld [vmem:[#allocation8 + $0x4a8] sm:$0xff]
    %v5444 = vld [vmem:[#allocation8 + $0x4b0] sm:$0xff]
    %v5445 = vld [vmem:[#allocation8 + $0x4b8] sm:$0xff]
    %v5446 = vld [vmem:[#allocation8 + $0x4c0] sm:$0xff]
    %v5447 = vld [vmem:[#allocation8 + $0x4c8] sm:$0xff]
    %v5448 = vld [vmem:[#allocation8 + $0x4d0] sm:$0xff]
    %v5449 = vld [vmem:[#allocation8 + $0x4d8] sm:$0xff]
    %v5450 = vld [vmem:[#allocation8 + $0x4e0] sm:$0xff]
    %v5451 = vld [vmem:[#allocation8 + $0x4e8] sm:$0xff]
    %v5452 = vld [vmem:[#allocation8 + $0x4f0] sm:$0xff]
    %v5453 = vld [vmem:[#allocation8 + $0x4f8] sm:$0xff]
    %v5454 = vld [vmem:[#allocation8 + $0x500] sm:$0xff]
    %v5455 = vld [vmem:[#allocation8 + $0x508] sm:$0xff]
    %v5456 = vld [vmem:[#allocation8 + $0x510] sm:$0xff]
    %v5457 = vld [vmem:[#allocation8 + $0x518] sm:$0xff]
    %v5458 = vld [vmem:[#allocation8 + $0x520] sm:$0xff]
    %v5459 = vld [vmem:[#allocation8 + $0x528] sm:$0xff]
    %v5460 = vld [vmem:[#allocation8 + $0x530] sm:$0xff]
    %v5461 = vld [vmem:[#allocation8 + $0x538] sm:$0xff]
    %v5462 = vld [vmem:[#allocation8 + $0x540] sm:$0xff]
    %v5463 = vld [vmem:[#allocation8 + $0x548] sm:$0xff]
    %v5464 = vld [vmem:[#allocation8 + $0x550] sm:$0xff]
    %v5465 = vld [vmem:[#allocation8 + $0x558] sm:$0xff]
    %v5466 = vld [vmem:[#allocation8 + $0x560] sm:$0xff]
    %v5467 = vld [vmem:[#allocation8 + $0x568] sm:$0xff]
    %v5468 = vld [vmem:[#allocation8 + $0x570] sm:$0xff]
    %v5469 = vld [vmem:[#allocation8 + $0x578] sm:$0xff]
    %v5470 = vld [vmem:[#allocation8 + $0x580] sm:$0xff]
    %v5471 = vld [vmem:[#allocation8 + $0x588] sm:$0xff]
    %v5472 = vld [vmem:[#allocation8 + $0x590] sm:$0xff]
    %v5473 = vld [vmem:[#allocation8 + $0x598] sm:$0xff]
    %v5474 = vld [vmem:[#allocation8 + $0x5a0] sm:$0xff]
    %v5475 = vld [vmem:[#allocation8 + $0x5a8] sm:$0xff]
    %v5476 = vld [vmem:[#allocation8 + $0x5b0] sm:$0xff]
    %v5477 = vld [vmem:[#allocation8 + $0x5b8] sm:$0xff]
    %v5478 = vld [vmem:[#allocation8 + $0x5c0] sm:$0xff]
    %v5479 = vld [vmem:[#allocation8 + $0x5c8] sm:$0xff]
    %v5480 = vld [vmem:[#allocation8 + $0x5d0] sm:$0xff]
    %v5481 = vld [vmem:[#allocation8 + $0x5d8] sm:$0xff]
    %v5482 = vld [vmem:[#allocation8 + $0x5e0] sm:$0xff]
    %v5483 = vld [vmem:[#allocation8 + $0x5e8] sm:$0xff]
    %v5484 = vld [vmem:[#allocation8 + $0x5f0] sm:$0xff]
    %v5485 = vld [vmem:[#allocation8 + $0x5f8] sm:$0xff]
    %v5486 = vunpack.c.l.s8.bf16 %v5294
    %v5487 = vunpack.c.l.s8.bf16 %v5295
    %v5488 = vunpack.c.l.s8.bf16 %v5296
    %v5489 = vunpack.c.l.s8.bf16 %v5297
    %v5490 = vunpack.c.h.s8.bf16 %v5294
    %v5491 = vunpack.c.h.s8.bf16 %v5295
    %v5492 = vunpack.c.h.s8.bf16 %v5296
    %v5493 = vunpack.c.h.s8.bf16 %v5297
    %v5494 = vunpack.c.l.s8.bf16 %v5298
    %v5495 = vunpack.c.l.s8.bf16 %v5299
    %v5496 = vunpack.c.l.s8.bf16 %v5300
    %v5497 = vunpack.c.l.s8.bf16 %v5301
    %v5498 = vunpack.c.h.s8.bf16 %v5298
    %v5499 = vunpack.c.h.s8.bf16 %v5299
    %v5500 = vunpack.c.h.s8.bf16 %v5300
    %v5501 = vunpack.c.h.s8.bf16 %v5301
    %v5502 = vunpack.c.l.s8.bf16 %v5302
    %v5503 = vunpack.c.l.s8.bf16 %v5303
    %v5504 = vunpack.c.l.s8.bf16 %v5304
    %v5505 = vunpack.c.l.s8.bf16 %v5305
    %v5506 = vunpack.c.h.s8.bf16 %v5302
    %v5507 = vunpack.c.h.s8.bf16 %v5303
    %v5508 = vunpack.c.h.s8.bf16 %v5304
    %v5509 = vunpack.c.h.s8.bf16 %v5305
    %v5510 = vunpack.c.l.s8.bf16 %v5306
    %v5511 = vunpack.c.l.s8.bf16 %v5307
    %v5512 = vunpack.c.l.s8.bf16 %v5308
    %v5513 = vunpack.c.l.s8.bf16 %v5309
    %v5514 = vunpack.c.h.s8.bf16 %v5306
    %v5515 = vunpack.c.h.s8.bf16 %v5307
    %v5516 = vunpack.c.h.s8.bf16 %v5308
    %v5517 = vunpack.c.h.s8.bf16 %v5309
    %v5518 = vunpack.c.l.s8.bf16 %v5310
    %v5519 = vunpack.c.l.s8.bf16 %v5311
    %v5520 = vunpack.c.l.s8.bf16 %v5312
    %v5521 = vunpack.c.l.s8.bf16 %v5313
    %v5522 = vunpack.c.h.s8.bf16 %v5310
    %v5523 = vunpack.c.h.s8.bf16 %v5311
    %v5524 = vunpack.c.h.s8.bf16 %v5312
    %v5525 = vunpack.c.h.s8.bf16 %v5313
    %v5526 = vunpack.c.l.s8.bf16 %v5314
    %v5527 = vunpack.c.l.s8.bf16 %v5315
    %v5528 = vunpack.c.l.s8.bf16 %v5316
    %v5529 = vunpack.c.l.s8.bf16 %v5317
    %v5530 = vunpack.c.h.s8.bf16 %v5314
    %v5531 = vunpack.c.h.s8.bf16 %v5315
    %v5532 = vunpack.c.h.s8.bf16 %v5316
    %v5533 = vunpack.c.h.s8.bf16 %v5317
    %v5534 = vunpack.c.l.s8.bf16 %v5318
    %v5535 = vunpack.c.l.s8.bf16 %v5319
    %v5536 = vunpack.c.l.s8.bf16 %v5320
    %v5537 = vunpack.c.l.s8.bf16 %v5321
    %v5538 = vunpack.c.h.s8.bf16 %v5318
    %v5539 = vunpack.c.h.s8.bf16 %v5319
    %v5540 = vunpack.c.h.s8.bf16 %v5320
    %v5541 = vunpack.c.h.s8.bf16 %v5321
    %v5542 = vunpack.c.l.s8.bf16 %v5322
    %v5543 = vunpack.c.l.s8.bf16 %v5323
    %v5544 = vunpack.c.l.s8.bf16 %v5324
    %v5545 = vunpack.c.l.s8.bf16 %v5325
    %v5546 = vunpack.c.h.s8.bf16 %v5322
    %v5547 = vunpack.c.h.s8.bf16 %v5323
    %v5548 = vunpack.c.h.s8.bf16 %v5324
    %v5549 = vunpack.c.h.s8.bf16 %v5325
    %v5550 = vunpack.c.l.s8.bf16 %v5326
    %v5551 = vunpack.c.l.s8.bf16 %v5327
    %v5552 = vunpack.c.l.s8.bf16 %v5328
    %v5553 = vunpack.c.l.s8.bf16 %v5329
    %v5554 = vunpack.c.h.s8.bf16 %v5326
    %v5555 = vunpack.c.h.s8.bf16 %v5327
    %v5556 = vunpack.c.h.s8.bf16 %v5328
    %v5557 = vunpack.c.h.s8.bf16 %v5329
    %v5558 = vunpack.c.l.s8.bf16 %v5330
    %v5559 = vunpack.c.l.s8.bf16 %v5331
    %v5560 = vunpack.c.l.s8.bf16 %v5332
    %v5561 = vunpack.c.l.s8.bf16 %v5333
    %v5562 = vunpack.c.h.s8.bf16 %v5330
    %v5563 = vunpack.c.h.s8.bf16 %v5331
    %v5564 = vunpack.c.h.s8.bf16 %v5332
    %v5565 = vunpack.c.h.s8.bf16 %v5333
    %v5566 = vunpack.c.l.s8.bf16 %v5334
    %v5567 = vunpack.c.l.s8.bf16 %v5335
    %v5568 = vunpack.c.l.s8.bf16 %v5336
    %v5569 = vunpack.c.l.s8.bf16 %v5337
    %v5570 = vunpack.c.h.s8.bf16 %v5334
    %v5571 = vunpack.c.h.s8.bf16 %v5335
    %v5572 = vunpack.c.h.s8.bf16 %v5336
    %v5573 = vunpack.c.h.s8.bf16 %v5337
    %v5574 = vunpack.c.l.s8.bf16 %v5338
    %v5575 = vunpack.c.l.s8.bf16 %v5339
    %v5576 = vunpack.c.l.s8.bf16 %v5340
    %v5577 = vunpack.c.l.s8.bf16 %v5341
    %v5578 = vunpack.c.h.s8.bf16 %v5338
    %v5579 = vunpack.c.h.s8.bf16 %v5339
    %v5580 = vunpack.c.h.s8.bf16 %v5340
    %v5581 = vunpack.c.h.s8.bf16 %v5341
    %v5582 = vunpack.c.l.s8.bf16 %v5342
    %v5583 = vunpack.c.l.s8.bf16 %v5343
    %v5584 = vunpack.c.l.s8.bf16 %v5344
    %v5585 = vunpack.c.l.s8.bf16 %v5345
    %v5586 = vunpack.c.h.s8.bf16 %v5342
    %v5587 = vunpack.c.h.s8.bf16 %v5343
    %v5588 = vunpack.c.h.s8.bf16 %v5344
    %v5589 = vunpack.c.h.s8.bf16 %v5345
    %v5590 = vunpack.c.l.s8.bf16 %v5346
    %v5591 = vunpack.c.l.s8.bf16 %v5347
    %v5592 = vunpack.c.l.s8.bf16 %v5348
    %v5593 = vunpack.c.l.s8.bf16 %v5349
    %v5594 = vunpack.c.h.s8.bf16 %v5346
    %v5595 = vunpack.c.h.s8.bf16 %v5347
    %v5596 = vunpack.c.h.s8.bf16 %v5348
    %v5597 = vunpack.c.h.s8.bf16 %v5349
    %v5598 = vunpack.c.l.s8.bf16 %v5350
    %v5599 = vunpack.c.l.s8.bf16 %v5351
    %v5600 = vunpack.c.l.s8.bf16 %v5352
    %v5601 = vunpack.c.l.s8.bf16 %v5353
    %v5602 = vunpack.c.h.s8.bf16 %v5350
    %v5603 = vunpack.c.h.s8.bf16 %v5351
    %v5604 = vunpack.c.h.s8.bf16 %v5352
    %v5605 = vunpack.c.h.s8.bf16 %v5353
    %v5606 = vunpack.c.l.s8.bf16 %v5354
    %v5607 = vunpack.c.l.s8.bf16 %v5355
    %v5608 = vunpack.c.l.s8.bf16 %v5356
    %v5609 = vunpack.c.l.s8.bf16 %v5357
    %v5610 = vunpack.c.h.s8.bf16 %v5354
    %v5611 = vunpack.c.h.s8.bf16 %v5355
    %v5612 = vunpack.c.h.s8.bf16 %v5356
    %v5613 = vunpack.c.h.s8.bf16 %v5357
    %v5614 = vunpack.c.l.s8.bf16 %v5358
    %v5615 = vunpack.c.l.s8.bf16 %v5359
    %v5616 = vunpack.c.l.s8.bf16 %v5360
    %v5617 = vunpack.c.l.s8.bf16 %v5361
    %v5618 = vunpack.c.h.s8.bf16 %v5358
    %v5619 = vunpack.c.h.s8.bf16 %v5359
    %v5620 = vunpack.c.h.s8.bf16 %v5360
    %v5621 = vunpack.c.h.s8.bf16 %v5361
    %v5622 = vunpack.c.l.s8.bf16 %v5362
    %v5623 = vunpack.c.l.s8.bf16 %v5363
    %v5624 = vunpack.c.l.s8.bf16 %v5364
    %v5625 = vunpack.c.l.s8.bf16 %v5365
    %v5626 = vunpack.c.h.s8.bf16 %v5362
    %v5627 = vunpack.c.h.s8.bf16 %v5363
    %v5628 = vunpack.c.h.s8.bf16 %v5364
    %v5629 = vunpack.c.h.s8.bf16 %v5365
    %v5630 = vunpack.c.l.s8.bf16 %v5366
    %v5631 = vunpack.c.l.s8.bf16 %v5367
    %v5632 = vunpack.c.l.s8.bf16 %v5368
    %v5633 = vunpack.c.l.s8.bf16 %v5369
    %v5634 = vunpack.c.h.s8.bf16 %v5366
    %v5635 = vunpack.c.h.s8.bf16 %v5367
    %v5636 = vunpack.c.h.s8.bf16 %v5368
    %v5637 = vunpack.c.h.s8.bf16 %v5369
    %v5638 = vunpack.c.l.s8.bf16 %v5370
    %v5639 = vunpack.c.l.s8.bf16 %v5371
    %v5640 = vunpack.c.l.s8.bf16 %v5372
    %v5641 = vunpack.c.l.s8.bf16 %v5373
    %v5642 = vunpack.c.h.s8.bf16 %v5370
    %v5643 = vunpack.c.h.s8.bf16 %v5371
    %v5644 = vunpack.c.h.s8.bf16 %v5372
    %v5645 = vunpack.c.h.s8.bf16 %v5373
    %v5646 = vunpack.c.l.s8.bf16 %v5374
    %v5647 = vunpack.c.l.s8.bf16 %v5375
    %v5648 = vunpack.c.l.s8.bf16 %v5376
    %v5649 = vunpack.c.l.s8.bf16 %v5377
    %v5650 = vunpack.c.h.s8.bf16 %v5374
    %v5651 = vunpack.c.h.s8.bf16 %v5375
    %v5652 = vunpack.c.h.s8.bf16 %v5376
    %v5653 = vunpack.c.h.s8.bf16 %v5377
    %v5654 = vunpack.c.l.s8.bf16 %v5378
    %v5655 = vunpack.c.l.s8.bf16 %v5379
    %v5656 = vunpack.c.l.s8.bf16 %v5380
    %v5657 = vunpack.c.l.s8.bf16 %v5381
    %v5658 = vunpack.c.h.s8.bf16 %v5378
    %v5659 = vunpack.c.h.s8.bf16 %v5379
    %v5660 = vunpack.c.h.s8.bf16 %v5380
    %v5661 = vunpack.c.h.s8.bf16 %v5381
    %v5662 = vunpack.c.l.s8.bf16 %v5382
    %v5663 = vunpack.c.l.s8.bf16 %v5383
    %v5664 = vunpack.c.l.s8.bf16 %v5384
    %v5665 = vunpack.c.l.s8.bf16 %v5385
    %v5666 = vunpack.c.h.s8.bf16 %v5382
    %v5667 = vunpack.c.h.s8.bf16 %v5383
    %v5668 = vunpack.c.h.s8.bf16 %v5384
    %v5669 = vunpack.c.h.s8.bf16 %v5385
    %v5670 = vunpack.c.l.s8.bf16 %v5386
    %v5671 = vunpack.c.l.s8.bf16 %v5387
    %v5672 = vunpack.c.l.s8.bf16 %v5388
    %v5673 = vunpack.c.l.s8.bf16 %v5389
    %v5674 = vunpack.c.h.s8.bf16 %v5386
    %v5675 = vunpack.c.h.s8.bf16 %v5387
    %v5676 = vunpack.c.h.s8.bf16 %v5388
    %v5677 = vunpack.c.h.s8.bf16 %v5389
    %v5678 = vunpack.c.l.s8.bf16 %v5390
    %v5679 = vunpack.c.l.s8.bf16 %v5391
    %v5680 = vunpack.c.l.s8.bf16 %v5392
    %v5681 = vunpack.c.l.s8.bf16 %v5393
    %v5682 = vunpack.c.h.s8.bf16 %v5390
    %v5683 = vunpack.c.h.s8.bf16 %v5391
    %v5684 = vunpack.c.h.s8.bf16 %v5392
    %v5685 = vunpack.c.h.s8.bf16 %v5393
    %v5686 = vunpack.c.l.s8.bf16 %v5394
    %v5687 = vunpack.c.l.s8.bf16 %v5395
    %v5688 = vunpack.c.l.s8.bf16 %v5396
    %v5689 = vunpack.c.l.s8.bf16 %v5397
    %v5690 = vunpack.c.h.s8.bf16 %v5394
    %v5691 = vunpack.c.h.s8.bf16 %v5395
    %v5692 = vunpack.c.h.s8.bf16 %v5396
    %v5693 = vunpack.c.h.s8.bf16 %v5397
    %v5694 = vunpack.c.l.s8.bf16 %v5398
    %v5695 = vunpack.c.l.s8.bf16 %v5399
    %v5696 = vunpack.c.l.s8.bf16 %v5400
    %v5697 = vunpack.c.l.s8.bf16 %v5401
    %v5698 = vunpack.c.h.s8.bf16 %v5398
    %v5699 = vunpack.c.h.s8.bf16 %v5399
    %v5700 = vunpack.c.h.s8.bf16 %v5400
    %v5701 = vunpack.c.h.s8.bf16 %v5401
    %v5702 = vunpack.c.l.s8.bf16 %v5402
    %v5703 = vunpack.c.l.s8.bf16 %v5403
    %v5704 = vunpack.c.l.s8.bf16 %v5404
    %v5705 = vunpack.c.l.s8.bf16 %v5405
    %v5706 = vunpack.c.h.s8.bf16 %v5402
    %v5707 = vunpack.c.h.s8.bf16 %v5403
    %v5708 = vunpack.c.h.s8.bf16 %v5404
    %v5709 = vunpack.c.h.s8.bf16 %v5405
    %v5710 = vunpack.c.l.s8.bf16 %v5406
    %v5711 = vunpack.c.l.s8.bf16 %v5407
    %v5712 = vunpack.c.l.s8.bf16 %v5408
    %v5713 = vunpack.c.l.s8.bf16 %v5409
    %v5714 = vunpack.c.h.s8.bf16 %v5406
    %v5715 = vunpack.c.h.s8.bf16 %v5407
    %v5716 = vunpack.c.h.s8.bf16 %v5408
    %v5717 = vunpack.c.h.s8.bf16 %v5409
    %v5718 = vunpack.c.l.s8.bf16 %v5410
    %v5719 = vunpack.c.l.s8.bf16 %v5411
    %v5720 = vunpack.c.l.s8.bf16 %v5412
    %v5721 = vunpack.c.l.s8.bf16 %v5413
    %v5722 = vunpack.c.h.s8.bf16 %v5410
    %v5723 = vunpack.c.h.s8.bf16 %v5411
    %v5724 = vunpack.c.h.s8.bf16 %v5412
    %v5725 = vunpack.c.h.s8.bf16 %v5413
    %v5726 = vunpack.c.l.s8.bf16 %v5414
    %v5727 = vunpack.c.l.s8.bf16 %v5415
    %v5728 = vunpack.c.l.s8.bf16 %v5416
    %v5729 = vunpack.c.l.s8.bf16 %v5417
    %v5730 = vunpack.c.h.s8.bf16 %v5414
    %v5731 = vunpack.c.h.s8.bf16 %v5415
    %v5732 = vunpack.c.h.s8.bf16 %v5416
    %v5733 = vunpack.c.h.s8.bf16 %v5417
    %v5734 = vunpack.c.l.s8.bf16 %v5418
    %v5735 = vunpack.c.l.s8.bf16 %v5419
    %v5736 = vunpack.c.l.s8.bf16 %v5420
    %v5737 = vunpack.c.l.s8.bf16 %v5421
    %v5738 = vunpack.c.h.s8.bf16 %v5418
    %v5739 = vunpack.c.h.s8.bf16 %v5419
    %v5740 = vunpack.c.h.s8.bf16 %v5420
    %v5741 = vunpack.c.h.s8.bf16 %v5421
    %v5742 = vunpack.c.l.s8.bf16 %v5422
    %v5743 = vunpack.c.l.s8.bf16 %v5423
    %v5744 = vunpack.c.l.s8.bf16 %v5424
    %v5745 = vunpack.c.l.s8.bf16 %v5425
    %v5746 = vunpack.c.h.s8.bf16 %v5422
    %v5747 = vunpack.c.h.s8.bf16 %v5423
    %v5748 = vunpack.c.h.s8.bf16 %v5424
    %v5749 = vunpack.c.h.s8.bf16 %v5425
    %v5750 = vunpack.c.l.s8.bf16 %v5426
    %v5751 = vunpack.c.l.s8.bf16 %v5427
    %v5752 = vunpack.c.l.s8.bf16 %v5428
    %v5753 = vunpack.c.l.s8.bf16 %v5429
    %v5754 = vunpack.c.h.s8.bf16 %v5426
    %v5755 = vunpack.c.h.s8.bf16 %v5427
    %v5756 = vunpack.c.h.s8.bf16 %v5428
    %v5757 = vunpack.c.h.s8.bf16 %v5429
    %v5758 = vunpack.c.l.s8.bf16 %v5430
    %v5759 = vunpack.c.l.s8.bf16 %v5431
    %v5760 = vunpack.c.l.s8.bf16 %v5432
    %v5761 = vunpack.c.l.s8.bf16 %v5433
    %v5762 = vunpack.c.h.s8.bf16 %v5430
    %v5763 = vunpack.c.h.s8.bf16 %v5431
    %v5764 = vunpack.c.h.s8.bf16 %v5432
    %v5765 = vunpack.c.h.s8.bf16 %v5433
    %v5766 = vunpack.c.l.s8.bf16 %v5434
    %v5767 = vunpack.c.l.s8.bf16 %v5435
    %v5768 = vunpack.c.l.s8.bf16 %v5436
    %v5769 = vunpack.c.l.s8.bf16 %v5437
    %v5770 = vunpack.c.h.s8.bf16 %v5434
    %v5771 = vunpack.c.h.s8.bf16 %v5435
    %v5772 = vunpack.c.h.s8.bf16 %v5436
    %v5773 = vunpack.c.h.s8.bf16 %v5437
    %v5774 = vunpack.c.l.s8.bf16 %v5438
    %v5775 = vunpack.c.l.s8.bf16 %v5439
    %v5776 = vunpack.c.l.s8.bf16 %v5440
    %v5777 = vunpack.c.l.s8.bf16 %v5441
    %v5778 = vunpack.c.h.s8.bf16 %v5438
    %v5779 = vunpack.c.h.s8.bf16 %v5439
    %v5780 = vunpack.c.h.s8.bf16 %v5440
    %v5781 = vunpack.c.h.s8.bf16 %v5441
    %v5782 = vunpack.c.l.s8.bf16 %v5442
    %v5783 = vunpack.c.l.s8.bf16 %v5443
    %v5784 = vunpack.c.l.s8.bf16 %v5444
    %v5785 = vunpack.c.l.s8.bf16 %v5445
    %v5786 = vunpack.c.h.s8.bf16 %v5442
    %v5787 = vunpack.c.h.s8.bf16 %v5443
    %v5788 = vunpack.c.h.s8.bf16 %v5444
    %v5789 = vunpack.c.h.s8.bf16 %v5445
    %v5790 = vunpack.c.l.s8.bf16 %v5446
    %v5791 = vunpack.c.l.s8.bf16 %v5447
    %v5792 = vunpack.c.l.s8.bf16 %v5448
    %v5793 = vunpack.c.l.s8.bf16 %v5449
    %v5794 = vunpack.c.h.s8.bf16 %v5446
    %v5795 = vunpack.c.h.s8.bf16 %v5447
    %v5796 = vunpack.c.h.s8.bf16 %v5448
    %v5797 = vunpack.c.h.s8.bf16 %v5449
    %v5798 = vunpack.c.l.s8.bf16 %v5450
    %v5799 = vunpack.c.l.s8.bf16 %v5451
    %v5800 = vunpack.c.l.s8.bf16 %v5452
    %v5801 = vunpack.c.l.s8.bf16 %v5453
    %v5802 = vunpack.c.h.s8.bf16 %v5450
    %v5803 = vunpack.c.h.s8.bf16 %v5451
    %v5804 = vunpack.c.h.s8.bf16 %v5452
    %v5805 = vunpack.c.h.s8.bf16 %v5453
    %v5806 = vunpack.c.l.s8.bf16 %v5454
    %v5807 = vunpack.c.l.s8.bf16 %v5455
    %v5808 = vunpack.c.l.s8.bf16 %v5456
    %v5809 = vunpack.c.l.s8.bf16 %v5457
    %v5810 = vunpack.c.h.s8.bf16 %v5454
    %v5811 = vunpack.c.h.s8.bf16 %v5455
    %v5812 = vunpack.c.h.s8.bf16 %v5456
    %v5813 = vunpack.c.h.s8.bf16 %v5457
    %v5814 = vunpack.c.l.s8.bf16 %v5458
    %v5815 = vunpack.c.l.s8.bf16 %v5459
    %v5816 = vunpack.c.l.s8.bf16 %v5460
    %v5817 = vunpack.c.l.s8.bf16 %v5461
    %v5818 = vunpack.c.h.s8.bf16 %v5458
    %v5819 = vunpack.c.h.s8.bf16 %v5459
    %v5820 = vunpack.c.h.s8.bf16 %v5460
    %v5821 = vunpack.c.h.s8.bf16 %v5461
    %v5822 = vunpack.c.l.s8.bf16 %v5462
    %v5823 = vunpack.c.l.s8.bf16 %v5463
    %v5824 = vunpack.c.l.s8.bf16 %v5464
    %v5825 = vunpack.c.l.s8.bf16 %v5465
    %v5826 = vunpack.c.h.s8.bf16 %v5462
    %v5827 = vunpack.c.h.s8.bf16 %v5463
    %v5828 = vunpack.c.h.s8.bf16 %v5464
    %v5829 = vunpack.c.h.s8.bf16 %v5465
    %v5830 = vunpack.c.l.s8.bf16 %v5466
    %v5831 = vunpack.c.l.s8.bf16 %v5467
    %v5832 = vunpack.c.l.s8.bf16 %v5468
    %v5833 = vunpack.c.l.s8.bf16 %v5469
    %v5834 = vunpack.c.h.s8.bf16 %v5466
    %v5835 = vunpack.c.h.s8.bf16 %v5467
    %v5836 = vunpack.c.h.s8.bf16 %v5468
    %v5837 = vunpack.c.h.s8.bf16 %v5469
    %v5838 = vunpack.c.l.s8.bf16 %v5470
    %v5839 = vunpack.c.l.s8.bf16 %v5471
    %v5840 = vunpack.c.l.s8.bf16 %v5472
    %v5841 = vunpack.c.l.s8.bf16 %v5473
    %v5842 = vunpack.c.h.s8.bf16 %v5470
    %v5843 = vunpack.c.h.s8.bf16 %v5471
    %v5844 = vunpack.c.h.s8.bf16 %v5472
    %v5845 = vunpack.c.h.s8.bf16 %v5473
    %v5846 = vunpack.c.l.s8.bf16 %v5474
    %v5847 = vunpack.c.l.s8.bf16 %v5475
    %v5848 = vunpack.c.l.s8.bf16 %v5476
    %v5849 = vunpack.c.l.s8.bf16 %v5477
    %v5850 = vunpack.c.h.s8.bf16 %v5474
    %v5851 = vunpack.c.h.s8.bf16 %v5475
    %v5852 = vunpack.c.h.s8.bf16 %v5476
    %v5853 = vunpack.c.h.s8.bf16 %v5477
    %v5854 = vunpack.c.l.s8.bf16 %v5478
    %v5855 = vunpack.c.l.s8.bf16 %v5479
    %v5856 = vunpack.c.l.s8.bf16 %v5480
    %v5857 = vunpack.c.l.s8.bf16 %v5481
    %v5858 = vunpack.c.h.s8.bf16 %v5478
    %v5859 = vunpack.c.h.s8.bf16 %v5479
    %v5860 = vunpack.c.h.s8.bf16 %v5480
    %v5861 = vunpack.c.h.s8.bf16 %v5481
    %v5862 = vunpack.c.l.s8.bf16 %v5482
    %v5863 = vunpack.c.l.s8.bf16 %v5483
    %v5864 = vunpack.c.l.s8.bf16 %v5484
    %v5865 = vunpack.c.l.s8.bf16 %v5485
    %v5866 = vunpack.c.h.s8.bf16 %v5482
    %v5867 = vunpack.c.h.s8.bf16 %v5483
    %v5868 = vunpack.c.h.s8.bf16 %v5484
    %v5869 = vunpack.c.h.s8.bf16 %v5485
    %5870 = vmatprep.subr.bf16.mxu0 %v5487
    %5871 = vmatpush1.bf16.msra.mxu0 %v5486
    %5872 = vmatprep.subr.bf16.mxu0 %v5491
    %5873 = vmatpush1.bf16.msra.mxu0 %v5490
    %5874 = vmatprep.subr.bf16.mxu0 %v5495
    %5875 = vmatpush1.bf16.msra.mxu0 %v5494
    %5876 = vmatprep.subr.bf16.mxu0 %v5499
    %5877 = vmatpush1.bf16.msra.mxu0 %v5498
    %5878 = vmatprep.subr.bf16.mxu0 %v5503
    %5879 = vmatpush1.bf16.msra.mxu0 %v5502
    %5880 = vmatprep.subr.bf16.mxu0 %v5507
    %5881 = vmatpush1.bf16.msra.mxu0 %v5506
    %5882 = vmatprep.subr.bf16.mxu0 %v5511
    %5883 = vmatpush1.bf16.msra.mxu0 %v5510
    %5884 = vmatprep.subr.bf16.mxu0 %v5515
    %5885 = vmatpush1.bf16.msra.mxu0 %v5514
    %5886 = vmatprep.subr.bf16.mxu0 %v5519
    %5887 = vmatpush1.bf16.msra.mxu0 %v5518
    %5888 = vmatprep.subr.bf16.mxu0 %v5523
    %5889 = vmatpush1.bf16.msra.mxu0 %v5522
    %5890 = vmatprep.subr.bf16.mxu0 %v5527
    %5891 = vmatpush1.bf16.msra.mxu0 %v5526
    %5892 = vmatprep.subr.bf16.mxu0 %v5531
    %5893 = vmatpush1.bf16.msra.mxu0 %v5530
    %5894 = vmatprep.subr.bf16.mxu0 %v5535
    %5895 = vmatpush1.bf16.msra.mxu0 %v5534
    %5896 = vmatprep.subr.bf16.mxu0 %v5539
    %5897 = vmatpush1.bf16.msra.mxu0 %v5538
    %5898 = vmatprep.subr.bf16.mxu0 %v5543
    %5899 = vmatpush1.bf16.msra.mxu0 %v5542
    %5900 = vmatprep.subr.bf16.mxu0 %v5547
    %5901 = vmatpush1.bf16.msra.mxu0 %v5546
    %5902 = vmatprep.mubr.bf16.mxu0 %v5283
    %5903 = vmatmul.mubr.bf16.gmra.mrb[0].mxu0 %v5282
    %v5904 = vpop.f32.mrb[0].mxu0
    %v5905 = vadd.f32 0.0, %v5904
    %v5906 = vpop.f32.mrb[0].mxu0
    %v5907 = vadd.f32 0.0, %v5906
    %v5908 = vpop.f32.mrb[0].mxu0
    %v5909 = vpop.f32.mrb[0].mxu0
    %5910 = vdwg.mxu0
    %5911 = vmatprep.subr.bf16.mxu0 %v5551
    %5912 = vmatpush1.bf16.msra.mxu0 %v5550
    %5913 = vmatprep.subr.bf16.mxu0 %v5555
    %5914 = vmatpush1.bf16.msra.mxu0 %v5554
    %5915 = vmatprep.subr.bf16.mxu0 %v5559
    %5916 = vmatpush1.bf16.msra.mxu0 %v5558
    %5917 = vmatprep.subr.bf16.mxu0 %v5563
    %5918 = vmatpush1.bf16.msra.mxu0 %v5562
    %5919 = vmatprep.subr.bf16.mxu0 %v5567
    %5920 = vmatpush1.bf16.msra.mxu0 %v5566
    %5921 = vmatprep.subr.bf16.mxu0 %v5571
    %5922 = vmatpush1.bf16.msra.mxu0 %v5570
    %5923 = vmatprep.subr.bf16.mxu0 %v5575
    %5924 = vmatpush1.bf16.msra.mxu0 %v5574
    %5925 = vmatprep.subr.bf16.mxu0 %v5579
    %5926 = vmatpush1.bf16.msra.mxu0 %v5578
    %5927 = vmatprep.subr.bf16.mxu0 %v5583
    %5928 = vmatpush1.bf16.msra.mxu0 %v5582
    %5929 = vmatprep.subr.bf16.mxu0 %v5587
    %5930 = vmatpush1.bf16.msra.mxu0 %v5586
    %5931 = vmatprep.subr.bf16.mxu0 %v5591
    %5932 = vmatpush1.bf16.msra.mxu0 %v5590
    %5933 = vmatprep.subr.bf16.mxu0 %v5595
    %5934 = vmatpush1.bf16.msra.mxu0 %v5594
    %5935 = vmatprep.subr.bf16.mxu0 %v5599
    %5936 = vmatpush1.bf16.msra.mxu0 %v5598
    %5937 = vmatprep.subr.bf16.mxu0 %v5603
    %5938 = vmatpush1.bf16.msra.mxu0 %v5602
    %5939 = vmatprep.subr.bf16.mxu0 %v5607
    %5940 = vmatpush1.bf16.msra.mxu0 %v5606
    %5941 = vmatprep.subr.bf16.mxu0 %v5611
    %5942 = vmatpush1.bf16.msra.mxu0 %v5610
    %5943 = vmatprep.mubr.bf16.mxu0 %v5285
    %5944 = vmatmul.mubr.bf16.gmra.mrb[0].mxu0 %v5284
    %v5945 = vpop.f32.mrb[0].mxu0
    %v5946 = vadd.f32 %v5905, %v5945
    %v5947 = vpop.f32.mrb[0].mxu0
    %v5948 = vadd.f32 %v5907, %v5947
    %v5949 = vpop.f32.mrb[0].mxu0
    %v5950 = vpop.f32.mrb[0].mxu0
    %5951 = vdwg.mxu0
    %5952 = vmatprep.subr.bf16.mxu0 %v5615
    %5953 = vmatpush1.bf16.msra.mxu0 %v5614
    %5954 = vmatprep.subr.bf16.mxu0 %v5619
    %5955 = vmatpush1.bf16.msra.mxu0 %v5618
    %5956 = vmatprep.subr.bf16.mxu0 %v5623
    %5957 = vmatpush1.bf16.msra.mxu0 %v5622
    %5958 = vmatprep.subr.bf16.mxu0 %v5627
    %5959 = vmatpush1.bf16.msra.mxu0 %v5626
    %5960 = vmatprep.subr.bf16.mxu0 %v5631
    %5961 = vmatpush1.bf16.msra.mxu0 %v5630
    %5962 = vmatprep.subr.bf16.mxu0 %v5635
    %5963 = vmatpush1.bf16.msra.mxu0 %v5634
    %5964 = vmatprep.subr.bf16.mxu0 %v5639
    %5965 = vmatpush1.bf16.msra.mxu0 %v5638
    %5966 = vmatprep.subr.bf16.mxu0 %v5643
    %5967 = vmatpush1.bf16.msra.mxu0 %v5642
    %5968 = vmatprep.subr.bf16.mxu0 %v5647
    %5969 = vmatpush1.bf16.msra.mxu0 %v5646
    %5970 = vmatprep.subr.bf16.mxu0 %v5651
    %5971 = vmatpush1.bf16.msra.mxu0 %v5650
    %5972 = vmatprep.subr.bf16.mxu0 %v5655
    %5973 = vmatpush1.bf16.msra.mxu0 %v5654
    %5974 = vmatprep.subr.bf16.mxu0 %v5659
    %5975 = vmatpush1.bf16.msra.mxu0 %v5658
    %5976 = vmatprep.subr.bf16.mxu0 %v5663
    %5977 = vmatpush1.bf16.msra.mxu0 %v5662
    %5978 = vmatprep.subr.bf16.mxu0 %v5667
    %5979 = vmatpush1.bf16.msra.mxu0 %v5666
    %5980 = vmatprep.subr.bf16.mxu0 %v5671
    %5981 = vmatpush1.bf16.msra.mxu0 %v5670
    %5982 = vmatprep.subr.bf16.mxu0 %v5675
    %5983 = vmatpush1.bf16.msra.mxu0 %v5674
    %5984 = vmatprep.mubr.bf16.mxu0 %v5287
    %5985 = vmatmul.mubr.bf16.gmra.mrb[0].mxu0 %v5286
    %v5986 = vpop.f32.mrb[0].mxu0
    %v5987 = vadd.f32 %v5946, %v5986
    %v5988 = vpop.f32.mrb[0].mxu0
    %v5989 = vadd.f32 %v5948, %v5988
    %v5990 = vpop.f32.mrb[0].mxu0
    %v5991 = vpop.f32.mrb[0].mxu0
    %5992 = vdwg.mxu0
    %5993 = vmatprep.subr.bf16.mxu0 %v5679
    %5994 = vmatpush1.bf16.msra.mxu0 %v5678
    %5995 = vmatprep.subr.bf16.mxu0 %v5683
    %5996 = vmatpush1.bf16.msra.mxu0 %v5682
    %5997 = vmatprep.subr.bf16.mxu0 %v5687
    %5998 = vmatpush1.bf16.msra.mxu0 %v5686
    %5999 = vmatprep.subr.bf16.mxu0 %v5691
    %6000 = vmatpush1.bf16.msra.mxu0 %v5690
    %6001 = vmatprep.subr.bf16.mxu0 %v5695
    %6002 = vmatpush1.bf16.msra.mxu0 %v5694
    %6003 = vmatprep.subr.bf16.mxu0 %v5699
    %6004 = vmatpush1.bf16.msra.mxu0 %v5698
    %6005 = vmatprep.subr.bf16.mxu0 %v5703
    %6006 = vmatpush1.bf16.msra.mxu0 %v5702
    %6007 = vmatprep.subr.bf16.mxu0 %v5707
    %6008 = vmatpush1.bf16.msra.mxu0 %v5706
    %6009 = vmatprep.subr.bf16.mxu0 %v5711
    %6010 = vmatpush1.bf16.msra.mxu0 %v5710
    %6011 = vmatprep.subr.bf16.mxu0 %v5715
    %6012 = vmatpush1.bf16.msra.mxu0 %v5714
    %6013 = vmatprep.subr.bf16.mxu0 %v5719
    %6014 = vmatpush1.bf16.msra.mxu0 %v5718
    %6015 = vmatprep.subr.bf16.mxu0 %v5723
    %6016 = vmatpush1.bf16.msra.mxu0 %v5722
    %6017 = vmatprep.subr.bf16.mxu0 %v5727
    %6018 = vmatpush1.bf16.msra.mxu0 %v5726
    %6019 = vmatprep.subr.bf16.mxu0 %v5731
    %6020 = vmatpush1.bf16.msra.mxu0 %v5730
    %6021 = vmatprep.subr.bf16.mxu0 %v5735
    %6022 = vmatpush1.bf16.msra.mxu0 %v5734
    %6023 = vmatprep.subr.bf16.mxu0 %v5739
    %6024 = vmatpush1.bf16.msra.mxu0 %v5738
    %6025 = vmatprep.mubr.bf16.mxu0 %v5289
    %6026 = vmatmul.mubr.bf16.gmra.mrb[0].mxu0 %v5288
    %v6027 = vpop.f32.mrb[0].mxu0
    %v6028 = vadd.f32 %v5987, %v6027
    %v6029 = vpop.f32.mrb[0].mxu0
    %v6030 = vadd.f32 %v5989, %v6029
    %v6031 = vpop.f32.mrb[0].mxu0
    %v6032 = vpop.f32.mrb[0].mxu0
    %6033 = vdwg.mxu0
    %6034 = vmatprep.subr.bf16.mxu0 %v5743
    %6035 = vmatpush1.bf16.msra.mxu0 %v5742
    %6036 = vmatprep.subr.bf16.mxu0 %v5747
    %6037 = vmatpush1.bf16.msra.mxu0 %v5746
    %6038 = vmatprep.subr.bf16.mxu0 %v5751
    %6039 = vmatpush1.bf16.msra.mxu0 %v5750
    %6040 = vmatprep.subr.bf16.mxu0 %v5755
    %6041 = vmatpush1.bf16.msra.mxu0 %v5754
    %6042 = vmatprep.subr.bf16.mxu0 %v5759
    %6043 = vmatpush1.bf16.msra.mxu0 %v5758
    %6044 = vmatprep.subr.bf16.mxu0 %v5763
    %6045 = vmatpush1.bf16.msra.mxu0 %v5762
    %6046 = vmatprep.subr.bf16.mxu0 %v5767
    %6047 = vmatpush1.bf16.msra.mxu0 %v5766
    %6048 = vmatprep.subr.bf16.mxu0 %v5771
    %6049 = vmatpush1.bf16.msra.mxu0 %v5770
    %6050 = vmatprep.subr.bf16.mxu0 %v5775
    %6051 = vmatpush1.bf16.msra.mxu0 %v5774
    %6052 = vmatprep.subr.bf16.mxu0 %v5779
    %6053 = vmatpush1.bf16.msra.mxu0 %v5778
    %6054 = vmatprep.subr.bf16.mxu0 %v5783
    %6055 = vmatpush1.bf16.msra.mxu0 %v5782
    %6056 = vmatprep.subr.bf16.mxu0 %v5787
    %6057 = vmatpush1.bf16.msra.mxu0 %v5786
    %6058 = vmatprep.subr.bf16.mxu0 %v5791
    %6059 = vmatpush1.bf16.msra.mxu0 %v5790
    %6060 = vmatprep.subr.bf16.mxu0 %v5795
    %6061 = vmatpush1.bf16.msra.mxu0 %v5794
    %6062 = vmatprep.subr.bf16.mxu0 %v5799
    %6063 = vmatpush1.bf16.msra.mxu0 %v5798
    %6064 = vmatprep.subr.bf16.mxu0 %v5803
    %6065 = vmatpush1.bf16.msra.mxu0 %v5802
    %6066 = vmatprep.mubr.bf16.mxu0 %v5291
    %6067 = vmatmul.mubr.bf16.gmra.mrb[0].mxu0 %v5290
    %v6068 = vpop.f32.mrb[0].mxu0
    %v6069 = vadd.f32 %v6028, %v6068
    %v6070 = vpop.f32.mrb[0].mxu0
    %v6071 = vadd.f32 %v6030, %v6070
    %v6072 = vpop.f32.mrb[0].mxu0
    %v6073 = vpop.f32.mrb[0].mxu0
    %6074 = vdwg.mxu0
    %6075 = vmatprep.subr.bf16.mxu0 %v5807
    %6076 = vmatpush1.bf16.msra.mxu0 %v5806
    %6077 = vmatprep.subr.bf16.mxu0 %v5811
    %6078 = vmatpush1.bf16.msra.mxu0 %v5810
    %6079 = vmatprep.subr.bf16.mxu0 %v5815
    %6080 = vmatpush1.bf16.msra.mxu0 %v5814
    %6081 = vmatprep.subr.bf16.mxu0 %v5819
    %6082 = vmatpush1.bf16.msra.mxu0 %v5818
    %6083 = vmatprep.subr.bf16.mxu0 %v5823
    %6084 = vmatpush1.bf16.msra.mxu0 %v5822
    %6085 = vmatprep.subr.bf16.mxu0 %v5827
    %6086 = vmatpush1.bf16.msra.mxu0 %v5826
    %6087 = vmatprep.subr.bf16.mxu0 %v5831
    %6088 = vmatpush1.bf16.msra.mxu0 %v5830
    %6089 = vmatprep.subr.bf16.mxu0 %v5835
    %6090 = vmatpush1.bf16.msra.mxu0 %v5834
    %6091 = vmatprep.subr.bf16.mxu0 %v5839
    %6092 = vmatpush1.bf16.msra.mxu0 %v5838
    %6093 = vmatprep.subr.bf16.mxu0 %v5843
    %6094 = vmatpush1.bf16.msra.mxu0 %v5842
    %6095 = vmatprep.subr.bf16.mxu0 %v5847
    %6096 = vmatpush1.bf16.msra.mxu0 %v5846
    %6097 = vmatprep.subr.bf16.mxu0 %v5851
    %6098 = vmatpush1.bf16.msra.mxu0 %v5850
    %6099 = vmatprep.subr.bf16.mxu0 %v5855
    %6100 = vmatpush1.bf16.msra.mxu0 %v5854
    %6101 = vmatprep.subr.bf16.mxu0 %v5859
    %6102 = vmatpush1.bf16.msra.mxu0 %v5858
    %6103 = vmatprep.subr.bf16.mxu0 %v5863
    %6104 = vmatpush1.bf16.msra.mxu0 %v5862
    %6105 = vmatprep.subr.bf16.mxu0 %v5867
    %6106 = vmatpush1.bf16.msra.mxu0 %v5866
    %6107 = vmatprep.mubr.bf16.mxu0 %v5293
    %6108 = vmatmul.mubr.bf16.gmra.mrb[0].mxu0 %v5292
    %v6109 = vpop.f32.mrb[0].mxu0
    %v6110 = vadd.f32 %v6069, %v6109
    %v6111 = vpop.f32.mrb[0].mxu0
    %v6112 = vadd.f32 %v6071, %v6111
    %v6113 = vpop.f32.mrb[0].mxu0
    %v6114 = vpop.f32.mrb[0].mxu0
    %6115 = vdwg.mxu0
    %6116 = vmatprep.subr.bf16.mxu0 %v5489
    %6117 = vmatpush1.bf16.msra.mxu0 %v5488
    %6118 = vmatprep.subr.bf16.mxu0 %v5493
    %6119 = vmatpush1.bf16.msra.mxu0 %v5492
    %6120 = vmatprep.subr.bf16.mxu0 %v5497
    %6121 = vmatpush1.bf16.msra.mxu0 %v5496
    %6122 = vmatprep.subr.bf16.mxu0 %v5501
    %6123 = vmatpush1.bf16.msra.mxu0 %v5500
    %6124 = vmatprep.subr.bf16.mxu0 %v5505
    %6125 = vmatpush1.bf16.msra.mxu0 %v5504
    %6126 = vmatprep.subr.bf16.mxu0 %v5509
    %6127 = vmatpush1.bf16.msra.mxu0 %v5508
    %6128 = vmatprep.subr.bf16.mxu0 %v5513
    %6129 = vmatpush1.bf16.msra.mxu0 %v5512
    %6130 = vmatprep.subr.bf16.mxu0 %v5517
    %6131 = vmatpush1.bf16.msra.mxu0 %v5516
    %6132 = vmatprep.subr.bf16.mxu0 %v5521
    %6133 = vmatpush1.bf16.msra.mxu0 %v5520
    %6134 = vmatprep.subr.bf16.mxu0 %v5525
    %6135 = vmatpush1.bf16.msra.mxu0 %v5524
    %6136 = vmatprep.subr.bf16.mxu0 %v5529
    %6137 = vmatpush1.bf16.msra.mxu0 %v5528
    %6138 = vmatprep.subr.bf16.mxu0 %v5533
    %6139 = vmatpush1.bf16.msra.mxu0 %v5532
    %6140 = vmatprep.subr.bf16.mxu0 %v5537
    %6141 = vmatpush1.bf16.msra.mxu0 %v5536
    %6142 = vmatprep.subr.bf16.mxu0 %v5541
    %6143 = vmatpush1.bf16.msra.mxu0 %v5540
    %6144 = vmatprep.subr.bf16.mxu0 %v5545
    %6145 = vmatpush1.bf16.msra.mxu0 %v5544
    %6146 = vmatprep.subr.bf16.mxu0 %v5549
    %6147 = vmatpush1.bf16.msra.mxu0 %v5548
    %6148 = vmatprep.mubr.bf16.mxu0 %v5283
    %6149 = vmatmul.mubr.bf16.gmra.mrb[0].mxu0 %v5282
    %v6150 = vpop.f32.mrb[0].mxu0
    %v6151 = vadd.f32 0.0, %v6150
    %v6152 = vpop.f32.mrb[0].mxu0
    %v6153 = vadd.f32 0.0, %v6152
    %v6154 = vpop.f32.mrb[0].mxu0
    %v6155 = vpop.f32.mrb[0].mxu0
    %6156 = vdwg.mxu0
    %6157 = vmatprep.subr.bf16.mxu0 %v5553
    %6158 = vmatpush1.bf16.msra.mxu0 %v5552
    %6159 = vmatprep.subr.bf16.mxu0 %v5557
    %6160 = vmatpush1.bf16.msra.mxu0 %v5556
    %6161 = vmatprep.subr.bf16.mxu0 %v5561
    %6162 = vmatpush1.bf16.msra.mxu0 %v5560
    %6163 = vmatprep.subr.bf16.mxu0 %v5565
    %6164 = vmatpush1.bf16.msra.mxu0 %v5564
    %6165 = vmatprep.subr.bf16.mxu0 %v5569
    %6166 = vmatpush1.bf16.msra.mxu0 %v5568
    %6167 = vmatprep.subr.bf16.mxu0 %v5573
    %6168 = vmatpush1.bf16.msra.mxu0 %v5572
    %6169 = vmatprep.subr.bf16.mxu0 %v5577
    %6170 = vmatpush1.bf16.msra.mxu0 %v5576
    %6171 = vmatprep.subr.bf16.mxu0 %v5581
    %6172 = vmatpush1.bf16.msra.mxu0 %v5580
    %6173 = vmatprep.subr.bf16.mxu0 %v5585
    %6174 = vmatpush1.bf16.msra.mxu0 %v5584
    %6175 = vmatprep.subr.bf16.mxu0 %v5589
    %6176 = vmatpush1.bf16.msra.mxu0 %v5588
    %6177 = vmatprep.subr.bf16.mxu0 %v5593
    %6178 = vmatpush1.bf16.msra.mxu0 %v5592
    %6179 = vmatprep.subr.bf16.mxu0 %v5597
    %6180 = vmatpush1.bf16.msra.mxu0 %v5596
    %6181 = vmatprep.subr.bf16.mxu0 %v5601
    %6182 = vmatpush1.bf16.msra.mxu0 %v5600
    %6183 = vmatprep.subr.bf16.mxu0 %v5605
    %6184 = vmatpush1.bf16.msra.mxu0 %v5604
    %6185 = vmatprep.subr.bf16.mxu0 %v5609
    %6186 = vmatpush1.bf16.msra.mxu0 %v5608
    %6187 = vmatprep.subr.bf16.mxu0 %v5613
    %6188 = vmatpush1.bf16.msra.mxu0 %v5612
    %6189 = vmatprep.mubr.bf16.mxu0 %v5285
    %6190 = vmatmul.mubr.bf16.gmra.mrb[0].mxu0 %v5284
    %v6191 = vpop.f32.mrb[0].mxu0
    %v6192 = vadd.f32 %v6151, %v6191
    %v6193 = vpop.f32.mrb[0].mxu0
    %v6194 = vadd.f32 %v6153, %v6193
    %v6195 = vpop.f32.mrb[0].mxu0
    %v6196 = vpop.f32.mrb[0].mxu0
    %6197 = vdwg.mxu0
    %6198 = vmatprep.subr.bf16.mxu0 %v5617
    %6199 = vmatpush1.bf16.msra.mxu0 %v5616
    %6200 = vmatprep.subr.bf16.mxu0 %v5621
    %6201 = vmatpush1.bf16.msra.mxu0 %v5620
    %6202 = vmatprep.subr.bf16.mxu0 %v5625
    %6203 = vmatpush1.bf16.msra.mxu0 %v5624
    %6204 = vmatprep.subr.bf16.mxu0 %v5629
    %6205 = vmatpush1.bf16.msra.mxu0 %v5628
    %6206 = vmatprep.subr.bf16.mxu0 %v5633
    %6207 = vmatpush1.bf16.msra.mxu0 %v5632
    %6208 = vmatprep.subr.bf16.mxu0 %v5637
    %6209 = vmatpush1.bf16.msra.mxu0 %v5636
    %6210 = vmatprep.subr.bf16.mxu0 %v5641
    %6211 = vmatpush1.bf16.msra.mxu0 %v5640
    %6212 = vmatprep.subr.bf16.mxu0 %v5645
    %6213 = vmatpush1.bf16.msra.mxu0 %v5644
    %6214 = vmatprep.subr.bf16.mxu0 %v5649
    %6215 = vmatpush1.bf16.msra.mxu0 %v5648
    %6216 = vmatprep.subr.bf16.mxu0 %v5653
    %6217 = vmatpush1.bf16.msra.mxu0 %v5652
    %6218 = vmatprep.subr.bf16.mxu0 %v5657
    %6219 = vmatpush1.bf16.msra.mxu0 %v5656
    %6220 = vmatprep.subr.bf16.mxu0 %v5661
    %6221 = vmatpush1.bf16.msra.mxu0 %v5660
    %6222 = vmatprep.subr.bf16.mxu0 %v5665
    %6223 = vmatpush1.bf16.msra.mxu0 %v5664
    %6224 = vmatprep.subr.bf16.mxu0 %v5669
    %6225 = vmatpush1.bf16.msra.mxu0 %v5668
    %6226 = vmatprep.subr.bf16.mxu0 %v5673
    %6227 = vmatpush1.bf16.msra.mxu0 %v5672
    %6228 = vmatprep.subr.bf16.mxu0 %v5677
    %6229 = vmatpush1.bf16.msra.mxu0 %v5676
    %6230 = vmatprep.mubr.bf16.mxu0 %v5287
    %6231 = vmatmul.mubr.bf16.gmra.mrb[0].mxu0 %v5286
    %v6232 = vpop.f32.mrb[0].mxu0
    %v6233 = vadd.f32 %v6192, %v6232
    %v6234 = vpop.f32.mrb[0].mxu0
    %v6235 = vadd.f32 %v6194, %v6234
    %v6236 = vpop.f32.mrb[0].mxu0
    %v6237 = vpop.f32.mrb[0].mxu0
    %6238 = vdwg.mxu0
    %6239 = vmatprep.subr.bf16.mxu0 %v5681
    %6240 = vmatpush1.bf16.msra.mxu0 %v5680
    %6241 = vmatprep.subr.bf16.mxu0 %v5685
    %6242 = vmatpush1.bf16.msra.mxu0 %v5684
    %6243 = vmatprep.subr.bf16.mxu0 %v5689
    %6244 = vmatpush1.bf16.msra.mxu0 %v5688
    %6245 = vmatprep.subr.bf16.mxu0 %v5693
    %6246 = vmatpush1.bf16.msra.mxu0 %v5692
    %6247 = vmatprep.subr.bf16.mxu0 %v5697
    %6248 = vmatpush1.bf16.msra.mxu0 %v5696
    %6249 = vmatprep.subr.bf16.mxu0 %v5701
    %6250 = vmatpush1.bf16.msra.mxu0 %v5700
    %6251 = vmatprep.subr.bf16.mxu0 %v5705
    %6252 = vmatpush1.bf16.msra.mxu0 %v5704
    %6253 = vmatprep.subr.bf16.mxu0 %v5709
    %6254 = vmatpush1.bf16.msra.mxu0 %v5708
    %6255 = vmatprep.subr.bf16.mxu0 %v5713
    %6256 = vmatpush1.bf16.msra.mxu0 %v5712
    %6257 = vmatprep.subr.bf16.mxu0 %v5717
    %6258 = vmatpush1.bf16.msra.mxu0 %v5716
    %6259 = vmatprep.subr.bf16.mxu0 %v5721
    %6260 = vmatpush1.bf16.msra.mxu0 %v5720
    %6261 = vmatprep.subr.bf16.mxu0 %v5725
    %6262 = vmatpush1.bf16.msra.mxu0 %v5724
    %6263 = vmatprep.subr.bf16.mxu0 %v5729
    %6264 = vmatpush1.bf16.msra.mxu0 %v5728
    %6265 = vmatprep.subr.bf16.mxu0 %v5733
    %6266 = vmatpush1.bf16.msra.mxu0 %v5732
    %6267 = vmatprep.subr.bf16.mxu0 %v5737
    %6268 = vmatpush1.bf16.msra.mxu0 %v5736
    %6269 = vmatprep.subr.bf16.mxu0 %v5741
    %6270 = vmatpush1.bf16.msra.mxu0 %v5740
    %6271 = vmatprep.mubr.bf16.mxu0 %v5289
    %6272 = vmatmul.mubr.bf16.gmra.mrb[0].mxu0 %v5288
    %v6273 = vpop.f32.mrb[0].mxu0
    %v6274 = vadd.f32 %v6233, %v6273
    %v6275 = vpop.f32.mrb[0].mxu0
    %v6276 = vadd.f32 %v6235, %v6275
    %v6277 = vpop.f32.mrb[0].mxu0
    %v6278 = vpop.f32.mrb[0].mxu0
    %6279 = vdwg.mxu0
    %6280 = vmatprep.subr.bf16.mxu0 %v5745
    %6281 = vmatpush1.bf16.msra.mxu0 %v5744
    %6282 = vmatprep.subr.bf16.mxu0 %v5749
    %6283 = vmatpush1.bf16.msra.mxu0 %v5748
    %6284 = vmatprep.subr.bf16.mxu0 %v5753
    %6285 = vmatpush1.bf16.msra.mxu0 %v5752
    %6286 = vmatprep.subr.bf16.mxu0 %v5757
    %6287 = vmatpush1.bf16.msra.mxu0 %v5756
    %6288 = vmatprep.subr.bf16.mxu0 %v5761
    %6289 = vmatpush1.bf16.msra.mxu0 %v5760
    %6290 = vmatprep.subr.bf16.mxu0 %v5765
    %6291 = vmatpush1.bf16.msra.mxu0 %v5764
    %6292 = vmatprep.subr.bf16.mxu0 %v5769
    %6293 = vmatpush1.bf16.msra.mxu0 %v5768
    %6294 = vmatprep.subr.bf16.mxu0 %v5773
    %6295 = vmatpush1.bf16.msra.mxu0 %v5772
    %6296 = vmatprep.subr.bf16.mxu0 %v5777
    %6297 = vmatpush1.bf16.msra.mxu0 %v5776
    %6298 = vmatprep.subr.bf16.mxu0 %v5781
    %6299 = vmatpush1.bf16.msra.mxu0 %v5780
    %6300 = vmatprep.subr.bf16.mxu0 %v5785
    %6301 = vmatpush1.bf16.msra.mxu0 %v5784
    %6302 = vmatprep.subr.bf16.mxu0 %v5789
    %6303 = vmatpush1.bf16.msra.mxu0 %v5788
    %6304 = vmatprep.subr.bf16.mxu0 %v5793
    %6305 = vmatpush1.bf16.msra.mxu0 %v5792
    %6306 = vmatprep.subr.bf16.mxu0 %v5797
    %6307 = vmatpush1.bf16.msra.mxu0 %v5796
    %6308 = vmatprep.subr.bf16.mxu0 %v5801
    %6309 = vmatpush1.bf16.msra.mxu0 %v5800
    %6310 = vmatprep.subr.bf16.mxu0 %v5805
    %6311 = vmatpush1.bf16.msra.mxu0 %v5804
    %6312 = vmatprep.mubr.bf16.mxu0 %v5291
    %6313 = vmatmul.mubr.bf16.gmra.mrb[0].mxu0 %v5290
    %v6314 = vpop.f32.mrb[0].mxu0
    %v6315 = vadd.f32 %v6274, %v6314
    %v6316 = vpop.f32.mrb[0].mxu0
    %v6317 = vadd.f32 %v6276, %v6316
    %v6318 = vpop.f32.mrb[0].mxu0
    %v6319 = vpop.f32.mrb[0].mxu0
    %6320 = vdwg.mxu0
    %6321 = vmatprep.subr.bf16.mxu0 %v5809
    %6322 = vmatpush1.bf16.msra.mxu0 %v5808
    %6323 = vmatprep.subr.bf16.mxu0 %v5813
    %6324 = vmatpush1.bf16.msra.mxu0 %v5812
    %6325 = vmatprep.subr.bf16.mxu0 %v5817
    %6326 = vmatpush1.bf16.msra.mxu0 %v5816
    %6327 = vmatprep.subr.bf16.mxu0 %v5821
    %6328 = vmatpush1.bf16.msra.mxu0 %v5820
    %6329 = vmatprep.subr.bf16.mxu0 %v5825
    %6330 = vmatpush1.bf16.msra.mxu0 %v5824
    %6331 = vmatprep.subr.bf16.mxu0 %v5829
    %6332 = vmatpush1.bf16.msra.mxu0 %v5828
    %6333 = vmatprep.subr.bf16.mxu0 %v5833
    %6334 = vmatpush1.bf16.msra.mxu0 %v5832
    %6335 = vmatprep.subr.bf16.mxu0 %v5837
    %6336 = vmatpush1.bf16.msra.mxu0 %v5836
    %6337 = vmatprep.subr.bf16.mxu0 %v5841
    %6338 = vmatpush1.bf16.msra.mxu0 %v5840
    %6339 = vmatprep.subr.bf16.mxu0 %v5845
    %6340 = vmatpush1.bf16.msra.mxu0 %v5844
    %6341 = vmatprep.subr.bf16.mxu0 %v5849
    %6342 = vmatpush1.bf16.msra.mxu0 %v5848
    %6343 = vmatprep.subr.bf16.mxu0 %v5853
    %6344 = vmatpush1.bf16.msra.mxu0 %v5852
    %6345 = vmatprep.subr.bf16.mxu0 %v5857
    %6346 = vmatpush1.bf16.msra.mxu0 %v5856
    %6347 = vmatprep.subr.bf16.mxu0 %v5861
    %6348 = vmatpush1.bf16.msra.mxu0 %v5860
    %6349 = vmatprep.subr.bf16.mxu0 %v5865
    %6350 = vmatpush1.bf16.msra.mxu0 %v5864
    %6351 = vmatprep.subr.bf16.mxu0 %v5869
    %6352 = vmatpush1.bf16.msra.mxu0 %v5868
    %6353 = vmatprep.mubr.bf16.mxu0 %v5293
    %6354 = vmatmul.mubr.bf16.gmra.mrb[0].mxu0 %v5292
    %v6355 = vpop.f32.mrb[0].mxu0
    %v6356 = vadd.f32 %v6315, %v6355
    %v6357 = vpop.f32.mrb[0].mxu0
    %v6358 = vadd.f32 %v6317, %v6357
    %v6359 = vpop.f32.mrb[0].mxu0
    %v6360 = vpop.f32.mrb[0].mxu0
    %6361 = vdwg.mxu0
    %v6362 = vld [vmem:[#allocation10] sm:$0xf]
    %v6364 = vlaneseq
    %v6365 = vshrl.u32 %v6364, 7
    %v6366 = vsub.s32 0, %v6365
    %v6367 = vrot.slane %v6362, %v6366
    %v6368 = vlaneseq
    %v6369 = vshrl.u32 %v6368, 7
    %v6370 = vsub.s32 1, %v6369
    %v6371 = vrot.slane %v6362, %v6370
    %v6372 = vlaneseq
    %v6373 = vshrl.u32 %v6372, 7
    %v6374 = vsub.s32 2, %v6373
    %v6375 = vrot.slane %v6362, %v6374
    %v6376 = vlaneseq
    %v6377 = vshrl.u32 %v6376, 7
    %v6378 = vsub.s32 3, %v6377
    %v6379 = vrot.slane %v6362, %v6378
    %v6384 = vmul.f32 %v6110, %v6367
    %v6385 = vmul.f32 %v6112, %v6371
    %v6386 = vmul.f32 %v6356, %v6375
    %v6387 = vmul.f32 %v6358, %v6379
    %v6388 = vld [vmem:[#allocation11] sm:$0xf]
    %v6390 = vlaneseq
    %v6391 = vshrl.u32 %v6390, 7
    %v6392 = vsub.s32 0, %v6391
    %v6393 = vrot.slane %v6388, %v6392
    %v6394 = vlaneseq
    %v6395 = vshrl.u32 %v6394, 7
    %v6396 = vsub.s32 1, %v6395
    %v6397 = vrot.slane %v6388, %v6396
    %v6398 = vlaneseq
    %v6399 = vshrl.u32 %v6398, 7
    %v6400 = vsub.s32 2, %v6399
    %v6401 = vrot.slane %v6388, %v6400
    %v6402 = vlaneseq
    %v6403 = vshrl.u32 %v6402, 7
    %v6404 = vsub.s32 3, %v6403
    %v6405 = vrot.slane %v6388, %v6404
    %v6410 = vadd.f32 %v6384, %v6393
    %v6411 = vadd.f32 %v6385, %v6397
    %v6412 = vadd.f32 %v6386, %v6401
    %v6413 = vadd.f32 %v6387, %v6405
    %v6414 = vmax.f32 %v6410, 0.0
    %v6415 = vmax.f32 %v6411, 0.0
    %v6416 = vmax.f32 %v6412, 0.0
    %v6417 = vmax.f32 %v6413, 0.0
    %v6418 = vpack.c.bf16 %v6414, %v6414
    %v6419 = vpack.c.bf16 %v6415, %v6415
    %v6420 = vpack.c.bf16 %v6416, %v6416
    %v6421 = vpack.c.bf16 %v6417, %v6417
    %v6422 = vld [vmem:[#allocation13] sm:$0xf]
    %v6423 = vld [vmem:[#allocation13 + $0x4] sm:$0xf]
    %v6424 = vld [vmem:[#allocation13 + $0x8] sm:$0xf]
    %v6425 = vld [vmem:[#allocation13 + $0xc] sm:$0xf]
    %v6426 = vld [vmem:[#allocation13 + $0x10] sm:$0xf]
    %v6427 = vld [vmem:[#allocation13 + $0x14] sm:$0xf]
    %v6428 = vld [vmem:[#allocation13 + $0x18] sm:$0xf]
    %v6429 = vld [vmem:[#allocation13 + $0x1c] sm:$0xf]
    %v6430 = vld [vmem:[#allocation13 + $0x20] sm:$0xf]
    %v6431 = vld [vmem:[#allocation13 + $0x24] sm:$0xf]
    %v6432 = vld [vmem:[#allocation13 + $0x28] sm:$0xf]
    %v6433 = vld [vmem:[#allocation13 + $0x2c] sm:$0xf]
    %v6434 = vld [vmem:[#allocation13 + $0x30] sm:$0xf]
    %v6435 = vld [vmem:[#allocation13 + $0x34] sm:$0xf]
    %v6436 = vld [vmem:[#allocation13 + $0x38] sm:$0xf]
    %v6437 = vld [vmem:[#allocation13 + $0x3c] sm:$0xf]
    %v6438 = vld [vmem:[#allocation13 + $0x40] sm:$0xf]
    %v6439 = vld [vmem:[#allocation13 + $0x44] sm:$0xf]
    %v6440 = vld [vmem:[#allocation13 + $0x48] sm:$0xf]
    %v6441 = vld [vmem:[#allocation13 + $0x4c] sm:$0xf]
    %v6442 = vld [vmem:[#allocation13 + $0x50] sm:$0xf]
    %v6443 = vld [vmem:[#allocation13 + $0x54] sm:$0xf]
    %v6444 = vld [vmem:[#allocation13 + $0x58] sm:$0xf]
    %v6445 = vld [vmem:[#allocation13 + $0x5c] sm:$0xf]
    %v6446 = vld [vmem:[#allocation13 + $0x60] sm:$0xf]
    %v6447 = vld [vmem:[#allocation13 + $0x64] sm:$0xf]
    %v6448 = vld [vmem:[#allocation13 + $0x68] sm:$0xf]
    %v6449 = vld [vmem:[#allocation13 + $0x6c] sm:$0xf]
    %v6450 = vld [vmem:[#allocation13 + $0x70] sm:$0xf]
    %v6451 = vld [vmem:[#allocation13 + $0x74] sm:$0xf]
    %v6452 = vld [vmem:[#allocation13 + $0x78] sm:$0xf]
    %v6453 = vld [vmem:[#allocation13 + $0x7c] sm:$0xf]
    %v6454 = vld [vmem:[#allocation13 + $0x80] sm:$0xf]
    %v6455 = vld [vmem:[#allocation13 + $0x84] sm:$0xf]
    %v6456 = vld [vmem:[#allocation13 + $0x88] sm:$0xf]
    %v6457 = vld [vmem:[#allocation13 + $0x8c] sm:$0xf]
    %v6458 = vld [vmem:[#allocation13 + $0x90] sm:$0xf]
    %v6459 = vld [vmem:[#allocation13 + $0x94] sm:$0xf]
    %v6460 = vld [vmem:[#allocation13 + $0x98] sm:$0xf]
    %v6461 = vld [vmem:[#allocation13 + $0x9c] sm:$0xf]
    %v6462 = vld [vmem:[#allocation13 + $0xa0] sm:$0xf]
    %v6463 = vld [vmem:[#allocation13 + $0xa4] sm:$0xf]
    %v6464 = vld [vmem:[#allocation13 + $0xa8] sm:$0xf]
    %v6465 = vld [vmem:[#allocation13 + $0xac] sm:$0xf]
    %v6466 = vld [vmem:[#allocation13 + $0xb0] sm:$0xf]
    %v6467 = vld [vmem:[#allocation13 + $0xb4] sm:$0xf]
    %v6468 = vld [vmem:[#allocation13 + $0xb8] sm:$0xf]
    %v6469 = vld [vmem:[#allocation13 + $0xbc] sm:$0xf]
    %v6470 = vld [vmem:[#allocation13 + $0xc0] sm:$0xf]
    %v6471 = vld [vmem:[#allocation13 + $0xc4] sm:$0xf]
    %v6472 = vld [vmem:[#allocation13 + $0xc8] sm:$0xf]
    %v6473 = vld [vmem:[#allocation13 + $0xcc] sm:$0xf]
    %v6474 = vld [vmem:[#allocation13 + $0xd0] sm:$0xf]
    %v6475 = vld [vmem:[#allocation13 + $0xd4] sm:$0xf]
    %v6476 = vld [vmem:[#allocation13 + $0xd8] sm:$0xf]
    %v6477 = vld [vmem:[#allocation13 + $0xdc] sm:$0xf]
    %v6478 = vld [vmem:[#allocation13 + $0xe0] sm:$0xf]
    %v6479 = vld [vmem:[#allocation13 + $0xe4] sm:$0xf]
    %v6480 = vld [vmem:[#allocation13 + $0xe8] sm:$0xf]
    %v6481 = vld [vmem:[#allocation13 + $0xec] sm:$0xf]
    %v6482 = vld [vmem:[#allocation13 + $0xf0] sm:$0xf]
    %v6483 = vld [vmem:[#allocation13 + $0xf4] sm:$0xf]
    %v6484 = vld [vmem:[#allocation13 + $0xf8] sm:$0xf]
    %v6485 = vld [vmem:[#allocation13 + $0xfc] sm:$0xf]
    %v6486 = vld [vmem:[#allocation14] sm:$0x1]
    %v6488 = vlaneseq
    %v6489 = vshrl.u32 %v6488, 7
    %v6490 = vsub.s32 0, %v6489
    %v6491 = vrot.slane %v6486, %v6490
    %v6557 = vunpack.c.l.b16 %v6422
    %v6558 = vunpack.c.l.b16 %v6423
    %v6559 = vunpack.c.l.b16 %v6424
    %v6560 = vunpack.c.l.b16 %v6425
    %v6561 = vunpack.c.l.b16 %v6426
    %v6562 = vunpack.c.l.b16 %v6427
    %v6563 = vunpack.c.l.b16 %v6428
    %v6564 = vunpack.c.l.b16 %v6429
    %v6565 = vunpack.c.l.b16 %v6430
    %v6566 = vunpack.c.l.b16 %v6431
    %v6567 = vunpack.c.l.b16 %v6432
    %v6568 = vunpack.c.l.b16 %v6433
    %v6569 = vunpack.c.l.b16 %v6434
    %v6570 = vunpack.c.l.b16 %v6435
    %v6571 = vunpack.c.l.b16 %v6436
    %v6572 = vunpack.c.l.b16 %v6437
    %v6573 = vunpack.c.l.b16 %v6438
    %v6574 = vunpack.c.l.b16 %v6439
    %v6575 = vunpack.c.l.b16 %v6440
    %v6576 = vunpack.c.l.b16 %v6441
    %v6577 = vunpack.c.l.b16 %v6442
    %v6578 = vunpack.c.l.b16 %v6443
    %v6579 = vunpack.c.l.b16 %v6444
    %v6580 = vunpack.c.l.b16 %v6445
    %v6581 = vunpack.c.l.b16 %v6446
    %v6582 = vunpack.c.l.b16 %v6447
    %v6583 = vunpack.c.l.b16 %v6448
    %v6584 = vunpack.c.l.b16 %v6449
    %v6585 = vunpack.c.l.b16 %v6450
    %v6586 = vunpack.c.l.b16 %v6451
    %v6587 = vunpack.c.l.b16 %v6452
    %v6588 = vunpack.c.l.b16 %v6453
    %v6589 = vunpack.c.l.b16 %v6454
    %v6590 = vunpack.c.l.b16 %v6455
    %v6591 = vunpack.c.l.b16 %v6456
    %v6592 = vunpack.c.l.b16 %v6457
    %v6593 = vunpack.c.l.b16 %v6458
    %v6594 = vunpack.c.l.b16 %v6459
    %v6595 = vunpack.c.l.b16 %v6460
    %v6596 = vunpack.c.l.b16 %v6461
    %v6597 = vunpack.c.l.b16 %v6462
    %v6598 = vunpack.c.l.b16 %v6463
    %v6599 = vunpack.c.l.b16 %v6464
    %v6600 = vunpack.c.l.b16 %v6465
    %v6601 = vunpack.c.l.b16 %v6466
    %v6602 = vunpack.c.l.b16 %v6467
    %v6603 = vunpack.c.l.b16 %v6468
    %v6604 = vunpack.c.l.b16 %v6469
    %v6605 = vunpack.c.l.b16 %v6470
    %v6606 = vunpack.c.l.b16 %v6471
    %v6607 = vunpack.c.l.b16 %v6472
    %v6608 = vunpack.c.l.b16 %v6473
    %v6609 = vunpack.c.l.b16 %v6474
    %v6610 = vunpack.c.l.b16 %v6475
    %v6611 = vunpack.c.l.b16 %v6476
    %v6612 = vunpack.c.l.b16 %v6477
    %v6613 = vunpack.c.l.b16 %v6478
    %v6614 = vunpack.c.l.b16 %v6479
    %v6615 = vunpack.c.l.b16 %v6480
    %v6616 = vunpack.c.l.b16 %v6481
    %v6617 = vunpack.c.l.b16 %v6482
    %v6618 = vunpack.c.l.b16 %v6483
    %v6619 = vunpack.c.l.b16 %v6484
    %v6620 = vunpack.c.l.b16 %v6485
    %v6621 = vpack.c.b16 %v6558, %v6557
    %v6622 = vpack.c.b16 %v6560, %v6559
    %v6623 = vpack.c.b16 %v6562, %v6561
    %v6624 = vpack.c.b16 %v6564, %v6563
    %v6625 = vpack.c.b16 %v6566, %v6565
    %v6626 = vpack.c.b16 %v6568, %v6567
    %v6627 = vpack.c.b16 %v6570, %v6569
    %v6628 = vpack.c.b16 %v6572, %v6571
    %v6629 = vpack.c.b16 %v6574, %v6573
    %v6630 = vpack.c.b16 %v6576, %v6575
    %v6631 = vpack.c.b16 %v6578, %v6577
    %v6632 = vpack.c.b16 %v6580, %v6579
    %v6633 = vpack.c.b16 %v6582, %v6581
    %v6634 = vpack.c.b16 %v6584, %v6583
    %v6635 = vpack.c.b16 %v6586, %v6585
    %v6636 = vpack.c.b16 %v6588, %v6587
    %v6637 = vpack.c.b16 %v6590, %v6589
    %v6638 = vpack.c.b16 %v6592, %v6591
    %v6639 = vpack.c.b16 %v6594, %v6593
    %v6640 = vpack.c.b16 %v6596, %v6595
    %v6641 = vpack.c.b16 %v6598, %v6597
    %v6642 = vpack.c.b16 %v6600, %v6599
    %v6643 = vpack.c.b16 %v6602, %v6601
    %v6644 = vpack.c.b16 %v6604, %v6603
    %v6645 = vpack.c.b16 %v6606, %v6605
    %v6646 = vpack.c.b16 %v6608, %v6607
    %v6647 = vpack.c.b16 %v6610, %v6609
    %v6648 = vpack.c.b16 %v6612, %v6611
    %v6649 = vpack.c.b16 %v6614, %v6613
    %v6650 = vpack.c.b16 %v6616, %v6615
    %v6651 = vpack.c.b16 %v6618, %v6617
    %v6652 = vpack.c.b16 %v6620, %v6619
    %6685 = vmatprep.subr.bf16.mxu0 0
    %6686 = vmatpush1.bf16.msra.mxu0 %v6621
    %6687 = vmatprep.subr.bf16.mxu0 0
    %6688 = vmatpush1.bf16.msra.mxu0 %v6622
    %6689 = vmatprep.subr.bf16.mxu0 0
    %6690 = vmatpush1.bf16.msra.mxu0 %v6623
    %6691 = vmatprep.subr.bf16.mxu0 0
    %6692 = vmatpush1.bf16.msra.mxu0 %v6624
    %6693 = vmatprep.subr.bf16.mxu0 0
    %6694 = vmatpush1.bf16.msra.mxu0 %v6625
    %6695 = vmatprep.subr.bf16.mxu0 0
    %6696 = vmatpush1.bf16.msra.mxu0 %v6626
    %6697 = vmatprep.subr.bf16.mxu0 0
    %6698 = vmatpush1.bf16.msra.mxu0 %v6627
    %6699 = vmatprep.subr.bf16.mxu0 0
    %6700 = vmatpush1.bf16.msra.mxu0 %v6628
    %6701 = vmatprep.subr.bf16.mxu0 0
    %6702 = vmatpush1.bf16.msra.mxu0 %v6629
    %6703 = vmatprep.subr.bf16.mxu0 0
    %6704 = vmatpush1.bf16.msra.mxu0 %v6630
    %6705 = vmatprep.subr.bf16.mxu0 0
    %6706 = vmatpush1.bf16.msra.mxu0 %v6631
    %6707 = vmatprep.subr.bf16.mxu0 0
    %6708 = vmatpush1.bf16.msra.mxu0 %v6632
    %6709 = vmatprep.subr.bf16.mxu0 0
    %6710 = vmatpush1.bf16.msra.mxu0 %v6633
    %6711 = vmatprep.subr.bf16.mxu0 0
    %6712 = vmatpush1.bf16.msra.mxu0 %v6634
    %6713 = vmatprep.subr.bf16.mxu0 0
    %6714 = vmatpush1.bf16.msra.mxu0 %v6635
    %6715 = vmatprep.subr.bf16.mxu0 0
    %6716 = vmatpush1.bf16.msra.mxu0 %v6636
    %6717 = vmatprep.mubr.bf16.mxu0 %v6419
    %6718 = vmatmul.mubr.bf16.gmra.mrb[0].mxu0 %v6418
    %v6719 = vpop.f32.mrb[0].mxu0
    %v6720 = vadd.f32 %v6491, %v6719
    %v6721 = vpop.f32.mrb[0].mxu0
    %v6722 = vpop.f32.mrb[0].mxu0
    %v6723 = vpop.f32.mrb[0].mxu0
    %6724 = vdwg.mxu0
    %6725 = vmatprep.subr.bf16.mxu0 0
    %6726 = vmatpush1.bf16.msra.mxu0 %v6637
    %6727 = vmatprep.subr.bf16.mxu0 0
    %6728 = vmatpush1.bf16.msra.mxu0 %v6638
    %6729 = vmatprep.subr.bf16.mxu0 0
    %6730 = vmatpush1.bf16.msra.mxu0 %v6639
    %6731 = vmatprep.subr.bf16.mxu0 0
    %6732 = vmatpush1.bf16.msra.mxu0 %v6640
    %6733 = vmatprep.subr.bf16.mxu0 0
    %6734 = vmatpush1.bf16.msra.mxu0 %v6641
    %6735 = vmatprep.subr.bf16.mxu0 0
    %6736 = vmatpush1.bf16.msra.mxu0 %v6642
    %6737 = vmatprep.subr.bf16.mxu0 0
    %6738 = vmatpush1.bf16.msra.mxu0 %v6643
    %6739 = vmatprep.subr.bf16.mxu0 0
    %6740 = vmatpush1.bf16.msra.mxu0 %v6644
    %6741 = vmatprep.subr.bf16.mxu0 0
    %6742 = vmatpush1.bf16.msra.mxu0 %v6645
    %6743 = vmatprep.subr.bf16.mxu0 0
    %6744 = vmatpush1.bf16.msra.mxu0 %v6646
    %6745 = vmatprep.subr.bf16.mxu0 0
    %6746 = vmatpush1.bf16.msra.mxu0 %v6647
    %6747 = vmatprep.subr.bf16.mxu0 0
    %6748 = vmatpush1.bf16.msra.mxu0 %v6648
    %6749 = vmatprep.subr.bf16.mxu0 0
    %6750 = vmatpush1.bf16.msra.mxu0 %v6649
    %6751 = vmatprep.subr.bf16.mxu0 0
    %6752 = vmatpush1.bf16.msra.mxu0 %v6650
    %6753 = vmatprep.subr.bf16.mxu0 0
    %6754 = vmatpush1.bf16.msra.mxu0 %v6651
    %6755 = vmatprep.subr.bf16.mxu0 0
    %6756 = vmatpush1.bf16.msra.mxu0 %v6652
    %6757 = vmatprep.mubr.bf16.mxu0 %v6421
    %6758 = vmatmul.mubr.bf16.gmra.mrb[0].mxu0 %v6420
    %v6759 = vpop.f32.mrb[0].mxu0
    %v6760 = vadd.f32 %v6720, %v6759
    %v6761 = vpop.f32.mrb[0].mxu0
    %v6762 = vpop.f32.mrb[0].mxu0
    %v6763 = vpop.f32.mrb[0].mxu0
    %6764 = vdwg.mxu0
    %v6765 = vmax.f32 %v6760, 0.0
    %v6766 = vpack.c.bf16 %v6765, %v6765
    %v6767 = vld [vmem:[%s9] sm:$0xf]
    %v6768 = vld [vmem:[%s9 + $0x4] sm:$0xf]
    %v6769 = vld [vmem:[%s9 + $0x8] sm:$0xf]
    %v6770 = vld [vmem:[%s9 + $0xc] sm:$0xf]
    %v6771 = vld [vmem:[%s9 + $0x10] sm:$0xf]
    %v6772 = vld [vmem:[%s9 + $0x14] sm:$0xf]
    %v6773 = vld [vmem:[%s9 + $0x18] sm:$0xf]
    %v6774 = vld [vmem:[%s9 + $0x1c] sm:$0xf]
    %v6775 = vld [vmem:[%s9 + $0x20] sm:$0xf]
    %v6776 = vld [vmem:[%s9 + $0x24] sm:$0xf]
    %v6777 = vld [vmem:[%s9 + $0x28] sm:$0xf]
    %v6778 = vld [vmem:[%s9 + $0x2c] sm:$0xf]
    %v6779 = vld [vmem:[%s9 + $0x30] sm:$0xf]
    %v6780 = vld [vmem:[%s9 + $0x34] sm:$0xf]
    %v6781 = vld [vmem:[%s9 + $0x38] sm:$0xf]
    %v6782 = vld [vmem:[%s9 + $0x3c] sm:$0xf]
    %v6783 = vld [vmem:[#allocation16] sm:$0x1]
    %v6785 = vlaneseq
    %v6786 = vshrl.u32 %v6785, 7
    %v6787 = vsub.s32 0, %v6786
    %v6788 = vrot.slane %v6783, %v6787
    %v6806 = vunpack.c.l.b16 %v6767
    %v6807 = vunpack.c.l.b16 %v6768
    %v6808 = vunpack.c.l.b16 %v6769
    %v6809 = vunpack.c.l.b16 %v6770
    %v6810 = vunpack.c.l.b16 %v6771
    %v6811 = vunpack.c.l.b16 %v6772
    %v6812 = vunpack.c.l.b16 %v6773
    %v6813 = vunpack.c.l.b16 %v6774
    %v6814 = vunpack.c.l.b16 %v6775
    %v6815 = vunpack.c.l.b16 %v6776
    %v6816 = vunpack.c.l.b16 %v6777
    %v6817 = vunpack.c.l.b16 %v6778
    %v6818 = vunpack.c.l.b16 %v6779
    %v6819 = vunpack.c.l.b16 %v6780
    %v6820 = vunpack.c.l.b16 %v6781
    %v6821 = vunpack.c.l.b16 %v6782
    %v6822 = vpack.c.b16 %v6807, %v6806
    %v6823 = vpack.c.b16 %v6809, %v6808
    %v6824 = vpack.c.b16 %v6811, %v6810
    %v6825 = vpack.c.b16 %v6813, %v6812
    %v6826 = vpack.c.b16 %v6815, %v6814
    %v6827 = vpack.c.b16 %v6817, %v6816
    %v6828 = vpack.c.b16 %v6819, %v6818
    %v6829 = vpack.c.b16 %v6821, %v6820
    %6838 = vmatprep.subr.bf16.mxu0 0
    %6839 = vmatpush1.bf16.msra.mxu0 %v6822
    %6840 = vmatprep.subr.bf16.mxu0 0
    %6841 = vmatpush1.bf16.msra.mxu0 %v6823
    %6842 = vmatprep.subr.bf16.mxu0 0
    %6843 = vmatpush1.bf16.msra.mxu0 %v6824
    %6844 = vmatprep.subr.bf16.mxu0 0
    %6845 = vmatpush1.bf16.msra.mxu0 %v6825
    %6846 = vmatprep.subr.bf16.mxu0 0
    %6847 = vmatpush1.bf16.msra.mxu0 %v6826
    %6848 = vmatprep.subr.bf16.mxu0 0
    %6849 = vmatpush1.bf16.msra.mxu0 %v6827
    %6850 = vmatprep.subr.bf16.mxu0 0
    %6851 = vmatpush1.bf16.msra.mxu0 %v6828
    %6852 = vmatprep.subr.bf16.mxu0 0
    %6853 = vmatpush1.bf16.msra.mxu0 %v6829
    %6854 = vmatprep.subr.bf16.mxu0 0
    %6855 = vmatpush1.bf16.msra.mxu0 0
    %6856 = vmatprep.subr.bf16.mxu0 0
    %6857 = vmatpush1.bf16.msra.mxu0 0
    %6858 = vmatprep.subr.bf16.mxu0 0
    %6859 = vmatpush1.bf16.msra.mxu0 0
    %6860 = vmatprep.subr.bf16.mxu0 0
    %6861 = vmatpush1.bf16.msra.mxu0 0
    %6862 = vmatprep.subr.bf16.mxu0 0
    %6863 = vmatpush1.bf16.msra.mxu0 0
    %6864 = vmatprep.subr.bf16.mxu0 0
    %6865 = vmatpush1.bf16.msra.mxu0 0
    %6866 = vmatprep.subr.bf16.mxu0 0
    %6867 = vmatpush1.bf16.msra.mxu0 0
    %6868 = vmatprep.subr.bf16.mxu0 0
    %6869 = vmatpush1.bf16.msra.mxu0 0
    %6870 = vmatprep.mubr.bf16.mxu0 0
    %6871 = vmatmul.mubr.bf16.gmra.mrb[0].mxu0 %v6766
    %v6872 = vpop.f32.mrb[0].mxu0
    %v6873 = vadd.f32 %v6788, %v6872
    %v6874 = vpop.f32.mrb[0].mxu0
    %v6875 = vpop.f32.mrb[0].mxu0
    %v6876 = vpop.f32.mrb[0].mxu0
    %6877 = vdwg.mxu0
    %v6878 = vmax.f32 %v6873, 0.0
    %v6879 = vpack.c.bf16 %v6878, %v6878
    %v6880 = vld [vmem:[%s11] sm:$0xf]
    %v6881 = vld [vmem:[%s11 + $0x4] sm:$0xf]
    %v6882 = vld [vmem:[%s11 + $0x8] sm:$0xf]
    %v6883 = vld [vmem:[%s11 + $0xc] sm:$0xf]
    %v6884 = vld [vmem:[#allocation17] sm:$0x1]
    %v6886 = vlaneseq
    %v6887 = vshrl.u32 %v6886, 7
    %v6888 = vsub.s32 0, %v6887
    %v6889 = vrot.slane %v6884, %v6888
    %v6895 = vunpack.c.l.b16 %v6880
    %v6896 = vunpack.c.l.b16 %v6881
    %v6897 = vunpack.c.l.b16 %v6882
    %v6898 = vunpack.c.l.b16 %v6883
    %v6899 = vpack.c.b16 %v6896, %v6895
    %v6900 = vpack.c.b16 %v6898, %v6897
    %vm6903 = vcmask 261120
    %v6905 = vsel %vm6903, %v6879, 0
    %6907 = vmatprep.subr.bf16.mxu0 0
    %6908 = vmatpush1.bf16.msra.mxu0 %v6899
    %6909 = vmatprep.subr.bf16.mxu0 0
    %6910 = vmatpush1.bf16.msra.mxu0 %v6900
    %6911 = vmatprep.subr.bf16.mxu0 0
    %6912 = vmatpush1.bf16.msra.mxu0 0
    %6913 = vmatprep.subr.bf16.mxu0 0
    %6914 = vmatpush1.bf16.msra.mxu0 0
    %6915 = vmatprep.subr.bf16.mxu0 0
    %6916 = vmatpush1.bf16.msra.mxu0 0
    %6917 = vmatprep.subr.bf16.mxu0 0
    %6918 = vmatpush1.bf16.msra.mxu0 0
    %6919 = vmatprep.subr.bf16.mxu0 0
    %6920 = vmatpush1.bf16.msra.mxu0 0
    %6921 = vmatprep.subr.bf16.mxu0 0
    %6922 = vmatpush1.bf16.msra.mxu0 0
    %6923 = vmatprep.subr.bf16.mxu0 0
    %6924 = vmatpush1.bf16.msra.mxu0 0
    %6925 = vmatprep.subr.bf16.mxu0 0
    %6926 = vmatpush1.bf16.msra.mxu0 0
    %6927 = vmatprep.subr.bf16.mxu0 0
    %6928 = vmatpush1.bf16.msra.mxu0 0
    %6929 = vmatprep.subr.bf16.mxu0 0
    %6930 = vmatpush1.bf16.msra.mxu0 0
    %6931 = vmatprep.subr.bf16.mxu0 0
    %6932 = vmatpush1.bf16.msra.mxu0 0
    %6933 = vmatprep.subr.bf16.mxu0 0
    %6934 = vmatpush1.bf16.msra.mxu0 0
    %6935 = vmatprep.subr.bf16.mxu0 0
    %6936 = vmatpush1.bf16.msra.mxu0 0
    %6937 = vmatprep.subr.bf16.mxu0 0
    %6938 = vmatpush1.bf16.msra.mxu0 0
    %6939 = vmatprep.mubr.bf16.mxu0 0
    %6940 = vmatmul.mubr.bf16.gmra.mrb[0].mxu0 %v6905
    %v6941 = vpop.f32.mrb[0].mxu0
    %v6942 = vadd.f32 %v6889, %v6941
    %v6943 = vpop.f32.mrb[0].mxu0
    %v6944 = vpop.f32.mrb[0].mxu0
    %v6945 = vpop.f32.mrb[0].mxu0
    %6946 = vdwg.mxu0
    %vm6947 = vcmask 50176
    %v6948 = vsel %vm6947, %v6942, -inf
    %6949 = vmax.xlane.f32.xlu0 %v6948
    %v6950 = vpop.xlane.xlu0 %6949
    %v6951 = vsub.f32 %v6942, %v6950
    %v6952 = vmul.f32 %v6951, 1.442695
    %v6953 = vpow.pop %v6952
    %v6954 = vsel %vm6947, %v6953, 0.0
    %6955 = vadd.xlane.f32.xlu0 %v6954
    %v6956 = vpop.xlane.xlu0 %6955
    %v6957 = vrcp.pop %v6956
    %v6958 = vmul.f32 %v6953, %v6957
    %6959 = vst.msk [vmem:[#allocation19] sm:$0x3] %vm6947, %v6958
    // Predicated region
    $region94: #{simple_dnn_forward.1} parent=1 // pred_check
      _
    $region95: #{simple_dnn_forward.1} parent=1 // pred_check_branch
      %6961 = sbr.rel (0) target = $region97
    $region96: #{simple_dnn_forward.1} parent=1 // pred_region
      %s6963 = ssub.s32 32, 32
      %6964 = vsyncadd [#allocation4], %s6963
      %s6966 = sshll.u32 [#allocation19], 4
      %s6967 = int_to_ptr.vmem [resolvable:$true] %s6966
      %6969 = dma.vmem_to_hbm [thread:$0]  %s6967, 32, %s13, [#allocation4]
    $region97: #{simple_dnn_forward.1} parent=1 // pred_fallthru
      _
    // Predicated region
    $region98: #{simple_dnn_forward.1} parent=1 // pred_check
      _
    $region99: #{simple_dnn_forward.1} parent=1 // pred_check_branch
      %6971 = sbr.rel (0) target = $region101
    $region100: #{simple_dnn_forward.1} parent=1 // pred_region
      %6972 = dma.done [#allocation4], 32
    $region101: #{simple_dnn_forward.1} parent=1 // pred_fallthru
      _
    %6973 = vsyncpa [#allocation3], 1
    %6974 = vsyncpa [#allocation6], 1
    %6975 = vsyncpa [#allocation9], 1
    %6976 = vsyncpa [#allocation12], 1
    %6977 = vsyncpa [#allocation15], 1
    %6978 = vsyncpa [#allocation18], 1
    %6979 = vsyncpa [#allocation4], 1

</llo_original>
